<compile_context>
chip_gen: v7x
topology: tpu7x:2x2x1
jax: 0.10.0
libtpu: 0.0.40
codegen_flags: <defaults>
</compile_context>

<pallas_src>
import functools

import jax
import jax.numpy as jnp
from jax.experimental import pallas as pl
from jax.experimental.pallas import tpu as pltpu

EPS = 1e-5          # nn.BatchNorm default eps
NEG_SLOPE = 0.2     # F.leaky_relu(x, 0.2)
VMEM_BUDGET = 24 * 1024 * 1024   # per-kernel working-set budget (bytes)


# ----------------------------------------------------------------------------
# Pallas kernel: (multi-phase) matmul + fused BatchNorm/LeakyReLU | sigmoid
# ----------------------------------------------------------------------------
def _fused_matmul_kernel(x_ref, w_ref, *rest, mode, n_phases, has_bias):
    if has_bias:
        b_ref, o_ref, acc_ref = rest
    else:
        o_ref, acc_ref = rest
        b_ref = None

    k = pl.program_id(1)                       # reduction (K) grid axis, last

    @pl.when(k == 0)
    def _init():
        acc_ref[...] = jnp.zeros_like(acc_ref)

    # One MXU matmul per sub-pixel phase (bf16 inputs, f32 accumulation).
    for p in range(n_phases):
        acc_ref[p] += jnp.dot(x_ref[p], w_ref[p],
                              preferred_element_type=jnp.float32)

    @pl.when(k == pl.num_programs(1) - 1)
    def _finalize():
        acc = acc_ref[...]                     # (P, M, tn) f32
        if has_bias:
            acc = acc + b_ref[...]             # (1, 1, tn) broadcast
        if mode == "bn_lrelu":
            # Training-mode BatchNorm: per-channel stats over all phases and
            # all rows (rows == N*H*W), gamma=1 / beta=0; then LeakyReLU(0.2).
            # (The conv bias is exactly cancelled by the mean subtraction, so
            # it is never added in this mode.)
            m1 = jnp.mean(jnp.mean(acc, axis=1, keepdims=True),
                          axis=0, keepdims=True)
            m2 = jnp.mean(jnp.mean(acc * acc, axis=1, keepdims=True),
                          axis=0, keepdims=True)
            var = jnp.maximum(m2 - m1 * m1, 0.0)
            y = (acc - m1) * jax.lax.rsqrt(var + EPS)
            y = jnp.where(y >= 0.0, y, NEG_SLOPE * y)
        elif mode == "sigmoid":
            y = jax.nn.sigmoid(acc)
        elif mode == "linear":
            y = acc
        else:
            raise ValueError(mode)
        o_ref[...] = y.astype(o_ref.dtype)


def _tile_candidates(dim):
    """Full dim first, then multiples of 128 dividing dim (largest -> smallest)."""
    cands = [dim]
    t = dim - (dim % 128)
    while t >= 128:
        if t != dim and dim % t == 0:
            cands.append(t)
        t -= 128
    return cands


def _choose_tiles(P, M, K, C, budget=VMEM_BUDGET):
    """Pick (tk, tn) with the fewest grid steps whose double-buffered working
    set (bf16 inputs, f32 output, f32 accumulator) fits the VMEM budget."""
    best = None
    for tk in _tile_candidates(K):
        for tn in _tile_candidates(C):
            vmem = (2 * P * M * tk * 2       # x, double-buffered bf16
                    + 2 * P * tk * tn * 2    # w, double-buffered bf16
                    + 2 * P * M * tn * 4     # out, double-buffered f32
                    + P * M * tn * 4         # accumulator scratch f32
                    + 2 * tn * 4)            # bias
            if vmem > budget:
                continue
            steps = (K // tk) * (C // tn)
            if best is None or steps < best[0]:
                best = (steps, tk, tn)
    if best is None:                          # fall back to smallest tiles
        return _tile_candidates(K)[-1], _tile_candidates(C)[-1]
    return best[1], best[2]


def fused_matmul(x, w, b, mode):
    """out[p] = post(x[p] @ w[p] (+ b)) for all phases p, in one pallas_call.

    x: (P, M, K) activations / im2col patches     -> cast to bf16 (MXU input)
    w: (P, K, C) matmul-ready weights              -> cast to bf16
    b: (C,) bias or None (dropped for bn_lrelu: cancelled by BN mean-sub)
    mode: "bn_lrelu" | "sigmoid" | "linear"
    returns (P, M, C) float32
    """
    P, M, K = x.shape
    P2, K2, C = w.shape
    assert P == P2 and K == K2

    x = x.astype(jnp.bfloat16)
    w = w.astype(jnp.bfloat16)

    tk, tn = _choose_tiles(P, M, K, C)
    grid = (C // tn, K // tk)                  # reduction axis last

    has_bias = (b is not None) and (mode != "bn_lrelu")
    in_specs = [
        pl.BlockSpec((P, M, tk), lambda j, k: (0, 0, k)),
        pl.BlockSpec((P, tk, tn), lambda j, k: (0, k, j)),
    ]
    inputs = [x, w]
    if has_bias:
        in_specs.append(pl.BlockSpec((1, 1, tn), lambda j, k: (0, 0, j)))
        inputs.append(b.reshape(1, 1, C).astype(jnp.float32))

    kernel = functools.partial(_fused_matmul_kernel, mode=mode,
                               n_phases=P, has_bias=has_bias)
    return pl.pallas_call(
        kernel,
        out_shape=jax.ShapeDtypeStruct((P, M, C), jnp.float32),
        grid=grid,
        in_specs=in_specs,
        out_specs=pl.BlockSpec((P, M, tn), lambda j, k: (0, 0, j)),
        scratch_shapes=[pltpu.VMEM((P, M, tn), jnp.float32)],
        compiler_params=pltpu.CompilerParams(
            dimension_semantics=("parallel", "arbitrary"),
            vmem_limit_bytes=32 * 1024 * 1024,
        ),
    )(*inputs)


# ----------------------------------------------------------------------------
# Glue: NHWC im2col lowering of conv / sub-pixel transposed conv
# ----------------------------------------------------------------------------
def _im2col_nhwc(x, k, stride):
    """x:(N,H,W,C) -> (N*Ho*Wo, k*k*C); K ordered (kh, kw, c), c fastest."""
    N, H, W, C = x.shape
    Ho = (H - k) // stride + 1
    Wo = (W - k) // stride + 1
    cols = []
    for i in range(k):
        for j in range(k):
            cols.append(x[:, i:i + stride * (Ho - 1) + 1:stride,
                          j:j + stride * (Wo - 1) + 1:stride, :])
    p = jnp.concatenate(cols, axis=-1)                     # (N, Ho, Wo, k*k*C)
    return p.reshape(N * Ho * Wo, k * k * C), Ho, Wo


def _to_nchw(x):
    return jnp.transpose(x, (0, 3, 1, 2))


def conv2d_bn_lrelu(x, w_mat, k, stride, padding):
    """Conv2d + BatchNorm2d(train) + LeakyReLU(0.2).  x NHWC, w_mat prepared."""
    N = x.shape[0]
    xp = jnp.pad(x, ((0, 0), (padding, padding), (padding, padding), (0, 0)))
    patches, Ho, Wo = _im2col_nhwc(xp, k, stride)
    out = fused_matmul(patches[None], w_mat[None], None, "bn_lrelu")[0]
    return out.reshape(N, Ho, Wo, w_mat.shape[1])


def conv_transpose2d_fused(x, w_phases, b, mode):
    """ConvTranspose2d(k=4, s=2, p=1) via sub-pixel decomposition.

    x: NHWC (N,H,W,Cin); w_phases: prepared (4, 2*2*Cin, Cout).
    The four 2x2 phase convolutions run on the UNdilated input inside one
    pallas_call (so BN stats span all phases); phases are interleaved into the
    (N, 2H, 2W, Cout) output afterwards (pure layout glue).
    """
    N, H, W, Cin = x.shape
    Cout = w_phases.shape[-1]
    xp = jnp.pad(x, ((0, 0), (1, 1), (1, 1), (0, 0)))      # (N, H+2, W+2, Cin)
    patch_list = []
    for py in range(2):
        for px in range(2):
            sl = xp[:, py:py + H + 1, px:px + W + 1, :]
            p, _, _ = _im2col_nhwc(sl, 2, 1)               # (N*H*W, 4*Cin)
            patch_list.append(p)
    patches = jnp.stack(patch_list, axis=0)                # (4, N*H*W, 4*Cin)
    out = fused_matmul(patches, w_phases, b, mode)         # (4, N*H*W, Cout)
    out = out.reshape(2, 2, N, H, W, Cout).transpose(2, 3, 0, 4, 1, 5)
    return out.reshape(N, 2 * H, 2 * W, Cout)


# ----------------------------------------------------------------------------
# Parameters: PyTorch-layout init + one-time matmul-ready preparation
# ----------------------------------------------------------------------------
def init_params(channels, size, latent_dim, hidden_dims_factors, key):
    sf = size // 2 ** len(hidden_dims_factors)
    hd_e = [f * size for f in hidden_dims_factors]          # encoder widths
    hd_d = [f * size for f in hidden_dims_factors[::-1]]    # decoder widths

    keys = iter(jax.random.split(key, 32))

    def w(shape, scale=0.05):
        return scale * jax.random.normal(next(keys), shape, dtype=jnp.float32)

    def b(n):
        return 0.01 * jax.random.normal(next(keys), (n,), dtype=jnp.float32)

    enc = {
        "conv1_w": w((hd_e[0], channels, 4, 4)), "conv1_b": b(hd_e[0]),
        "conv2_w": w((hd_e[1], hd_e[0], 4, 4)),  "conv2_b": b(hd_e[1]),
        "conv3_w": w((hd_e[2], hd_e[1], 4, 4)),  "conv3_b": b(hd_e[2]),
        "conv4_w": w((hd_e[3], hd_e[2], 4, 4)),  "conv4_b": b(hd_e[3]),
        "fcm_w": w((latent_dim, hd_e[3] * sf * sf)), "fcm_b": b(latent_dim),
        "fcv_w": w((latent_dim, hd_e[3] * sf * sf)), "fcv_b": b(latent_dim),
    }
    dec = {
        "fc1_w": w((hd_d[0] * sf * sf, latent_dim)), "fc1_b": b(hd_d[0] * sf * sf),
        # ConvTranspose2d weight layout: (Cin, Cout, k, k)
        "conv1_w": w((hd_d[0], hd_d[1], 4, 4)), "conv1_b": b(hd_d[1]),
        "conv2_w": w((hd_d[1], hd_d[2], 4, 4)), "conv2_b": b(hd_d[2]),
        "conv3_w": w((hd_d[2], hd_d[3], 4, 4)), "conv3_b": b(hd_d[3]),
        "conv4_w": w((hd_d[3], channels, 4, 4)), "conv4_b": b(channels),
    }
    cfg = {"sf": sf, "hd_e": hd_e, "hd_d": hd_d,
           "latent": latent_dim, "channels": channels, "size": size}
    return {"enc": enc, "dec": dec}, cfg


def _prep_conv_weight(w):
    """Conv2d weight (Cout, Cin, k, k) -> (k*k*Cin, Cout), NHWC patch order."""
    Cout, Cin, kh, kw = w.shape
    return w.transpose(2, 3, 1, 0).reshape(kh * kw * Cin, Cout)


def _prep_convT_weight(w):
    """ConvTranspose2d(k=4,s=2,p=1) weight (Cin,Cout,4,4) -> four 2x2 sub-pixel
    phase kernels, each flattened to (2*2*Cin, Cout); stacked -> (4, 4*Cin, Cout)."""
    Cin, Cout = w.shape[0], w.shape[1]
    taps = ((3, 1), (2, 0))     # output phase 0 / 1 -> (tap0, tap1) kernel taps
    phases = []
    for py in range(2):
        for px in range(2):
            sub = jnp.take(w, jnp.array(taps[py]), axis=2)
            sub = jnp.take(sub, jnp.array(taps[px]), axis=3)     # (Cin,Cout,2,2)
            phases.append(sub.transpose(2, 3, 0, 1).reshape(2 * 2 * Cin, Cout))
    return jnp.stack(phases, axis=0)


def _prep_fc_in_nhwc(w, C, sf):
    """Linear weight (out, C*sf*sf) with NCHW-flattened in-features -> reorder
    in-features to NHWC flatten order and transpose to (in, out)."""
    out_f = w.shape[0]
    return (w.reshape(out_f, C, sf, sf).transpose(0, 2, 3, 1)
            .reshape(out_f, sf * sf * C).T)


def _prep_fc_out_nhwc(w, C, sf):
    """Linear weight (C*sf*sf, latent) with NCHW-ordered out-features -> reorder
    out-features to NHWC order and transpose to (latent, sf*sf*C)."""
    latent = w.shape[1]
    return (w.reshape(C, sf, sf, latent).transpose(1, 2, 0, 3)
            .reshape(sf * sf * C, latent).T)


def prepare_params(params, cfg):
    """Hoist all weight reshapes/transposes out of the forward pass (run once)."""
    enc, dec = params["enc"], params["dec"]
    sf, hd_e, hd_d = cfg["sf"], cfg["hd_e"], cfg["hd_d"]

    # fc_mean and fc_log_var fused into one matmul (doubles output lane width).
    enc_fc_w = jnp.concatenate(
        [_prep_fc_in_nhwc(enc["fcm_w"], hd_e[3], sf),
         _prep_fc_in_nhwc(enc["fcv_w"], hd_e[3], sf)], axis=1)
    enc_fc_b = jnp.concatenate([enc["fcm_b"], enc["fcv_b"]])

    return {
        # Conv / fc1 biases are intentionally dropped: exactly cancelled by the
        # training-mode BatchNorm mean subtraction that follows those layers.
        "enc_conv1": _prep_conv_weight(enc["conv1_w"]),
        "enc_conv2": _prep_conv_weight(enc["conv2_w"]),
        "enc_conv3": _prep_conv_weight(enc["conv3_w"]),
        "enc_conv4": _prep_conv_weight(enc["conv4_w"]),
        "enc_fc_w": enc_fc_w, "enc_fc_b": enc_fc_b,
        "dec_fc1_w": _prep_fc_out_nhwc(dec["fc1_w"], hd_d[0], sf),
        "dec_conv1": _prep_convT_weight(dec["conv1_w"]),
        "dec_conv2": _prep_convT_weight(dec["conv2_w"]),
        "dec_conv3": _prep_convT_weight(dec["conv3_w"]),
        "dec_conv4": _prep_convT_weight(dec["conv4_w"]),
        "dec_conv4_b": dec["conv4_b"],
    }


# ----------------------------------------------------------------------------
# VAE forward pass (mirrors VariationalAutoencoder.forward; NHWC internally)
# ----------------------------------------------------------------------------
def vae_forward(prepped, cfg, x_nchw, eps):
    inter = [x_nchw]
    N = x_nchw.shape[0]
    latent, sf = cfg["latent"], cfg["sf"]

    x = jnp.transpose(x_nchw, (0, 2, 3, 1))        # NHWC internal layout

    # ----- Encoder: 4 x (Conv2d k4 s2 p1 + BN + LeakyReLU) -----
    h = conv2d_bn_lrelu(x, prepped["enc_conv1"], 4, 2, 1); inter.append(_to_nchw(h))
    h = conv2d_bn_lrelu(h, prepped["enc_conv2"], 4, 2, 1); inter.append(_to_nchw(h))
    h = conv2d_bn_lrelu(h, prepped["enc_conv3"], 4, 2, 1); inter.append(_to_nchw(h))
    h = conv2d_bn_lrelu(h, prepped["enc_conv4"], 4, 2, 1); inter.append(_to_nchw(h))

    hf = h.reshape(N, -1)                          # NHWC flatten (fc weights pre-permuted)
    zz = fused_matmul(hf[None], prepped["enc_fc_w"][None],
                      prepped["enc_fc_b"], "linear")[0]
    z_mean, z_log_var = zz[:, :latent], zz[:, latent:]

    # ----- Reparameterize -----
    # TODO(synk): torch.randn_like is stateful RNG; epsilon is supplied
    # deterministically from a JAX PRNG key instead.
    z = z_mean + jnp.exp(0.5 * z_log_var) * eps
    inter.append(z)

    # ----- Decoder -----
    hd = fused_matmul(z[None], prepped["dec_fc1_w"][None], None, "bn_lrelu")[0]
    hd = hd.reshape(N, sf, sf, cfg["hd_d"][0])     # NHWC (fc1 out-features pre-permuted)
    # PyTorch's intermediate after fc1+BN1d+LeakyReLU is flattened in (C,H,W)
    # feature order; re-permute for an exact semantic match.
    inter.append(_to_nchw(hd).reshape(N, -1))
    hd = conv_transpose2d_fused(hd, prepped["dec_conv1"], None, "bn_lrelu"); inter.append(_to_nchw(hd))
    hd = conv_transpose2d_fused(hd, prepped["dec_conv2"], None, "bn_lrelu"); inter.append(_to_nchw(hd))
    hd = conv_transpose2d_fused(hd, prepped["dec_conv3"], None, "bn_lrelu"); inter.append(_to_nchw(hd))
    xr = conv_transpose2d_fused(hd, prepped["dec_conv4"], prepped["dec_conv4_b"], "sigmoid")
    x_recon = _to_nchw(xr); inter.append(x_recon)

    return x_recon, z_mean, z_log_var, inter


# ----------------------------------------------------------------------------
if __name__ == "__main__":
    # Small shapes consistent with the module: VAE(channels=3, size=16,
    # latent_dim=16, hidden_dims_factors=[2,4,8,8]), batch=2.
    batch, channels, size, latent_dim = 2, 3, 16, 16
    hidden_dims_factors = [2, 4, 8, 8]

    key = jax.random.PRNGKey(0)
    k_x, k_eps, k_params = jax.random.split(key, 3)

    x = jax.random.uniform(k_x, (batch, channels, size, size), dtype=jnp.float32)
    eps = jax.random.normal(k_eps, (batch, latent_dim), dtype=jnp.float32)
    params, cfg = init_params(channels, size, latent_dim, hidden_dims_factors, k_params)
    prepped = prepare_params(params, cfg)          # weight transforms hoisted (once)

    @jax.jit
    def fwd(p, xb, ep):
        return vae_forward(p, cfg, xb, ep)

    x_recon, z_mean, z_log_var, intermediates = fwd(prepped, x, eps)
    jax.block_until_ready(x_recon)
    jax.block_until_ready(z_mean)
    jax.block_until_ready(z_log_var)

    assert x_recon.shape == (batch, channels, size, size)
    assert z_mean.shape == (batch, latent_dim)
    assert z_log_var.shape == (batch, latent_dim)
    assert len(intermediates) == 11
    assert bool(jnp.all(jnp.isfinite(x_recon)))
    assert bool(jnp.all((x_recon >= 0.0) & (x_recon <= 1.0)))
    print("KERNEL_OK")
</pallas_src>

<mosaic_0001>
module attributes {stable_mosaic.version = 11 : i64} {
  func.func @_fused_matmul_kernel(%arg0: i32, %arg1: i32, %arg2: memref<1x128x48xbf16, #tpu.memory_space<vmem>>, %arg3: memref<1x48x32xbf16, #tpu.memory_space<vmem>>, %arg4: memref<1x128x32xf32, #tpu.memory_space<vmem>>, %arg5: memref<1x128x32xf32, #tpu.memory_space<vmem>>) attributes {dimension_semantics = [#tpu.dimension_semantics<parallel>, #tpu.dimension_semantics<arbitrary>], iteration_bounds = array<i64: 1, 1>, scalar_prefetch = 0 : i64, scratch_operands = 1 : i64, tpu.core_type = #tpu.core_type<tc>, window_params = [{transform_indices = @transform_0, window_bounds = array<i64: 1, 128, 48>}, {transform_indices = @transform_1, window_bounds = array<i64: 1, 48, 32>}, {transform_indices = @transform_2, window_bounds = array<i64: 1, 128, 32>}]} {
    %c0_i32 = arith.constant 0 : i32
    %0 = arith.cmpi eq, %arg1, %c0_i32 : i32
    %1 = arith.extui %0 : i1 to i32
    %c0_i32_0 = arith.constant 0 : i32
    %2 = arith.cmpi ne, %1, %c0_i32_0 : i32
    scf.if %2 {
      %cst_14 = arith.constant 0.000000e+00 : f32
      %17 = vector.broadcast %cst_14 : f32 to vector<1x128x32xf32>
      %c0_15 = arith.constant 0 : index
      %c0_16 = arith.constant 0 : index
      %c0_17 = arith.constant 0 : index
      %18 = vector.load %arg5[%c0_15, %c0_16, %c0_17] : memref<1x128x32xf32, #tpu.memory_space<vmem>>, vector<1x128x32xf32>
      tpu.vector_store %arg5[%c0_15, %c0_16, %c0_17], %17 {strides = array<i32>} : memref<1x128x32xf32, #tpu.memory_space<vmem>>, vector<1x128x32xf32>,
    } else {
    }
    %c0 = arith.constant 0 : index
    %c0_1 = arith.constant 0 : index
    %c0_2 = arith.constant 0 : index
    %3 = vector.load %arg5[%c0, %c0_1, %c0_2] : memref<1x128x32xf32, #tpu.memory_space<vmem>>, vector<1x128x32xf32>
    %4 = vector.shape_cast %3 : vector<1x128x32xf32> to vector<128x32xf32>
    %c0_3 = arith.constant 0 : index
    %c0_4 = arith.constant 0 : index
    %c0_5 = arith.constant 0 : index
    %5 = vector.load %arg2[%c0_3, %c0_4, %c0_5] : memref<1x128x48xbf16, #tpu.memory_space<vmem>>, vector<1x128x48xbf16>
    %6 = vector.shape_cast %5 : vector<1x128x48xbf16> to vector<128x48xbf16>
    %c0_6 = arith.constant 0 : index
    %c0_7 = arith.constant 0 : index
    %c0_8 = arith.constant 0 : index
    %7 = vector.load %arg3[%c0_6, %c0_7, %c0_8] : memref<1x48x32xbf16, #tpu.memory_space<vmem>>, vector<1x48x32xbf16>
    %8 = vector.shape_cast %7 : vector<1x48x32xbf16> to vector<48x32xbf16>
    %cst = arith.constant dense<0.000000e+00> : vector<128x32xf32>
    %9 = tpu.matmul %6, %8, %cst {dimension_numbers = #tpu.dot_dimension_numbers<[1], [0], [0], [1], [0, 0, 1, 1], [], []>} : vector<128x48xbf16>, vector<48x32xbf16>, vector<128x32xf32> -> vector<128x32xf32>
    %10 = arith.addf %4, %9 : vector<128x32xf32>
    %c0_9 = arith.constant 0 : index
    %c0_10 = arith.constant 0 : index
    %c0_11 = arith.constant 0 : index
    %11 = vector.load %arg5[%c0_9, %c0_10, %c0_11] : memref<1x128x32xf32, #tpu.memory_space<vmem>>, vector<1x128x32xf32>
    %12 = vector.shape_cast %11 : vector<1x128x32xf32> to vector<128x32xf32>
    %13 = vector.shape_cast %10 : vector<128x32xf32> to vector<1x128x32xf32>
    tpu.vector_store %arg5[%c0_9, %c0_10, %c0_11], %13 {strides = array<i32>} : memref<1x128x32xf32, #tpu.memory_space<vmem>>, vector<1x128x32xf32>,
    %c0_i32_12 = arith.constant 0 : i32
    %14 = arith.cmpi eq, %arg1, %c0_i32_12 : i32
    %15 = arith.extui %14 : i1 to i32
    %c0_i32_13 = arith.constant 0 : i32
    %16 = arith.cmpi ne, %15, %c0_i32_13 : i32
    scf.if %16 {
      %c0_14 = arith.constant 0 : index
      %c0_15 = arith.constant 0 : index
      %c0_16 = arith.constant 0 : index
      %17 = vector.load %arg5[%c0_14, %c0_15, %c0_16] : memref<1x128x32xf32, #tpu.memory_space<vmem>>, vector<1x128x32xf32>
      %cst_17 = arith.constant dense<0.000000e+00> : vector<1x32xf32>
      %18 = vector.multi_reduction <add>, %17, %cst_17 [1] : vector<1x128x32xf32> to vector<1x32xf32>
      %19 = vector.shape_cast %18 : vector<1x32xf32> to vector<1x1x32xf32>
      %cst_18 = arith.constant 1.280000e+02 : f32
      %20 = vector.broadcast %cst_18 : f32 to vector<1x1x32xf32>
      %21 = arith.divf %19, %20 : vector<1x1x32xf32>
      %cst_19 = arith.constant dense<0.000000e+00> : vector<1x32xf32>
      %22 = vector.multi_reduction <add>, %21, %cst_19 [0] : vector<1x1x32xf32> to vector<1x32xf32>
      %23 = vector.shape_cast %22 : vector<1x32xf32> to vector<1x1x32xf32>
      %cst_20 = arith.constant 1.000000e+00 : f32
      %24 = vector.broadcast %cst_20 : f32 to vector<1x1x32xf32>
      %25 = arith.divf %23, %24 : vector<1x1x32xf32>
      %26 = arith.mulf %17, %17 : vector<1x128x32xf32>
      %cst_21 = arith.constant dense<0.000000e+00> : vector<1x32xf32>
      %27 = vector.multi_reduction <add>, %26, %cst_21 [1] : vector<1x128x32xf32> to vector<1x32xf32>
      %28 = vector.shape_cast %27 : vector<1x32xf32> to vector<1x1x32xf32>
      %cst_22 = arith.constant 1.280000e+02 : f32
      %29 = vector.broadcast %cst_22 : f32 to vector<1x1x32xf32>
      %30 = arith.divf %28, %29 : vector<1x1x32xf32>
      %cst_23 = arith.constant dense<0.000000e+00> : vector<1x32xf32>
      %31 = vector.multi_reduction <add>, %30, %cst_23 [0] : vector<1x1x32xf32> to vector<1x32xf32>
      %32 = vector.shape_cast %31 : vector<1x32xf32> to vector<1x1x32xf32>
      %cst_24 = arith.constant 1.000000e+00 : f32
      %33 = vector.broadcast %cst_24 : f32 to vector<1x1x32xf32>
      %34 = arith.divf %32, %33 : vector<1x1x32xf32>
      %35 = arith.mulf %25, %25 : vector<1x1x32xf32>
      %36 = arith.subf %34, %35 : vector<1x1x32xf32>
      %cst_25 = arith.constant 0.000000e+00 : f32
      %37 = vector.broadcast %cst_25 : f32 to vector<1x1x32xf32>
      %38 = arith.maximumf %36, %37 : vector<1x1x32xf32>
      %39 = vector.broadcast %25 : vector<1x1x32xf32> to vector<1x128x32xf32>
      %40 = arith.subf %17, %39 : vector<1x128x32xf32>
      %cst_26 = arith.constant 9.99999974E-6 : f32
      %41 = vector.broadcast %cst_26 : f32 to vector<1x1x32xf32>
      %42 = arith.addf %38, %41 : vector<1x1x32xf32>
      %43 = math.rsqrt %42 : vector<1x1x32xf32>
      %44 = vector.broadcast %43 : vector<1x1x32xf32> to vector<1x128x32xf32>
      %45 = arith.mulf %40, %44 : vector<1x128x32xf32>
      %cst_27 = arith.constant 0.000000e+00 : f32
      %46 = vector.broadcast %cst_27 : f32 to vector<1x128x32xf32>
      %47 = arith.cmpf oge, %45, %46 : vector<1x128x32xf32>
      %cst_28 = arith.constant 2.000000e-01 : f32
      %48 = vector.broadcast %cst_28 : f32 to vector<1x128x32xf32>
      %49 = arith.mulf %48, %45 : vector<1x128x32xf32>
      %50 = arith.select %47, %45, %49 : vector<1x128x32xi1>, vector<1x128x32xf32>
      %c0_29 = arith.constant 0 : index
      %c0_30 = arith.constant 0 : index
      %c0_31 = arith.constant 0 : index
      %51 = vector.load %arg4[%c0_29, %c0_30, %c0_31] : memref<1x128x32xf32, #tpu.memory_space<vmem>>, vector<1x128x32xf32>
      tpu.vector_store %arg4[%c0_29, %c0_30, %c0_31], %50 {strides = array<i32>} : memref<1x128x32xf32, #tpu.memory_space<vmem>>, vector<1x128x32xf32>,
    } else {
    }
    return
  }
  func.func @transform_0(%arg0: i32, %arg1: i32) -> (i32, i32, i32) {
    %c0_i32 = arith.constant 0 : i32
    %c0_i32_0 = arith.constant 0 : i32
    %c0_i32_1 = arith.constant 0 : i32
    return %c0_i32, %c0_i32_0, %arg1 : i32, i32, i32
  }
  func.func @transform_1(%arg0: i32, %arg1: i32) -> (i32, i32, i32) {
    %c0_i32 = arith.constant 0 : i32
    %c0_i32_0 = arith.constant 0 : i32
    return %c0_i32, %arg1, %arg0 : i32, i32, i32
  }
  func.func @transform_2(%arg0: i32, %arg1: i32) -> (i32, i32, i32) {
    %c0_i32 = arith.constant 0 : i32
    %c0_i32_0 = arith.constant 0 : i32
    %c0_i32_1 = arith.constant 0 : i32
    return %c0_i32, %c0_i32_0, %arg0 : i32, i32, i32
  }
}

module attributes {stable_mosaic.version = 11 : i64} {
  func.func @_fused_matmul_kernel(%arg0: i32, %arg1: i32, %arg2: memref<1x32x512xbf16, #tpu.memory_space<vmem>>, %arg3: memref<1x512x64xbf16, #tpu.memory_space<vmem>>, %arg4: memref<1x32x64xf32, #tpu.memory_space<vmem>>, %arg5: memref<1x32x64xf32, #tpu.memory_space<vmem>>) attributes {dimension_semantics = [#tpu.dimension_semantics<parallel>, #tpu.dimension_semantics<arbitrary>], iteration_bounds = array<i64: 1, 1>, scalar_prefetch = 0 : i64, scratch_operands = 1 : i64, tpu.core_type = #tpu.core_type<tc>, window_params = [{transform_indices = @transform_0, window_bounds = array<i64: 1, 32, 512>}, {transform_indices = @transform_1, window_bounds = array<i64: 1, 512, 64>}, {transform_indices = @transform_2, window_bounds = array<i64: 1, 32, 64>}]} {
    %c0_i32 = arith.constant 0 : i32
    %0 = arith.cmpi eq, %arg1, %c0_i32 : i32
    %1 = arith.extui %0 : i1 to i32
    %c0_i32_0 = arith.constant 0 : i32
    %2 = arith.cmpi ne, %1, %c0_i32_0 : i32
    scf.if %2 {
      %cst_14 = arith.constant 0.000000e+00 : f32
      %17 = vector.broadcast %cst_14 : f32 to vector<1x32x64xf32>
      %c0_15 = arith.constant 0 : index
      %c0_16 = arith.constant 0 : index
      %c0_17 = arith.constant 0 : index
      %18 = vector.load %arg5[%c0_15, %c0_16, %c0_17] : memref<1x32x64xf32, #tpu.memory_space<vmem>>, vector<1x32x64xf32>
      tpu.vector_store %arg5[%c0_15, %c0_16, %c0_17], %17 {strides = array<i32>} : memref<1x32x64xf32, #tpu.memory_space<vmem>>, vector<1x32x64xf32>,
    } else {
    }
    %c0 = arith.constant 0 : index
    %c0_1 = arith.constant 0 : index
    %c0_2 = arith.constant 0 : index
    %3 = vector.load %arg5[%c0, %c0_1, %c0_2] : memref<1x32x64xf32, #tpu.memory_space<vmem>>, vector<1x32x64xf32>
    %4 = vector.shape_cast %3 : vector<1x32x64xf32> to vector<32x64xf32>
    %c0_3 = arith.constant 0 : index
    %c0_4 = arith.constant 0 : index
    %c0_5 = arith.constant 0 : index
    %5 = vector.load %arg2[%c0_3, %c0_4, %c0_5] : memref<1x32x512xbf16, #tpu.memory_space<vmem>>, vector<1x32x512xbf16>
    %6 = vector.shape_cast %5 : vector<1x32x512xbf16> to vector<32x512xbf16>
    %c0_6 = arith.constant 0 : index
    %c0_7 = arith.constant 0 : index
    %c0_8 = arith.constant 0 : index
    %7 = vector.load %arg3[%c0_6, %c0_7, %c0_8] : memref<1x512x64xbf16, #tpu.memory_space<vmem>>, vector<1x512x64xbf16>
    %8 = vector.shape_cast %7 : vector<1x512x64xbf16> to vector<512x64xbf16>
    %cst = arith.constant dense<0.000000e+00> : vector<32x64xf32>
    %9 = tpu.matmul %6, %8, %cst {dimension_numbers = #tpu.dot_dimension_numbers<[1], [0], [0], [1], [0, 0, 1, 1], [], []>} : vector<32x512xbf16>, vector<512x64xbf16>, vector<32x64xf32> -> vector<32x64xf32>
    %10 = arith.addf %4, %9 : vector<32x64xf32>
    %c0_9 = arith.constant 0 : index
    %c0_10 = arith.constant 0 : index
    %c0_11 = arith.constant 0 : index
    %11 = vector.load %arg5[%c0_9, %c0_10, %c0_11] : memref<1x32x64xf32, #tpu.memory_space<vmem>>, vector<1x32x64xf32>
    %12 = vector.shape_cast %11 : vector<1x32x64xf32> to vector<32x64xf32>
    %13 = vector.shape_cast %10 : vector<32x64xf32> to vector<1x32x64xf32>
    tpu.vector_store %arg5[%c0_9, %c0_10, %c0_11], %13 {strides = array<i32>} : memref<1x32x64xf32, #tpu.memory_space<vmem>>, vector<1x32x64xf32>,
    %c0_i32_12 = arith.constant 0 : i32
    %14 = arith.cmpi eq, %arg1, %c0_i32_12 : i32
    %15 = arith.extui %14 : i1 to i32
    %c0_i32_13 = arith.constant 0 : i32
    %16 = arith.cmpi ne, %15, %c0_i32_13 : i32
    scf.if %16 {
      %c0_14 = arith.constant 0 : index
      %c0_15 = arith.constant 0 : index
      %c0_16 = arith.constant 0 : index
      %17 = vector.load %arg5[%c0_14, %c0_15, %c0_16] : memref<1x32x64xf32, #tpu.memory_space<vmem>>, vector<1x32x64xf32>
      %cst_17 = arith.constant dense<0.000000e+00> : vector<1x64xf32>
      %18 = vector.multi_reduction <add>, %17, %cst_17 [1] : vector<1x32x64xf32> to vector<1x64xf32>
      %19 = vector.shape_cast %18 : vector<1x64xf32> to vector<1x1x64xf32>
      %cst_18 = arith.constant 3.200000e+01 : f32
      %20 = vector.broadcast %cst_18 : f32 to vector<1x1x64xf32>
      %21 = arith.divf %19, %20 : vector<1x1x64xf32>
      %cst_19 = arith.constant dense<0.000000e+00> : vector<1x64xf32>
      %22 = vector.multi_reduction <add>, %21, %cst_19 [0] : vector<1x1x64xf32> to vector<1x64xf32>
      %23 = vector.shape_cast %22 : vector<1x64xf32> to vector<1x1x64xf32>
      %cst_20 = arith.constant 1.000000e+00 : f32
      %24 = vector.broadcast %cst_20 : f32 to vector<1x1x64xf32>
      %25 = arith.divf %23, %24 : vector<1x1x64xf32>
      %26 = arith.mulf %17, %17 : vector<1x32x64xf32>
      %cst_21 = arith.constant dense<0.000000e+00> : vector<1x64xf32>
      %27 = vector.multi_reduction <add>, %26, %cst_21 [1] : vector<1x32x64xf32> to vector<1x64xf32>
      %28 = vector.shape_cast %27 : vector<1x64xf32> to vector<1x1x64xf32>
      %cst_22 = arith.constant 3.200000e+01 : f32
      %29 = vector.broadcast %cst_22 : f32 to vector<1x1x64xf32>
      %30 = arith.divf %28, %29 : vector<1x1x64xf32>
      %cst_23 = arith.constant dense<0.000000e+00> : vector<1x64xf32>
      %31 = vector.multi_reduction <add>, %30, %cst_23 [0] : vector<1x1x64xf32> to vector<1x64xf32>
      %32 = vector.shape_cast %31 : vector<1x64xf32> to vector<1x1x64xf32>
      %cst_24 = arith.constant 1.000000e+00 : f32
      %33 = vector.broadcast %cst_24 : f32 to vector<1x1x64xf32>
      %34 = arith.divf %32, %33 : vector<1x1x64xf32>
      %35 = arith.mulf %25, %25 : vector<1x1x64xf32>
      %36 = arith.subf %34, %35 : vector<1x1x64xf32>
      %cst_25 = arith.constant 0.000000e+00 : f32
      %37 = vector.broadcast %cst_25 : f32 to vector<1x1x64xf32>
      %38 = arith.maximumf %36, %37 : vector<1x1x64xf32>
      %39 = vector.broadcast %25 : vector<1x1x64xf32> to vector<1x32x64xf32>
      %40 = arith.subf %17, %39 : vector<1x32x64xf32>
      %cst_26 = arith.constant 9.99999974E-6 : f32
      %41 = vector.broadcast %cst_26 : f32 to vector<1x1x64xf32>
      %42 = arith.addf %38, %41 : vector<1x1x64xf32>
      %43 = math.rsqrt %42 : vector<1x1x64xf32>
      %44 = vector.broadcast %43 : vector<1x1x64xf32> to vector<1x32x64xf32>
      %45 = arith.mulf %40, %44 : vector<1x32x64xf32>
      %cst_27 = arith.constant 0.000000e+00 : f32
      %46 = vector.broadcast %cst_27 : f32 to vector<1x32x64xf32>
      %47 = arith.cmpf oge, %45, %46 : vector<1x32x64xf32>
      %cst_28 = arith.constant 2.000000e-01 : f32
      %48 = vector.broadcast %cst_28 : f32 to vector<1x32x64xf32>
      %49 = arith.mulf %48, %45 : vector<1x32x64xf32>
      %50 = arith.select %47, %45, %49 : vector<1x32x64xi1>, vector<1x32x64xf32>
      %c0_29 = arith.constant 0 : index
      %c0_30 = arith.constant 0 : index
      %c0_31 = arith.constant 0 : index
      %51 = vector.load %arg4[%c0_29, %c0_30, %c0_31] : memref<1x32x64xf32, #tpu.memory_space<vmem>>, vector<1x32x64xf32>
      tpu.vector_store %arg4[%c0_29, %c0_30, %c0_31], %50 {strides = array<i32>} : memref<1x32x64xf32, #tpu.memory_space<vmem>>, vector<1x32x64xf32>,
    } else {
    }
    return
  }
  func.func @transform_0(%arg0: i32, %arg1: i32) -> (i32, i32, i32) {
    %c0_i32 = arith.constant 0 : i32
    %c0_i32_0 = arith.constant 0 : i32
    %c0_i32_1 = arith.constant 0 : i32
    return %c0_i32, %c0_i32_0, %arg1 : i32, i32, i32
  }
  func.func @transform_1(%arg0: i32, %arg1: i32) -> (i32, i32, i32) {
    %c0_i32 = arith.constant 0 : i32
    %c0_i32_0 = arith.constant 0 : i32
    return %c0_i32, %arg1, %arg0 : i32, i32, i32
  }
  func.func @transform_2(%arg0: i32, %arg1: i32) -> (i32, i32, i32) {
    %c0_i32 = arith.constant 0 : i32
    %c0_i32_0 = arith.constant 0 : i32
    %c0_i32_1 = arith.constant 0 : i32
    return %c0_i32, %c0_i32_0, %arg0 : i32, i32, i32
  }
}

module attributes {stable_mosaic.version = 11 : i64} {
  func.func @_fused_matmul_kernel(%arg0: i32, %arg1: i32, %arg2: memref<1x8x1024xbf16, #tpu.memory_space<vmem>>, %arg3: memref<1x1024x128xbf16, #tpu.memory_space<vmem>>, %arg4: memref<1x8x128xf32, #tpu.memory_space<vmem>>, %arg5: memref<1x8x128xf32, #tpu.memory_space<vmem>>) attributes {dimension_semantics = [#tpu.dimension_semantics<parallel>, #tpu.dimension_semantics<arbitrary>], iteration_bounds = array<i64: 1, 1>, scalar_prefetch = 0 : i64, scratch_operands = 1 : i64, tpu.core_type = #tpu.core_type<tc>, window_params = [{transform_indices = @transform_0, window_bounds = array<i64: 1, 8, 1024>}, {transform_indices = @transform_1, window_bounds = array<i64: 1, 1024, 128>}, {transform_indices = @transform_2, window_bounds = array<i64: 1, 8, 128>}]} {
    %c0_i32 = arith.constant 0 : i32
    %0 = arith.cmpi eq, %arg1, %c0_i32 : i32
    %1 = arith.extui %0 : i1 to i32
    %c0_i32_0 = arith.constant 0 : i32
    %2 = arith.cmpi ne, %1, %c0_i32_0 : i32
    scf.if %2 {
      %cst_14 = arith.constant 0.000000e+00 : f32
      %17 = vector.broadcast %cst_14 : f32 to vector<1x8x128xf32>
      %c0_15 = arith.constant 0 : index
      %c0_16 = arith.constant 0 : index
      %c0_17 = arith.constant 0 : index
      %18 = vector.load %arg5[%c0_15, %c0_16, %c0_17] : memref<1x8x128xf32, #tpu.memory_space<vmem>>, vector<1x8x128xf32>
      tpu.vector_store %arg5[%c0_15, %c0_16, %c0_17], %17 {strides = array<i32>} : memref<1x8x128xf32, #tpu.memory_space<vmem>>, vector<1x8x128xf32>,
    } else {
    }
    %c0 = arith.constant 0 : index
    %c0_1 = arith.constant 0 : index
    %c0_2 = arith.constant 0 : index
    %3 = vector.load %arg5[%c0, %c0_1, %c0_2] : memref<1x8x128xf32, #tpu.memory_space<vmem>>, vector<1x8x128xf32>
    %4 = vector.shape_cast %3 : vector<1x8x128xf32> to vector<8x128xf32>
    %c0_3 = arith.constant 0 : index
    %c0_4 = arith.constant 0 : index
    %c0_5 = arith.constant 0 : index
    %5 = vector.load %arg2[%c0_3, %c0_4, %c0_5] : memref<1x8x1024xbf16, #tpu.memory_space<vmem>>, vector<1x8x1024xbf16>
    %6 = vector.shape_cast %5 : vector<1x8x1024xbf16> to vector<8x1024xbf16>
    %c0_6 = arith.constant 0 : index
    %c0_7 = arith.constant 0 : index
    %c0_8 = arith.constant 0 : index
    %7 = vector.load %arg3[%c0_6, %c0_7, %c0_8] : memref<1x1024x128xbf16, #tpu.memory_space<vmem>>, vector<1x1024x128xbf16>
    %8 = vector.shape_cast %7 : vector<1x1024x128xbf16> to vector<1024x128xbf16>
    %cst = arith.constant dense<0.000000e+00> : vector<8x128xf32>
    %9 = tpu.matmul %6, %8, %cst {dimension_numbers = #tpu.dot_dimension_numbers<[1], [0], [0], [1], [0, 0, 1, 1], [], []>} : vector<8x1024xbf16>, vector<1024x128xbf16>, vector<8x128xf32> -> vector<8x128xf32>
    %10 = arith.addf %4, %9 : vector<8x128xf32>
    %c0_9 = arith.constant 0 : index
    %c0_10 = arith.constant 0 : index
    %c0_11 = arith.constant 0 : index
    %11 = vector.load %arg5[%c0_9, %c0_10, %c0_11] : memref<1x8x128xf32, #tpu.memory_space<vmem>>, vector<1x8x128xf32>
    %12 = vector.shape_cast %11 : vector<1x8x128xf32> to vector<8x128xf32>
    %13 = vector.shape_cast %10 : vector<8x128xf32> to vector<1x8x128xf32>
    tpu.vector_store %arg5[%c0_9, %c0_10, %c0_11], %13 {strides = array<i32>} : memref<1x8x128xf32, #tpu.memory_space<vmem>>, vector<1x8x128xf32>,
    %c0_i32_12 = arith.constant 0 : i32
    %14 = arith.cmpi eq, %arg1, %c0_i32_12 : i32
    %15 = arith.extui %14 : i1 to i32
    %c0_i32_13 = arith.constant 0 : i32
    %16 = arith.cmpi ne, %15, %c0_i32_13 : i32
    scf.if %16 {
      %c0_14 = arith.constant 0 : index
      %c0_15 = arith.constant 0 : index
      %c0_16 = arith.constant 0 : index
      %17 = vector.load %arg5[%c0_14, %c0_15, %c0_16] : memref<1x8x128xf32, #tpu.memory_space<vmem>>, vector<1x8x128xf32>
      %cst_17 = arith.constant dense<0.000000e+00> : vector<1x128xf32>
      %18 = vector.multi_reduction <add>, %17, %cst_17 [1] : vector<1x8x128xf32> to vector<1x128xf32>
      %19 = vector.shape_cast %18 : vector<1x128xf32> to vector<1x1x128xf32>
      %cst_18 = arith.constant 8.000000e+00 : f32
      %20 = vector.broadcast %cst_18 : f32 to vector<1x1x128xf32>
      %21 = arith.divf %19, %20 : vector<1x1x128xf32>
      %cst_19 = arith.constant dense<0.000000e+00> : vector<1x128xf32>
      %22 = vector.multi_reduction <add>, %21, %cst_19 [0] : vector<1x1x128xf32> to vector<1x128xf32>
      %23 = vector.shape_cast %22 : vector<1x128xf32> to vector<1x1x128xf32>
      %cst_20 = arith.constant 1.000000e+00 : f32
      %24 = vector.broadcast %cst_20 : f32 to vector<1x1x128xf32>
      %25 = arith.divf %23, %24 : vector<1x1x128xf32>
      %26 = arith.mulf %17, %17 : vector<1x8x128xf32>
      %cst_21 = arith.constant dense<0.000000e+00> : vector<1x128xf32>
      %27 = vector.multi_reduction <add>, %26, %cst_21 [1] : vector<1x8x128xf32> to vector<1x128xf32>
      %28 = vector.shape_cast %27 : vector<1x128xf32> to vector<1x1x128xf32>
      %cst_22 = arith.constant 8.000000e+00 : f32
      %29 = vector.broadcast %cst_22 : f32 to vector<1x1x128xf32>
      %30 = arith.divf %28, %29 : vector<1x1x128xf32>
      %cst_23 = arith.constant dense<0.000000e+00> : vector<1x128xf32>
      %31 = vector.multi_reduction <add>, %30, %cst_23 [0] : vector<1x1x128xf32> to vector<1x128xf32>
      %32 = vector.shape_cast %31 : vector<1x128xf32> to vector<1x1x128xf32>
      %cst_24 = arith.constant 1.000000e+00 : f32
      %33 = vector.broadcast %cst_24 : f32 to vector<1x1x128xf32>
      %34 = arith.divf %32, %33 : vector<1x1x128xf32>
      %35 = arith.mulf %25, %25 : vector<1x1x128xf32>
      %36 = arith.subf %34, %35 : vector<1x1x128xf32>
      %cst_25 = arith.constant 0.000000e+00 : f32
      %37 = vector.broadcast %cst_25 : f32 to vector<1x1x128xf32>
      %38 = arith.maximumf %36, %37 : vector<1x1x128xf32>
      %39 = vector.broadcast %25 : vector<1x1x128xf32> to vector<1x8x128xf32>
      %40 = arith.subf %17, %39 : vector<1x8x128xf32>
      %cst_26 = arith.constant 9.99999974E-6 : f32
      %41 = vector.broadcast %cst_26 : f32 to vector<1x1x128xf32>
      %42 = arith.addf %38, %41 : vector<1x1x128xf32>
      %43 = math.rsqrt %42 : vector<1x1x128xf32>
      %44 = vector.broadcast %43 : vector<1x1x128xf32> to vector<1x8x128xf32>
      %45 = arith.mulf %40, %44 : vector<1x8x128xf32>
      %cst_27 = arith.constant 0.000000e+00 : f32
      %46 = vector.broadcast %cst_27 : f32 to vector<1x8x128xf32>
      %47 = arith.cmpf oge, %45, %46 : vector<1x8x128xf32>
      %cst_28 = arith.constant 2.000000e-01 : f32
      %48 = vector.broadcast %cst_28 : f32 to vector<1x8x128xf32>
      %49 = arith.mulf %48, %45 : vector<1x8x128xf32>
      %50 = arith.select %47, %45, %49 : vector<1x8x128xi1>, vector<1x8x128xf32>
      %c0_29 = arith.constant 0 : index
      %c0_30 = arith.constant 0 : index
      %c0_31 = arith.constant 0 : index
      %51 = vector.load %arg4[%c0_29, %c0_30, %c0_31] : memref<1x8x128xf32, #tpu.memory_space<vmem>>, vector<1x8x128xf32>
      tpu.vector_store %arg4[%c0_29, %c0_30, %c0_31], %50 {strides = array<i32>} : memref<1x8x128xf32, #tpu.memory_space<vmem>>, vector<1x8x128xf32>,
    } else {
    }
    return
  }
  func.func @transform_0(%arg0: i32, %arg1: i32) -> (i32, i32, i32) {
    %c0_i32 = arith.constant 0 : i32
    %c0_i32_0 = arith.constant 0 : i32
    %c0_i32_1 = arith.constant 0 : i32
    return %c0_i32, %c0_i32_0, %arg1 : i32, i32, i32
  }
  func.func @transform_1(%arg0: i32, %arg1: i32) -> (i32, i32, i32) {
    %c0_i32 = arith.constant 0 : i32
    %c0_i32_0 = arith.constant 0 : i32
    return %c0_i32, %arg1, %arg0 : i32, i32, i32
  }
  func.func @transform_2(%arg0: i32, %arg1: i32) -> (i32, i32, i32) {
    %c0_i32 = arith.constant 0 : i32
    %c0_i32_0 = arith.constant 0 : i32
    %c0_i32_1 = arith.constant 0 : i32
    return %c0_i32, %c0_i32_0, %arg0 : i32, i32, i32
  }
}

module attributes {stable_mosaic.version = 11 : i64} {
  func.func @_fused_matmul_kernel(%arg0: i32, %arg1: i32, %arg2: memref<1x2x2048xbf16, #tpu.memory_space<vmem>>, %arg3: memref<1x2048x128xbf16, #tpu.memory_space<vmem>>, %arg4: memref<1x2x128xf32, #tpu.memory_space<vmem>>, %arg5: memref<1x2x128xf32, #tpu.memory_space<vmem>>) attributes {dimension_semantics = [#tpu.dimension_semantics<parallel>, #tpu.dimension_semantics<arbitrary>], iteration_bounds = array<i64: 1, 1>, scalar_prefetch = 0 : i64, scratch_operands = 1 : i64, tpu.core_type = #tpu.core_type<tc>, window_params = [{transform_indices = @transform_0, window_bounds = array<i64: 1, 2, 2048>}, {transform_indices = @transform_1, window_bounds = array<i64: 1, 2048, 128>}, {transform_indices = @transform_2, window_bounds = array<i64: 1, 2, 128>}]} {
    %c0_i32 = arith.constant 0 : i32
    %0 = arith.cmpi eq, %arg1, %c0_i32 : i32
    %1 = arith.extui %0 : i1 to i32
    %c0_i32_0 = arith.constant 0 : i32
    %2 = arith.cmpi ne, %1, %c0_i32_0 : i32
    scf.if %2 {
      %cst_14 = arith.constant 0.000000e+00 : f32
      %17 = vector.broadcast %cst_14 : f32 to vector<1x2x128xf32>
      %c0_15 = arith.constant 0 : index
      %c0_16 = arith.constant 0 : index
      %c0_17 = arith.constant 0 : index
      %18 = vector.load %arg5[%c0_15, %c0_16, %c0_17] : memref<1x2x128xf32, #tpu.memory_space<vmem>>, vector<1x2x128xf32>
      tpu.vector_store %arg5[%c0_15, %c0_16, %c0_17], %17 {strides = array<i32>} : memref<1x2x128xf32, #tpu.memory_space<vmem>>, vector<1x2x128xf32>,
    } else {
    }
    %c0 = arith.constant 0 : index
    %c0_1 = arith.constant 0 : index
    %c0_2 = arith.constant 0 : index
    %3 = vector.load %arg5[%c0, %c0_1, %c0_2] : memref<1x2x128xf32, #tpu.memory_space<vmem>>, vector<1x2x128xf32>
    %4 = vector.shape_cast %3 : vector<1x2x128xf32> to vector<2x128xf32>
    %c0_3 = arith.constant 0 : index
    %c0_4 = arith.constant 0 : index
    %c0_5 = arith.constant 0 : index
    %5 = vector.load %arg2[%c0_3, %c0_4, %c0_5] : memref<1x2x2048xbf16, #tpu.memory_space<vmem>>, vector<1x2x2048xbf16>
    %6 = vector.shape_cast %5 : vector<1x2x2048xbf16> to vector<2x2048xbf16>
    %c0_6 = arith.constant 0 : index
    %c0_7 = arith.constant 0 : index
    %c0_8 = arith.constant 0 : index
    %7 = vector.load %arg3[%c0_6, %c0_7, %c0_8] : memref<1x2048x128xbf16, #tpu.memory_space<vmem>>, vector<1x2048x128xbf16>
    %8 = vector.shape_cast %7 : vector<1x2048x128xbf16> to vector<2048x128xbf16>
    %cst = arith.constant dense<0.000000e+00> : vector<2x128xf32>
    %9 = tpu.matmul %6, %8, %cst {dimension_numbers = #tpu.dot_dimension_numbers<[1], [0], [0], [1], [0, 0, 1, 1], [], []>} : vector<2x2048xbf16>, vector<2048x128xbf16>, vector<2x128xf32> -> vector<2x128xf32>
    %10 = arith.addf %4, %9 : vector<2x128xf32>
    %c0_9 = arith.constant 0 : index
    %c0_10 = arith.constant 0 : index
    %c0_11 = arith.constant 0 : index
    %11 = vector.load %arg5[%c0_9, %c0_10, %c0_11] : memref<1x2x128xf32, #tpu.memory_space<vmem>>, vector<1x2x128xf32>
    %12 = vector.shape_cast %11 : vector<1x2x128xf32> to vector<2x128xf32>
    %13 = vector.shape_cast %10 : vector<2x128xf32> to vector<1x2x128xf32>
    tpu.vector_store %arg5[%c0_9, %c0_10, %c0_11], %13 {strides = array<i32>} : memref<1x2x128xf32, #tpu.memory_space<vmem>>, vector<1x2x128xf32>,
    %c0_i32_12 = arith.constant 0 : i32
    %14 = arith.cmpi eq, %arg1, %c0_i32_12 : i32
    %15 = arith.extui %14 : i1 to i32
    %c0_i32_13 = arith.constant 0 : i32
    %16 = arith.cmpi ne, %15, %c0_i32_13 : i32
    scf.if %16 {
      %c0_14 = arith.constant 0 : index
      %c0_15 = arith.constant 0 : index
      %c0_16 = arith.constant 0 : index
      %17 = vector.load %arg5[%c0_14, %c0_15, %c0_16] : memref<1x2x128xf32, #tpu.memory_space<vmem>>, vector<1x2x128xf32>
      %cst_17 = arith.constant dense<0.000000e+00> : vector<1x128xf32>
      %18 = vector.multi_reduction <add>, %17, %cst_17 [1] : vector<1x2x128xf32> to vector<1x128xf32>
      %19 = vector.shape_cast %18 : vector<1x128xf32> to vector<1x1x128xf32>
      %cst_18 = arith.constant 2.000000e+00 : f32
      %20 = vector.broadcast %cst_18 : f32 to vector<1x1x128xf32>
      %21 = arith.divf %19, %20 : vector<1x1x128xf32>
      %cst_19 = arith.constant dense<0.000000e+00> : vector<1x128xf32>
      %22 = vector.multi_reduction <add>, %21, %cst_19 [0] : vector<1x1x128xf32> to vector<1x128xf32>
      %23 = vector.shape_cast %22 : vector<1x128xf32> to vector<1x1x128xf32>
      %cst_20 = arith.constant 1.000000e+00 : f32
      %24 = vector.broadcast %cst_20 : f32 to vector<1x1x128xf32>
      %25 = arith.divf %23, %24 : vector<1x1x128xf32>
      %26 = arith.mulf %17, %17 : vector<1x2x128xf32>
      %cst_21 = arith.constant dense<0.000000e+00> : vector<1x128xf32>
      %27 = vector.multi_reduction <add>, %26, %cst_21 [1] : vector<1x2x128xf32> to vector<1x128xf32>
      %28 = vector.shape_cast %27 : vector<1x128xf32> to vector<1x1x128xf32>
      %cst_22 = arith.constant 2.000000e+00 : f32
      %29 = vector.broadcast %cst_22 : f32 to vector<1x1x128xf32>
      %30 = arith.divf %28, %29 : vector<1x1x128xf32>
      %cst_23 = arith.constant dense<0.000000e+00> : vector<1x128xf32>
      %31 = vector.multi_reduction <add>, %30, %cst_23 [0] : vector<1x1x128xf32> to vector<1x128xf32>
      %32 = vector.shape_cast %31 : vector<1x128xf32> to vector<1x1x128xf32>
      %cst_24 = arith.constant 1.000000e+00 : f32
      %33 = vector.broadcast %cst_24 : f32 to vector<1x1x128xf32>
      %34 = arith.divf %32, %33 : vector<1x1x128xf32>
      %35 = arith.mulf %25, %25 : vector<1x1x128xf32>
      %36 = arith.subf %34, %35 : vector<1x1x128xf32>
      %cst_25 = arith.constant 0.000000e+00 : f32
      %37 = vector.broadcast %cst_25 : f32 to vector<1x1x128xf32>
      %38 = arith.maximumf %36, %37 : vector<1x1x128xf32>
      %39 = vector.broadcast %25 : vector<1x1x128xf32> to vector<1x2x128xf32>
      %40 = arith.subf %17, %39 : vector<1x2x128xf32>
      %cst_26 = arith.constant 9.99999974E-6 : f32
      %41 = vector.broadcast %cst_26 : f32 to vector<1x1x128xf32>
      %42 = arith.addf %38, %41 : vector<1x1x128xf32>
      %43 = math.rsqrt %42 : vector<1x1x128xf32>
      %44 = vector.broadcast %43 : vector<1x1x128xf32> to vector<1x2x128xf32>
      %45 = arith.mulf %40, %44 : vector<1x2x128xf32>
      %cst_27 = arith.constant 0.000000e+00 : f32
      %46 = vector.broadcast %cst_27 : f32 to vector<1x2x128xf32>
      %47 = arith.cmpf oge, %45, %46 : vector<1x2x128xf32>
      %cst_28 = arith.constant 2.000000e-01 : f32
      %48 = vector.broadcast %cst_28 : f32 to vector<1x2x128xf32>
      %49 = arith.mulf %48, %45 : vector<1x2x128xf32>
      %50 = arith.select %47, %45, %49 : vector<1x2x128xi1>, vector<1x2x128xf32>
      %c0_29 = arith.constant 0 : index
      %c0_30 = arith.constant 0 : index
      %c0_31 = arith.constant 0 : index
      %51 = vector.load %arg4[%c0_29, %c0_30, %c0_31] : memref<1x2x128xf32, #tpu.memory_space<vmem>>, vector<1x2x128xf32>
      tpu.vector_store %arg4[%c0_29, %c0_30, %c0_31], %50 {strides = array<i32>} : memref<1x2x128xf32, #tpu.memory_space<vmem>>, vector<1x2x128xf32>,
    } else {
    }
    return
  }
  func.func @transform_0(%arg0: i32, %arg1: i32) -> (i32, i32, i32) {
    %c0_i32 = arith.constant 0 : i32
    %c0_i32_0 = arith.constant 0 : i32
    %c0_i32_1 = arith.constant 0 : i32
    return %c0_i32, %c0_i32_0, %arg1 : i32, i32, i32
  }
  func.func @transform_1(%arg0: i32, %arg1: i32) -> (i32, i32, i32) {
    %c0_i32 = arith.constant 0 : i32
    %c0_i32_0 = arith.constant 0 : i32
    return %c0_i32, %arg1, %arg0 : i32, i32, i32
  }
  func.func @transform_2(%arg0: i32, %arg1: i32) -> (i32, i32, i32) {
    %c0_i32 = arith.constant 0 : i32
    %c0_i32_0 = arith.constant 0 : i32
    %c0_i32_1 = arith.constant 0 : i32
    return %c0_i32, %c0_i32_0, %arg0 : i32, i32, i32
  }
}

module attributes {stable_mosaic.version = 11 : i64} {
  func.func @_fused_matmul_kernel(%arg0: i32, %arg1: i32, %arg2: memref<1x2x128xbf16, #tpu.memory_space<vmem>>, %arg3: memref<1x128x32xbf16, #tpu.memory_space<vmem>>, %arg4: memref<1x1x32xf32, #tpu.memory_space<vmem>>, %arg5: memref<1x2x32xf32, #tpu.memory_space<vmem>>, %arg6: memref<1x2x32xf32, #tpu.memory_space<vmem>>) attributes {dimension_semantics = [#tpu.dimension_semantics<parallel>, #tpu.dimension_semantics<arbitrary>], iteration_bounds = array<i64: 1, 1>, scalar_prefetch = 0 : i64, scratch_operands = 1 : i64, tpu.core_type = #tpu.core_type<tc>, window_params = [{transform_indices = @transform_0, window_bounds = array<i64: 1, 2, 128>}, {transform_indices = @transform_1, window_bounds = array<i64: 1, 128, 32>}, {transform_indices = @transform_2, window_bounds = array<i64: 1, 1, 32>}, {transform_indices = @transform_3, window_bounds = array<i64: 1, 2, 32>}]} {
    %c0_i32 = arith.constant 0 : i32
    %0 = arith.cmpi eq, %arg1, %c0_i32 : i32
    %1 = arith.extui %0 : i1 to i32
    %c0_i32_0 = arith.constant 0 : i32
    %2 = arith.cmpi ne, %1, %c0_i32_0 : i32
    scf.if %2 {
      %cst_14 = arith.constant 0.000000e+00 : f32
      %17 = vector.broadcast %cst_14 : f32 to vector<1x2x32xf32>
      %c0_15 = arith.constant 0 : index
      %c0_16 = arith.constant 0 : index
      %c0_17 = arith.constant 0 : index
      %18 = vector.load %arg6[%c0_15, %c0_16, %c0_17] : memref<1x2x32xf32, #tpu.memory_space<vmem>>, vector<1x2x32xf32>
      tpu.vector_store %arg6[%c0_15, %c0_16, %c0_17], %17 {strides = array<i32>} : memref<1x2x32xf32, #tpu.memory_space<vmem>>, vector<1x2x32xf32>,
    } else {
    }
    %c0 = arith.constant 0 : index
    %c0_1 = arith.constant 0 : index
    %c0_2 = arith.constant 0 : index
    %3 = vector.load %arg6[%c0, %c0_1, %c0_2] : memref<1x2x32xf32, #tpu.memory_space<vmem>>, vector<1x2x32xf32>
    %4 = vector.shape_cast %3 : vector<1x2x32xf32> to vector<2x32xf32>
    %c0_3 = arith.constant 0 : index
    %c0_4 = arith.constant 0 : index
    %c0_5 = arith.constant 0 : index
    %5 = vector.load %arg2[%c0_3, %c0_4, %c0_5] : memref<1x2x128xbf16, #tpu.memory_space<vmem>>, vector<1x2x128xbf16>
    %6 = vector.shape_cast %5 : vector<1x2x128xbf16> to vector<2x128xbf16>
    %c0_6 = arith.constant 0 : index
    %c0_7 = arith.constant 0 : index
    %c0_8 = arith.constant 0 : index
    %7 = vector.load %arg3[%c0_6, %c0_7, %c0_8] : memref<1x128x32xbf16, #tpu.memory_space<vmem>>, vector<1x128x32xbf16>
    %8 = vector.shape_cast %7 : vector<1x128x32xbf16> to vector<128x32xbf16>
    %cst = arith.constant dense<0.000000e+00> : vector<2x32xf32>
    %9 = tpu.matmul %6, %8, %cst {dimension_numbers = #tpu.dot_dimension_numbers<[1], [0], [0], [1], [0, 0, 1, 1], [], []>} : vector<2x128xbf16>, vector<128x32xbf16>, vector<2x32xf32> -> vector<2x32xf32>
    %10 = arith.addf %4, %9 : vector<2x32xf32>
    %c0_9 = arith.constant 0 : index
    %c0_10 = arith.constant 0 : index
    %c0_11 = arith.constant 0 : index
    %11 = vector.load %arg6[%c0_9, %c0_10, %c0_11] : memref<1x2x32xf32, #tpu.memory_space<vmem>>, vector<1x2x32xf32>
    %12 = vector.shape_cast %11 : vector<1x2x32xf32> to vector<2x32xf32>
    %13 = vector.shape_cast %10 : vector<2x32xf32> to vector<1x2x32xf32>
    tpu.vector_store %arg6[%c0_9, %c0_10, %c0_11], %13 {strides = array<i32>} : memref<1x2x32xf32, #tpu.memory_space<vmem>>, vector<1x2x32xf32>,
    %c0_i32_12 = arith.constant 0 : i32
    %14 = arith.cmpi eq, %arg1, %c0_i32_12 : i32
    %15 = arith.extui %14 : i1 to i32
    %c0_i32_13 = arith.constant 0 : i32
    %16 = arith.cmpi ne, %15, %c0_i32_13 : i32
    scf.if %16 {
      %c0_14 = arith.constant 0 : index
      %c0_15 = arith.constant 0 : index
      %c0_16 = arith.constant 0 : index
      %17 = vector.load %arg6[%c0_14, %c0_15, %c0_16] : memref<1x2x32xf32, #tpu.memory_space<vmem>>, vector<1x2x32xf32>
      %c0_17 = arith.constant 0 : index
      %c0_18 = arith.constant 0 : index
      %c0_19 = arith.constant 0 : index
      %18 = vector.load %arg4[%c0_17, %c0_18, %c0_19] : memref<1x1x32xf32, #tpu.memory_space<vmem>>, vector<1x1x32xf32>
      %19 = vector.broadcast %18 : vector<1x1x32xf32> to vector<1x2x32xf32>
      %20 = arith.addf %17, %19 : vector<1x2x32xf32>
      %c0_20 = arith.constant 0 : index
      %c0_21 = arith.constant 0 : index
      %c0_22 = arith.constant 0 : index
      %21 = vector.load %arg5[%c0_20, %c0_21, %c0_22] : memref<1x2x32xf32, #tpu.memory_space<vmem>>, vector<1x2x32xf32>
      tpu.vector_store %arg5[%c0_20, %c0_21, %c0_22], %20 {strides = array<i32>} : memref<1x2x32xf32, #tpu.memory_space<vmem>>, vector<1x2x32xf32>,
    } else {
    }
    return
  }
  func.func @transform_0(%arg0: i32, %arg1: i32) -> (i32, i32, i32) {
    %c0_i32 = arith.constant 0 : i32
    %c0_i32_0 = arith.constant 0 : i32
    %c0_i32_1 = arith.constant 0 : i32
    return %c0_i32, %c0_i32_0, %arg1 : i32, i32, i32
  }
  func.func @transform_1(%arg0: i32, %arg1: i32) -> (i32, i32, i32) {
    %c0_i32 = arith.constant 0 : i32
    %c0_i32_0 = arith.constant 0 : i32
    return %c0_i32, %arg1, %arg0 : i32, i32, i32
  }
  func.func @transform_2(%arg0: i32, %arg1: i32) -> (i32, i32, i32) {
    %c0_i32 = arith.constant 0 : i32
    %c0_i32_0 = arith.constant 0 : i32
    %c0_i32_1 = arith.constant 0 : i32
    return %c0_i32, %c0_i32_0, %arg0 : i32, i32, i32
  }
  func.func @transform_3(%arg0: i32, %arg1: i32) -> (i32, i32, i32) {
    %c0_i32 = arith.constant 0 : i32
    %c0_i32_0 = arith.constant 0 : i32
    %c0_i32_1 = arith.constant 0 : i32
    return %c0_i32, %c0_i32_0, %arg0 : i32, i32, i32
  }
}

module attributes {stable_mosaic.version = 11 : i64} {
  func.func @_fused_matmul_kernel(%arg0: i32, %arg1: i32, %arg2: memref<1x2x16xbf16, #tpu.memory_space<vmem>>, %arg3: memref<1x16x128xbf16, #tpu.memory_space<vmem>>, %arg4: memref<1x2x128xf32, #tpu.memory_space<vmem>>, %arg5: memref<1x2x128xf32, #tpu.memory_space<vmem>>) attributes {dimension_semantics = [#tpu.dimension_semantics<parallel>, #tpu.dimension_semantics<arbitrary>], iteration_bounds = array<i64: 1, 1>, scalar_prefetch = 0 : i64, scratch_operands = 1 : i64, tpu.core_type = #tpu.core_type<tc>, window_params = [{transform_indices = @transform_0, window_bounds = array<i64: 1, 2, 16>}, {transform_indices = @transform_1, window_bounds = array<i64: 1, 16, 128>}, {transform_indices = @transform_2, window_bounds = array<i64: 1, 2, 128>}]} {
    %c0_i32 = arith.constant 0 : i32
    %0 = arith.cmpi eq, %arg1, %c0_i32 : i32
    %1 = arith.extui %0 : i1 to i32
    %c0_i32_0 = arith.constant 0 : i32
    %2 = arith.cmpi ne, %1, %c0_i32_0 : i32
    scf.if %2 {
      %cst_14 = arith.constant 0.000000e+00 : f32
      %17 = vector.broadcast %cst_14 : f32 to vector<1x2x128xf32>
      %c0_15 = arith.constant 0 : index
      %c0_16 = arith.constant 0 : index
      %c0_17 = arith.constant 0 : index
      %18 = vector.load %arg5[%c0_15, %c0_16, %c0_17] : memref<1x2x128xf32, #tpu.memory_space<vmem>>, vector<1x2x128xf32>
      tpu.vector_store %arg5[%c0_15, %c0_16, %c0_17], %17 {strides = array<i32>} : memref<1x2x128xf32, #tpu.memory_space<vmem>>, vector<1x2x128xf32>,
    } else {
    }
    %c0 = arith.constant 0 : index
    %c0_1 = arith.constant 0 : index
    %c0_2 = arith.constant 0 : index
    %3 = vector.load %arg5[%c0, %c0_1, %c0_2] : memref<1x2x128xf32, #tpu.memory_space<vmem>>, vector<1x2x128xf32>
    %4 = vector.shape_cast %3 : vector<1x2x128xf32> to vector<2x128xf32>
    %c0_3 = arith.constant 0 : index
    %c0_4 = arith.constant 0 : index
    %c0_5 = arith.constant 0 : index
    %5 = vector.load %arg2[%c0_3, %c0_4, %c0_5] : memref<1x2x16xbf16, #tpu.memory_space<vmem>>, vector<1x2x16xbf16>
    %6 = vector.shape_cast %5 : vector<1x2x16xbf16> to vector<2x16xbf16>
    %c0_6 = arith.constant 0 : index
    %c0_7 = arith.constant 0 : index
    %c0_8 = arith.constant 0 : index
    %7 = vector.load %arg3[%c0_6, %c0_7, %c0_8] : memref<1x16x128xbf16, #tpu.memory_space<vmem>>, vector<1x16x128xbf16>
    %8 = vector.shape_cast %7 : vector<1x16x128xbf16> to vector<16x128xbf16>
    %cst = arith.constant dense<0.000000e+00> : vector<2x128xf32>
    %9 = tpu.matmul %6, %8, %cst {dimension_numbers = #tpu.dot_dimension_numbers<[1], [0], [0], [1], [0, 0, 1, 1], [], []>} : vector<2x16xbf16>, vector<16x128xbf16>, vector<2x128xf32> -> vector<2x128xf32>
    %10 = arith.addf %4, %9 : vector<2x128xf32>
    %c0_9 = arith.constant 0 : index
    %c0_10 = arith.constant 0 : index
    %c0_11 = arith.constant 0 : index
    %11 = vector.load %arg5[%c0_9, %c0_10, %c0_11] : memref<1x2x128xf32, #tpu.memory_space<vmem>>, vector<1x2x128xf32>
    %12 = vector.shape_cast %11 : vector<1x2x128xf32> to vector<2x128xf32>
    %13 = vector.shape_cast %10 : vector<2x128xf32> to vector<1x2x128xf32>
    tpu.vector_store %arg5[%c0_9, %c0_10, %c0_11], %13 {strides = array<i32>} : memref<1x2x128xf32, #tpu.memory_space<vmem>>, vector<1x2x128xf32>,
    %c0_i32_12 = arith.constant 0 : i32
    %14 = arith.cmpi eq, %arg1, %c0_i32_12 : i32
    %15 = arith.extui %14 : i1 to i32
    %c0_i32_13 = arith.constant 0 : i32
    %16 = arith.cmpi ne, %15, %c0_i32_13 : i32
    scf.if %16 {
      %c0_14 = arith.constant 0 : index
      %c0_15 = arith.constant 0 : index
      %c0_16 = arith.constant 0 : index
      %17 = vector.load %arg5[%c0_14, %c0_15, %c0_16] : memref<1x2x128xf32, #tpu.memory_space<vmem>>, vector<1x2x128xf32>
      %cst_17 = arith.constant dense<0.000000e+00> : vector<1x128xf32>
      %18 = vector.multi_reduction <add>, %17, %cst_17 [1] : vector<1x2x128xf32> to vector<1x128xf32>
      %19 = vector.shape_cast %18 : vector<1x128xf32> to vector<1x1x128xf32>
      %cst_18 = arith.constant 2.000000e+00 : f32
      %20 = vector.broadcast %cst_18 : f32 to vector<1x1x128xf32>
      %21 = arith.divf %19, %20 : vector<1x1x128xf32>
      %cst_19 = arith.constant dense<0.000000e+00> : vector<1x128xf32>
      %22 = vector.multi_reduction <add>, %21, %cst_19 [0] : vector<1x1x128xf32> to vector<1x128xf32>
      %23 = vector.shape_cast %22 : vector<1x128xf32> to vector<1x1x128xf32>
      %cst_20 = arith.constant 1.000000e+00 : f32
      %24 = vector.broadcast %cst_20 : f32 to vector<1x1x128xf32>
      %25 = arith.divf %23, %24 : vector<1x1x128xf32>
      %26 = arith.mulf %17, %17 : vector<1x2x128xf32>
      %cst_21 = arith.constant dense<0.000000e+00> : vector<1x128xf32>
      %27 = vector.multi_reduction <add>, %26, %cst_21 [1] : vector<1x2x128xf32> to vector<1x128xf32>
      %28 = vector.shape_cast %27 : vector<1x128xf32> to vector<1x1x128xf32>
      %cst_22 = arith.constant 2.000000e+00 : f32
      %29 = vector.broadcast %cst_22 : f32 to vector<1x1x128xf32>
      %30 = arith.divf %28, %29 : vector<1x1x128xf32>
      %cst_23 = arith.constant dense<0.000000e+00> : vector<1x128xf32>
      %31 = vector.multi_reduction <add>, %30, %cst_23 [0] : vector<1x1x128xf32> to vector<1x128xf32>
      %32 = vector.shape_cast %31 : vector<1x128xf32> to vector<1x1x128xf32>
      %cst_24 = arith.constant 1.000000e+00 : f32
      %33 = vector.broadcast %cst_24 : f32 to vector<1x1x128xf32>
      %34 = arith.divf %32, %33 : vector<1x1x128xf32>
      %35 = arith.mulf %25, %25 : vector<1x1x128xf32>
      %36 = arith.subf %34, %35 : vector<1x1x128xf32>
      %cst_25 = arith.constant 0.000000e+00 : f32
      %37 = vector.broadcast %cst_25 : f32 to vector<1x1x128xf32>
      %38 = arith.maximumf %36, %37 : vector<1x1x128xf32>
      %39 = vector.broadcast %25 : vector<1x1x128xf32> to vector<1x2x128xf32>
      %40 = arith.subf %17, %39 : vector<1x2x128xf32>
      %cst_26 = arith.constant 9.99999974E-6 : f32
      %41 = vector.broadcast %cst_26 : f32 to vector<1x1x128xf32>
      %42 = arith.addf %38, %41 : vector<1x1x128xf32>
      %43 = math.rsqrt %42 : vector<1x1x128xf32>
      %44 = vector.broadcast %43 : vector<1x1x128xf32> to vector<1x2x128xf32>
      %45 = arith.mulf %40, %44 : vector<1x2x128xf32>
      %cst_27 = arith.constant 0.000000e+00 : f32
      %46 = vector.broadcast %cst_27 : f32 to vector<1x2x128xf32>
      %47 = arith.cmpf oge, %45, %46 : vector<1x2x128xf32>
      %cst_28 = arith.constant 2.000000e-01 : f32
      %48 = vector.broadcast %cst_28 : f32 to vector<1x2x128xf32>
      %49 = arith.mulf %48, %45 : vector<1x2x128xf32>
      %50 = arith.select %47, %45, %49 : vector<1x2x128xi1>, vector<1x2x128xf32>
      %c0_29 = arith.constant 0 : index
      %c0_30 = arith.constant 0 : index
      %c0_31 = arith.constant 0 : index
      %51 = vector.load %arg4[%c0_29, %c0_30, %c0_31] : memref<1x2x128xf32, #tpu.memory_space<vmem>>, vector<1x2x128xf32>
      tpu.vector_store %arg4[%c0_29, %c0_30, %c0_31], %50 {strides = array<i32>} : memref<1x2x128xf32, #tpu.memory_space<vmem>>, vector<1x2x128xf32>,
    } else {
    }
    return
  }
  func.func @transform_0(%arg0: i32, %arg1: i32) -> (i32, i32, i32) {
    %c0_i32 = arith.constant 0 : i32
    %c0_i32_0 = arith.constant 0 : i32
    %c0_i32_1 = arith.constant 0 : i32
    return %c0_i32, %c0_i32_0, %arg1 : i32, i32, i32
  }
  func.func @transform_1(%arg0: i32, %arg1: i32) -> (i32, i32, i32) {
    %c0_i32 = arith.constant 0 : i32
    %c0_i32_0 = arith.constant 0 : i32
    return %c0_i32, %arg1, %arg0 : i32, i32, i32
  }
  func.func @transform_2(%arg0: i32, %arg1: i32) -> (i32, i32, i32) {
    %c0_i32 = arith.constant 0 : i32
    %c0_i32_0 = arith.constant 0 : i32
    %c0_i32_1 = arith.constant 0 : i32
    return %c0_i32, %c0_i32_0, %arg0 : i32, i32, i32
  }
}

module attributes {stable_mosaic.version = 11 : i64} {
  func.func @_fused_matmul_kernel(%arg0: i32, %arg1: i32, %arg2: memref<4x2x512xbf16, #tpu.memory_space<vmem>>, %arg3: memref<4x512x128xbf16, #tpu.memory_space<vmem>>, %arg4: memref<4x2x128xf32, #tpu.memory_space<vmem>>, %arg5: memref<4x2x128xf32, #tpu.memory_space<vmem>>) attributes {dimension_semantics = [#tpu.dimension_semantics<parallel>, #tpu.dimension_semantics<arbitrary>], iteration_bounds = array<i64: 1, 1>, scalar_prefetch = 0 : i64, scratch_operands = 1 : i64, tpu.core_type = #tpu.core_type<tc>, window_params = [{transform_indices = @transform_0, window_bounds = array<i64: 4, 2, 512>}, {transform_indices = @transform_1, window_bounds = array<i64: 4, 512, 128>}, {transform_indices = @transform_2, window_bounds = array<i64: 4, 2, 128>}]} {
    %c0_i32 = arith.constant 0 : i32
    %0 = arith.cmpi eq, %arg1, %c0_i32 : i32
    %1 = arith.extui %0 : i1 to i32
    %c0_i32_0 = arith.constant 0 : i32
    %2 = arith.cmpi ne, %1, %c0_i32_0 : i32
    scf.if %2 {
      %cst_50 = arith.constant 0.000000e+00 : f32
      %50 = vector.broadcast %cst_50 : f32 to vector<4x2x128xf32>
      %c0_51 = arith.constant 0 : index
      %c0_52 = arith.constant 0 : index
      %c0_53 = arith.constant 0 : index
      %51 = vector.load %arg5[%c0_51, %c0_52, %c0_53] : memref<4x2x128xf32, #tpu.memory_space<vmem>>, vector<4x2x128xf32>
      tpu.vector_store %arg5[%c0_51, %c0_52, %c0_53], %50 {strides = array<i32>} : memref<4x2x128xf32, #tpu.memory_space<vmem>>, vector<4x2x128xf32>,
    } else {
    }
    %c0 = arith.constant 0 : index
    %c0_1 = arith.constant 0 : index
    %c0_2 = arith.constant 0 : index
    %3 = vector.load %arg5[%c0, %c0_1, %c0_2] : memref<4x2x128xf32, #tpu.memory_space<vmem>>, vector<1x2x128xf32>
    %4 = vector.shape_cast %3 : vector<1x2x128xf32> to vector<2x128xf32>
    %c0_3 = arith.constant 0 : index
    %c0_4 = arith.constant 0 : index
    %c0_5 = arith.constant 0 : index
    %5 = vector.load %arg2[%c0_3, %c0_4, %c0_5] : memref<4x2x512xbf16, #tpu.memory_space<vmem>>, vector<1x2x512xbf16>
    %6 = vector.shape_cast %5 : vector<1x2x512xbf16> to vector<2x512xbf16>
    %c0_6 = arith.constant 0 : index
    %c0_7 = arith.constant 0 : index
    %c0_8 = arith.constant 0 : index
    %7 = vector.load %arg3[%c0_6, %c0_7, %c0_8] : memref<4x512x128xbf16, #tpu.memory_space<vmem>>, vector<1x512x128xbf16>
    %8 = vector.shape_cast %7 : vector<1x512x128xbf16> to vector<512x128xbf16>
    %cst = arith.constant dense<0.000000e+00> : vector<2x128xf32>
    %9 = tpu.matmul %6, %8, %cst {dimension_numbers = #tpu.dot_dimension_numbers<[1], [0], [0], [1], [0, 0, 1, 1], [], []>} : vector<2x512xbf16>, vector<512x128xbf16>, vector<2x128xf32> -> vector<2x128xf32>
    %10 = arith.addf %4, %9 : vector<2x128xf32>
    %c0_9 = arith.constant 0 : index
    %c0_10 = arith.constant 0 : index
    %c0_11 = arith.constant 0 : index
    %11 = vector.load %arg5[%c0_9, %c0_10, %c0_11] : memref<4x2x128xf32, #tpu.memory_space<vmem>>, vector<1x2x128xf32>
    %12 = vector.shape_cast %11 : vector<1x2x128xf32> to vector<2x128xf32>
    %13 = vector.shape_cast %10 : vector<2x128xf32> to vector<1x2x128xf32>
    tpu.vector_store %arg5[%c0_9, %c0_10, %c0_11], %13 {strides = array<i32>} : memref<4x2x128xf32, #tpu.memory_space<vmem>>, vector<1x2x128xf32>,
    %c1 = arith.constant 1 : index
    %c0_12 = arith.constant 0 : index
    %c0_13 = arith.constant 0 : index
    %14 = vector.load %arg5[%c1, %c0_12, %c0_13] : memref<4x2x128xf32, #tpu.memory_space<vmem>>, vector<1x2x128xf32>
    %15 = vector.shape_cast %14 : vector<1x2x128xf32> to vector<2x128xf32>
    %c1_14 = arith.constant 1 : index
    %c0_15 = arith.constant 0 : index
    %c0_16 = arith.constant 0 : index
    %16 = vector.load %arg2[%c1_14, %c0_15, %c0_16] : memref<4x2x512xbf16, #tpu.memory_space<vmem>>, vector<1x2x512xbf16>
    %17 = vector.shape_cast %16 : vector<1x2x512xbf16> to vector<2x512xbf16>
    %c1_17 = arith.constant 1 : index
    %c0_18 = arith.constant 0 : index
    %c0_19 = arith.constant 0 : index
    %18 = vector.load %arg3[%c1_17, %c0_18, %c0_19] : memref<4x512x128xbf16, #tpu.memory_space<vmem>>, vector<1x512x128xbf16>
    %19 = vector.shape_cast %18 : vector<1x512x128xbf16> to vector<512x128xbf16>
    %cst_20 = arith.constant dense<0.000000e+00> : vector<2x128xf32>
    %20 = tpu.matmul %17, %19, %cst_20 {dimension_numbers = #tpu.dot_dimension_numbers<[1], [0], [0], [1], [0, 0, 1, 1], [], []>} : vector<2x512xbf16>, vector<512x128xbf16>, vector<2x128xf32> -> vector<2x128xf32>
    %21 = arith.addf %15, %20 : vector<2x128xf32>
    %c1_21 = arith.constant 1 : index
    %c0_22 = arith.constant 0 : index
    %c0_23 = arith.constant 0 : index
    %22 = vector.load %arg5[%c1_21, %c0_22, %c0_23] : memref<4x2x128xf32, #tpu.memory_space<vmem>>, vector<1x2x128xf32>
    %23 = vector.shape_cast %22 : vector<1x2x128xf32> to vector<2x128xf32>
    %24 = vector.shape_cast %21 : vector<2x128xf32> to vector<1x2x128xf32>
    tpu.vector_store %arg5[%c1_21, %c0_22, %c0_23], %24 {strides = array<i32>} : memref<4x2x128xf32, #tpu.memory_space<vmem>>, vector<1x2x128xf32>,
    %c2 = arith.constant 2 : index
    %c0_24 = arith.constant 0 : index
    %c0_25 = arith.constant 0 : index
    %25 = vector.load %arg5[%c2, %c0_24, %c0_25] : memref<4x2x128xf32, #tpu.memory_space<vmem>>, vector<1x2x128xf32>
    %26 = vector.shape_cast %25 : vector<1x2x128xf32> to vector<2x128xf32>
    %c2_26 = arith.constant 2 : index
    %c0_27 = arith.constant 0 : index
    %c0_28 = arith.constant 0 : index
    %27 = vector.load %arg2[%c2_26, %c0_27, %c0_28] : memref<4x2x512xbf16, #tpu.memory_space<vmem>>, vector<1x2x512xbf16>
    %28 = vector.shape_cast %27 : vector<1x2x512xbf16> to vector<2x512xbf16>
    %c2_29 = arith.constant 2 : index
    %c0_30 = arith.constant 0 : index
    %c0_31 = arith.constant 0 : index
    %29 = vector.load %arg3[%c2_29, %c0_30, %c0_31] : memref<4x512x128xbf16, #tpu.memory_space<vmem>>, vector<1x512x128xbf16>
    %30 = vector.shape_cast %29 : vector<1x512x128xbf16> to vector<512x128xbf16>
    %cst_32 = arith.constant dense<0.000000e+00> : vector<2x128xf32>
    %31 = tpu.matmul %28, %30, %cst_32 {dimension_numbers = #tpu.dot_dimension_numbers<[1], [0], [0], [1], [0, 0, 1, 1], [], []>} : vector<2x512xbf16>, vector<512x128xbf16>, vector<2x128xf32> -> vector<2x128xf32>
    %32 = arith.addf %26, %31 : vector<2x128xf32>
    %c2_33 = arith.constant 2 : index
    %c0_34 = arith.constant 0 : index
    %c0_35 = arith.constant 0 : index
    %33 = vector.load %arg5[%c2_33, %c0_34, %c0_35] : memref<4x2x128xf32, #tpu.memory_space<vmem>>, vector<1x2x128xf32>
    %34 = vector.shape_cast %33 : vector<1x2x128xf32> to vector<2x128xf32>
    %35 = vector.shape_cast %32 : vector<2x128xf32> to vector<1x2x128xf32>
    tpu.vector_store %arg5[%c2_33, %c0_34, %c0_35], %35 {strides = array<i32>} : memref<4x2x128xf32, #tpu.memory_space<vmem>>, vector<1x2x128xf32>,
    %c3 = arith.constant 3 : index
    %c0_36 = arith.constant 0 : index
    %c0_37 = arith.constant 0 : index
    %36 = vector.load %arg5[%c3, %c0_36, %c0_37] : memref<4x2x128xf32, #tpu.memory_space<vmem>>, vector<1x2x128xf32>
    %37 = vector.shape_cast %36 : vector<1x2x128xf32> to vector<2x128xf32>
    %c3_38 = arith.constant 3 : index
    %c0_39 = arith.constant 0 : index
    %c0_40 = arith.constant 0 : index
    %38 = vector.load %arg2[%c3_38, %c0_39, %c0_40] : memref<4x2x512xbf16, #tpu.memory_space<vmem>>, vector<1x2x512xbf16>
    %39 = vector.shape_cast %38 : vector<1x2x512xbf16> to vector<2x512xbf16>
    %c3_41 = arith.constant 3 : index
    %c0_42 = arith.constant 0 : index
    %c0_43 = arith.constant 0 : index
    %40 = vector.load %arg3[%c3_41, %c0_42, %c0_43] : memref<4x512x128xbf16, #tpu.memory_space<vmem>>, vector<1x512x128xbf16>
    %41 = vector.shape_cast %40 : vector<1x512x128xbf16> to vector<512x128xbf16>
    %cst_44 = arith.constant dense<0.000000e+00> : vector<2x128xf32>
    %42 = tpu.matmul %39, %41, %cst_44 {dimension_numbers = #tpu.dot_dimension_numbers<[1], [0], [0], [1], [0, 0, 1, 1], [], []>} : vector<2x512xbf16>, vector<512x128xbf16>, vector<2x128xf32> -> vector<2x128xf32>
    %43 = arith.addf %37, %42 : vector<2x128xf32>
    %c3_45 = arith.constant 3 : index
    %c0_46 = arith.constant 0 : index
    %c0_47 = arith.constant 0 : index
    %44 = vector.load %arg5[%c3_45, %c0_46, %c0_47] : memref<4x2x128xf32, #tpu.memory_space<vmem>>, vector<1x2x128xf32>
    %45 = vector.shape_cast %44 : vector<1x2x128xf32> to vector<2x128xf32>
    %46 = vector.shape_cast %43 : vector<2x128xf32> to vector<1x2x128xf32>
    tpu.vector_store %arg5[%c3_45, %c0_46, %c0_47], %46 {strides = array<i32>} : memref<4x2x128xf32, #tpu.memory_space<vmem>>, vector<1x2x128xf32>,
    %c0_i32_48 = arith.constant 0 : i32
    %47 = arith.cmpi eq, %arg1, %c0_i32_48 : i32
    %48 = arith.extui %47 : i1 to i32
    %c0_i32_49 = arith.constant 0 : i32
    %49 = arith.cmpi ne, %48, %c0_i32_49 : i32
    scf.if %49 {
      %c0_50 = arith.constant 0 : index
      %c0_51 = arith.constant 0 : index
      %c0_52 = arith.constant 0 : index
      %50 = vector.load %arg5[%c0_50, %c0_51, %c0_52] : memref<4x2x128xf32, #tpu.memory_space<vmem>>, vector<4x2x128xf32>
      %cst_53 = arith.constant dense<0.000000e+00> : vector<4x128xf32>
      %51 = vector.multi_reduction <add>, %50, %cst_53 [1] : vector<4x2x128xf32> to vector<4x128xf32>
      %52 = vector.shape_cast %51 : vector<4x128xf32> to vector<4x1x128xf32>
      %cst_54 = arith.constant 2.000000e+00 : f32
      %53 = vector.broadcast %cst_54 : f32 to vector<4x1x128xf32>
      %54 = arith.divf %52, %53 : vector<4x1x128xf32>
      %cst_55 = arith.constant dense<0.000000e+00> : vector<1x128xf32>
      %55 = vector.multi_reduction <add>, %54, %cst_55 [0] : vector<4x1x128xf32> to vector<1x128xf32>
      %56 = vector.shape_cast %55 : vector<1x128xf32> to vector<1x1x128xf32>
      %cst_56 = arith.constant 4.000000e+00 : f32
      %57 = vector.broadcast %cst_56 : f32 to vector<1x1x128xf32>
      %58 = arith.divf %56, %57 : vector<1x1x128xf32>
      %59 = arith.mulf %50, %50 : vector<4x2x128xf32>
      %cst_57 = arith.constant dense<0.000000e+00> : vector<4x128xf32>
      %60 = vector.multi_reduction <add>, %59, %cst_57 [1] : vector<4x2x128xf32> to vector<4x128xf32>
      %61 = vector.shape_cast %60 : vector<4x128xf32> to vector<4x1x128xf32>
      %cst_58 = arith.constant 2.000000e+00 : f32
      %62 = vector.broadcast %cst_58 : f32 to vector<4x1x128xf32>
      %63 = arith.divf %61, %62 : vector<4x1x128xf32>
      %cst_59 = arith.constant dense<0.000000e+00> : vector<1x128xf32>
      %64 = vector.multi_reduction <add>, %63, %cst_59 [0] : vector<4x1x128xf32> to vector<1x128xf32>
      %65 = vector.shape_cast %64 : vector<1x128xf32> to vector<1x1x128xf32>
      %cst_60 = arith.constant 4.000000e+00 : f32
      %66 = vector.broadcast %cst_60 : f32 to vector<1x1x128xf32>
      %67 = arith.divf %65, %66 : vector<1x1x128xf32>
      %68 = arith.mulf %58, %58 : vector<1x1x128xf32>
      %69 = arith.subf %67, %68 : vector<1x1x128xf32>
      %cst_61 = arith.constant 0.000000e+00 : f32
      %70 = vector.broadcast %cst_61 : f32 to vector<1x1x128xf32>
      %71 = arith.maximumf %69, %70 : vector<1x1x128xf32>
      %72 = vector.broadcast %58 : vector<1x1x128xf32> to vector<4x2x128xf32>
      %73 = arith.subf %50, %72 : vector<4x2x128xf32>
      %cst_62 = arith.constant 9.99999974E-6 : f32
      %74 = vector.broadcast %cst_62 : f32 to vector<1x1x128xf32>
      %75 = arith.addf %71, %74 : vector<1x1x128xf32>
      %76 = math.rsqrt %75 : vector<1x1x128xf32>
      %77 = vector.broadcast %76 : vector<1x1x128xf32> to vector<4x2x128xf32>
      %78 = arith.mulf %73, %77 : vector<4x2x128xf32>
      %cst_63 = arith.constant 0.000000e+00 : f32
      %79 = vector.broadcast %cst_63 : f32 to vector<4x2x128xf32>
      %80 = arith.cmpf oge, %78, %79 : vector<4x2x128xf32>
      %cst_64 = arith.constant 2.000000e-01 : f32
      %81 = vector.broadcast %cst_64 : f32 to vector<4x2x128xf32>
      %82 = arith.mulf %81, %78 : vector<4x2x128xf32>
      %83 = arith.select %80, %78, %82 : vector<4x2x128xi1>, vector<4x2x128xf32>
      %c0_65 = arith.constant 0 : index
      %c0_66 = arith.constant 0 : index
      %c0_67 = arith.constant 0 : index
      %84 = vector.load %arg4[%c0_65, %c0_66, %c0_67] : memref<4x2x128xf32, #tpu.memory_space<vmem>>, vector<4x2x128xf32>
      tpu.vector_store %arg4[%c0_65, %c0_66, %c0_67], %83 {strides = array<i32>} : memref<4x2x128xf32, #tpu.memory_space<vmem>>, vector<4x2x128xf32>,
    } else {
    }
    return
  }
  func.func @transform_0(%arg0: i32, %arg1: i32) -> (i32, i32, i32) {
    %c0_i32 = arith.constant 0 : i32
    %c0_i32_0 = arith.constant 0 : i32
    %c0_i32_1 = arith.constant 0 : i32
    return %c0_i32, %c0_i32_0, %arg1 : i32, i32, i32
  }
  func.func @transform_1(%arg0: i32, %arg1: i32) -> (i32, i32, i32) {
    %c0_i32 = arith.constant 0 : i32
    %c0_i32_0 = arith.constant 0 : i32
    return %c0_i32, %arg1, %arg0 : i32, i32, i32
  }
  func.func @transform_2(%arg0: i32, %arg1: i32) -> (i32, i32, i32) {
    %c0_i32 = arith.constant 0 : i32
    %c0_i32_0 = arith.constant 0 : i32
    %c0_i32_1 = arith.constant 0 : i32
    return %c0_i32, %c0_i32_0, %arg0 : i32, i32, i32
  }
}

module attributes {stable_mosaic.version = 11 : i64} {
  func.func @_fused_matmul_kernel(%arg0: i32, %arg1: i32, %arg2: memref<4x8x512xbf16, #tpu.memory_space<vmem>>, %arg3: memref<4x512x64xbf16, #tpu.memory_space<vmem>>, %arg4: memref<4x8x64xf32, #tpu.memory_space<vmem>>, %arg5: memref<4x8x64xf32, #tpu.memory_space<vmem>>) attributes {dimension_semantics = [#tpu.dimension_semantics<parallel>, #tpu.dimension_semantics<arbitrary>], iteration_bounds = array<i64: 1, 1>, scalar_prefetch = 0 : i64, scratch_operands = 1 : i64, tpu.core_type = #tpu.core_type<tc>, window_params = [{transform_indices = @transform_0, window_bounds = array<i64: 4, 8, 512>}, {transform_indices = @transform_1, window_bounds = array<i64: 4, 512, 64>}, {transform_indices = @transform_2, window_bounds = array<i64: 4, 8, 64>}]} {
    %c0_i32 = arith.constant 0 : i32
    %0 = arith.cmpi eq, %arg1, %c0_i32 : i32
    %1 = arith.extui %0 : i1 to i32
    %c0_i32_0 = arith.constant 0 : i32
    %2 = arith.cmpi ne, %1, %c0_i32_0 : i32
    scf.if %2 {
      %cst_50 = arith.constant 0.000000e+00 : f32
      %50 = vector.broadcast %cst_50 : f32 to vector<4x8x64xf32>
      %c0_51 = arith.constant 0 : index
      %c0_52 = arith.constant 0 : index
      %c0_53 = arith.constant 0 : index
      %51 = vector.load %arg5[%c0_51, %c0_52, %c0_53] : memref<4x8x64xf32, #tpu.memory_space<vmem>>, vector<4x8x64xf32>
      tpu.vector_store %arg5[%c0_51, %c0_52, %c0_53], %50 {strides = array<i32>} : memref<4x8x64xf32, #tpu.memory_space<vmem>>, vector<4x8x64xf32>,
    } else {
    }
    %c0 = arith.constant 0 : index
    %c0_1 = arith.constant 0 : index
    %c0_2 = arith.constant 0 : index
    %3 = vector.load %arg5[%c0, %c0_1, %c0_2] : memref<4x8x64xf32, #tpu.memory_space<vmem>>, vector<1x8x64xf32>
    %4 = vector.shape_cast %3 : vector<1x8x64xf32> to vector<8x64xf32>
    %c0_3 = arith.constant 0 : index
    %c0_4 = arith.constant 0 : index
    %c0_5 = arith.constant 0 : index
    %5 = vector.load %arg2[%c0_3, %c0_4, %c0_5] : memref<4x8x512xbf16, #tpu.memory_space<vmem>>, vector<1x8x512xbf16>
    %6 = vector.shape_cast %5 : vector<1x8x512xbf16> to vector<8x512xbf16>
    %c0_6 = arith.constant 0 : index
    %c0_7 = arith.constant 0 : index
    %c0_8 = arith.constant 0 : index
    %7 = vector.load %arg3[%c0_6, %c0_7, %c0_8] : memref<4x512x64xbf16, #tpu.memory_space<vmem>>, vector<1x512x64xbf16>
    %8 = vector.shape_cast %7 : vector<1x512x64xbf16> to vector<512x64xbf16>
    %cst = arith.constant dense<0.000000e+00> : vector<8x64xf32>
    %9 = tpu.matmul %6, %8, %cst {dimension_numbers = #tpu.dot_dimension_numbers<[1], [0], [0], [1], [0, 0, 1, 1], [], []>} : vector<8x512xbf16>, vector<512x64xbf16>, vector<8x64xf32> -> vector<8x64xf32>
    %10 = arith.addf %4, %9 : vector<8x64xf32>
    %c0_9 = arith.constant 0 : index
    %c0_10 = arith.constant 0 : index
    %c0_11 = arith.constant 0 : index
    %11 = vector.load %arg5[%c0_9, %c0_10, %c0_11] : memref<4x8x64xf32, #tpu.memory_space<vmem>>, vector<1x8x64xf32>
    %12 = vector.shape_cast %11 : vector<1x8x64xf32> to vector<8x64xf32>
    %13 = vector.shape_cast %10 : vector<8x64xf32> to vector<1x8x64xf32>
    tpu.vector_store %arg5[%c0_9, %c0_10, %c0_11], %13 {strides = array<i32>} : memref<4x8x64xf32, #tpu.memory_space<vmem>>, vector<1x8x64xf32>,
    %c1 = arith.constant 1 : index
    %c0_12 = arith.constant 0 : index
    %c0_13 = arith.constant 0 : index
    %14 = vector.load %arg5[%c1, %c0_12, %c0_13] : memref<4x8x64xf32, #tpu.memory_space<vmem>>, vector<1x8x64xf32>
    %15 = vector.shape_cast %14 : vector<1x8x64xf32> to vector<8x64xf32>
    %c1_14 = arith.constant 1 : index
    %c0_15 = arith.constant 0 : index
    %c0_16 = arith.constant 0 : index
    %16 = vector.load %arg2[%c1_14, %c0_15, %c0_16] : memref<4x8x512xbf16, #tpu.memory_space<vmem>>, vector<1x8x512xbf16>
    %17 = vector.shape_cast %16 : vector<1x8x512xbf16> to vector<8x512xbf16>
    %c1_17 = arith.constant 1 : index
    %c0_18 = arith.constant 0 : index
    %c0_19 = arith.constant 0 : index
    %18 = vector.load %arg3[%c1_17, %c0_18, %c0_19] : memref<4x512x64xbf16, #tpu.memory_space<vmem>>, vector<1x512x64xbf16>
    %19 = vector.shape_cast %18 : vector<1x512x64xbf16> to vector<512x64xbf16>
    %cst_20 = arith.constant dense<0.000000e+00> : vector<8x64xf32>
    %20 = tpu.matmul %17, %19, %cst_20 {dimension_numbers = #tpu.dot_dimension_numbers<[1], [0], [0], [1], [0, 0, 1, 1], [], []>} : vector<8x512xbf16>, vector<512x64xbf16>, vector<8x64xf32> -> vector<8x64xf32>
    %21 = arith.addf %15, %20 : vector<8x64xf32>
    %c1_21 = arith.constant 1 : index
    %c0_22 = arith.constant 0 : index
    %c0_23 = arith.constant 0 : index
    %22 = vector.load %arg5[%c1_21, %c0_22, %c0_23] : memref<4x8x64xf32, #tpu.memory_space<vmem>>, vector<1x8x64xf32>
    %23 = vector.shape_cast %22 : vector<1x8x64xf32> to vector<8x64xf32>
    %24 = vector.shape_cast %21 : vector<8x64xf32> to vector<1x8x64xf32>
    tpu.vector_store %arg5[%c1_21, %c0_22, %c0_23], %24 {strides = array<i32>} : memref<4x8x64xf32, #tpu.memory_space<vmem>>, vector<1x8x64xf32>,
    %c2 = arith.constant 2 : index
    %c0_24 = arith.constant 0 : index
    %c0_25 = arith.constant 0 : index
    %25 = vector.load %arg5[%c2, %c0_24, %c0_25] : memref<4x8x64xf32, #tpu.memory_space<vmem>>, vector<1x8x64xf32>
    %26 = vector.shape_cast %25 : vector<1x8x64xf32> to vector<8x64xf32>
    %c2_26 = arith.constant 2 : index
    %c0_27 = arith.constant 0 : index
    %c0_28 = arith.constant 0 : index
    %27 = vector.load %arg2[%c2_26, %c0_27, %c0_28] : memref<4x8x512xbf16, #tpu.memory_space<vmem>>, vector<1x8x512xbf16>
    %28 = vector.shape_cast %27 : vector<1x8x512xbf16> to vector<8x512xbf16>
    %c2_29 = arith.constant 2 : index
    %c0_30 = arith.constant 0 : index
    %c0_31 = arith.constant 0 : index
    %29 = vector.load %arg3[%c2_29, %c0_30, %c0_31] : memref<4x512x64xbf16, #tpu.memory_space<vmem>>, vector<1x512x64xbf16>
    %30 = vector.shape_cast %29 : vector<1x512x64xbf16> to vector<512x64xbf16>
    %cst_32 = arith.constant dense<0.000000e+00> : vector<8x64xf32>
    %31 = tpu.matmul %28, %30, %cst_32 {dimension_numbers = #tpu.dot_dimension_numbers<[1], [0], [0], [1], [0, 0, 1, 1], [], []>} : vector<8x512xbf16>, vector<512x64xbf16>, vector<8x64xf32> -> vector<8x64xf32>
    %32 = arith.addf %26, %31 : vector<8x64xf32>
    %c2_33 = arith.constant 2 : index
    %c0_34 = arith.constant 0 : index
    %c0_35 = arith.constant 0 : index
    %33 = vector.load %arg5[%c2_33, %c0_34, %c0_35] : memref<4x8x64xf32, #tpu.memory_space<vmem>>, vector<1x8x64xf32>
    %34 = vector.shape_cast %33 : vector<1x8x64xf32> to vector<8x64xf32>
    %35 = vector.shape_cast %32 : vector<8x64xf32> to vector<1x8x64xf32>
    tpu.vector_store %arg5[%c2_33, %c0_34, %c0_35], %35 {strides = array<i32>} : memref<4x8x64xf32, #tpu.memory_space<vmem>>, vector<1x8x64xf32>,
    %c3 = arith.constant 3 : index
    %c0_36 = arith.constant 0 : index
    %c0_37 = arith.constant 0 : index
    %36 = vector.load %arg5[%c3, %c0_36, %c0_37] : memref<4x8x64xf32, #tpu.memory_space<vmem>>, vector<1x8x64xf32>
    %37 = vector.shape_cast %36 : vector<1x8x64xf32> to vector<8x64xf32>
    %c3_38 = arith.constant 3 : index
    %c0_39 = arith.constant 0 : index
    %c0_40 = arith.constant 0 : index
    %38 = vector.load %arg2[%c3_38, %c0_39, %c0_40] : memref<4x8x512xbf16, #tpu.memory_space<vmem>>, vector<1x8x512xbf16>
    %39 = vector.shape_cast %38 : vector<1x8x512xbf16> to vector<8x512xbf16>
    %c3_41 = arith.constant 3 : index
    %c0_42 = arith.constant 0 : index
    %c0_43 = arith.constant 0 : index
    %40 = vector.load %arg3[%c3_41, %c0_42, %c0_43] : memref<4x512x64xbf16, #tpu.memory_space<vmem>>, vector<1x512x64xbf16>
    %41 = vector.shape_cast %40 : vector<1x512x64xbf16> to vector<512x64xbf16>
    %cst_44 = arith.constant dense<0.000000e+00> : vector<8x64xf32>
    %42 = tpu.matmul %39, %41, %cst_44 {dimension_numbers = #tpu.dot_dimension_numbers<[1], [0], [0], [1], [0, 0, 1, 1], [], []>} : vector<8x512xbf16>, vector<512x64xbf16>, vector<8x64xf32> -> vector<8x64xf32>
    %43 = arith.addf %37, %42 : vector<8x64xf32>
    %c3_45 = arith.constant 3 : index
    %c0_46 = arith.constant 0 : index
    %c0_47 = arith.constant 0 : index
    %44 = vector.load %arg5[%c3_45, %c0_46, %c0_47] : memref<4x8x64xf32, #tpu.memory_space<vmem>>, vector<1x8x64xf32>
    %45 = vector.shape_cast %44 : vector<1x8x64xf32> to vector<8x64xf32>
    %46 = vector.shape_cast %43 : vector<8x64xf32> to vector<1x8x64xf32>
    tpu.vector_store %arg5[%c3_45, %c0_46, %c0_47], %46 {strides = array<i32>} : memref<4x8x64xf32, #tpu.memory_space<vmem>>, vector<1x8x64xf32>,
    %c0_i32_48 = arith.constant 0 : i32
    %47 = arith.cmpi eq, %arg1, %c0_i32_48 : i32
    %48 = arith.extui %47 : i1 to i32
    %c0_i32_49 = arith.constant 0 : i32
    %49 = arith.cmpi ne, %48, %c0_i32_49 : i32
    scf.if %49 {
      %c0_50 = arith.constant 0 : index
      %c0_51 = arith.constant 0 : index
      %c0_52 = arith.constant 0 : index
      %50 = vector.load %arg5[%c0_50, %c0_51, %c0_52] : memref<4x8x64xf32, #tpu.memory_space<vmem>>, vector<4x8x64xf32>
      %cst_53 = arith.constant dense<0.000000e+00> : vector<4x64xf32>
      %51 = vector.multi_reduction <add>, %50, %cst_53 [1] : vector<4x8x64xf32> to vector<4x64xf32>
      %52 = vector.shape_cast %51 : vector<4x64xf32> to vector<4x1x64xf32>
      %cst_54 = arith.constant 8.000000e+00 : f32
      %53 = vector.broadcast %cst_54 : f32 to vector<4x1x64xf32>
      %54 = arith.divf %52, %53 : vector<4x1x64xf32>
      %cst_55 = arith.constant dense<0.000000e+00> : vector<1x64xf32>
      %55 = vector.multi_reduction <add>, %54, %cst_55 [0] : vector<4x1x64xf32> to vector<1x64xf32>
      %56 = vector.shape_cast %55 : vector<1x64xf32> to vector<1x1x64xf32>
      %cst_56 = arith.constant 4.000000e+00 : f32
      %57 = vector.broadcast %cst_56 : f32 to vector<1x1x64xf32>
      %58 = arith.divf %56, %57 : vector<1x1x64xf32>
      %59 = arith.mulf %50, %50 : vector<4x8x64xf32>
      %cst_57 = arith.constant dense<0.000000e+00> : vector<4x64xf32>
      %60 = vector.multi_reduction <add>, %59, %cst_57 [1] : vector<4x8x64xf32> to vector<4x64xf32>
      %61 = vector.shape_cast %60 : vector<4x64xf32> to vector<4x1x64xf32>
      %cst_58 = arith.constant 8.000000e+00 : f32
      %62 = vector.broadcast %cst_58 : f32 to vector<4x1x64xf32>
      %63 = arith.divf %61, %62 : vector<4x1x64xf32>
      %cst_59 = arith.constant dense<0.000000e+00> : vector<1x64xf32>
      %64 = vector.multi_reduction <add>, %63, %cst_59 [0] : vector<4x1x64xf32> to vector<1x64xf32>
      %65 = vector.shape_cast %64 : vector<1x64xf32> to vector<1x1x64xf32>
      %cst_60 = arith.constant 4.000000e+00 : f32
      %66 = vector.broadcast %cst_60 : f32 to vector<1x1x64xf32>
      %67 = arith.divf %65, %66 : vector<1x1x64xf32>
      %68 = arith.mulf %58, %58 : vector<1x1x64xf32>
      %69 = arith.subf %67, %68 : vector<1x1x64xf32>
      %cst_61 = arith.constant 0.000000e+00 : f32
      %70 = vector.broadcast %cst_61 : f32 to vector<1x1x64xf32>
      %71 = arith.maximumf %69, %70 : vector<1x1x64xf32>
      %72 = vector.broadcast %58 : vector<1x1x64xf32> to vector<4x8x64xf32>
      %73 = arith.subf %50, %72 : vector<4x8x64xf32>
      %cst_62 = arith.constant 9.99999974E-6 : f32
      %74 = vector.broadcast %cst_62 : f32 to vector<1x1x64xf32>
      %75 = arith.addf %71, %74 : vector<1x1x64xf32>
      %76 = math.rsqrt %75 : vector<1x1x64xf32>
      %77 = vector.broadcast %76 : vector<1x1x64xf32> to vector<4x8x64xf32>
      %78 = arith.mulf %73, %77 : vector<4x8x64xf32>
      %cst_63 = arith.constant 0.000000e+00 : f32
      %79 = vector.broadcast %cst_63 : f32 to vector<4x8x64xf32>
      %80 = arith.cmpf oge, %78, %79 : vector<4x8x64xf32>
      %cst_64 = arith.constant 2.000000e-01 : f32
      %81 = vector.broadcast %cst_64 : f32 to vector<4x8x64xf32>
      %82 = arith.mulf %81, %78 : vector<4x8x64xf32>
      %83 = arith.select %80, %78, %82 : vector<4x8x64xi1>, vector<4x8x64xf32>
      %c0_65 = arith.constant 0 : index
      %c0_66 = arith.constant 0 : index
      %c0_67 = arith.constant 0 : index
      %84 = vector.load %arg4[%c0_65, %c0_66, %c0_67] : memref<4x8x64xf32, #tpu.memory_space<vmem>>, vector<4x8x64xf32>
      tpu.vector_store %arg4[%c0_65, %c0_66, %c0_67], %83 {strides = array<i32>} : memref<4x8x64xf32, #tpu.memory_space<vmem>>, vector<4x8x64xf32>,
    } else {
    }
    return
  }
  func.func @transform_0(%arg0: i32, %arg1: i32) -> (i32, i32, i32) {
    %c0_i32 = arith.constant 0 : i32
    %c0_i32_0 = arith.constant 0 : i32
    %c0_i32_1 = arith.constant 0 : i32
    return %c0_i32, %c0_i32_0, %arg1 : i32, i32, i32
  }
  func.func @transform_1(%arg0: i32, %arg1: i32) -> (i32, i32, i32) {
    %c0_i32 = arith.constant 0 : i32
    %c0_i32_0 = arith.constant 0 : i32
    return %c0_i32, %arg1, %arg0 : i32, i32, i32
  }
  func.func @transform_2(%arg0: i32, %arg1: i32) -> (i32, i32, i32) {
    %c0_i32 = arith.constant 0 : i32
    %c0_i32_0 = arith.constant 0 : i32
    %c0_i32_1 = arith.constant 0 : i32
    return %c0_i32, %c0_i32_0, %arg0 : i32, i32, i32
  }
}

module attributes {stable_mosaic.version = 11 : i64} {
  func.func @_fused_matmul_kernel(%arg0: i32, %arg1: i32, %arg2: memref<4x32x256xbf16, #tpu.memory_space<vmem>>, %arg3: memref<4x256x32xbf16, #tpu.memory_space<vmem>>, %arg4: memref<4x32x32xf32, #tpu.memory_space<vmem>>, %arg5: memref<4x32x32xf32, #tpu.memory_space<vmem>>) attributes {dimension_semantics = [#tpu.dimension_semantics<parallel>, #tpu.dimension_semantics<arbitrary>], iteration_bounds = array<i64: 1, 1>, scalar_prefetch = 0 : i64, scratch_operands = 1 : i64, tpu.core_type = #tpu.core_type<tc>, window_params = [{transform_indices = @transform_0, window_bounds = array<i64: 4, 32, 256>}, {transform_indices = @transform_1, window_bounds = array<i64: 4, 256, 32>}, {transform_indices = @transform_2, window_bounds = array<i64: 4, 32, 32>}]} {
    %c0_i32 = arith.constant 0 : i32
    %0 = arith.cmpi eq, %arg1, %c0_i32 : i32
    %1 = arith.extui %0 : i1 to i32
    %c0_i32_0 = arith.constant 0 : i32
    %2 = arith.cmpi ne, %1, %c0_i32_0 : i32
    scf.if %2 {
      %cst_50 = arith.constant 0.000000e+00 : f32
      %50 = vector.broadcast %cst_50 : f32 to vector<4x32x32xf32>
      %c0_51 = arith.constant 0 : index
      %c0_52 = arith.constant 0 : index
      %c0_53 = arith.constant 0 : index
      %51 = vector.load %arg5[%c0_51, %c0_52, %c0_53] : memref<4x32x32xf32, #tpu.memory_space<vmem>>, vector<4x32x32xf32>
      tpu.vector_store %arg5[%c0_51, %c0_52, %c0_53], %50 {strides = array<i32>} : memref<4x32x32xf32, #tpu.memory_space<vmem>>, vector<4x32x32xf32>,
    } else {
    }
    %c0 = arith.constant 0 : index
    %c0_1 = arith.constant 0 : index
    %c0_2 = arith.constant 0 : index
    %3 = vector.load %arg5[%c0, %c0_1, %c0_2] : memref<4x32x32xf32, #tpu.memory_space<vmem>>, vector<1x32x32xf32>
    %4 = vector.shape_cast %3 : vector<1x32x32xf32> to vector<32x32xf32>
    %c0_3 = arith.constant 0 : index
    %c0_4 = arith.constant 0 : index
    %c0_5 = arith.constant 0 : index
    %5 = vector.load %arg2[%c0_3, %c0_4, %c0_5] : memref<4x32x256xbf16, #tpu.memory_space<vmem>>, vector<1x32x256xbf16>
    %6 = vector.shape_cast %5 : vector<1x32x256xbf16> to vector<32x256xbf16>
    %c0_6 = arith.constant 0 : index
    %c0_7 = arith.constant 0 : index
    %c0_8 = arith.constant 0 : index
    %7 = vector.load %arg3[%c0_6, %c0_7, %c0_8] : memref<4x256x32xbf16, #tpu.memory_space<vmem>>, vector<1x256x32xbf16>
    %8 = vector.shape_cast %7 : vector<1x256x32xbf16> to vector<256x32xbf16>
    %cst = arith.constant dense<0.000000e+00> : vector<32x32xf32>
    %9 = tpu.matmul %6, %8, %cst {dimension_numbers = #tpu.dot_dimension_numbers<[1], [0], [0], [1], [0, 0, 1, 1], [], []>} : vector<32x256xbf16>, vector<256x32xbf16>, vector<32x32xf32> -> vector<32x32xf32>
    %10 = arith.addf %4, %9 : vector<32x32xf32>
    %c0_9 = arith.constant 0 : index
    %c0_10 = arith.constant 0 : index
    %c0_11 = arith.constant 0 : index
    %11 = vector.load %arg5[%c0_9, %c0_10, %c0_11] : memref<4x32x32xf32, #tpu.memory_space<vmem>>, vector<1x32x32xf32>
    %12 = vector.shape_cast %11 : vector<1x32x32xf32> to vector<32x32xf32>
    %13 = vector.shape_cast %10 : vector<32x32xf32> to vector<1x32x32xf32>
    tpu.vector_store %arg5[%c0_9, %c0_10, %c0_11], %13 {strides = array<i32>} : memref<4x32x32xf32, #tpu.memory_space<vmem>>, vector<1x32x32xf32>,
    %c1 = arith.constant 1 : index
    %c0_12 = arith.constant 0 : index
    %c0_13 = arith.constant 0 : index
    %14 = vector.load %arg5[%c1, %c0_12, %c0_13] : memref<4x32x32xf32, #tpu.memory_space<vmem>>, vector<1x32x32xf32>
    %15 = vector.shape_cast %14 : vector<1x32x32xf32> to vector<32x32xf32>
    %c1_14 = arith.constant 1 : index
    %c0_15 = arith.constant 0 : index
    %c0_16 = arith.constant 0 : index
    %16 = vector.load %arg2[%c1_14, %c0_15, %c0_16] : memref<4x32x256xbf16, #tpu.memory_space<vmem>>, vector<1x32x256xbf16>
    %17 = vector.shape_cast %16 : vector<1x32x256xbf16> to vector<32x256xbf16>
    %c1_17 = arith.constant 1 : index
    %c0_18 = arith.constant 0 : index
    %c0_19 = arith.constant 0 : index
    %18 = vector.load %arg3[%c1_17, %c0_18, %c0_19] : memref<4x256x32xbf16, #tpu.memory_space<vmem>>, vector<1x256x32xbf16>
    %19 = vector.shape_cast %18 : vector<1x256x32xbf16> to vector<256x32xbf16>
    %cst_20 = arith.constant dense<0.000000e+00> : vector<32x32xf32>
    %20 = tpu.matmul %17, %19, %cst_20 {dimension_numbers = #tpu.dot_dimension_numbers<[1], [0], [0], [1], [0, 0, 1, 1], [], []>} : vector<32x256xbf16>, vector<256x32xbf16>, vector<32x32xf32> -> vector<32x32xf32>
    %21 = arith.addf %15, %20 : vector<32x32xf32>
    %c1_21 = arith.constant 1 : index
    %c0_22 = arith.constant 0 : index
    %c0_23 = arith.constant 0 : index
    %22 = vector.load %arg5[%c1_21, %c0_22, %c0_23] : memref<4x32x32xf32, #tpu.memory_space<vmem>>, vector<1x32x32xf32>
    %23 = vector.shape_cast %22 : vector<1x32x32xf32> to vector<32x32xf32>
    %24 = vector.shape_cast %21 : vector<32x32xf32> to vector<1x32x32xf32>
    tpu.vector_store %arg5[%c1_21, %c0_22, %c0_23], %24 {strides = array<i32>} : memref<4x32x32xf32, #tpu.memory_space<vmem>>, vector<1x32x32xf32>,
    %c2 = arith.constant 2 : index
    %c0_24 = arith.constant 0 : index
    %c0_25 = arith.constant 0 : index
    %25 = vector.load %arg5[%c2, %c0_24, %c0_25] : memref<4x32x32xf32, #tpu.memory_space<vmem>>, vector<1x32x32xf32>
    %26 = vector.shape_cast %25 : vector<1x32x32xf32> to vector<32x32xf32>
    %c2_26 = arith.constant 2 : index
    %c0_27 = arith.constant 0 : index
    %c0_28 = arith.constant 0 : index
    %27 = vector.load %arg2[%c2_26, %c0_27, %c0_28] : memref<4x32x256xbf16, #tpu.memory_space<vmem>>, vector<1x32x256xbf16>
    %28 = vector.shape_cast %27 : vector<1x32x256xbf16> to vector<32x256xbf16>
    %c2_29 = arith.constant 2 : index
    %c0_30 = arith.constant 0 : index
    %c0_31 = arith.constant 0 : index
    %29 = vector.load %arg3[%c2_29, %c0_30, %c0_31] : memref<4x256x32xbf16, #tpu.memory_space<vmem>>, vector<1x256x32xbf16>
    %30 = vector.shape_cast %29 : vector<1x256x32xbf16> to vector<256x32xbf16>
    %cst_32 = arith.constant dense<0.000000e+00> : vector<32x32xf32>
    %31 = tpu.matmul %28, %30, %cst_32 {dimension_numbers = #tpu.dot_dimension_numbers<[1], [0], [0], [1], [0, 0, 1, 1], [], []>} : vector<32x256xbf16>, vector<256x32xbf16>, vector<32x32xf32> -> vector<32x32xf32>
    %32 = arith.addf %26, %31 : vector<32x32xf32>
    %c2_33 = arith.constant 2 : index
    %c0_34 = arith.constant 0 : index
    %c0_35 = arith.constant 0 : index
    %33 = vector.load %arg5[%c2_33, %c0_34, %c0_35] : memref<4x32x32xf32, #tpu.memory_space<vmem>>, vector<1x32x32xf32>
    %34 = vector.shape_cast %33 : vector<1x32x32xf32> to vector<32x32xf32>
    %35 = vector.shape_cast %32 : vector<32x32xf32> to vector<1x32x32xf32>
    tpu.vector_store %arg5[%c2_33, %c0_34, %c0_35], %35 {strides = array<i32>} : memref<4x32x32xf32, #tpu.memory_space<vmem>>, vector<1x32x32xf32>,
    %c3 = arith.constant 3 : index
    %c0_36 = arith.constant 0 : index
    %c0_37 = arith.constant 0 : index
    %36 = vector.load %arg5[%c3, %c0_36, %c0_37] : memref<4x32x32xf32, #tpu.memory_space<vmem>>, vector<1x32x32xf32>
    %37 = vector.shape_cast %36 : vector<1x32x32xf32> to vector<32x32xf32>
    %c3_38 = arith.constant 3 : index
    %c0_39 = arith.constant 0 : index
    %c0_40 = arith.constant 0 : index
    %38 = vector.load %arg2[%c3_38, %c0_39, %c0_40] : memref<4x32x256xbf16, #tpu.memory_space<vmem>>, vector<1x32x256xbf16>
    %39 = vector.shape_cast %38 : vector<1x32x256xbf16> to vector<32x256xbf16>
    %c3_41 = arith.constant 3 : index
    %c0_42 = arith.constant 0 : index
    %c0_43 = arith.constant 0 : index
    %40 = vector.load %arg3[%c3_41, %c0_42, %c0_43] : memref<4x256x32xbf16, #tpu.memory_space<vmem>>, vector<1x256x32xbf16>
    %41 = vector.shape_cast %40 : vector<1x256x32xbf16> to vector<256x32xbf16>
    %cst_44 = arith.constant dense<0.000000e+00> : vector<32x32xf32>
    %42 = tpu.matmul %39, %41, %cst_44 {dimension_numbers = #tpu.dot_dimension_numbers<[1], [0], [0], [1], [0, 0, 1, 1], [], []>} : vector<32x256xbf16>, vector<256x32xbf16>, vector<32x32xf32> -> vector<32x32xf32>
    %43 = arith.addf %37, %42 : vector<32x32xf32>
    %c3_45 = arith.constant 3 : index
    %c0_46 = arith.constant 0 : index
    %c0_47 = arith.constant 0 : index
    %44 = vector.load %arg5[%c3_45, %c0_46, %c0_47] : memref<4x32x32xf32, #tpu.memory_space<vmem>>, vector<1x32x32xf32>
    %45 = vector.shape_cast %44 : vector<1x32x32xf32> to vector<32x32xf32>
    %46 = vector.shape_cast %43 : vector<32x32xf32> to vector<1x32x32xf32>
    tpu.vector_store %arg5[%c3_45, %c0_46, %c0_47], %46 {strides = array<i32>} : memref<4x32x32xf32, #tpu.memory_space<vmem>>, vector<1x32x32xf32>,
    %c0_i32_48 = arith.constant 0 : i32
    %47 = arith.cmpi eq, %arg1, %c0_i32_48 : i32
    %48 = arith.extui %47 : i1 to i32
    %c0_i32_49 = arith.constant 0 : i32
    %49 = arith.cmpi ne, %48, %c0_i32_49 : i32
    scf.if %49 {
      %c0_50 = arith.constant 0 : index
      %c0_51 = arith.constant 0 : index
      %c0_52 = arith.constant 0 : index
      %50 = vector.load %arg5[%c0_50, %c0_51, %c0_52] : memref<4x32x32xf32, #tpu.memory_space<vmem>>, vector<4x32x32xf32>
      %cst_53 = arith.constant dense<0.000000e+00> : vector<4x32xf32>
      %51 = vector.multi_reduction <add>, %50, %cst_53 [1] : vector<4x32x32xf32> to vector<4x32xf32>
      %52 = vector.shape_cast %51 : vector<4x32xf32> to vector<4x1x32xf32>
      %cst_54 = arith.constant 3.200000e+01 : f32
      %53 = vector.broadcast %cst_54 : f32 to vector<4x1x32xf32>
      %54 = arith.divf %52, %53 : vector<4x1x32xf32>
      %cst_55 = arith.constant dense<0.000000e+00> : vector<1x32xf32>
      %55 = vector.multi_reduction <add>, %54, %cst_55 [0] : vector<4x1x32xf32> to vector<1x32xf32>
      %56 = vector.shape_cast %55 : vector<1x32xf32> to vector<1x1x32xf32>
      %cst_56 = arith.constant 4.000000e+00 : f32
      %57 = vector.broadcast %cst_56 : f32 to vector<1x1x32xf32>
      %58 = arith.divf %56, %57 : vector<1x1x32xf32>
      %59 = arith.mulf %50, %50 : vector<4x32x32xf32>
      %cst_57 = arith.constant dense<0.000000e+00> : vector<4x32xf32>
      %60 = vector.multi_reduction <add>, %59, %cst_57 [1] : vector<4x32x32xf32> to vector<4x32xf32>
      %61 = vector.shape_cast %60 : vector<4x32xf32> to vector<4x1x32xf32>
      %cst_58 = arith.constant 3.200000e+01 : f32
      %62 = vector.broadcast %cst_58 : f32 to vector<4x1x32xf32>
      %63 = arith.divf %61, %62 : vector<4x1x32xf32>
      %cst_59 = arith.constant dense<0.000000e+00> : vector<1x32xf32>
      %64 = vector.multi_reduction <add>, %63, %cst_59 [0] : vector<4x1x32xf32> to vector<1x32xf32>
      %65 = vector.shape_cast %64 : vector<1x32xf32> to vector<1x1x32xf32>
      %cst_60 = arith.constant 4.000000e+00 : f32
      %66 = vector.broadcast %cst_60 : f32 to vector<1x1x32xf32>
      %67 = arith.divf %65, %66 : vector<1x1x32xf32>
      %68 = arith.mulf %58, %58 : vector<1x1x32xf32>
      %69 = arith.subf %67, %68 : vector<1x1x32xf32>
      %cst_61 = arith.constant 0.000000e+00 : f32
      %70 = vector.broadcast %cst_61 : f32 to vector<1x1x32xf32>
      %71 = arith.maximumf %69, %70 : vector<1x1x32xf32>
      %72 = vector.broadcast %58 : vector<1x1x32xf32> to vector<4x32x32xf32>
      %73 = arith.subf %50, %72 : vector<4x32x32xf32>
      %cst_62 = arith.constant 9.99999974E-6 : f32
      %74 = vector.broadcast %cst_62 : f32 to vector<1x1x32xf32>
      %75 = arith.addf %71, %74 : vector<1x1x32xf32>
      %76 = math.rsqrt %75 : vector<1x1x32xf32>
      %77 = vector.broadcast %76 : vector<1x1x32xf32> to vector<4x32x32xf32>
      %78 = arith.mulf %73, %77 : vector<4x32x32xf32>
      %cst_63 = arith.constant 0.000000e+00 : f32
      %79 = vector.broadcast %cst_63 : f32 to vector<4x32x32xf32>
      %80 = arith.cmpf oge, %78, %79 : vector<4x32x32xf32>
      %cst_64 = arith.constant 2.000000e-01 : f32
      %81 = vector.broadcast %cst_64 : f32 to vector<4x32x32xf32>
      %82 = arith.mulf %81, %78 : vector<4x32x32xf32>
      %83 = arith.select %80, %78, %82 : vector<4x32x32xi1>, vector<4x32x32xf32>
      %c0_65 = arith.constant 0 : index
      %c0_66 = arith.constant 0 : index
      %c0_67 = arith.constant 0 : index
      %84 = vector.load %arg4[%c0_65, %c0_66, %c0_67] : memref<4x32x32xf32, #tpu.memory_space<vmem>>, vector<4x32x32xf32>
      tpu.vector_store %arg4[%c0_65, %c0_66, %c0_67], %83 {strides = array<i32>} : memref<4x32x32xf32, #tpu.memory_space<vmem>>, vector<4x32x32xf32>,
    } else {
    }
    return
  }
  func.func @transform_0(%arg0: i32, %arg1: i32) -> (i32, i32, i32) {
    %c0_i32 = arith.constant 0 : i32
    %c0_i32_0 = arith.constant 0 : i32
    %c0_i32_1 = arith.constant 0 : i32
    return %c0_i32, %c0_i32_0, %arg1 : i32, i32, i32
  }
  func.func @transform_1(%arg0: i32, %arg1: i32) -> (i32, i32, i32) {
    %c0_i32 = arith.constant 0 : i32
    %c0_i32_0 = arith.constant 0 : i32
    return %c0_i32, %arg1, %arg0 : i32, i32, i32
  }
  func.func @transform_2(%arg0: i32, %arg1: i32) -> (i32, i32, i32) {
    %c0_i32 = arith.constant 0 : i32
    %c0_i32_0 = arith.constant 0 : i32
    %c0_i32_1 = arith.constant 0 : i32
    return %c0_i32, %c0_i32_0, %arg0 : i32, i32, i32
  }
}

module attributes {stable_mosaic.version = 11 : i64} {
  func.func @_fused_matmul_kernel(%arg0: i32, %arg1: i32, %arg2: memref<4x128x128xbf16, #tpu.memory_space<vmem>>, %arg3: memref<4x128x3xbf16, #tpu.memory_space<vmem>>, %arg4: memref<1x1x3xf32, #tpu.memory_space<vmem>>, %arg5: memref<4x128x3xf32, #tpu.memory_space<vmem>>, %arg6: memref<4x128x3xf32, #tpu.memory_space<vmem>>) attributes {dimension_semantics = [#tpu.dimension_semantics<parallel>, #tpu.dimension_semantics<arbitrary>], iteration_bounds = array<i64: 1, 1>, scalar_prefetch = 0 : i64, scratch_operands = 1 : i64, tpu.core_type = #tpu.core_type<tc>, window_params = [{transform_indices = @transform_0, window_bounds = array<i64: 4, 128, 128>}, {transform_indices = @transform_1, window_bounds = array<i64: 4, 128, 3>}, {transform_indices = @transform_2, window_bounds = array<i64: 1, 1, 3>}, {transform_indices = @transform_3, window_bounds = array<i64: 4, 128, 3>}]} {
    %c0_i32 = arith.constant 0 : i32
    %0 = arith.cmpi eq, %arg1, %c0_i32 : i32
    %1 = arith.extui %0 : i1 to i32
    %c0_i32_0 = arith.constant 0 : i32
    %2 = arith.cmpi ne, %1, %c0_i32_0 : i32
    scf.if %2 {
      %cst_50 = arith.constant 0.000000e+00 : f32
      %50 = vector.broadcast %cst_50 : f32 to vector<4x128x3xf32>
      %c0_51 = arith.constant 0 : index
      %c0_52 = arith.constant 0 : index
      %c0_53 = arith.constant 0 : index
      %51 = vector.load %arg6[%c0_51, %c0_52, %c0_53] : memref<4x128x3xf32, #tpu.memory_space<vmem>>, vector<4x128x3xf32>
      tpu.vector_store %arg6[%c0_51, %c0_52, %c0_53], %50 {strides = array<i32>} : memref<4x128x3xf32, #tpu.memory_space<vmem>>, vector<4x128x3xf32>,
    } else {
    }
    %c0 = arith.constant 0 : index
    %c0_1 = arith.constant 0 : index
    %c0_2 = arith.constant 0 : index
    %3 = vector.load %arg6[%c0, %c0_1, %c0_2] : memref<4x128x3xf32, #tpu.memory_space<vmem>>, vector<1x128x3xf32>
    %4 = vector.shape_cast %3 : vector<1x128x3xf32> to vector<128x3xf32>
    %c0_3 = arith.constant 0 : index
    %c0_4 = arith.constant 0 : index
    %c0_5 = arith.constant 0 : index
    %5 = vector.load %arg2[%c0_3, %c0_4, %c0_5] : memref<4x128x128xbf16, #tpu.memory_space<vmem>>, vector<1x128x128xbf16>
    %6 = vector.shape_cast %5 : vector<1x128x128xbf16> to vector<128x128xbf16>
    %c0_6 = arith.constant 0 : index
    %c0_7 = arith.constant 0 : index
    %c0_8 = arith.constant 0 : index
    %7 = vector.load %arg3[%c0_6, %c0_7, %c0_8] : memref<4x128x3xbf16, #tpu.memory_space<vmem>>, vector<1x128x3xbf16>
    %8 = vector.shape_cast %7 : vector<1x128x3xbf16> to vector<128x3xbf16>
    %cst = arith.constant dense<0.000000e+00> : vector<128x3xf32>
    %9 = tpu.matmul %6, %8, %cst {dimension_numbers = #tpu.dot_dimension_numbers<[1], [0], [0], [1], [0, 0, 1, 1], [], []>} : vector<128x128xbf16>, vector<128x3xbf16>, vector<128x3xf32> -> vector<128x3xf32>
    %10 = arith.addf %4, %9 : vector<128x3xf32>
    %c0_9 = arith.constant 0 : index
    %c0_10 = arith.constant 0 : index
    %c0_11 = arith.constant 0 : index
    %11 = vector.load %arg6[%c0_9, %c0_10, %c0_11] : memref<4x128x3xf32, #tpu.memory_space<vmem>>, vector<1x128x3xf32>
    %12 = vector.shape_cast %11 : vector<1x128x3xf32> to vector<128x3xf32>
    %13 = vector.shape_cast %10 : vector<128x3xf32> to vector<1x128x3xf32>
    tpu.vector_store %arg6[%c0_9, %c0_10, %c0_11], %13 {strides = array<i32>} : memref<4x128x3xf32, #tpu.memory_space<vmem>>, vector<1x128x3xf32>,
    %c1 = arith.constant 1 : index
    %c0_12 = arith.constant 0 : index
    %c0_13 = arith.constant 0 : index
    %14 = vector.load %arg6[%c1, %c0_12, %c0_13] : memref<4x128x3xf32, #tpu.memory_space<vmem>>, vector<1x128x3xf32>
    %15 = vector.shape_cast %14 : vector<1x128x3xf32> to vector<128x3xf32>
    %c1_14 = arith.constant 1 : index
    %c0_15 = arith.constant 0 : index
    %c0_16 = arith.constant 0 : index
    %16 = vector.load %arg2[%c1_14, %c0_15, %c0_16] : memref<4x128x128xbf16, #tpu.memory_space<vmem>>, vector<1x128x128xbf16>
    %17 = vector.shape_cast %16 : vector<1x128x128xbf16> to vector<128x128xbf16>
    %c1_17 = arith.constant 1 : index
    %c0_18 = arith.constant 0 : index
    %c0_19 = arith.constant 0 : index
    %18 = vector.load %arg3[%c1_17, %c0_18, %c0_19] : memref<4x128x3xbf16, #tpu.memory_space<vmem>>, vector<1x128x3xbf16>
    %19 = vector.shape_cast %18 : vector<1x128x3xbf16> to vector<128x3xbf16>
    %cst_20 = arith.constant dense<0.000000e+00> : vector<128x3xf32>
    %20 = tpu.matmul %17, %19, %cst_20 {dimension_numbers = #tpu.dot_dimension_numbers<[1], [0], [0], [1], [0, 0, 1, 1], [], []>} : vector<128x128xbf16>, vector<128x3xbf16>, vector<128x3xf32> -> vector<128x3xf32>
    %21 = arith.addf %15, %20 : vector<128x3xf32>
    %c1_21 = arith.constant 1 : index
    %c0_22 = arith.constant 0 : index
    %c0_23 = arith.constant 0 : index
    %22 = vector.load %arg6[%c1_21, %c0_22, %c0_23] : memref<4x128x3xf32, #tpu.memory_space<vmem>>, vector<1x128x3xf32>
    %23 = vector.shape_cast %22 : vector<1x128x3xf32> to vector<128x3xf32>
    %24 = vector.shape_cast %21 : vector<128x3xf32> to vector<1x128x3xf32>
    tpu.vector_store %arg6[%c1_21, %c0_22, %c0_23], %24 {strides = array<i32>} : memref<4x128x3xf32, #tpu.memory_space<vmem>>, vector<1x128x3xf32>,
    %c2 = arith.constant 2 : index
    %c0_24 = arith.constant 0 : index
    %c0_25 = arith.constant 0 : index
    %25 = vector.load %arg6[%c2, %c0_24, %c0_25] : memref<4x128x3xf32, #tpu.memory_space<vmem>>, vector<1x128x3xf32>
    %26 = vector.shape_cast %25 : vector<1x128x3xf32> to vector<128x3xf32>
    %c2_26 = arith.constant 2 : index
    %c0_27 = arith.constant 0 : index
    %c0_28 = arith.constant 0 : index
    %27 = vector.load %arg2[%c2_26, %c0_27, %c0_28] : memref<4x128x128xbf16, #tpu.memory_space<vmem>>, vector<1x128x128xbf16>
    %28 = vector.shape_cast %27 : vector<1x128x128xbf16> to vector<128x128xbf16>
    %c2_29 = arith.constant 2 : index
    %c0_30 = arith.constant 0 : index
    %c0_31 = arith.constant 0 : index
    %29 = vector.load %arg3[%c2_29, %c0_30, %c0_31] : memref<4x128x3xbf16, #tpu.memory_space<vmem>>, vector<1x128x3xbf16>
    %30 = vector.shape_cast %29 : vector<1x128x3xbf16> to vector<128x3xbf16>
    %cst_32 = arith.constant dense<0.000000e+00> : vector<128x3xf32>
    %31 = tpu.matmul %28, %30, %cst_32 {dimension_numbers = #tpu.dot_dimension_numbers<[1], [0], [0], [1], [0, 0, 1, 1], [], []>} : vector<128x128xbf16>, vector<128x3xbf16>, vector<128x3xf32> -> vector<128x3xf32>
    %32 = arith.addf %26, %31 : vector<128x3xf32>
    %c2_33 = arith.constant 2 : index
    %c0_34 = arith.constant 0 : index
    %c0_35 = arith.constant 0 : index
    %33 = vector.load %arg6[%c2_33, %c0_34, %c0_35] : memref<4x128x3xf32, #tpu.memory_space<vmem>>, vector<1x128x3xf32>
    %34 = vector.shape_cast %33 : vector<1x128x3xf32> to vector<128x3xf32>
    %35 = vector.shape_cast %32 : vector<128x3xf32> to vector<1x128x3xf32>
    tpu.vector_store %arg6[%c2_33, %c0_34, %c0_35], %35 {strides = array<i32>} : memref<4x128x3xf32, #tpu.memory_space<vmem>>, vector<1x128x3xf32>,
    %c3 = arith.constant 3 : index
    %c0_36 = arith.constant 0 : index
    %c0_37 = arith.constant 0 : index
    %36 = vector.load %arg6[%c3, %c0_36, %c0_37] : memref<4x128x3xf32, #tpu.memory_space<vmem>>, vector<1x128x3xf32>
    %37 = vector.shape_cast %36 : vector<1x128x3xf32> to vector<128x3xf32>
    %c3_38 = arith.constant 3 : index
    %c0_39 = arith.constant 0 : index
    %c0_40 = arith.constant 0 : index
    %38 = vector.load %arg2[%c3_38, %c0_39, %c0_40] : memref<4x128x128xbf16, #tpu.memory_space<vmem>>, vector<1x128x128xbf16>
    %39 = vector.shape_cast %38 : vector<1x128x128xbf16> to vector<128x128xbf16>
    %c3_41 = arith.constant 3 : index
    %c0_42 = arith.constant 0 : index
    %c0_43 = arith.constant 0 : index
    %40 = vector.load %arg3[%c3_41, %c0_42, %c0_43] : memref<4x128x3xbf16, #tpu.memory_space<vmem>>, vector<1x128x3xbf16>
    %41 = vector.shape_cast %40 : vector<1x128x3xbf16> to vector<128x3xbf16>
    %cst_44 = arith.constant dense<0.000000e+00> : vector<128x3xf32>
    %42 = tpu.matmul %39, %41, %cst_44 {dimension_numbers = #tpu.dot_dimension_numbers<[1], [0], [0], [1], [0, 0, 1, 1], [], []>} : vector<128x128xbf16>, vector<128x3xbf16>, vector<128x3xf32> -> vector<128x3xf32>
    %43 = arith.addf %37, %42 : vector<128x3xf32>
    %c3_45 = arith.constant 3 : index
    %c0_46 = arith.constant 0 : index
    %c0_47 = arith.constant 0 : index
    %44 = vector.load %arg6[%c3_45, %c0_46, %c0_47] : memref<4x128x3xf32, #tpu.memory_space<vmem>>, vector<1x128x3xf32>
    %45 = vector.shape_cast %44 : vector<1x128x3xf32> to vector<128x3xf32>
    %46 = vector.shape_cast %43 : vector<128x3xf32> to vector<1x128x3xf32>
    tpu.vector_store %arg6[%c3_45, %c0_46, %c0_47], %46 {strides = array<i32>} : memref<4x128x3xf32, #tpu.memory_space<vmem>>, vector<1x128x3xf32>,
    %c0_i32_48 = arith.constant 0 : i32
    %47 = arith.cmpi eq, %arg1, %c0_i32_48 : i32
    %48 = arith.extui %47 : i1 to i32
    %c0_i32_49 = arith.constant 0 : i32
    %49 = arith.cmpi ne, %48, %c0_i32_49 : i32
    scf.if %49 {
      %c0_50 = arith.constant 0 : index
      %c0_51 = arith.constant 0 : index
      %c0_52 = arith.constant 0 : index
      %50 = vector.load %arg6[%c0_50, %c0_51, %c0_52] : memref<4x128x3xf32, #tpu.memory_space<vmem>>, vector<4x128x3xf32>
      %c0_53 = arith.constant 0 : index
      %c0_54 = arith.constant 0 : index
      %c0_55 = arith.constant 0 : index
      %51 = vector.load %arg4[%c0_53, %c0_54, %c0_55] : memref<1x1x3xf32, #tpu.memory_space<vmem>>, vector<1x1x3xf32>
      %52 = vector.broadcast %51 : vector<1x1x3xf32> to vector<4x128x3xf32>
      %53 = arith.addf %50, %52 : vector<4x128x3xf32>
      %54 = arith.negf %53 : vector<4x128x3xf32>
      %55 = math.exp %54 : vector<4x128x3xf32>
      %cst_56 = arith.constant 1.000000e+00 : f32
      %56 = vector.broadcast %cst_56 : f32 to vector<4x128x3xf32>
      %57 = arith.addf %56, %55 : vector<4x128x3xf32>
      %58 = arith.divf %56, %57 : vector<4x128x3xf32>
      %c0_57 = arith.constant 0 : index
      %c0_58 = arith.constant 0 : index
      %c0_59 = arith.constant 0 : index
      %59 = vector.load %arg5[%c0_57, %c0_58, %c0_59] : memref<4x128x3xf32, #tpu.memory_space<vmem>>, vector<4x128x3xf32>
      tpu.vector_store %arg5[%c0_57, %c0_58, %c0_59], %58 {strides = array<i32>} : memref<4x128x3xf32, #tpu.memory_space<vmem>>, vector<4x128x3xf32>,
    } else {
    }
    return
  }
  func.func @transform_0(%arg0: i32, %arg1: i32) -> (i32, i32, i32) {
    %c0_i32 = arith.constant 0 : i32
    %c0_i32_0 = arith.constant 0 : i32
    %c0_i32_1 = arith.constant 0 : i32
    return %c0_i32, %c0_i32_0, %arg1 : i32, i32, i32
  }
  func.func @transform_1(%arg0: i32, %arg1: i32) -> (i32, i32, i32) {
    %c0_i32 = arith.constant 0 : i32
    %c0_i32_0 = arith.constant 0 : i32
    return %c0_i32, %arg1, %arg0 : i32, i32, i32
  }
  func.func @transform_2(%arg0: i32, %arg1: i32) -> (i32, i32, i32) {
    %c0_i32 = arith.constant 0 : i32
    %c0_i32_0 = arith.constant 0 : i32
    %c0_i32_1 = arith.constant 0 : i32
    return %c0_i32, %c0_i32_0, %arg0 : i32, i32, i32
  }
  func.func @transform_3(%arg0: i32, %arg1: i32) -> (i32, i32, i32) {
    %c0_i32 = arith.constant 0 : i32
    %c0_i32_0 = arith.constant 0 : i32
    %c0_i32_1 = arith.constant 0 : i32
    return %c0_i32, %c0_i32_0, %arg0 : i32, i32, i32
  }
}

</mosaic_0001>

<llo_original>
// kernel: fwd.10
$region0: #{fwd.10}
  #allocation0 [shape = 'u32[]', space=smem, size = 0x4, offset = 0x4, fixed_abs, tag = 'smem constant byte address 0x4 - core index']
  #allocation1 [shape = 'u32[144,128]{1,0:T(1,128)}', space=vmem, size = 0x12000, scoped, tag = 'internal scratch']
  #allocation2 [shape = 'f32[1,128,32]{2,1,0:T(8,128)}', space=vmem, size = 0x10000, scoped, tag = 'scratch operand']
  %s0 = inlined_call_operand.vmem [shape: bf16[1,128,48], index: 0, kind: input, shape index: {}]
  %s1 = inlined_call_operand.vmem [shape: bf16[1,48,32], index: 1, kind: input, shape index: {}]
  %s2 = inlined_call_operand.vmem [shape: f32[1,128,32], index: 2, kind: output, shape index: {}]
  %s3 = sld [smem:[#allocation0]]
  $region26: #{fwd.10} parent=0
    _
  %s5 = ssub.s32 1, %s3
  %s6 = scalar_select 0, %s5, %s3
  // Predicated region
  $region2: #{fwd.10} parent=0 // pred_check
    _
  $region3: #{fwd.10} parent=0 // pred_check_branch
    %8 = sbr.rel (0) target = $region5
  $region4: #{fwd.10} parent=0 // pred_region
    _
  $region5: #{fwd.10} parent=0 // pred_fallthru
    _
  // Predicated region
  $region6: #{fwd.10} parent=0 // pred_check
    _
  $region7: #{fwd.10} parent=0 // pred_check_branch
    %10 = sbr.rel (0) target = $region9
  $region8: #{fwd.10} parent=0 // pred_region
    _
  $region9: #{fwd.10} parent=0 // pred_fallthru
    _
  %p12 = scmp.eq.s32.totalorder 0, 0
  // Predicated region
  $region10: #{fwd.10} parent=0 // pred_check
    %p13 = pneg %p12
  $region11: #{fwd.10} parent=0 // pred_check_branch
    %15 = sbr.rel (%p13) target = $region13
  $region12: #{fwd.10} parent=0 // pred_region
    %vm16 = vcmask 261120
    %17 = vst.msk [vmem:[#allocation2] sm:$0xff] %vm16, 0.0
    %18 = vst.msk [vmem:[#allocation2 + $0x8] sm:$0xff] %vm16, 0.0
    %19 = vst.msk [vmem:[#allocation2 + $0x10] sm:$0xff] %vm16, 0.0
    %20 = vst.msk [vmem:[#allocation2 + $0x18] sm:$0xff] %vm16, 0.0
    %21 = vst.msk [vmem:[#allocation2 + $0x20] sm:$0xff] %vm16, 0.0
    %22 = vst.msk [vmem:[#allocation2 + $0x28] sm:$0xff] %vm16, 0.0
    %23 = vst.msk [vmem:[#allocation2 + $0x30] sm:$0xff] %vm16, 0.0
    %24 = vst.msk [vmem:[#allocation2 + $0x38] sm:$0xff] %vm16, 0.0
    %25 = vst.msk [vmem:[#allocation2 + $0x40] sm:$0xff] %vm16, 0.0
    %26 = vst.msk [vmem:[#allocation2 + $0x48] sm:$0xff] %vm16, 0.0
    %27 = vst.msk [vmem:[#allocation2 + $0x50] sm:$0xff] %vm16, 0.0
    %28 = vst.msk [vmem:[#allocation2 + $0x58] sm:$0xff] %vm16, 0.0
    %29 = vst.msk [vmem:[#allocation2 + $0x60] sm:$0xff] %vm16, 0.0
    %30 = vst.msk [vmem:[#allocation2 + $0x68] sm:$0xff] %vm16, 0.0
    %31 = vst.msk [vmem:[#allocation2 + $0x70] sm:$0xff] %vm16, 0.0
    %32 = vst.msk [vmem:[#allocation2 + $0x78] sm:$0xff] %vm16, 0.0
  $region13: #{fwd.10} parent=0 // pred_fallthru
    _
  %v33 = vld [vmem:[#allocation2] sm:$0xff]
  %v34 = vld [vmem:[#allocation2 + $0x8] sm:$0xff]
  %v35 = vld [vmem:[#allocation2 + $0x10] sm:$0xff]
  %v36 = vld [vmem:[#allocation2 + $0x18] sm:$0xff]
  %v37 = vld [vmem:[#allocation2 + $0x20] sm:$0xff]
  %v38 = vld [vmem:[#allocation2 + $0x28] sm:$0xff]
  %v39 = vld [vmem:[#allocation2 + $0x30] sm:$0xff]
  %v40 = vld [vmem:[#allocation2 + $0x38] sm:$0xff]
  %v41 = vld [vmem:[#allocation2 + $0x40] sm:$0xff]
  %v42 = vld [vmem:[#allocation2 + $0x48] sm:$0xff]
  %v43 = vld [vmem:[#allocation2 + $0x50] sm:$0xff]
  %v44 = vld [vmem:[#allocation2 + $0x58] sm:$0xff]
  %v45 = vld [vmem:[#allocation2 + $0x60] sm:$0xff]
  %v46 = vld [vmem:[#allocation2 + $0x68] sm:$0xff]
  %v47 = vld [vmem:[#allocation2 + $0x70] sm:$0xff]
  %v48 = vld [vmem:[#allocation2 + $0x78] sm:$0xff]
  %v49 = vld [vmem:[%s0] sm:$0xf]
  %v50 = vld [vmem:[%s0 + $0x4] sm:$0xf]
  %v51 = vld [vmem:[%s0 + $0x8] sm:$0xf]
  %v52 = vld [vmem:[%s0 + $0xc] sm:$0xf]
  %v53 = vld [vmem:[%s0 + $0x10] sm:$0xf]
  %v54 = vld [vmem:[%s0 + $0x14] sm:$0xf]
  %v55 = vld [vmem:[%s0 + $0x18] sm:$0xf]
  %v56 = vld [vmem:[%s0 + $0x1c] sm:$0xf]
  %v57 = vld [vmem:[%s0 + $0x20] sm:$0xf]
  %v58 = vld [vmem:[%s0 + $0x24] sm:$0xf]
  %v59 = vld [vmem:[%s0 + $0x28] sm:$0xf]
  %v60 = vld [vmem:[%s0 + $0x2c] sm:$0xf]
  %v61 = vld [vmem:[%s0 + $0x30] sm:$0xf]
  %v62 = vld [vmem:[%s0 + $0x34] sm:$0xf]
  %v63 = vld [vmem:[%s0 + $0x38] sm:$0xf]
  %v64 = vld [vmem:[%s0 + $0x3c] sm:$0xf]
  %v65 = vld [vmem:[%s1] sm:$0xf]
  %v66 = vld [vmem:[%s1 + $0x4] sm:$0xf]
  %v67 = vld [vmem:[%s1 + $0x8] sm:$0xf]
  %v68 = vld [vmem:[%s1 + $0xc] sm:$0xf]
  %v69 = vld [vmem:[%s1 + $0x10] sm:$0xf]
  %v70 = vld [vmem:[%s1 + $0x14] sm:$0xf]
  %v87 = vunpack.c.l.b16 %v49
  %v88 = vunpack.c.l.b16 %v50
  %v89 = vunpack.c.l.b16 %v51
  %v90 = vunpack.c.l.b16 %v52
  %v91 = vunpack.c.l.b16 %v53
  %v92 = vunpack.c.l.b16 %v54
  %v93 = vunpack.c.l.b16 %v55
  %v94 = vunpack.c.l.b16 %v56
  %v95 = vunpack.c.l.b16 %v57
  %v96 = vunpack.c.l.b16 %v58
  %v97 = vunpack.c.l.b16 %v59
  %v98 = vunpack.c.l.b16 %v60
  %v99 = vunpack.c.l.b16 %v61
  %v100 = vunpack.c.l.b16 %v62
  %v101 = vunpack.c.l.b16 %v63
  %v102 = vunpack.c.l.b16 %v64
  %v103 = vpack.c.b16 %v88, %v87
  %v104 = vpack.c.b16 %v90, %v89
  %v105 = vpack.c.b16 %v92, %v91
  %v106 = vpack.c.b16 %v94, %v93
  %v107 = vpack.c.b16 %v96, %v95
  %v108 = vpack.c.b16 %v98, %v97
  %v109 = vpack.c.b16 %v100, %v99
  %v110 = vpack.c.b16 %v102, %v101
  %v117 = vunpack.c.l.b16 %v65
  %v118 = vunpack.c.l.b16 %v66
  %v119 = vunpack.c.l.b16 %v67
  %v120 = vunpack.c.l.b16 %v68
  %v121 = vunpack.c.l.b16 %v69
  %v122 = vunpack.c.l.b16 %v70
  %v123 = vpack.c.b16 %v118, %v117
  %v124 = vpack.c.b16 %v120, %v119
  %v125 = vpack.c.b16 %v122, %v121
  %vm129 = vcmask 392192
  %v131 = vsel %vm129, %v103, 0
  %v134 = vsel %vm129, %v104, 0
  %v137 = vsel %vm129, %v105, 0
  %v140 = vsel %vm129, %v106, 0
  %v143 = vsel %vm129, %v107, 0
  %v146 = vsel %vm129, %v108, 0
  %v149 = vsel %vm129, %v109, 0
  %v152 = vsel %vm129, %v110, 0
  %154 = vmatprep.subr.bf16.mxu0 0
  %155 = vmatpush1.bf16.msra.mxu0 %v123
  %156 = vmatprep.subr.bf16.mxu0 0
  %157 = vmatpush1.bf16.msra.mxu0 %v124
  %158 = vmatprep.subr.bf16.mxu0 0
  %159 = vmatpush1.bf16.msra.mxu0 %v125
  %160 = vmatprep.subr.bf16.mxu0 0
  %161 = vmatpush1.bf16.msra.mxu0 0
  %162 = vmatprep.subr.bf16.mxu0 0
  %163 = vmatpush1.bf16.msra.mxu0 0
  %164 = vmatprep.subr.bf16.mxu0 0
  %165 = vmatpush1.bf16.msra.mxu0 0
  %166 = vmatprep.subr.bf16.mxu0 0
  %167 = vmatpush1.bf16.msra.mxu0 0
  %168 = vmatprep.subr.bf16.mxu0 0
  %169 = vmatpush1.bf16.msra.mxu0 0
  %170 = vmatprep.subr.bf16.mxu0 0
  %171 = vmatpush1.bf16.msra.mxu0 0
  %172 = vmatprep.subr.bf16.mxu0 0
  %173 = vmatpush1.bf16.msra.mxu0 0
  %174 = vmatprep.subr.bf16.mxu0 0
  %175 = vmatpush1.bf16.msra.mxu0 0
  %176 = vmatprep.subr.bf16.mxu0 0
  %177 = vmatpush1.bf16.msra.mxu0 0
  %178 = vmatprep.subr.bf16.mxu0 0
  %179 = vmatpush1.bf16.msra.mxu0 0
  %180 = vmatprep.subr.bf16.mxu0 0
  %181 = vmatpush1.bf16.msra.mxu0 0
  %182 = vmatprep.subr.bf16.mxu0 0
  %183 = vmatpush1.bf16.msra.mxu0 0
  %184 = vmatprep.subr.bf16.mxu0 0
  %185 = vmatpush1.bf16.msra.mxu0 0
  %186 = vmatprep.mubr.bf16.mxu0 0
  %187 = vmatmul.mubr.bf16.gmra.mrb[0].mxu0 %v131
  %v188 = vpop.f32.mrb[0].mxu0
  %v189 = vadd.f32 0.0, %v188
  %v190 = vpop.f32.mrb[0].mxu0
  %v191 = vpop.f32.mrb[0].mxu0
  %v192 = vadd.f32 0.0, %v191
  %v193 = vpop.f32.mrb[0].mxu0
  %194 = vmatprep.mubr.bf16.mxu0 0
  %195 = vmatmul.mubr.bf16.gmra.mrb[0].mxu0 %v134
  %v196 = vpop.f32.mrb[0].mxu0
  %v197 = vadd.f32 0.0, %v196
  %v198 = vpop.f32.mrb[0].mxu0
  %v199 = vpop.f32.mrb[0].mxu0
  %v200 = vadd.f32 0.0, %v199
  %v201 = vpop.f32.mrb[0].mxu0
  %202 = vmatprep.mubr.bf16.mxu0 0
  %203 = vmatmul.mubr.bf16.gmra.mrb[0].mxu0 %v137
  %v204 = vpop.f32.mrb[0].mxu0
  %v205 = vadd.f32 0.0, %v204
  %v206 = vpop.f32.mrb[0].mxu0
  %v207 = vpop.f32.mrb[0].mxu0
  %v208 = vadd.f32 0.0, %v207
  %v209 = vpop.f32.mrb[0].mxu0
  %210 = vmatprep.mubr.bf16.mxu0 0
  %211 = vmatmul.mubr.bf16.gmra.mrb[0].mxu0 %v140
  %v212 = vpop.f32.mrb[0].mxu0
  %v213 = vadd.f32 0.0, %v212
  %v214 = vpop.f32.mrb[0].mxu0
  %v215 = vpop.f32.mrb[0].mxu0
  %v216 = vadd.f32 0.0, %v215
  %v217 = vpop.f32.mrb[0].mxu0
  %218 = vmatprep.mubr.bf16.mxu0 0
  %219 = vmatmul.mubr.bf16.gmra.mrb[0].mxu0 %v143
  %v220 = vpop.f32.mrb[0].mxu0
  %v221 = vadd.f32 0.0, %v220
  %v222 = vpop.f32.mrb[0].mxu0
  %v223 = vpop.f32.mrb[0].mxu0
  %v224 = vadd.f32 0.0, %v223
  %v225 = vpop.f32.mrb[0].mxu0
  %226 = vmatprep.mubr.bf16.mxu0 0
  %227 = vmatmul.mubr.bf16.gmra.mrb[0].mxu0 %v146
  %v228 = vpop.f32.mrb[0].mxu0
  %v229 = vadd.f32 0.0, %v228
  %v230 = vpop.f32.mrb[0].mxu0
  %v231 = vpop.f32.mrb[0].mxu0
  %v232 = vadd.f32 0.0, %v231
  %v233 = vpop.f32.mrb[0].mxu0
  %234 = vmatprep.mubr.bf16.mxu0 0
  %235 = vmatmul.mubr.bf16.gmra.mrb[0].mxu0 %v149
  %v236 = vpop.f32.mrb[0].mxu0
  %v237 = vadd.f32 0.0, %v236
  %v238 = vpop.f32.mrb[0].mxu0
  %v239 = vpop.f32.mrb[0].mxu0
  %v240 = vadd.f32 0.0, %v239
  %v241 = vpop.f32.mrb[0].mxu0
  %242 = vmatprep.mubr.bf16.mxu0 0
  %243 = vmatmul.mubr.bf16.gmra.mrb[0].mxu0 %v152
  %v244 = vpop.f32.mrb[0].mxu0
  %v245 = vadd.f32 0.0, %v244
  %v246 = vpop.f32.mrb[0].mxu0
  %v247 = vpop.f32.mrb[0].mxu0
  %v248 = vadd.f32 0.0, %v247
  %v249 = vpop.f32.mrb[0].mxu0
  %250 = vdwg.mxu0
  %v251 = vadd.f32 %v33, %v189
  %v252 = vadd.f32 %v34, %v192
  %v253 = vadd.f32 %v35, %v197
  %v254 = vadd.f32 %v36, %v200
  %v255 = vadd.f32 %v37, %v205
  %v256 = vadd.f32 %v38, %v208
  %v257 = vadd.f32 %v39, %v213
  %v258 = vadd.f32 %v40, %v216
  %v259 = vadd.f32 %v41, %v221
  %v260 = vadd.f32 %v42, %v224
  %v261 = vadd.f32 %v43, %v229
  %v262 = vadd.f32 %v44, %v232
  %v263 = vadd.f32 %v45, %v237
  %v264 = vadd.f32 %v46, %v240
  %v265 = vadd.f32 %v47, %v245
  %v266 = vadd.f32 %v48, %v248
  %vm267 = vcmask 261120
  %268 = vst.msk [vmem:[#allocation2] sm:$0xff] %vm267, %v251
  %269 = vst.msk [vmem:[#allocation2 + $0x8] sm:$0xff] %vm267, %v252
  %270 = vst.msk [vmem:[#allocation2 + $0x10] sm:$0xff] %vm267, %v253
  %271 = vst.msk [vmem:[#allocation2 + $0x18] sm:$0xff] %vm267, %v254
  %272 = vst.msk [vmem:[#allocation2 + $0x20] sm:$0xff] %vm267, %v255
  %273 = vst.msk [vmem:[#allocation2 + $0x28] sm:$0xff] %vm267, %v256
  %274 = vst.msk [vmem:[#allocation2 + $0x30] sm:$0xff] %vm267, %v257
  %275 = vst.msk [vmem:[#allocation2 + $0x38] sm:$0xff] %vm267, %v258
  %276 = vst.msk [vmem:[#allocation2 + $0x40] sm:$0xff] %vm267, %v259
  %277 = vst.msk [vmem:[#allocation2 + $0x48] sm:$0xff] %vm267, %v260
  %278 = vst.msk [vmem:[#allocation2 + $0x50] sm:$0xff] %vm267, %v261
  %279 = vst.msk [vmem:[#allocation2 + $0x58] sm:$0xff] %vm267, %v262
  %280 = vst.msk [vmem:[#allocation2 + $0x60] sm:$0xff] %vm267, %v263
  %281 = vst.msk [vmem:[#allocation2 + $0x68] sm:$0xff] %vm267, %v264
  %282 = vst.msk [vmem:[#allocation2 + $0x70] sm:$0xff] %vm267, %v265
  %283 = vst.msk [vmem:[#allocation2 + $0x78] sm:$0xff] %vm267, %v266
  // Predicated region
  $region14: #{fwd.10} parent=0 // pred_check
    %p284 = pneg %p12
  $region15: #{fwd.10} parent=0 // pred_check_branch
    %286 = sbr.rel (%p284) target = $region17
  $region16: #{fwd.10} parent=0 // pred_region
    %v287 = vld [vmem:[#allocation2] sm:$0xff]
    %v288 = vld [vmem:[#allocation2 + $0x8] sm:$0xff]
    %v289 = vld [vmem:[#allocation2 + $0x10] sm:$0xff]
    %v290 = vld [vmem:[#allocation2 + $0x18] sm:$0xff]
    %v291 = vld [vmem:[#allocation2 + $0x20] sm:$0xff]
    %v292 = vld [vmem:[#allocation2 + $0x28] sm:$0xff]
    %v293 = vld [vmem:[#allocation2 + $0x30] sm:$0xff]
    %v294 = vld [vmem:[#allocation2 + $0x38] sm:$0xff]
    %v295 = vld [vmem:[#allocation2 + $0x40] sm:$0xff]
    %v296 = vld [vmem:[#allocation2 + $0x48] sm:$0xff]
    %v297 = vld [vmem:[#allocation2 + $0x50] sm:$0xff]
    %v298 = vld [vmem:[#allocation2 + $0x58] sm:$0xff]
    %v299 = vld [vmem:[#allocation2 + $0x60] sm:$0xff]
    %v300 = vld [vmem:[#allocation2 + $0x68] sm:$0xff]
    %v301 = vld [vmem:[#allocation2 + $0x70] sm:$0xff]
    %v302 = vld [vmem:[#allocation2 + $0x78] sm:$0xff]
    %v303 = vsel %vm267, %v287, 0.0
    %v304 = vsel %vm267, %v288, 0.0
    %v305 = vadd.f32 %v303, %v304
    %v306 = vsel %vm267, %v289, 0.0
    %v307 = vadd.f32 %v305, %v306
    %v308 = vsel %vm267, %v290, 0.0
    %v309 = vadd.f32 %v307, %v308
    %v310 = vsel %vm267, %v291, 0.0
    %v311 = vadd.f32 %v309, %v310
    %v312 = vsel %vm267, %v292, 0.0
    %v313 = vadd.f32 %v311, %v312
    %v314 = vsel %vm267, %v293, 0.0
    %v315 = vadd.f32 %v313, %v314
    %v316 = vsel %vm267, %v294, 0.0
    %v317 = vadd.f32 %v315, %v316
    %v318 = vsel %vm267, %v295, 0.0
    %v319 = vadd.f32 %v317, %v318
    %v320 = vsel %vm267, %v296, 0.0
    %v321 = vadd.f32 %v319, %v320
    %v322 = vsel %vm267, %v297, 0.0
    %v323 = vadd.f32 %v321, %v322
    %v324 = vsel %vm267, %v298, 0.0
    %v325 = vadd.f32 %v323, %v324
    %v326 = vsel %vm267, %v299, 0.0
    %v327 = vadd.f32 %v325, %v326
    %v328 = vsel %vm267, %v300, 0.0
    %v329 = vadd.f32 %v327, %v328
    %v330 = vsel %vm267, %v301, 0.0
    %v331 = vadd.f32 %v329, %v330
    %v332 = vsel %vm267, %v302, 0.0
    %v333 = vadd.f32 %v331, %v332
    %v334 = vrot.slane %v333, 4
    %v335 = vadd.f32 %v333, %v334
    %v336 = vrot.slane %v335, 2
    %v337 = vadd.f32 %v335, %v336
    %v338 = vrot.slane %v337, 1
    %v339 = vadd.f32 %v337, %v338
    %v340 = vrcp.pop 128.0
    %v341 = vmul.f32 %v339, %v340
    %v342 = vadd.f32 %v341, 0.0
    %v343 = vmul.f32 %v287, %v287
    %v344 = vmul.f32 %v288, %v288
    %v345 = vmul.f32 %v289, %v289
    %v346 = vmul.f32 %v290, %v290
    %v347 = vmul.f32 %v291, %v291
    %v348 = vmul.f32 %v292, %v292
    %v349 = vmul.f32 %v293, %v293
    %v350 = vmul.f32 %v294, %v294
    %v351 = vmul.f32 %v295, %v295
    %v352 = vmul.f32 %v296, %v296
    %v353 = vmul.f32 %v297, %v297
    %v354 = vmul.f32 %v298, %v298
    %v355 = vmul.f32 %v299, %v299
    %v356 = vmul.f32 %v300, %v300
    %v357 = vmul.f32 %v301, %v301
    %v358 = vmul.f32 %v302, %v302
    %v359 = vsel %vm267, %v343, 0.0
    %v360 = vsel %vm267, %v344, 0.0
    %v361 = vadd.f32 %v359, %v360
    %v362 = vsel %vm267, %v345, 0.0
    %v363 = vadd.f32 %v361, %v362
    %v364 = vsel %vm267, %v346, 0.0
    %v365 = vadd.f32 %v363, %v364
    %v366 = vsel %vm267, %v347, 0.0
    %v367 = vadd.f32 %v365, %v366
    %v368 = vsel %vm267, %v348, 0.0
    %v369 = vadd.f32 %v367, %v368
    %v370 = vsel %vm267, %v349, 0.0
    %v371 = vadd.f32 %v369, %v370
    %v372 = vsel %vm267, %v350, 0.0
    %v373 = vadd.f32 %v371, %v372
    %v374 = vsel %vm267, %v351, 0.0
    %v375 = vadd.f32 %v373, %v374
    %v376 = vsel %vm267, %v352, 0.0
    %v377 = vadd.f32 %v375, %v376
    %v378 = vsel %vm267, %v353, 0.0
    %v379 = vadd.f32 %v377, %v378
    %v380 = vsel %vm267, %v354, 0.0
    %v381 = vadd.f32 %v379, %v380
    %v382 = vsel %vm267, %v355, 0.0
    %v383 = vadd.f32 %v381, %v382
    %v384 = vsel %vm267, %v356, 0.0
    %v385 = vadd.f32 %v383, %v384
    %v386 = vsel %vm267, %v357, 0.0
    %v387 = vadd.f32 %v385, %v386
    %v388 = vsel %vm267, %v358, 0.0
    %v389 = vadd.f32 %v387, %v388
    %v390 = vrot.slane %v389, 4
    %v391 = vadd.f32 %v389, %v390
    %v392 = vrot.slane %v391, 2
    %v393 = vadd.f32 %v391, %v392
    %v394 = vrot.slane %v393, 1
    %v395 = vadd.f32 %v393, %v394
    %v396 = vmul.f32 %v395, %v340
    %v397 = vadd.f32 %v396, 0.0
    %v398 = vmul.f32 %v342, %v342
    %v399 = vsub.f32 %v397, %v398
    %v400 = vmax.f32 %v399, 0.0
    %v401 = vsub.f32 %v287, %v342
    %v402 = vsub.f32 %v288, %v342
    %v403 = vsub.f32 %v289, %v342
    %v404 = vsub.f32 %v290, %v342
    %v405 = vsub.f32 %v291, %v342
    %v406 = vsub.f32 %v292, %v342
    %v407 = vsub.f32 %v293, %v342
    %v408 = vsub.f32 %v294, %v342
    %v409 = vsub.f32 %v295, %v342
    %v410 = vsub.f32 %v296, %v342
    %v411 = vsub.f32 %v297, %v342
    %v412 = vsub.f32 %v298, %v342
    %v413 = vsub.f32 %v299, %v342
    %v414 = vsub.f32 %v300, %v342
    %v415 = vsub.f32 %v301, %v342
    %v416 = vsub.f32 %v302, %v342
    %v417 = vadd.f32 %v400, 1e-05
    %v418 = vrsqrt.pop %v417
    %v419 = vmul.f32 %v401, %v418
    %v420 = vmul.f32 %v402, %v418
    %v421 = vmul.f32 %v403, %v418
    %v422 = vmul.f32 %v404, %v418
    %v423 = vmul.f32 %v405, %v418
    %v424 = vmul.f32 %v406, %v418
    %v425 = vmul.f32 %v407, %v418
    %v426 = vmul.f32 %v408, %v418
    %v427 = vmul.f32 %v409, %v418
    %v428 = vmul.f32 %v410, %v418
    %v429 = vmul.f32 %v411, %v418
    %v430 = vmul.f32 %v412, %v418
    %v431 = vmul.f32 %v413, %v418
    %v432 = vmul.f32 %v414, %v418
    %v433 = vmul.f32 %v415, %v418
    %v434 = vmul.f32 %v416, %v418
    %vm435 = vcmp.ge.f32.partialorder %v419, 0.0
    %vm436 = vcmp.ge.f32.partialorder %v420, 0.0
    %vm437 = vcmp.ge.f32.partialorder %v421, 0.0
    %vm438 = vcmp.ge.f32.partialorder %v422, 0.0
    %vm439 = vcmp.ge.f32.partialorder %v423, 0.0
    %vm440 = vcmp.ge.f32.partialorder %v424, 0.0
    %vm441 = vcmp.ge.f32.partialorder %v425, 0.0
    %vm442 = vcmp.ge.f32.partialorder %v426, 0.0
    %vm443 = vcmp.ge.f32.partialorder %v427, 0.0
    %vm444 = vcmp.ge.f32.partialorder %v428, 0.0
    %vm445 = vcmp.ge.f32.partialorder %v429, 0.0
    %vm446 = vcmp.ge.f32.partialorder %v430, 0.0
    %vm447 = vcmp.ge.f32.partialorder %v431, 0.0
    %vm448 = vcmp.ge.f32.partialorder %v432, 0.0
    %vm449 = vcmp.ge.f32.partialorder %v433, 0.0
    %vm450 = vcmp.ge.f32.partialorder %v434, 0.0
    %v451 = vmul.f32 %v419, 0.2
    %v452 = vmul.f32 %v420, 0.2
    %v453 = vmul.f32 %v421, 0.2
    %v454 = vmul.f32 %v422, 0.2
    %v455 = vmul.f32 %v423, 0.2
    %v456 = vmul.f32 %v424, 0.2
    %v457 = vmul.f32 %v425, 0.2
    %v458 = vmul.f32 %v426, 0.2
    %v459 = vmul.f32 %v427, 0.2
    %v460 = vmul.f32 %v428, 0.2
    %v461 = vmul.f32 %v429, 0.2
    %v462 = vmul.f32 %v430, 0.2
    %v463 = vmul.f32 %v431, 0.2
    %v464 = vmul.f32 %v432, 0.2
    %v465 = vmul.f32 %v433, 0.2
    %v466 = vmul.f32 %v434, 0.2
    %v467 = vsel %vm435, %v419, %v451
    %v468 = vsel %vm436, %v420, %v452
    %v469 = vsel %vm437, %v421, %v453
    %v470 = vsel %vm438, %v422, %v454
    %v471 = vsel %vm439, %v423, %v455
    %v472 = vsel %vm440, %v424, %v456
    %v473 = vsel %vm441, %v425, %v457
    %v474 = vsel %vm442, %v426, %v458
    %v475 = vsel %vm443, %v427, %v459
    %v476 = vsel %vm444, %v428, %v460
    %v477 = vsel %vm445, %v429, %v461
    %v478 = vsel %vm446, %v430, %v462
    %v479 = vsel %vm447, %v431, %v463
    %v480 = vsel %vm448, %v432, %v464
    %v481 = vsel %vm449, %v433, %v465
    %v482 = vsel %vm450, %v434, %v466
    %483 = vst.msk [vmem:[%s2] sm:$0xff] %vm267, %v467
    %484 = vst.msk [vmem:[%s2 + $0x8] sm:$0xff] %vm267, %v468
    %485 = vst.msk [vmem:[%s2 + $0x10] sm:$0xff] %vm267, %v469
    %486 = vst.msk [vmem:[%s2 + $0x18] sm:$0xff] %vm267, %v470
    %487 = vst.msk [vmem:[%s2 + $0x20] sm:$0xff] %vm267, %v471
    %488 = vst.msk [vmem:[%s2 + $0x28] sm:$0xff] %vm267, %v472
    %489 = vst.msk [vmem:[%s2 + $0x30] sm:$0xff] %vm267, %v473
    %490 = vst.msk [vmem:[%s2 + $0x38] sm:$0xff] %vm267, %v474
    %491 = vst.msk [vmem:[%s2 + $0x40] sm:$0xff] %vm267, %v475
    %492 = vst.msk [vmem:[%s2 + $0x48] sm:$0xff] %vm267, %v476
    %493 = vst.msk [vmem:[%s2 + $0x50] sm:$0xff] %vm267, %v477
    %494 = vst.msk [vmem:[%s2 + $0x58] sm:$0xff] %vm267, %v478
    %495 = vst.msk [vmem:[%s2 + $0x60] sm:$0xff] %vm267, %v479
    %496 = vst.msk [vmem:[%s2 + $0x68] sm:$0xff] %vm267, %v480
    %497 = vst.msk [vmem:[%s2 + $0x70] sm:$0xff] %vm267, %v481
    %498 = vst.msk [vmem:[%s2 + $0x78] sm:$0xff] %vm267, %v482
  $region17: #{fwd.10} parent=0 // pred_fallthru
    _
  // Predicated region
  $region18: #{fwd.10} parent=0 // pred_check
    _
  $region19: #{fwd.10} parent=0 // pred_check_branch
    %500 = sbr.rel (0) target = $region21
  $region20: #{fwd.10} parent=0 // pred_region
    _
  $region21: #{fwd.10} parent=0 // pred_fallthru
    _
  // Predicated region
  $region22: #{fwd.10} parent=0 // pred_check
    _
  $region23: #{fwd.10} parent=0 // pred_check_branch
    %502 = sbr.rel (0) target = $region25
  $region24: #{fwd.10} parent=0 // pred_region
    _
  $region25: #{fwd.10} parent=0 // pred_fallthru
    _

// kernel: fwd.11
$region0: #{fwd.11}
  #allocation0 [shape = 'u32[]', space=smem, size = 0x4, offset = 0x4, fixed_abs, tag = 'smem constant byte address 0x4 - core index']
  #allocation1 [shape = 'u32[144,128]{1,0:T(1,128)}', space=vmem, size = 0x12000, scoped, tag = 'internal scratch']
  #allocation2 [shape = 'f32[1,32,64]{2,1,0:T(8,128)}', space=vmem, size = 0x4000, scoped, tag = 'scratch operand']
  %s0 = inlined_call_operand.vmem [shape: bf16[1,32,512], index: 0, kind: input, shape index: {}]
  %s1 = inlined_call_operand.vmem [shape: bf16[1,512,64], index: 1, kind: input, shape index: {}]
  %s2 = inlined_call_operand.vmem [shape: f32[1,32,64], index: 2, kind: output, shape index: {}]
  %s3 = sld [smem:[#allocation0]]
  $region26: #{fwd.11} parent=0
    _
  %s5 = ssub.s32 1, %s3
  %s6 = scalar_select 0, %s5, %s3
  // Predicated region
  $region2: #{fwd.11} parent=0 // pred_check
    _
  $region3: #{fwd.11} parent=0 // pred_check_branch
    %8 = sbr.rel (0) target = $region5
  $region4: #{fwd.11} parent=0 // pred_region
    _
  $region5: #{fwd.11} parent=0 // pred_fallthru
    _
  // Predicated region
  $region6: #{fwd.11} parent=0 // pred_check
    _
  $region7: #{fwd.11} parent=0 // pred_check_branch
    %10 = sbr.rel (0) target = $region9
  $region8: #{fwd.11} parent=0 // pred_region
    _
  $region9: #{fwd.11} parent=0 // pred_fallthru
    _
  %p12 = scmp.eq.s32.totalorder 0, 0
  // Predicated region
  $region10: #{fwd.11} parent=0 // pred_check
    %p13 = pneg %p12
  $region11: #{fwd.11} parent=0 // pred_check_branch
    %15 = sbr.rel (%p13) target = $region13
  $region12: #{fwd.11} parent=0 // pred_region
    %vm16 = vcmask 523264
    %17 = vst.msk [vmem:[#allocation2] sm:$0xff] %vm16, 0.0
    %18 = vst.msk [vmem:[#allocation2 + $0x8] sm:$0xff] %vm16, 0.0
    %19 = vst.msk [vmem:[#allocation2 + $0x10] sm:$0xff] %vm16, 0.0
    %20 = vst.msk [vmem:[#allocation2 + $0x18] sm:$0xff] %vm16, 0.0
  $region13: #{fwd.11} parent=0 // pred_fallthru
    _
  %v21 = vld [vmem:[#allocation2] sm:$0xff]
  %v22 = vld [vmem:[#allocation2 + $0x8] sm:$0xff]
  %v23 = vld [vmem:[#allocation2 + $0x10] sm:$0xff]
  %v24 = vld [vmem:[#allocation2 + $0x18] sm:$0xff]
  %v25 = vld [vmem:[%s0] sm:$0xff]
  %v26 = vld [vmem:[%s0 + $0x8] sm:$0xff]
  %v27 = vld [vmem:[%s0 + $0x10] sm:$0xff]
  %v28 = vld [vmem:[%s0 + $0x18] sm:$0xff]
  %v29 = vld [vmem:[%s0 + $0x20] sm:$0xff]
  %v30 = vld [vmem:[%s0 + $0x28] sm:$0xff]
  %v31 = vld [vmem:[%s0 + $0x30] sm:$0xff]
  %v32 = vld [vmem:[%s0 + $0x38] sm:$0xff]
  %v33 = vld [vmem:[%s1] sm:$0xf]
  %v34 = vld [vmem:[%s1 + $0x4] sm:$0xf]
  %v35 = vld [vmem:[%s1 + $0x8] sm:$0xf]
  %v36 = vld [vmem:[%s1 + $0xc] sm:$0xf]
  %v37 = vld [vmem:[%s1 + $0x10] sm:$0xf]
  %v38 = vld [vmem:[%s1 + $0x14] sm:$0xf]
  %v39 = vld [vmem:[%s1 + $0x18] sm:$0xf]
  %v40 = vld [vmem:[%s1 + $0x1c] sm:$0xf]
  %v41 = vld [vmem:[%s1 + $0x20] sm:$0xf]
  %v42 = vld [vmem:[%s1 + $0x24] sm:$0xf]
  %v43 = vld [vmem:[%s1 + $0x28] sm:$0xf]
  %v44 = vld [vmem:[%s1 + $0x2c] sm:$0xf]
  %v45 = vld [vmem:[%s1 + $0x30] sm:$0xf]
  %v46 = vld [vmem:[%s1 + $0x34] sm:$0xf]
  %v47 = vld [vmem:[%s1 + $0x38] sm:$0xf]
  %v48 = vld [vmem:[%s1 + $0x3c] sm:$0xf]
  %v49 = vld [vmem:[%s1 + $0x40] sm:$0xf]
  %v50 = vld [vmem:[%s1 + $0x44] sm:$0xf]
  %v51 = vld [vmem:[%s1 + $0x48] sm:$0xf]
  %v52 = vld [vmem:[%s1 + $0x4c] sm:$0xf]
  %v53 = vld [vmem:[%s1 + $0x50] sm:$0xf]
  %v54 = vld [vmem:[%s1 + $0x54] sm:$0xf]
  %v55 = vld [vmem:[%s1 + $0x58] sm:$0xf]
  %v56 = vld [vmem:[%s1 + $0x5c] sm:$0xf]
  %v57 = vld [vmem:[%s1 + $0x60] sm:$0xf]
  %v58 = vld [vmem:[%s1 + $0x64] sm:$0xf]
  %v59 = vld [vmem:[%s1 + $0x68] sm:$0xf]
  %v60 = vld [vmem:[%s1 + $0x6c] sm:$0xf]
  %v61 = vld [vmem:[%s1 + $0x70] sm:$0xf]
  %v62 = vld [vmem:[%s1 + $0x74] sm:$0xf]
  %v63 = vld [vmem:[%s1 + $0x78] sm:$0xf]
  %v64 = vld [vmem:[%s1 + $0x7c] sm:$0xf]
  %v65 = vld [vmem:[%s1 + $0x80] sm:$0xf]
  %v66 = vld [vmem:[%s1 + $0x84] sm:$0xf]
  %v67 = vld [vmem:[%s1 + $0x88] sm:$0xf]
  %v68 = vld [vmem:[%s1 + $0x8c] sm:$0xf]
  %v69 = vld [vmem:[%s1 + $0x90] sm:$0xf]
  %v70 = vld [vmem:[%s1 + $0x94] sm:$0xf]
  %v71 = vld [vmem:[%s1 + $0x98] sm:$0xf]
  %v72 = vld [vmem:[%s1 + $0x9c] sm:$0xf]
  %v73 = vld [vmem:[%s1 + $0xa0] sm:$0xf]
  %v74 = vld [vmem:[%s1 + $0xa4] sm:$0xf]
  %v75 = vld [vmem:[%s1 + $0xa8] sm:$0xf]
  %v76 = vld [vmem:[%s1 + $0xac] sm:$0xf]
  %v77 = vld [vmem:[%s1 + $0xb0] sm:$0xf]
  %v78 = vld [vmem:[%s1 + $0xb4] sm:$0xf]
  %v79 = vld [vmem:[%s1 + $0xb8] sm:$0xf]
  %v80 = vld [vmem:[%s1 + $0xbc] sm:$0xf]
  %v81 = vld [vmem:[%s1 + $0xc0] sm:$0xf]
  %v82 = vld [vmem:[%s1 + $0xc4] sm:$0xf]
  %v83 = vld [vmem:[%s1 + $0xc8] sm:$0xf]
  %v84 = vld [vmem:[%s1 + $0xcc] sm:$0xf]
  %v85 = vld [vmem:[%s1 + $0xd0] sm:$0xf]
  %v86 = vld [vmem:[%s1 + $0xd4] sm:$0xf]
  %v87 = vld [vmem:[%s1 + $0xd8] sm:$0xf]
  %v88 = vld [vmem:[%s1 + $0xdc] sm:$0xf]
  %v89 = vld [vmem:[%s1 + $0xe0] sm:$0xf]
  %v90 = vld [vmem:[%s1 + $0xe4] sm:$0xf]
  %v91 = vld [vmem:[%s1 + $0xe8] sm:$0xf]
  %v92 = vld [vmem:[%s1 + $0xec] sm:$0xf]
  %v93 = vld [vmem:[%s1 + $0xf0] sm:$0xf]
  %v94 = vld [vmem:[%s1 + $0xf4] sm:$0xf]
  %v95 = vld [vmem:[%s1 + $0xf8] sm:$0xf]
  %v96 = vld [vmem:[%s1 + $0xfc] sm:$0xf]
  %v105 = vunpack.c.l.b16 %v25
  %v106 = vunpack.c.h.b16 %v25
  %v107 = vunpack.c.l.b16 %v26
  %v108 = vunpack.c.h.b16 %v26
  %v109 = vunpack.c.l.b16 %v27
  %v110 = vunpack.c.h.b16 %v27
  %v111 = vunpack.c.l.b16 %v28
  %v112 = vunpack.c.h.b16 %v28
  %v113 = vunpack.c.l.b16 %v29
  %v114 = vunpack.c.h.b16 %v29
  %v115 = vunpack.c.l.b16 %v30
  %v116 = vunpack.c.h.b16 %v30
  %v117 = vunpack.c.l.b16 %v31
  %v118 = vunpack.c.h.b16 %v31
  %v119 = vunpack.c.l.b16 %v32
  %v120 = vunpack.c.h.b16 %v32
  %v121 = vpack.c.b16 %v109, %v105
  %v122 = vpack.c.b16 %v110, %v106
  %v123 = vpack.c.b16 %v111, %v107
  %v124 = vpack.c.b16 %v112, %v108
  %v125 = vpack.c.b16 %v117, %v113
  %v126 = vpack.c.b16 %v118, %v114
  %v127 = vpack.c.b16 %v119, %v115
  %v128 = vpack.c.b16 %v120, %v116
  %v201 = vunpack.c.l.b16 %v33
  %v202 = vunpack.c.l.b16 %v34
  %v203 = vunpack.c.l.b16 %v35
  %v204 = vunpack.c.l.b16 %v36
  %v205 = vunpack.c.l.b16 %v37
  %v206 = vunpack.c.l.b16 %v38
  %v207 = vunpack.c.l.b16 %v39
  %v208 = vunpack.c.l.b16 %v40
  %v209 = vunpack.c.l.b16 %v41
  %v210 = vunpack.c.l.b16 %v42
  %v211 = vunpack.c.l.b16 %v43
  %v212 = vunpack.c.l.b16 %v44
  %v213 = vunpack.c.l.b16 %v45
  %v214 = vunpack.c.l.b16 %v46
  %v215 = vunpack.c.l.b16 %v47
  %v216 = vunpack.c.l.b16 %v48
  %v217 = vunpack.c.l.b16 %v49
  %v218 = vunpack.c.l.b16 %v50
  %v219 = vunpack.c.l.b16 %v51
  %v220 = vunpack.c.l.b16 %v52
  %v221 = vunpack.c.l.b16 %v53
  %v222 = vunpack.c.l.b16 %v54
  %v223 = vunpack.c.l.b16 %v55
  %v224 = vunpack.c.l.b16 %v56
  %v225 = vunpack.c.l.b16 %v57
  %v226 = vunpack.c.l.b16 %v58
  %v227 = vunpack.c.l.b16 %v59
  %v228 = vunpack.c.l.b16 %v60
  %v229 = vunpack.c.l.b16 %v61
  %v230 = vunpack.c.l.b16 %v62
  %v231 = vunpack.c.l.b16 %v63
  %v232 = vunpack.c.l.b16 %v64
  %v233 = vunpack.c.l.b16 %v65
  %v234 = vunpack.c.l.b16 %v66
  %v235 = vunpack.c.l.b16 %v67
  %v236 = vunpack.c.l.b16 %v68
  %v237 = vunpack.c.l.b16 %v69
  %v238 = vunpack.c.l.b16 %v70
  %v239 = vunpack.c.l.b16 %v71
  %v240 = vunpack.c.l.b16 %v72
  %v241 = vunpack.c.l.b16 %v73
  %v242 = vunpack.c.l.b16 %v74
  %v243 = vunpack.c.l.b16 %v75
  %v244 = vunpack.c.l.b16 %v76
  %v245 = vunpack.c.l.b16 %v77
  %v246 = vunpack.c.l.b16 %v78
  %v247 = vunpack.c.l.b16 %v79
  %v248 = vunpack.c.l.b16 %v80
  %v249 = vunpack.c.l.b16 %v81
  %v250 = vunpack.c.l.b16 %v82
  %v251 = vunpack.c.l.b16 %v83
  %v252 = vunpack.c.l.b16 %v84
  %v253 = vunpack.c.l.b16 %v85
  %v254 = vunpack.c.l.b16 %v86
  %v255 = vunpack.c.l.b16 %v87
  %v256 = vunpack.c.l.b16 %v88
  %v257 = vunpack.c.l.b16 %v89
  %v258 = vunpack.c.l.b16 %v90
  %v259 = vunpack.c.l.b16 %v91
  %v260 = vunpack.c.l.b16 %v92
  %v261 = vunpack.c.l.b16 %v93
  %v262 = vunpack.c.l.b16 %v94
  %v263 = vunpack.c.l.b16 %v95
  %v264 = vunpack.c.l.b16 %v96
  %v265 = vpack.c.b16 %v202, %v201
  %v266 = vpack.c.b16 %v204, %v203
  %v267 = vpack.c.b16 %v206, %v205
  %v268 = vpack.c.b16 %v208, %v207
  %v269 = vpack.c.b16 %v210, %v209
  %v270 = vpack.c.b16 %v212, %v211
  %v271 = vpack.c.b16 %v214, %v213
  %v272 = vpack.c.b16 %v216, %v215
  %v273 = vpack.c.b16 %v218, %v217
  %v274 = vpack.c.b16 %v220, %v219
  %v275 = vpack.c.b16 %v222, %v221
  %v276 = vpack.c.b16 %v224, %v223
  %v277 = vpack.c.b16 %v226, %v225
  %v278 = vpack.c.b16 %v228, %v227
  %v279 = vpack.c.b16 %v230, %v229
  %v280 = vpack.c.b16 %v232, %v231
  %v281 = vpack.c.b16 %v234, %v233
  %v282 = vpack.c.b16 %v236, %v235
  %v283 = vpack.c.b16 %v238, %v237
  %v284 = vpack.c.b16 %v240, %v239
  %v285 = vpack.c.b16 %v242, %v241
  %v286 = vpack.c.b16 %v244, %v243
  %v287 = vpack.c.b16 %v246, %v245
  %v288 = vpack.c.b16 %v248, %v247
  %v289 = vpack.c.b16 %v250, %v249
  %v290 = vpack.c.b16 %v252, %v251
  %v291 = vpack.c.b16 %v254, %v253
  %v292 = vpack.c.b16 %v256, %v255
  %v293 = vpack.c.b16 %v258, %v257
  %v294 = vpack.c.b16 %v260, %v259
  %v295 = vpack.c.b16 %v262, %v261
  %v296 = vpack.c.b16 %v264, %v263
  %329 = vmatprep.subr.bf16.mxu0 0
  %330 = vmatpush1.bf16.msra.mxu0 %v265
  %331 = vmatprep.subr.bf16.mxu0 0
  %332 = vmatpush1.bf16.msra.mxu0 %v266
  %333 = vmatprep.subr.bf16.mxu0 0
  %334 = vmatpush1.bf16.msra.mxu0 %v267
  %335 = vmatprep.subr.bf16.mxu0 0
  %336 = vmatpush1.bf16.msra.mxu0 %v268
  %337 = vmatprep.subr.bf16.mxu0 0
  %338 = vmatpush1.bf16.msra.mxu0 %v269
  %339 = vmatprep.subr.bf16.mxu0 0
  %340 = vmatpush1.bf16.msra.mxu0 %v270
  %341 = vmatprep.subr.bf16.mxu0 0
  %342 = vmatpush1.bf16.msra.mxu0 %v271
  %343 = vmatprep.subr.bf16.mxu0 0
  %344 = vmatpush1.bf16.msra.mxu0 %v272
  %345 = vmatprep.subr.bf16.mxu0 0
  %346 = vmatpush1.bf16.msra.mxu0 %v273
  %347 = vmatprep.subr.bf16.mxu0 0
  %348 = vmatpush1.bf16.msra.mxu0 %v274
  %349 = vmatprep.subr.bf16.mxu0 0
  %350 = vmatpush1.bf16.msra.mxu0 %v275
  %351 = vmatprep.subr.bf16.mxu0 0
  %352 = vmatpush1.bf16.msra.mxu0 %v276
  %353 = vmatprep.subr.bf16.mxu0 0
  %354 = vmatpush1.bf16.msra.mxu0 %v277
  %355 = vmatprep.subr.bf16.mxu0 0
  %356 = vmatpush1.bf16.msra.mxu0 %v278
  %357 = vmatprep.subr.bf16.mxu0 0
  %358 = vmatpush1.bf16.msra.mxu0 %v279
  %359 = vmatprep.subr.bf16.mxu0 0
  %360 = vmatpush1.bf16.msra.mxu0 %v280
  %361 = vmatprep.mubr.bf16.mxu0 %v122
  %362 = vmatmul.mubr.bf16.gmra.mrb[0].mxu0 %v121
  %v363 = vpop.f32.mrb[0].mxu0
  %v364 = vadd.f32 0.0, %v363
  %v365 = vpop.f32.mrb[0].mxu0
  %v366 = vpop.f32.mrb[0].mxu0
  %v367 = vadd.f32 0.0, %v366
  %v368 = vpop.f32.mrb[0].mxu0
  %369 = vmatprep.mubr.bf16.mxu0 %v126
  %370 = vmatmul.mubr.bf16.gmra.mrb[0].mxu0 %v125
  %v371 = vpop.f32.mrb[0].mxu0
  %v372 = vadd.f32 0.0, %v371
  %v373 = vpop.f32.mrb[0].mxu0
  %v374 = vpop.f32.mrb[0].mxu0
  %v375 = vadd.f32 0.0, %v374
  %v376 = vpop.f32.mrb[0].mxu0
  %377 = vdwg.mxu0
  %378 = vmatprep.subr.bf16.mxu0 0
  %379 = vmatpush1.bf16.msra.mxu0 %v281
  %380 = vmatprep.subr.bf16.mxu0 0
  %381 = vmatpush1.bf16.msra.mxu0 %v282
  %382 = vmatprep.subr.bf16.mxu0 0
  %383 = vmatpush1.bf16.msra.mxu0 %v283
  %384 = vmatprep.subr.bf16.mxu0 0
  %385 = vmatpush1.bf16.msra.mxu0 %v284
  %386 = vmatprep.subr.bf16.mxu0 0
  %387 = vmatpush1.bf16.msra.mxu0 %v285
  %388 = vmatprep.subr.bf16.mxu0 0
  %389 = vmatpush1.bf16.msra.mxu0 %v286
  %390 = vmatprep.subr.bf16.mxu0 0
  %391 = vmatpush1.bf16.msra.mxu0 %v287
  %392 = vmatprep.subr.bf16.mxu0 0
  %393 = vmatpush1.bf16.msra.mxu0 %v288
  %394 = vmatprep.subr.bf16.mxu0 0
  %395 = vmatpush1.bf16.msra.mxu0 %v289
  %396 = vmatprep.subr.bf16.mxu0 0
  %397 = vmatpush1.bf16.msra.mxu0 %v290
  %398 = vmatprep.subr.bf16.mxu0 0
  %399 = vmatpush1.bf16.msra.mxu0 %v291
  %400 = vmatprep.subr.bf16.mxu0 0
  %401 = vmatpush1.bf16.msra.mxu0 %v292
  %402 = vmatprep.subr.bf16.mxu0 0
  %403 = vmatpush1.bf16.msra.mxu0 %v293
  %404 = vmatprep.subr.bf16.mxu0 0
  %405 = vmatpush1.bf16.msra.mxu0 %v294
  %406 = vmatprep.subr.bf16.mxu0 0
  %407 = vmatpush1.bf16.msra.mxu0 %v295
  %408 = vmatprep.subr.bf16.mxu0 0
  %409 = vmatpush1.bf16.msra.mxu0 %v296
  %410 = vmatprep.mubr.bf16.mxu0 %v124
  %411 = vmatmul.mubr.bf16.gmra.mrb[0].mxu0 %v123
  %v412 = vpop.f32.mrb[0].mxu0
  %v413 = vadd.f32 %v364, %v412
  %v414 = vpop.f32.mrb[0].mxu0
  %v415 = vpop.f32.mrb[0].mxu0
  %v416 = vadd.f32 %v367, %v415
  %v417 = vpop.f32.mrb[0].mxu0
  %418 = vmatprep.mubr.bf16.mxu0 %v128
  %419 = vmatmul.mubr.bf16.gmra.mrb[0].mxu0 %v127
  %v420 = vpop.f32.mrb[0].mxu0
  %v421 = vadd.f32 %v372, %v420
  %v422 = vpop.f32.mrb[0].mxu0
  %v423 = vpop.f32.mrb[0].mxu0
  %v424 = vadd.f32 %v375, %v423
  %v425 = vpop.f32.mrb[0].mxu0
  %426 = vdwg.mxu0
  %v427 = vadd.f32 %v21, %v413
  %v428 = vadd.f32 %v22, %v416
  %v429 = vadd.f32 %v23, %v421
  %v430 = vadd.f32 %v24, %v424
  %vm431 = vcmask 523264
  %432 = vst.msk [vmem:[#allocation2] sm:$0xff] %vm431, %v427
  %433 = vst.msk [vmem:[#allocation2 + $0x8] sm:$0xff] %vm431, %v428
  %434 = vst.msk [vmem:[#allocation2 + $0x10] sm:$0xff] %vm431, %v429
  %435 = vst.msk [vmem:[#allocation2 + $0x18] sm:$0xff] %vm431, %v430
  // Predicated region
  $region14: #{fwd.11} parent=0 // pred_check
    %p436 = pneg %p12
  $region15: #{fwd.11} parent=0 // pred_check_branch
    %438 = sbr.rel (%p436) target = $region17
  $region16: #{fwd.11} parent=0 // pred_region
    %v439 = vld [vmem:[#allocation2] sm:$0xff]
    %v440 = vld [vmem:[#allocation2 + $0x8] sm:$0xff]
    %v441 = vld [vmem:[#allocation2 + $0x10] sm:$0xff]
    %v442 = vld [vmem:[#allocation2 + $0x18] sm:$0xff]
    %v443 = vsel %vm431, %v439, 0.0
    %v444 = vsel %vm431, %v440, 0.0
    %v445 = vadd.f32 %v443, %v444
    %v446 = vsel %vm431, %v441, 0.0
    %v447 = vadd.f32 %v445, %v446
    %v448 = vsel %vm431, %v442, 0.0
    %v449 = vadd.f32 %v447, %v448
    %v450 = vrot.slane %v449, 4
    %v451 = vadd.f32 %v449, %v450
    %v452 = vrot.slane %v451, 2
    %v453 = vadd.f32 %v451, %v452
    %v454 = vrot.slane %v453, 1
    %v455 = vadd.f32 %v453, %v454
    %v456 = vrcp.pop 32.0
    %v457 = vmul.f32 %v455, %v456
    %v458 = vadd.f32 %v457, 0.0
    %v459 = vmul.f32 %v439, %v439
    %v460 = vmul.f32 %v440, %v440
    %v461 = vmul.f32 %v441, %v441
    %v462 = vmul.f32 %v442, %v442
    %v463 = vsel %vm431, %v459, 0.0
    %v464 = vsel %vm431, %v460, 0.0
    %v465 = vadd.f32 %v463, %v464
    %v466 = vsel %vm431, %v461, 0.0
    %v467 = vadd.f32 %v465, %v466
    %v468 = vsel %vm431, %v462, 0.0
    %v469 = vadd.f32 %v467, %v468
    %v470 = vrot.slane %v469, 4
    %v471 = vadd.f32 %v469, %v470
    %v472 = vrot.slane %v471, 2
    %v473 = vadd.f32 %v471, %v472
    %v474 = vrot.slane %v473, 1
    %v475 = vadd.f32 %v473, %v474
    %v476 = vmul.f32 %v475, %v456
    %v477 = vadd.f32 %v476, 0.0
    %v478 = vmul.f32 %v458, %v458
    %v479 = vsub.f32 %v477, %v478
    %v480 = vmax.f32 %v479, 0.0
    %v481 = vsub.f32 %v439, %v458
    %v482 = vsub.f32 %v440, %v458
    %v483 = vsub.f32 %v441, %v458
    %v484 = vsub.f32 %v442, %v458
    %v485 = vadd.f32 %v480, 1e-05
    %v486 = vrsqrt.pop %v485
    %v487 = vmul.f32 %v481, %v486
    %v488 = vmul.f32 %v482, %v486
    %v489 = vmul.f32 %v483, %v486
    %v490 = vmul.f32 %v484, %v486
    %vm491 = vcmp.ge.f32.partialorder %v487, 0.0
    %vm492 = vcmp.ge.f32.partialorder %v488, 0.0
    %vm493 = vcmp.ge.f32.partialorder %v489, 0.0
    %vm494 = vcmp.ge.f32.partialorder %v490, 0.0
    %v495 = vmul.f32 %v487, 0.2
    %v496 = vmul.f32 %v488, 0.2
    %v497 = vmul.f32 %v489, 0.2
    %v498 = vmul.f32 %v490, 0.2
    %v499 = vsel %vm491, %v487, %v495
    %v500 = vsel %vm492, %v488, %v496
    %v501 = vsel %vm493, %v489, %v497
    %v502 = vsel %vm494, %v490, %v498
    %503 = vst.msk [vmem:[%s2] sm:$0xff] %vm431, %v499
    %504 = vst.msk [vmem:[%s2 + $0x8] sm:$0xff] %vm431, %v500
    %505 = vst.msk [vmem:[%s2 + $0x10] sm:$0xff] %vm431, %v501
    %506 = vst.msk [vmem:[%s2 + $0x18] sm:$0xff] %vm431, %v502
  $region17: #{fwd.11} parent=0 // pred_fallthru
    _
  // Predicated region
  $region18: #{fwd.11} parent=0 // pred_check
    _
  $region19: #{fwd.11} parent=0 // pred_check_branch
    %508 = sbr.rel (0) target = $region21
  $region20: #{fwd.11} parent=0 // pred_region
    _
  $region21: #{fwd.11} parent=0 // pred_fallthru
    _
  // Predicated region
  $region22: #{fwd.11} parent=0 // pred_check
    _
  $region23: #{fwd.11} parent=0 // pred_check_branch
    %510 = sbr.rel (0) target = $region25
  $region24: #{fwd.11} parent=0 // pred_region
    _
  $region25: #{fwd.11} parent=0 // pred_fallthru
    _

// kernel: fwd.12
$region0: #{fwd.12}
  #allocation0 [shape = 'u32[]', space=smem, size = 0x4, offset = 0x4, fixed_abs, tag = 'smem constant byte address 0x4 - core index']
  #allocation1 [shape = 'u32[144,128]{1,0:T(1,128)}', space=vmem, size = 0x12000, scoped, tag = 'internal scratch']
  #allocation2 [shape = 'f32[1,8,128]{2,1,0:T(8,128)}', space=vmem, size = 0x1000, scoped, tag = 'scratch operand']
  %s0 = inlined_call_operand.vmem [shape: bf16[1,8,1024], index: 0, kind: input, shape index: {}]
  %s1 = inlined_call_operand.vmem [shape: bf16[1,1024,128], index: 1, kind: input, shape index: {}]
  %s2 = inlined_call_operand.vmem [shape: f32[1,8,128], index: 2, kind: output, shape index: {}]
  %s3 = sld [smem:[#allocation0]]
  $region26: #{fwd.12} parent=0
    _
  %s5 = ssub.s32 1, %s3
  %s6 = scalar_select 0, %s5, %s3
  // Predicated region
  $region2: #{fwd.12} parent=0 // pred_check
    _
  $region3: #{fwd.12} parent=0 // pred_check_branch
    %8 = sbr.rel (0) target = $region5
  $region4: #{fwd.12} parent=0 // pred_region
    _
  $region5: #{fwd.12} parent=0 // pred_fallthru
    _
  // Predicated region
  $region6: #{fwd.12} parent=0 // pred_check
    _
  $region7: #{fwd.12} parent=0 // pred_check_branch
    %10 = sbr.rel (0) target = $region9
  $region8: #{fwd.12} parent=0 // pred_region
    _
  $region9: #{fwd.12} parent=0 // pred_fallthru
    _
  %p12 = scmp.eq.s32.totalorder 0, 0
  // Predicated region
  $region10: #{fwd.12} parent=0 // pred_check
    %p13 = pneg %p12
  $region11: #{fwd.12} parent=0 // pred_check_branch
    %15 = sbr.rel (%p13) target = $region13
  $region12: #{fwd.12} parent=0 // pred_region
    %16 = vst [vmem:[#allocation2] sm:$0xff] 0.0
  $region13: #{fwd.12} parent=0 // pred_fallthru
    _
  %v17 = vld [vmem:[#allocation2] sm:$0xff]
  %v18 = vld [vmem:[%s0] sm:$0xff]
  %v19 = vld [vmem:[%s0 + $0x8] sm:$0xff]
  %v20 = vld [vmem:[%s0 + $0x10] sm:$0xff]
  %v21 = vld [vmem:[%s0 + $0x18] sm:$0xff]
  %v22 = vld [vmem:[%s1] sm:$0xf]
  %v23 = vld [vmem:[%s1 + $0x4] sm:$0xf]
  %v24 = vld [vmem:[%s1 + $0x8] sm:$0xf]
  %v25 = vld [vmem:[%s1 + $0xc] sm:$0xf]
  %v26 = vld [vmem:[%s1 + $0x10] sm:$0xf]
  %v27 = vld [vmem:[%s1 + $0x14] sm:$0xf]
  %v28 = vld [vmem:[%s1 + $0x18] sm:$0xf]
  %v29 = vld [vmem:[%s1 + $0x1c] sm:$0xf]
  %v30 = vld [vmem:[%s1 + $0x20] sm:$0xf]
  %v31 = vld [vmem:[%s1 + $0x24] sm:$0xf]
  %v32 = vld [vmem:[%s1 + $0x28] sm:$0xf]
  %v33 = vld [vmem:[%s1 + $0x2c] sm:$0xf]
  %v34 = vld [vmem:[%s1 + $0x30] sm:$0xf]
  %v35 = vld [vmem:[%s1 + $0x34] sm:$0xf]
  %v36 = vld [vmem:[%s1 + $0x38] sm:$0xf]
  %v37 = vld [vmem:[%s1 + $0x3c] sm:$0xf]
  %v38 = vld [vmem:[%s1 + $0x40] sm:$0xf]
  %v39 = vld [vmem:[%s1 + $0x44] sm:$0xf]
  %v40 = vld [vmem:[%s1 + $0x48] sm:$0xf]
  %v41 = vld [vmem:[%s1 + $0x4c] sm:$0xf]
  %v42 = vld [vmem:[%s1 + $0x50] sm:$0xf]
  %v43 = vld [vmem:[%s1 + $0x54] sm:$0xf]
  %v44 = vld [vmem:[%s1 + $0x58] sm:$0xf]
  %v45 = vld [vmem:[%s1 + $0x5c] sm:$0xf]
  %v46 = vld [vmem:[%s1 + $0x60] sm:$0xf]
  %v47 = vld [vmem:[%s1 + $0x64] sm:$0xf]
  %v48 = vld [vmem:[%s1 + $0x68] sm:$0xf]
  %v49 = vld [vmem:[%s1 + $0x6c] sm:$0xf]
  %v50 = vld [vmem:[%s1 + $0x70] sm:$0xf]
  %v51 = vld [vmem:[%s1 + $0x74] sm:$0xf]
  %v52 = vld [vmem:[%s1 + $0x78] sm:$0xf]
  %v53 = vld [vmem:[%s1 + $0x7c] sm:$0xf]
  %v54 = vld [vmem:[%s1 + $0x80] sm:$0xf]
  %v55 = vld [vmem:[%s1 + $0x84] sm:$0xf]
  %v56 = vld [vmem:[%s1 + $0x88] sm:$0xf]
  %v57 = vld [vmem:[%s1 + $0x8c] sm:$0xf]
  %v58 = vld [vmem:[%s1 + $0x90] sm:$0xf]
  %v59 = vld [vmem:[%s1 + $0x94] sm:$0xf]
  %v60 = vld [vmem:[%s1 + $0x98] sm:$0xf]
  %v61 = vld [vmem:[%s1 + $0x9c] sm:$0xf]
  %v62 = vld [vmem:[%s1 + $0xa0] sm:$0xf]
  %v63 = vld [vmem:[%s1 + $0xa4] sm:$0xf]
  %v64 = vld [vmem:[%s1 + $0xa8] sm:$0xf]
  %v65 = vld [vmem:[%s1 + $0xac] sm:$0xf]
  %v66 = vld [vmem:[%s1 + $0xb0] sm:$0xf]
  %v67 = vld [vmem:[%s1 + $0xb4] sm:$0xf]
  %v68 = vld [vmem:[%s1 + $0xb8] sm:$0xf]
  %v69 = vld [vmem:[%s1 + $0xbc] sm:$0xf]
  %v70 = vld [vmem:[%s1 + $0xc0] sm:$0xf]
  %v71 = vld [vmem:[%s1 + $0xc4] sm:$0xf]
  %v72 = vld [vmem:[%s1 + $0xc8] sm:$0xf]
  %v73 = vld [vmem:[%s1 + $0xcc] sm:$0xf]
  %v74 = vld [vmem:[%s1 + $0xd0] sm:$0xf]
  %v75 = vld [vmem:[%s1 + $0xd4] sm:$0xf]
  %v76 = vld [vmem:[%s1 + $0xd8] sm:$0xf]
  %v77 = vld [vmem:[%s1 + $0xdc] sm:$0xf]
  %v78 = vld [vmem:[%s1 + $0xe0] sm:$0xf]
  %v79 = vld [vmem:[%s1 + $0xe4] sm:$0xf]
  %v80 = vld [vmem:[%s1 + $0xe8] sm:$0xf]
  %v81 = vld [vmem:[%s1 + $0xec] sm:$0xf]
  %v82 = vld [vmem:[%s1 + $0xf0] sm:$0xf]
  %v83 = vld [vmem:[%s1 + $0xf4] sm:$0xf]
  %v84 = vld [vmem:[%s1 + $0xf8] sm:$0xf]
  %v85 = vld [vmem:[%s1 + $0xfc] sm:$0xf]
  %v86 = vld [vmem:[%s1 + $0x100] sm:$0xf]
  %v87 = vld [vmem:[%s1 + $0x104] sm:$0xf]
  %v88 = vld [vmem:[%s1 + $0x108] sm:$0xf]
  %v89 = vld [vmem:[%s1 + $0x10c] sm:$0xf]
  %v90 = vld [vmem:[%s1 + $0x110] sm:$0xf]
  %v91 = vld [vmem:[%s1 + $0x114] sm:$0xf]
  %v92 = vld [vmem:[%s1 + $0x118] sm:$0xf]
  %v93 = vld [vmem:[%s1 + $0x11c] sm:$0xf]
  %v94 = vld [vmem:[%s1 + $0x120] sm:$0xf]
  %v95 = vld [vmem:[%s1 + $0x124] sm:$0xf]
  %v96 = vld [vmem:[%s1 + $0x128] sm:$0xf]
  %v97 = vld [vmem:[%s1 + $0x12c] sm:$0xf]
  %v98 = vld [vmem:[%s1 + $0x130] sm:$0xf]
  %v99 = vld [vmem:[%s1 + $0x134] sm:$0xf]
  %v100 = vld [vmem:[%s1 + $0x138] sm:$0xf]
  %v101 = vld [vmem:[%s1 + $0x13c] sm:$0xf]
  %v102 = vld [vmem:[%s1 + $0x140] sm:$0xf]
  %v103 = vld [vmem:[%s1 + $0x144] sm:$0xf]
  %v104 = vld [vmem:[%s1 + $0x148] sm:$0xf]
  %v105 = vld [vmem:[%s1 + $0x14c] sm:$0xf]
  %v106 = vld [vmem:[%s1 + $0x150] sm:$0xf]
  %v107 = vld [vmem:[%s1 + $0x154] sm:$0xf]
  %v108 = vld [vmem:[%s1 + $0x158] sm:$0xf]
  %v109 = vld [vmem:[%s1 + $0x15c] sm:$0xf]
  %v110 = vld [vmem:[%s1 + $0x160] sm:$0xf]
  %v111 = vld [vmem:[%s1 + $0x164] sm:$0xf]
  %v112 = vld [vmem:[%s1 + $0x168] sm:$0xf]
  %v113 = vld [vmem:[%s1 + $0x16c] sm:$0xf]
  %v114 = vld [vmem:[%s1 + $0x170] sm:$0xf]
  %v115 = vld [vmem:[%s1 + $0x174] sm:$0xf]
  %v116 = vld [vmem:[%s1 + $0x178] sm:$0xf]
  %v117 = vld [vmem:[%s1 + $0x17c] sm:$0xf]
  %v118 = vld [vmem:[%s1 + $0x180] sm:$0xf]
  %v119 = vld [vmem:[%s1 + $0x184] sm:$0xf]
  %v120 = vld [vmem:[%s1 + $0x188] sm:$0xf]
  %v121 = vld [vmem:[%s1 + $0x18c] sm:$0xf]
  %v122 = vld [vmem:[%s1 + $0x190] sm:$0xf]
  %v123 = vld [vmem:[%s1 + $0x194] sm:$0xf]
  %v124 = vld [vmem:[%s1 + $0x198] sm:$0xf]
  %v125 = vld [vmem:[%s1 + $0x19c] sm:$0xf]
  %v126 = vld [vmem:[%s1 + $0x1a0] sm:$0xf]
  %v127 = vld [vmem:[%s1 + $0x1a4] sm:$0xf]
  %v128 = vld [vmem:[%s1 + $0x1a8] sm:$0xf]
  %v129 = vld [vmem:[%s1 + $0x1ac] sm:$0xf]
  %v130 = vld [vmem:[%s1 + $0x1b0] sm:$0xf]
  %v131 = vld [vmem:[%s1 + $0x1b4] sm:$0xf]
  %v132 = vld [vmem:[%s1 + $0x1b8] sm:$0xf]
  %v133 = vld [vmem:[%s1 + $0x1bc] sm:$0xf]
  %v134 = vld [vmem:[%s1 + $0x1c0] sm:$0xf]
  %v135 = vld [vmem:[%s1 + $0x1c4] sm:$0xf]
  %v136 = vld [vmem:[%s1 + $0x1c8] sm:$0xf]
  %v137 = vld [vmem:[%s1 + $0x1cc] sm:$0xf]
  %v138 = vld [vmem:[%s1 + $0x1d0] sm:$0xf]
  %v139 = vld [vmem:[%s1 + $0x1d4] sm:$0xf]
  %v140 = vld [vmem:[%s1 + $0x1d8] sm:$0xf]
  %v141 = vld [vmem:[%s1 + $0x1dc] sm:$0xf]
  %v142 = vld [vmem:[%s1 + $0x1e0] sm:$0xf]
  %v143 = vld [vmem:[%s1 + $0x1e4] sm:$0xf]
  %v144 = vld [vmem:[%s1 + $0x1e8] sm:$0xf]
  %v145 = vld [vmem:[%s1 + $0x1ec] sm:$0xf]
  %v146 = vld [vmem:[%s1 + $0x1f0] sm:$0xf]
  %v147 = vld [vmem:[%s1 + $0x1f4] sm:$0xf]
  %v148 = vld [vmem:[%s1 + $0x1f8] sm:$0xf]
  %v149 = vld [vmem:[%s1 + $0x1fc] sm:$0xf]
  %v154 = vunpack.c.l.b16 %v18
  %v155 = vunpack.c.h.b16 %v18
  %v156 = vunpack.c.l.b16 %v19
  %v157 = vunpack.c.h.b16 %v19
  %v158 = vunpack.c.l.b16 %v20
  %v159 = vunpack.c.h.b16 %v20
  %v160 = vunpack.c.l.b16 %v21
  %v161 = vunpack.c.h.b16 %v21
  %v162 = vpack.c.b16 %v154, %v154
  %v163 = vpack.c.b16 %v155, %v155
  %v164 = vpack.c.b16 %v156, %v156
  %v165 = vpack.c.b16 %v157, %v157
  %v166 = vpack.c.b16 %v158, %v158
  %v167 = vpack.c.b16 %v159, %v159
  %v168 = vpack.c.b16 %v160, %v160
  %v169 = vpack.c.b16 %v161, %v161
  %v306 = vunpack.c.l.b16 %v22
  %v307 = vunpack.c.l.b16 %v23
  %v308 = vunpack.c.l.b16 %v24
  %v309 = vunpack.c.l.b16 %v25
  %v310 = vunpack.c.l.b16 %v26
  %v311 = vunpack.c.l.b16 %v27
  %v312 = vunpack.c.l.b16 %v28
  %v313 = vunpack.c.l.b16 %v29
  %v314 = vunpack.c.l.b16 %v30
  %v315 = vunpack.c.l.b16 %v31
  %v316 = vunpack.c.l.b16 %v32
  %v317 = vunpack.c.l.b16 %v33
  %v318 = vunpack.c.l.b16 %v34
  %v319 = vunpack.c.l.b16 %v35
  %v320 = vunpack.c.l.b16 %v36
  %v321 = vunpack.c.l.b16 %v37
  %v322 = vunpack.c.l.b16 %v38
  %v323 = vunpack.c.l.b16 %v39
  %v324 = vunpack.c.l.b16 %v40
  %v325 = vunpack.c.l.b16 %v41
  %v326 = vunpack.c.l.b16 %v42
  %v327 = vunpack.c.l.b16 %v43
  %v328 = vunpack.c.l.b16 %v44
  %v329 = vunpack.c.l.b16 %v45
  %v330 = vunpack.c.l.b16 %v46
  %v331 = vunpack.c.l.b16 %v47
  %v332 = vunpack.c.l.b16 %v48
  %v333 = vunpack.c.l.b16 %v49
  %v334 = vunpack.c.l.b16 %v50
  %v335 = vunpack.c.l.b16 %v51
  %v336 = vunpack.c.l.b16 %v52
  %v337 = vunpack.c.l.b16 %v53
  %v338 = vunpack.c.l.b16 %v54
  %v339 = vunpack.c.l.b16 %v55
  %v340 = vunpack.c.l.b16 %v56
  %v341 = vunpack.c.l.b16 %v57
  %v342 = vunpack.c.l.b16 %v58
  %v343 = vunpack.c.l.b16 %v59
  %v344 = vunpack.c.l.b16 %v60
  %v345 = vunpack.c.l.b16 %v61
  %v346 = vunpack.c.l.b16 %v62
  %v347 = vunpack.c.l.b16 %v63
  %v348 = vunpack.c.l.b16 %v64
  %v349 = vunpack.c.l.b16 %v65
  %v350 = vunpack.c.l.b16 %v66
  %v351 = vunpack.c.l.b16 %v67
  %v352 = vunpack.c.l.b16 %v68
  %v353 = vunpack.c.l.b16 %v69
  %v354 = vunpack.c.l.b16 %v70
  %v355 = vunpack.c.l.b16 %v71
  %v356 = vunpack.c.l.b16 %v72
  %v357 = vunpack.c.l.b16 %v73
  %v358 = vunpack.c.l.b16 %v74
  %v359 = vunpack.c.l.b16 %v75
  %v360 = vunpack.c.l.b16 %v76
  %v361 = vunpack.c.l.b16 %v77
  %v362 = vunpack.c.l.b16 %v78
  %v363 = vunpack.c.l.b16 %v79
  %v364 = vunpack.c.l.b16 %v80
  %v365 = vunpack.c.l.b16 %v81
  %v366 = vunpack.c.l.b16 %v82
  %v367 = vunpack.c.l.b16 %v83
  %v368 = vunpack.c.l.b16 %v84
  %v369 = vunpack.c.l.b16 %v85
  %v370 = vunpack.c.l.b16 %v86
  %v371 = vunpack.c.l.b16 %v87
  %v372 = vunpack.c.l.b16 %v88
  %v373 = vunpack.c.l.b16 %v89
  %v374 = vunpack.c.l.b16 %v90
  %v375 = vunpack.c.l.b16 %v91
  %v376 = vunpack.c.l.b16 %v92
  %v377 = vunpack.c.l.b16 %v93
  %v378 = vunpack.c.l.b16 %v94
  %v379 = vunpack.c.l.b16 %v95
  %v380 = vunpack.c.l.b16 %v96
  %v381 = vunpack.c.l.b16 %v97
  %v382 = vunpack.c.l.b16 %v98
  %v383 = vunpack.c.l.b16 %v99
  %v384 = vunpack.c.l.b16 %v100
  %v385 = vunpack.c.l.b16 %v101
  %v386 = vunpack.c.l.b16 %v102
  %v387 = vunpack.c.l.b16 %v103
  %v388 = vunpack.c.l.b16 %v104
  %v389 = vunpack.c.l.b16 %v105
  %v390 = vunpack.c.l.b16 %v106
  %v391 = vunpack.c.l.b16 %v107
  %v392 = vunpack.c.l.b16 %v108
  %v393 = vunpack.c.l.b16 %v109
  %v394 = vunpack.c.l.b16 %v110
  %v395 = vunpack.c.l.b16 %v111
  %v396 = vunpack.c.l.b16 %v112
  %v397 = vunpack.c.l.b16 %v113
  %v398 = vunpack.c.l.b16 %v114
  %v399 = vunpack.c.l.b16 %v115
  %v400 = vunpack.c.l.b16 %v116
  %v401 = vunpack.c.l.b16 %v117
  %v402 = vunpack.c.l.b16 %v118
  %v403 = vunpack.c.l.b16 %v119
  %v404 = vunpack.c.l.b16 %v120
  %v405 = vunpack.c.l.b16 %v121
  %v406 = vunpack.c.l.b16 %v122
  %v407 = vunpack.c.l.b16 %v123
  %v408 = vunpack.c.l.b16 %v124
  %v409 = vunpack.c.l.b16 %v125
  %v410 = vunpack.c.l.b16 %v126
  %v411 = vunpack.c.l.b16 %v127
  %v412 = vunpack.c.l.b16 %v128
  %v413 = vunpack.c.l.b16 %v129
  %v414 = vunpack.c.l.b16 %v130
  %v415 = vunpack.c.l.b16 %v131
  %v416 = vunpack.c.l.b16 %v132
  %v417 = vunpack.c.l.b16 %v133
  %v418 = vunpack.c.l.b16 %v134
  %v419 = vunpack.c.l.b16 %v135
  %v420 = vunpack.c.l.b16 %v136
  %v421 = vunpack.c.l.b16 %v137
  %v422 = vunpack.c.l.b16 %v138
  %v423 = vunpack.c.l.b16 %v139
  %v424 = vunpack.c.l.b16 %v140
  %v425 = vunpack.c.l.b16 %v141
  %v426 = vunpack.c.l.b16 %v142
  %v427 = vunpack.c.l.b16 %v143
  %v428 = vunpack.c.l.b16 %v144
  %v429 = vunpack.c.l.b16 %v145
  %v430 = vunpack.c.l.b16 %v146
  %v431 = vunpack.c.l.b16 %v147
  %v432 = vunpack.c.l.b16 %v148
  %v433 = vunpack.c.l.b16 %v149
  %v434 = vpack.c.b16 %v307, %v306
  %v435 = vpack.c.b16 %v309, %v308
  %v436 = vpack.c.b16 %v311, %v310
  %v437 = vpack.c.b16 %v313, %v312
  %v438 = vpack.c.b16 %v315, %v314
  %v439 = vpack.c.b16 %v317, %v316
  %v440 = vpack.c.b16 %v319, %v318
  %v441 = vpack.c.b16 %v321, %v320
  %v442 = vpack.c.b16 %v323, %v322
  %v443 = vpack.c.b16 %v325, %v324
  %v444 = vpack.c.b16 %v327, %v326
  %v445 = vpack.c.b16 %v329, %v328
  %v446 = vpack.c.b16 %v331, %v330
  %v447 = vpack.c.b16 %v333, %v332
  %v448 = vpack.c.b16 %v335, %v334
  %v449 = vpack.c.b16 %v337, %v336
  %v450 = vpack.c.b16 %v339, %v338
  %v451 = vpack.c.b16 %v341, %v340
  %v452 = vpack.c.b16 %v343, %v342
  %v453 = vpack.c.b16 %v345, %v344
  %v454 = vpack.c.b16 %v347, %v346
  %v455 = vpack.c.b16 %v349, %v348
  %v456 = vpack.c.b16 %v351, %v350
  %v457 = vpack.c.b16 %v353, %v352
  %v458 = vpack.c.b16 %v355, %v354
  %v459 = vpack.c.b16 %v357, %v356
  %v460 = vpack.c.b16 %v359, %v358
  %v461 = vpack.c.b16 %v361, %v360
  %v462 = vpack.c.b16 %v363, %v362
  %v463 = vpack.c.b16 %v365, %v364
  %v464 = vpack.c.b16 %v367, %v366
  %v465 = vpack.c.b16 %v369, %v368
  %v466 = vpack.c.b16 %v371, %v370
  %v467 = vpack.c.b16 %v373, %v372
  %v468 = vpack.c.b16 %v375, %v374
  %v469 = vpack.c.b16 %v377, %v376
  %v470 = vpack.c.b16 %v379, %v378
  %v471 = vpack.c.b16 %v381, %v380
  %v472 = vpack.c.b16 %v383, %v382
  %v473 = vpack.c.b16 %v385, %v384
  %v474 = vpack.c.b16 %v387, %v386
  %v475 = vpack.c.b16 %v389, %v388
  %v476 = vpack.c.b16 %v391, %v390
  %v477 = vpack.c.b16 %v393, %v392
  %v478 = vpack.c.b16 %v395, %v394
  %v479 = vpack.c.b16 %v397, %v396
  %v480 = vpack.c.b16 %v399, %v398
  %v481 = vpack.c.b16 %v401, %v400
  %v482 = vpack.c.b16 %v403, %v402
  %v483 = vpack.c.b16 %v405, %v404
  %v484 = vpack.c.b16 %v407, %v406
  %v485 = vpack.c.b16 %v409, %v408
  %v486 = vpack.c.b16 %v411, %v410
  %v487 = vpack.c.b16 %v413, %v412
  %v488 = vpack.c.b16 %v415, %v414
  %v489 = vpack.c.b16 %v417, %v416
  %v490 = vpack.c.b16 %v419, %v418
  %v491 = vpack.c.b16 %v421, %v420
  %v492 = vpack.c.b16 %v423, %v422
  %v493 = vpack.c.b16 %v425, %v424
  %v494 = vpack.c.b16 %v427, %v426
  %v495 = vpack.c.b16 %v429, %v428
  %v496 = vpack.c.b16 %v431, %v430
  %v497 = vpack.c.b16 %v433, %v432
  %562 = vmatprep.subr.bf16.mxu0 0
  %563 = vmatpush1.bf16.msra.mxu0 %v434
  %564 = vmatprep.subr.bf16.mxu0 0
  %565 = vmatpush1.bf16.msra.mxu0 %v435
  %566 = vmatprep.subr.bf16.mxu0 0
  %567 = vmatpush1.bf16.msra.mxu0 %v436
  %568 = vmatprep.subr.bf16.mxu0 0
  %569 = vmatpush1.bf16.msra.mxu0 %v437
  %570 = vmatprep.subr.bf16.mxu0 0
  %571 = vmatpush1.bf16.msra.mxu0 %v438
  %572 = vmatprep.subr.bf16.mxu0 0
  %573 = vmatpush1.bf16.msra.mxu0 %v439
  %574 = vmatprep.subr.bf16.mxu0 0
  %575 = vmatpush1.bf16.msra.mxu0 %v440
  %576 = vmatprep.subr.bf16.mxu0 0
  %577 = vmatpush1.bf16.msra.mxu0 %v441
  %578 = vmatprep.subr.bf16.mxu0 0
  %579 = vmatpush1.bf16.msra.mxu0 %v442
  %580 = vmatprep.subr.bf16.mxu0 0
  %581 = vmatpush1.bf16.msra.mxu0 %v443
  %582 = vmatprep.subr.bf16.mxu0 0
  %583 = vmatpush1.bf16.msra.mxu0 %v444
  %584 = vmatprep.subr.bf16.mxu0 0
  %585 = vmatpush1.bf16.msra.mxu0 %v445
  %586 = vmatprep.subr.bf16.mxu0 0
  %587 = vmatpush1.bf16.msra.mxu0 %v446
  %588 = vmatprep.subr.bf16.mxu0 0
  %589 = vmatpush1.bf16.msra.mxu0 %v447
  %590 = vmatprep.subr.bf16.mxu0 0
  %591 = vmatpush1.bf16.msra.mxu0 %v448
  %592 = vmatprep.subr.bf16.mxu0 0
  %593 = vmatpush1.bf16.msra.mxu0 %v449
  %594 = vmatprep.mubr.bf16.mxu0 %v163
  %595 = vmatmul.mubr.bf16.gmra.mrb[0].mxu0 %v162
  %v596 = vpop.f32.mrb[0].mxu0
  %v597 = vadd.f32 0.0, %v596
  %v598 = vpop.f32.mrb[0].mxu0
  %v599 = vpop.f32.mrb[0].mxu0
  %v600 = vpop.f32.mrb[0].mxu0
  %601 = vdwg.mxu0
  %602 = vmatprep.subr.bf16.mxu0 0
  %603 = vmatpush1.bf16.msra.mxu0 %v450
  %604 = vmatprep.subr.bf16.mxu0 0
  %605 = vmatpush1.bf16.msra.mxu0 %v451
  %606 = vmatprep.subr.bf16.mxu0 0
  %607 = vmatpush1.bf16.msra.mxu0 %v452
  %608 = vmatprep.subr.bf16.mxu0 0
  %609 = vmatpush1.bf16.msra.mxu0 %v453
  %610 = vmatprep.subr.bf16.mxu0 0
  %611 = vmatpush1.bf16.msra.mxu0 %v454
  %612 = vmatprep.subr.bf16.mxu0 0
  %613 = vmatpush1.bf16.msra.mxu0 %v455
  %614 = vmatprep.subr.bf16.mxu0 0
  %615 = vmatpush1.bf16.msra.mxu0 %v456
  %616 = vmatprep.subr.bf16.mxu0 0
  %617 = vmatpush1.bf16.msra.mxu0 %v457
  %618 = vmatprep.subr.bf16.mxu0 0
  %619 = vmatpush1.bf16.msra.mxu0 %v458
  %620 = vmatprep.subr.bf16.mxu0 0
  %621 = vmatpush1.bf16.msra.mxu0 %v459
  %622 = vmatprep.subr.bf16.mxu0 0
  %623 = vmatpush1.bf16.msra.mxu0 %v460
  %624 = vmatprep.subr.bf16.mxu0 0
  %625 = vmatpush1.bf16.msra.mxu0 %v461
  %626 = vmatprep.subr.bf16.mxu0 0
  %627 = vmatpush1.bf16.msra.mxu0 %v462
  %628 = vmatprep.subr.bf16.mxu0 0
  %629 = vmatpush1.bf16.msra.mxu0 %v463
  %630 = vmatprep.subr.bf16.mxu0 0
  %631 = vmatpush1.bf16.msra.mxu0 %v464
  %632 = vmatprep.subr.bf16.mxu0 0
  %633 = vmatpush1.bf16.msra.mxu0 %v465
  %634 = vmatprep.mubr.bf16.mxu0 %v165
  %635 = vmatmul.mubr.bf16.gmra.mrb[0].mxu0 %v164
  %v636 = vpop.f32.mrb[0].mxu0
  %v637 = vadd.f32 %v597, %v636
  %v638 = vpop.f32.mrb[0].mxu0
  %v639 = vpop.f32.mrb[0].mxu0
  %v640 = vpop.f32.mrb[0].mxu0
  %641 = vdwg.mxu0
  %642 = vmatprep.subr.bf16.mxu0 0
  %643 = vmatpush1.bf16.msra.mxu0 %v466
  %644 = vmatprep.subr.bf16.mxu0 0
  %645 = vmatpush1.bf16.msra.mxu0 %v467
  %646 = vmatprep.subr.bf16.mxu0 0
  %647 = vmatpush1.bf16.msra.mxu0 %v468
  %648 = vmatprep.subr.bf16.mxu0 0
  %649 = vmatpush1.bf16.msra.mxu0 %v469
  %650 = vmatprep.subr.bf16.mxu0 0
  %651 = vmatpush1.bf16.msra.mxu0 %v470
  %652 = vmatprep.subr.bf16.mxu0 0
  %653 = vmatpush1.bf16.msra.mxu0 %v471
  %654 = vmatprep.subr.bf16.mxu0 0
  %655 = vmatpush1.bf16.msra.mxu0 %v472
  %656 = vmatprep.subr.bf16.mxu0 0
  %657 = vmatpush1.bf16.msra.mxu0 %v473
  %658 = vmatprep.subr.bf16.mxu0 0
  %659 = vmatpush1.bf16.msra.mxu0 %v474
  %660 = vmatprep.subr.bf16.mxu0 0
  %661 = vmatpush1.bf16.msra.mxu0 %v475
  %662 = vmatprep.subr.bf16.mxu0 0
  %663 = vmatpush1.bf16.msra.mxu0 %v476
  %664 = vmatprep.subr.bf16.mxu0 0
  %665 = vmatpush1.bf16.msra.mxu0 %v477
  %666 = vmatprep.subr.bf16.mxu0 0
  %667 = vmatpush1.bf16.msra.mxu0 %v478
  %668 = vmatprep.subr.bf16.mxu0 0
  %669 = vmatpush1.bf16.msra.mxu0 %v479
  %670 = vmatprep.subr.bf16.mxu0 0
  %671 = vmatpush1.bf16.msra.mxu0 %v480
  %672 = vmatprep.subr.bf16.mxu0 0
  %673 = vmatpush1.bf16.msra.mxu0 %v481
  %674 = vmatprep.mubr.bf16.mxu0 %v167
  %675 = vmatmul.mubr.bf16.gmra.mrb[0].mxu0 %v166
  %v676 = vpop.f32.mrb[0].mxu0
  %v677 = vadd.f32 %v637, %v676
  %v678 = vpop.f32.mrb[0].mxu0
  %v679 = vpop.f32.mrb[0].mxu0
  %v680 = vpop.f32.mrb[0].mxu0
  %681 = vdwg.mxu0
  %682 = vmatprep.subr.bf16.mxu0 0
  %683 = vmatpush1.bf16.msra.mxu0 %v482
  %684 = vmatprep.subr.bf16.mxu0 0
  %685 = vmatpush1.bf16.msra.mxu0 %v483
  %686 = vmatprep.subr.bf16.mxu0 0
  %687 = vmatpush1.bf16.msra.mxu0 %v484
  %688 = vmatprep.subr.bf16.mxu0 0
  %689 = vmatpush1.bf16.msra.mxu0 %v485
  %690 = vmatprep.subr.bf16.mxu0 0
  %691 = vmatpush1.bf16.msra.mxu0 %v486
  %692 = vmatprep.subr.bf16.mxu0 0
  %693 = vmatpush1.bf16.msra.mxu0 %v487
  %694 = vmatprep.subr.bf16.mxu0 0
  %695 = vmatpush1.bf16.msra.mxu0 %v488
  %696 = vmatprep.subr.bf16.mxu0 0
  %697 = vmatpush1.bf16.msra.mxu0 %v489
  %698 = vmatprep.subr.bf16.mxu0 0
  %699 = vmatpush1.bf16.msra.mxu0 %v490
  %700 = vmatprep.subr.bf16.mxu0 0
  %701 = vmatpush1.bf16.msra.mxu0 %v491
  %702 = vmatprep.subr.bf16.mxu0 0
  %703 = vmatpush1.bf16.msra.mxu0 %v492
  %704 = vmatprep.subr.bf16.mxu0 0
  %705 = vmatpush1.bf16.msra.mxu0 %v493
  %706 = vmatprep.subr.bf16.mxu0 0
  %707 = vmatpush1.bf16.msra.mxu0 %v494
  %708 = vmatprep.subr.bf16.mxu0 0
  %709 = vmatpush1.bf16.msra.mxu0 %v495
  %710 = vmatprep.subr.bf16.mxu0 0
  %711 = vmatpush1.bf16.msra.mxu0 %v496
  %712 = vmatprep.subr.bf16.mxu0 0
  %713 = vmatpush1.bf16.msra.mxu0 %v497
  %714 = vmatprep.mubr.bf16.mxu0 %v169
  %715 = vmatmul.mubr.bf16.gmra.mrb[0].mxu0 %v168
  %v716 = vpop.f32.mrb[0].mxu0
  %v717 = vadd.f32 %v677, %v716
  %v718 = vpop.f32.mrb[0].mxu0
  %v719 = vpop.f32.mrb[0].mxu0
  %v720 = vpop.f32.mrb[0].mxu0
  %721 = vdwg.mxu0
  %v722 = vadd.f32 %v17, %v717
  %723 = vst [vmem:[#allocation2] sm:$0xff] %v722
  // Predicated region
  $region14: #{fwd.12} parent=0 // pred_check
    %p724 = pneg %p12
  $region15: #{fwd.12} parent=0 // pred_check_branch
    %726 = sbr.rel (%p724) target = $region17
  $region16: #{fwd.12} parent=0 // pred_region
    %v727 = vld [vmem:[#allocation2] sm:$0xff]
    %v728 = vrot.slane %v727, 4
    %v729 = vadd.f32 %v727, %v728
    %v730 = vrot.slane %v729, 2
    %v731 = vadd.f32 %v729, %v730
    %v732 = vrot.slane %v731, 1
    %v733 = vadd.f32 %v731, %v732
    %v734 = vrcp.pop 8.0
    %v735 = vmul.f32 %v733, %v734
    %v736 = vadd.f32 %v735, 0.0
    %v737 = vmul.f32 %v727, %v727
    %v738 = vrot.slane %v737, 4
    %v739 = vadd.f32 %v737, %v738
    %v740 = vrot.slane %v739, 2
    %v741 = vadd.f32 %v739, %v740
    %v742 = vrot.slane %v741, 1
    %v743 = vadd.f32 %v741, %v742
    %v744 = vmul.f32 %v743, %v734
    %v745 = vadd.f32 %v744, 0.0
    %v746 = vmul.f32 %v736, %v736
    %v747 = vsub.f32 %v745, %v746
    %v748 = vmax.f32 %v747, 0.0
    %v749 = vsub.f32 %v727, %v736
    %v750 = vadd.f32 %v748, 1e-05
    %v751 = vrsqrt.pop %v750
    %v752 = vmul.f32 %v749, %v751
    %vm753 = vcmp.ge.f32.partialorder %v752, 0.0
    %v754 = vmul.f32 %v752, 0.2
    %v755 = vsel %vm753, %v752, %v754
    %756 = vst [vmem:[%s2] sm:$0xff] %v755
  $region17: #{fwd.12} parent=0 // pred_fallthru
    _
  // Predicated region
  $region18: #{fwd.12} parent=0 // pred_check
    _
  $region19: #{fwd.12} parent=0 // pred_check_branch
    %758 = sbr.rel (0) target = $region21
  $region20: #{fwd.12} parent=0 // pred_region
    _
  $region21: #{fwd.12} parent=0 // pred_fallthru
    _
  // Predicated region
  $region22: #{fwd.12} parent=0 // pred_check
    _
  $region23: #{fwd.12} parent=0 // pred_check_branch
    %760 = sbr.rel (0) target = $region25
  $region24: #{fwd.12} parent=0 // pred_region
    _
  $region25: #{fwd.12} parent=0 // pred_fallthru
    _

// kernel: fwd.14
$region0: #{fwd.14}
  #allocation0 [shape = 'u32[]', space=smem, size = 0x4, offset = 0x4, fixed_abs, tag = 'smem constant byte address 0x4 - core index']
  #allocation1 [shape = 'u32[144,128]{1,0:T(1,128)}', space=vmem, size = 0x12000, scoped, tag = 'internal scratch']
  #allocation2 [shape = 'f32[1,2,32]{2,1,0:T(2,128)}', space=vmem, size = 0x400, scoped, tag = 'scratch operand']
  %s0 = inlined_call_operand.vmem [shape: bf16[1,2,128], index: 0, kind: input, shape index: {}]
  %s1 = inlined_call_operand.vmem [shape: bf16[1,128,32], index: 1, kind: input, shape index: {}]
  %s2 = inlined_call_operand.vmem [shape: f32[1,1,32], index: 2, kind: input, shape index: {}]
  %s3 = inlined_call_operand.vmem [shape: f32[1,2,32], index: 3, kind: output, shape index: {}]
  %s4 = sld [smem:[#allocation0]]
  $region30: #{fwd.14} parent=0
    _
  %s6 = ssub.s32 1, %s4
  %s7 = scalar_select 0, %s6, %s4
  // Predicated region
  $region2: #{fwd.14} parent=0 // pred_check
    _
  $region3: #{fwd.14} parent=0 // pred_check_branch
    %9 = sbr.rel (0) target = $region5
  $region4: #{fwd.14} parent=0 // pred_region
    _
  $region5: #{fwd.14} parent=0 // pred_fallthru
    _
  // Predicated region
  $region6: #{fwd.14} parent=0 // pred_check
    _
  $region7: #{fwd.14} parent=0 // pred_check_branch
    %11 = sbr.rel (0) target = $region9
  $region8: #{fwd.14} parent=0 // pred_region
    _
  $region9: #{fwd.14} parent=0 // pred_fallthru
    _
  // Predicated region
  $region10: #{fwd.14} parent=0 // pred_check
    _
  $region11: #{fwd.14} parent=0 // pred_check_branch
    %13 = sbr.rel (0) target = $region13
  $region12: #{fwd.14} parent=0 // pred_region
    _
  $region13: #{fwd.14} parent=0 // pred_fallthru
    _
  %p15 = scmp.eq.s32.totalorder 0, 0
  // Predicated region
  $region14: #{fwd.14} parent=0 // pred_check
    %p16 = pneg %p15
  $region15: #{fwd.14} parent=0 // pred_check_branch
    %18 = sbr.rel (%p16) target = $region17
  $region16: #{fwd.14} parent=0 // pred_region
    %vm19 = vcmask 254976
    %20 = vst.msk [vmem:[#allocation2] sm:$0x3] %vm19, 0.0
  $region17: #{fwd.14} parent=0 // pred_fallthru
    _
  %v21 = vld [vmem:[#allocation2] sm:$0x3]
  %v22 = vld [vmem:[%s0] sm:$0x1]
  %v23 = vld [vmem:[%s1] sm:$0xf]
  %v24 = vld [vmem:[%s1 + $0x4] sm:$0xf]
  %v25 = vld [vmem:[%s1 + $0x8] sm:$0xf]
  %v26 = vld [vmem:[%s1 + $0xc] sm:$0xf]
  %v27 = vld [vmem:[%s1 + $0x10] sm:$0xf]
  %v28 = vld [vmem:[%s1 + $0x14] sm:$0xf]
  %v29 = vld [vmem:[%s1 + $0x18] sm:$0xf]
  %v30 = vld [vmem:[%s1 + $0x1c] sm:$0xf]
  %v31 = vld [vmem:[%s1 + $0x20] sm:$0xf]
  %v32 = vld [vmem:[%s1 + $0x24] sm:$0xf]
  %v33 = vld [vmem:[%s1 + $0x28] sm:$0xf]
  %v34 = vld [vmem:[%s1 + $0x2c] sm:$0xf]
  %v35 = vld [vmem:[%s1 + $0x30] sm:$0xf]
  %v36 = vld [vmem:[%s1 + $0x34] sm:$0xf]
  %v37 = vld [vmem:[%s1 + $0x38] sm:$0xf]
  %v38 = vld [vmem:[%s1 + $0x3c] sm:$0xf]
  %v55 = vunpack.c.l.b16 %v23
  %v56 = vunpack.c.l.b16 %v24
  %v57 = vunpack.c.l.b16 %v25
  %v58 = vunpack.c.l.b16 %v26
  %v59 = vunpack.c.l.b16 %v27
  %v60 = vunpack.c.l.b16 %v28
  %v61 = vunpack.c.l.b16 %v29
  %v62 = vunpack.c.l.b16 %v30
  %v63 = vunpack.c.l.b16 %v31
  %v64 = vunpack.c.l.b16 %v32
  %v65 = vunpack.c.l.b16 %v33
  %v66 = vunpack.c.l.b16 %v34
  %v67 = vunpack.c.l.b16 %v35
  %v68 = vunpack.c.l.b16 %v36
  %v69 = vunpack.c.l.b16 %v37
  %v70 = vunpack.c.l.b16 %v38
  %v71 = vpack.c.b16 %v56, %v55
  %v72 = vpack.c.b16 %v58, %v57
  %v73 = vpack.c.b16 %v60, %v59
  %v74 = vpack.c.b16 %v62, %v61
  %v75 = vpack.c.b16 %v64, %v63
  %v76 = vpack.c.b16 %v66, %v65
  %v77 = vpack.c.b16 %v68, %v67
  %v78 = vpack.c.b16 %v70, %v69
  %87 = vmatprep.subr.bf16.mxu0 0
  %88 = vmatpush1.bf16.msra.mxu0 %v71
  %89 = vmatprep.subr.bf16.mxu0 0
  %90 = vmatpush1.bf16.msra.mxu0 %v72
  %91 = vmatprep.subr.bf16.mxu0 0
  %92 = vmatpush1.bf16.msra.mxu0 %v73
  %93 = vmatprep.subr.bf16.mxu0 0
  %94 = vmatpush1.bf16.msra.mxu0 %v74
  %95 = vmatprep.subr.bf16.mxu0 0
  %96 = vmatpush1.bf16.msra.mxu0 %v75
  %97 = vmatprep.subr.bf16.mxu0 0
  %98 = vmatpush1.bf16.msra.mxu0 %v76
  %99 = vmatprep.subr.bf16.mxu0 0
  %100 = vmatpush1.bf16.msra.mxu0 %v77
  %101 = vmatprep.subr.bf16.mxu0 0
  %102 = vmatpush1.bf16.msra.mxu0 %v78
  %103 = vmatprep.subr.bf16.mxu0 0
  %104 = vmatpush1.bf16.msra.mxu0 0
  %105 = vmatprep.subr.bf16.mxu0 0
  %106 = vmatpush1.bf16.msra.mxu0 0
  %107 = vmatprep.subr.bf16.mxu0 0
  %108 = vmatpush1.bf16.msra.mxu0 0
  %109 = vmatprep.subr.bf16.mxu0 0
  %110 = vmatpush1.bf16.msra.mxu0 0
  %111 = vmatprep.subr.bf16.mxu0 0
  %112 = vmatpush1.bf16.msra.mxu0 0
  %113 = vmatprep.subr.bf16.mxu0 0
  %114 = vmatpush1.bf16.msra.mxu0 0
  %115 = vmatprep.subr.bf16.mxu0 0
  %116 = vmatpush1.bf16.msra.mxu0 0
  %117 = vmatprep.subr.bf16.mxu0 0
  %118 = vmatpush1.bf16.msra.mxu0 0
  %119 = vmatprep.mubr.bf16.mxu0 0
  %120 = vmatmul.mubr.bf16.gmra.mrb[0].mxu0 %v22
  %v121 = vpop.f32.mrb[0].mxu0
  %v122 = vadd.f32 0.0, %v121
  %v123 = vpop.f32.mrb[0].mxu0
  %v124 = vpop.f32.mrb[0].mxu0
  %v125 = vpop.f32.mrb[0].mxu0
  %126 = vdwg.mxu0
  %v127 = vadd.f32 %v21, %v122
  %vm128 = vcmask 254976
  %129 = vst.msk [vmem:[#allocation2] sm:$0x3] %vm128, %v127
  // Predicated region
  $region18: #{fwd.14} parent=0 // pred_check
    %p130 = pneg %p15
  $region19: #{fwd.14} parent=0 // pred_check_branch
    %132 = sbr.rel (%p130) target = $region21
  $region20: #{fwd.14} parent=0 // pred_region
    %v133 = vld [vmem:[#allocation2] sm:$0x3]
    %v134 = vld [vmem:[%s2] sm:$0x1]
    %v136 = vlaneseq
    %v137 = vshrl.u32 %v136, 7
    %v138 = vsub.s32 0, %v137
    %v139 = vrot.slane %v134, %v138
    %v141 = vadd.f32 %v133, %v139
    %142 = vst.msk [vmem:[%s3] sm:$0x3] %vm128, %v141
  $region21: #{fwd.14} parent=0 // pred_fallthru
    _
  // Predicated region
  $region22: #{fwd.14} parent=0 // pred_check
    _
  $region23: #{fwd.14} parent=0 // pred_check_branch
    %144 = sbr.rel (0) target = $region25
  $region24: #{fwd.14} parent=0 // pred_region
    _
  $region25: #{fwd.14} parent=0 // pred_fallthru
    _
  // Predicated region
  $region26: #{fwd.14} parent=0 // pred_check
    _
  $region27: #{fwd.14} parent=0 // pred_check_branch
    %146 = sbr.rel (0) target = $region29
  $region28: #{fwd.14} parent=0 // pred_region
    _
  $region29: #{fwd.14} parent=0 // pred_fallthru
    _

// kernel: fwd.15
$region0: #{fwd.15}
  #allocation0 [shape = 'u32[]', space=smem, size = 0x4, offset = 0x4, fixed_abs, tag = 'smem constant byte address 0x4 - core index']
  #allocation1 [shape = 'u32[144,128]{1,0:T(1,128)}', space=vmem, size = 0x12000, scoped, tag = 'internal scratch']
  #allocation2 [shape = 'f32[1,2,128]{2,1,0:T(2,128)}', space=vmem, size = 0x400, scoped, tag = 'scratch operand']
  %s0 = inlined_call_operand.vmem [shape: bf16[1,2,16], index: 0, kind: input, shape index: {}]
  %s1 = inlined_call_operand.vmem [shape: bf16[1,16,128], index: 1, kind: input, shape index: {}]
  %s2 = inlined_call_operand.vmem [shape: f32[1,2,128], index: 2, kind: output, shape index: {}]
  %s3 = sld [smem:[#allocation0]]
  $region26: #{fwd.15} parent=0
    _
  %s5 = ssub.s32 1, %s3
  %s6 = scalar_select 0, %s5, %s3
  // Predicated region
  $region2: #{fwd.15} parent=0 // pred_check
    _
  $region3: #{fwd.15} parent=0 // pred_check_branch
    %8 = sbr.rel (0) target = $region5
  $region4: #{fwd.15} parent=0 // pred_region
    _
  $region5: #{fwd.15} parent=0 // pred_fallthru
    _
  // Predicated region
  $region6: #{fwd.15} parent=0 // pred_check
    _
  $region7: #{fwd.15} parent=0 // pred_check_branch
    %10 = sbr.rel (0) target = $region9
  $region8: #{fwd.15} parent=0 // pred_region
    _
  $region9: #{fwd.15} parent=0 // pred_fallthru
    _
  %p12 = scmp.eq.s32.totalorder 0, 0
  // Predicated region
  $region10: #{fwd.15} parent=0 // pred_check
    %p13 = pneg %p12
  $region11: #{fwd.15} parent=0 // pred_check_branch
    %15 = sbr.rel (%p13) target = $region13
  $region12: #{fwd.15} parent=0 // pred_region
    %16 = vst [vmem:[#allocation2] sm:$0x3] 0.0
  $region13: #{fwd.15} parent=0 // pred_fallthru
    _
  %v17 = vld [vmem:[#allocation2] sm:$0x3]
  %v18 = vld [vmem:[%s0] sm:$0x1]
  %v19 = vld [vmem:[%s1] sm:$0xf]
  %v20 = vld [vmem:[%s1 + $0x4] sm:$0xf]
  %v23 = vunpack.c.l.b16 %v19
  %v24 = vunpack.c.l.b16 %v20
  %v25 = vpack.c.b16 %v24, %v23
  %vm27 = vcmask 130048
  %v29 = vsel %vm27, %v18, 0
  %31 = vmatprep.subr.bf16.mxu0 0
  %32 = vmatpush1.bf16.msra.mxu0 %v25
  %33 = vmatprep.subr.bf16.mxu0 0
  %34 = vmatpush1.bf16.msra.mxu0 0
  %35 = vmatprep.subr.bf16.mxu0 0
  %36 = vmatpush1.bf16.msra.mxu0 0
  %37 = vmatprep.subr.bf16.mxu0 0
  %38 = vmatpush1.bf16.msra.mxu0 0
  %39 = vmatprep.subr.bf16.mxu0 0
  %40 = vmatpush1.bf16.msra.mxu0 0
  %41 = vmatprep.subr.bf16.mxu0 0
  %42 = vmatpush1.bf16.msra.mxu0 0
  %43 = vmatprep.subr.bf16.mxu0 0
  %44 = vmatpush1.bf16.msra.mxu0 0
  %45 = vmatprep.subr.bf16.mxu0 0
  %46 = vmatpush1.bf16.msra.mxu0 0
  %47 = vmatprep.subr.bf16.mxu0 0
  %48 = vmatpush1.bf16.msra.mxu0 0
  %49 = vmatprep.subr.bf16.mxu0 0
  %50 = vmatpush1.bf16.msra.mxu0 0
  %51 = vmatprep.subr.bf16.mxu0 0
  %52 = vmatpush1.bf16.msra.mxu0 0
  %53 = vmatprep.subr.bf16.mxu0 0
  %54 = vmatpush1.bf16.msra.mxu0 0
  %55 = vmatprep.subr.bf16.mxu0 0
  %56 = vmatpush1.bf16.msra.mxu0 0
  %57 = vmatprep.subr.bf16.mxu0 0
  %58 = vmatpush1.bf16.msra.mxu0 0
  %59 = vmatprep.subr.bf16.mxu0 0
  %60 = vmatpush1.bf16.msra.mxu0 0
  %61 = vmatprep.subr.bf16.mxu0 0
  %62 = vmatpush1.bf16.msra.mxu0 0
  %63 = vmatprep.mubr.bf16.mxu0 0
  %64 = vmatmul.mubr.bf16.gmra.mrb[0].mxu0 %v29
  %v65 = vpop.f32.mrb[0].mxu0
  %v66 = vadd.f32 0.0, %v65
  %v67 = vpop.f32.mrb[0].mxu0
  %v68 = vpop.f32.mrb[0].mxu0
  %v69 = vpop.f32.mrb[0].mxu0
  %70 = vdwg.mxu0
  %v71 = vadd.f32 %v17, %v66
  %72 = vst [vmem:[#allocation2] sm:$0x3] %v71
  // Predicated region
  $region14: #{fwd.15} parent=0 // pred_check
    %p73 = pneg %p12
  $region15: #{fwd.15} parent=0 // pred_check_branch
    %75 = sbr.rel (%p73) target = $region17
  $region16: #{fwd.15} parent=0 // pred_region
    %v76 = vld [vmem:[#allocation2] sm:$0x3]
    %vm77 = vcmask 1041408
    %v78 = vsel %vm77, %v76, 0.0
    %v79 = vrot.slane %v78, 4
    %v80 = vadd.f32 %v78, %v79
    %v81 = vrot.slane %v80, 2
    %v82 = vadd.f32 %v80, %v81
    %v83 = vrot.slane %v82, 1
    %v84 = vadd.f32 %v82, %v83
    %v85 = vrcp.pop 2.0
    %v86 = vmul.f32 %v84, %v85
    %v87 = vadd.f32 %v86, 0.0
    %v88 = vmul.f32 %v76, %v76
    %v89 = vsel %vm77, %v88, 0.0
    %v90 = vrot.slane %v89, 4
    %v91 = vadd.f32 %v89, %v90
    %v92 = vrot.slane %v91, 2
    %v93 = vadd.f32 %v91, %v92
    %v94 = vrot.slane %v93, 1
    %v95 = vadd.f32 %v93, %v94
    %v96 = vmul.f32 %v95, %v85
    %v97 = vadd.f32 %v96, 0.0
    %v98 = vmul.f32 %v87, %v87
    %v99 = vsub.f32 %v97, %v98
    %v100 = vmax.f32 %v99, 0.0
    %v101 = vsub.f32 %v76, %v87
    %v102 = vadd.f32 %v100, 1e-05
    %v103 = vrsqrt.pop %v102
    %v104 = vmul.f32 %v101, %v103
    %vm105 = vcmp.ge.f32.partialorder %v104, 0.0
    %v106 = vmul.f32 %v104, 0.2
    %v107 = vsel %vm105, %v104, %v106
    %108 = vst [vmem:[%s2] sm:$0x3] %v107
  $region17: #{fwd.15} parent=0 // pred_fallthru
    _
  // Predicated region
  $region18: #{fwd.15} parent=0 // pred_check
    _
  $region19: #{fwd.15} parent=0 // pred_check_branch
    %110 = sbr.rel (0) target = $region21
  $region20: #{fwd.15} parent=0 // pred_region
    _
  $region21: #{fwd.15} parent=0 // pred_fallthru
    _
  // Predicated region
  $region22: #{fwd.15} parent=0 // pred_check
    _
  $region23: #{fwd.15} parent=0 // pred_check_branch
    %112 = sbr.rel (0) target = $region25
  $region24: #{fwd.15} parent=0 // pred_region
    _
  $region25: #{fwd.15} parent=0 // pred_fallthru
    _

// kernel: fwd.13
$region0: #{fwd.13}
  #allocation0 [shape = 'u32[]', space=smem, size = 0x4, offset = 0x4, fixed_abs, tag = 'smem constant byte address 0x4 - core index']
  #allocation1 [shape = 'u32[144,128]{1,0:T(1,128)}', space=vmem, size = 0x12000, scoped, tag = 'internal scratch']
  #allocation2 [shape = 'f32[1,2,128]{2,1,0:T(2,128)}', space=vmem, size = 0x400, scoped, tag = 'scratch operand']
  %s0 = inlined_call_operand.vmem [shape: bf16[1,2,2048], index: 0, kind: input, shape index: {}]
  %s1 = inlined_call_operand.vmem [shape: bf16[1,2048,128], index: 1, kind: input, shape index: {}]
  %s2 = inlined_call_operand.vmem [shape: f32[1,2,128], index: 2, kind: output, shape index: {}]
  %s3 = sld [smem:[#allocation0]]
  $region26: #{fwd.13} parent=0
    _
  %s5 = ssub.s32 1, %s3
  %s6 = scalar_select 0, %s5, %s3
  // Predicated region
  $region2: #{fwd.13} parent=0 // pred_check
    _
  $region3: #{fwd.13} parent=0 // pred_check_branch
    %8 = sbr.rel (0) target = $region5
  $region4: #{fwd.13} parent=0 // pred_region
    _
  $region5: #{fwd.13} parent=0 // pred_fallthru
    _
  // Predicated region
  $region6: #{fwd.13} parent=0 // pred_check
    _
  $region7: #{fwd.13} parent=0 // pred_check_branch
    %10 = sbr.rel (0) target = $region9
  $region8: #{fwd.13} parent=0 // pred_region
    _
  $region9: #{fwd.13} parent=0 // pred_fallthru
    _
  %p12 = scmp.eq.s32.totalorder 0, 0
  // Predicated region
  $region10: #{fwd.13} parent=0 // pred_check
    %p13 = pneg %p12
  $region11: #{fwd.13} parent=0 // pred_check_branch
    %15 = sbr.rel (%p13) target = $region13
  $region12: #{fwd.13} parent=0 // pred_region
    %16 = vst [vmem:[#allocation2] sm:$0x3] 0.0
  $region13: #{fwd.13} parent=0 // pred_fallthru
    _
  %v17 = vld [vmem:[#allocation2] sm:$0x3]
  %v18 = vld [vmem:[%s0] sm:$0xff]
  %v19 = vld [vmem:[%s0 + $0x8] sm:$0xff]
  %v20 = vld [vmem:[%s1] sm:$0xf]
  %v21 = vld [vmem:[%s1 + $0x4] sm:$0xf]
  %v22 = vld [vmem:[%s1 + $0x8] sm:$0xf]
  %v23 = vld [vmem:[%s1 + $0xc] sm:$0xf]
  %v24 = vld [vmem:[%s1 + $0x10] sm:$0xf]
  %v25 = vld [vmem:[%s1 + $0x14] sm:$0xf]
  %v26 = vld [vmem:[%s1 + $0x18] sm:$0xf]
  %v27 = vld [vmem:[%s1 + $0x1c] sm:$0xf]
  %v28 = vld [vmem:[%s1 + $0x20] sm:$0xf]
  %v29 = vld [vmem:[%s1 + $0x24] sm:$0xf]
  %v30 = vld [vmem:[%s1 + $0x28] sm:$0xf]
  %v31 = vld [vmem:[%s1 + $0x2c] sm:$0xf]
  %v32 = vld [vmem:[%s1 + $0x30] sm:$0xf]
  %v33 = vld [vmem:[%s1 + $0x34] sm:$0xf]
  %v34 = vld [vmem:[%s1 + $0x38] sm:$0xf]
  %v35 = vld [vmem:[%s1 + $0x3c] sm:$0xf]
  %v36 = vld [vmem:[%s1 + $0x40] sm:$0xf]
  %v37 = vld [vmem:[%s1 + $0x44] sm:$0xf]
  %v38 = vld [vmem:[%s1 + $0x48] sm:$0xf]
  %v39 = vld [vmem:[%s1 + $0x4c] sm:$0xf]
  %v40 = vld [vmem:[%s1 + $0x50] sm:$0xf]
  %v41 = vld [vmem:[%s1 + $0x54] sm:$0xf]
  %v42 = vld [vmem:[%s1 + $0x58] sm:$0xf]
  %v43 = vld [vmem:[%s1 + $0x5c] sm:$0xf]
  %v44 = vld [vmem:[%s1 + $0x60] sm:$0xf]
  %v45 = vld [vmem:[%s1 + $0x64] sm:$0xf]
  %v46 = vld [vmem:[%s1 + $0x68] sm:$0xf]
  %v47 = vld [vmem:[%s1 + $0x6c] sm:$0xf]
  %v48 = vld [vmem:[%s1 + $0x70] sm:$0xf]
  %v49 = vld [vmem:[%s1 + $0x74] sm:$0xf]
  %v50 = vld [vmem:[%s1 + $0x78] sm:$0xf]
  %v51 = vld [vmem:[%s1 + $0x7c] sm:$0xf]
  %v52 = vld [vmem:[%s1 + $0x80] sm:$0xf]
  %v53 = vld [vmem:[%s1 + $0x84] sm:$0xf]
  %v54 = vld [vmem:[%s1 + $0x88] sm:$0xf]
  %v55 = vld [vmem:[%s1 + $0x8c] sm:$0xf]
  %v56 = vld [vmem:[%s1 + $0x90] sm:$0xf]
  %v57 = vld [vmem:[%s1 + $0x94] sm:$0xf]
  %v58 = vld [vmem:[%s1 + $0x98] sm:$0xf]
  %v59 = vld [vmem:[%s1 + $0x9c] sm:$0xf]
  %v60 = vld [vmem:[%s1 + $0xa0] sm:$0xf]
  %v61 = vld [vmem:[%s1 + $0xa4] sm:$0xf]
  %v62 = vld [vmem:[%s1 + $0xa8] sm:$0xf]
  %v63 = vld [vmem:[%s1 + $0xac] sm:$0xf]
  %v64 = vld [vmem:[%s1 + $0xb0] sm:$0xf]
  %v65 = vld [vmem:[%s1 + $0xb4] sm:$0xf]
  %v66 = vld [vmem:[%s1 + $0xb8] sm:$0xf]
  %v67 = vld [vmem:[%s1 + $0xbc] sm:$0xf]
  %v68 = vld [vmem:[%s1 + $0xc0] sm:$0xf]
  %v69 = vld [vmem:[%s1 + $0xc4] sm:$0xf]
  %v70 = vld [vmem:[%s1 + $0xc8] sm:$0xf]
  %v71 = vld [vmem:[%s1 + $0xcc] sm:$0xf]
  %v72 = vld [vmem:[%s1 + $0xd0] sm:$0xf]
  %v73 = vld [vmem:[%s1 + $0xd4] sm:$0xf]
  %v74 = vld [vmem:[%s1 + $0xd8] sm:$0xf]
  %v75 = vld [vmem:[%s1 + $0xdc] sm:$0xf]
  %v76 = vld [vmem:[%s1 + $0xe0] sm:$0xf]
  %v77 = vld [vmem:[%s1 + $0xe4] sm:$0xf]
  %v78 = vld [vmem:[%s1 + $0xe8] sm:$0xf]
  %v79 = vld [vmem:[%s1 + $0xec] sm:$0xf]
  %v80 = vld [vmem:[%s1 + $0xf0] sm:$0xf]
  %v81 = vld [vmem:[%s1 + $0xf4] sm:$0xf]
  %v82 = vld [vmem:[%s1 + $0xf8] sm:$0xf]
  %v83 = vld [vmem:[%s1 + $0xfc] sm:$0xf]
  %v84 = vld [vmem:[%s1 + $0x100] sm:$0xf]
  %v85 = vld [vmem:[%s1 + $0x104] sm:$0xf]
  %v86 = vld [vmem:[%s1 + $0x108] sm:$0xf]
  %v87 = vld [vmem:[%s1 + $0x10c] sm:$0xf]
  %v88 = vld [vmem:[%s1 + $0x110] sm:$0xf]
  %v89 = vld [vmem:[%s1 + $0x114] sm:$0xf]
  %v90 = vld [vmem:[%s1 + $0x118] sm:$0xf]
  %v91 = vld [vmem:[%s1 + $0x11c] sm:$0xf]
  %v92 = vld [vmem:[%s1 + $0x120] sm:$0xf]
  %v93 = vld [vmem:[%s1 + $0x124] sm:$0xf]
  %v94 = vld [vmem:[%s1 + $0x128] sm:$0xf]
  %v95 = vld [vmem:[%s1 + $0x12c] sm:$0xf]
  %v96 = vld [vmem:[%s1 + $0x130] sm:$0xf]
  %v97 = vld [vmem:[%s1 + $0x134] sm:$0xf]
  %v98 = vld [vmem:[%s1 + $0x138] sm:$0xf]
  %v99 = vld [vmem:[%s1 + $0x13c] sm:$0xf]
  %v100 = vld [vmem:[%s1 + $0x140] sm:$0xf]
  %v101 = vld [vmem:[%s1 + $0x144] sm:$0xf]
  %v102 = vld [vmem:[%s1 + $0x148] sm:$0xf]
  %v103 = vld [vmem:[%s1 + $0x14c] sm:$0xf]
  %v104 = vld [vmem:[%s1 + $0x150] sm:$0xf]
  %v105 = vld [vmem:[%s1 + $0x154] sm:$0xf]
  %v106 = vld [vmem:[%s1 + $0x158] sm:$0xf]
  %v107 = vld [vmem:[%s1 + $0x15c] sm:$0xf]
  %v108 = vld [vmem:[%s1 + $0x160] sm:$0xf]
  %v109 = vld [vmem:[%s1 + $0x164] sm:$0xf]
  %v110 = vld [vmem:[%s1 + $0x168] sm:$0xf]
  %v111 = vld [vmem:[%s1 + $0x16c] sm:$0xf]
  %v112 = vld [vmem:[%s1 + $0x170] sm:$0xf]
  %v113 = vld [vmem:[%s1 + $0x174] sm:$0xf]
  %v114 = vld [vmem:[%s1 + $0x178] sm:$0xf]
  %v115 = vld [vmem:[%s1 + $0x17c] sm:$0xf]
  %v116 = vld [vmem:[%s1 + $0x180] sm:$0xf]
  %v117 = vld [vmem:[%s1 + $0x184] sm:$0xf]
  %v118 = vld [vmem:[%s1 + $0x188] sm:$0xf]
  %v119 = vld [vmem:[%s1 + $0x18c] sm:$0xf]
  %v120 = vld [vmem:[%s1 + $0x190] sm:$0xf]
  %v121 = vld [vmem:[%s1 + $0x194] sm:$0xf]
  %v122 = vld [vmem:[%s1 + $0x198] sm:$0xf]
  %v123 = vld [vmem:[%s1 + $0x19c] sm:$0xf]
  %v124 = vld [vmem:[%s1 + $0x1a0] sm:$0xf]
  %v125 = vld [vmem:[%s1 + $0x1a4] sm:$0xf]
  %v126 = vld [vmem:[%s1 + $0x1a8] sm:$0xf]
  %v127 = vld [vmem:[%s1 + $0x1ac] sm:$0xf]
  %v128 = vld [vmem:[%s1 + $0x1b0] sm:$0xf]
  %v129 = vld [vmem:[%s1 + $0x1b4] sm:$0xf]
  %v130 = vld [vmem:[%s1 + $0x1b8] sm:$0xf]
  %v131 = vld [vmem:[%s1 + $0x1bc] sm:$0xf]
  %v132 = vld [vmem:[%s1 + $0x1c0] sm:$0xf]
  %v133 = vld [vmem:[%s1 + $0x1c4] sm:$0xf]
  %v134 = vld [vmem:[%s1 + $0x1c8] sm:$0xf]
  %v135 = vld [vmem:[%s1 + $0x1cc] sm:$0xf]
  %v136 = vld [vmem:[%s1 + $0x1d0] sm:$0xf]
  %v137 = vld [vmem:[%s1 + $0x1d4] sm:$0xf]
  %v138 = vld [vmem:[%s1 + $0x1d8] sm:$0xf]
  %v139 = vld [vmem:[%s1 + $0x1dc] sm:$0xf]
  %v140 = vld [vmem:[%s1 + $0x1e0] sm:$0xf]
  %v141 = vld [vmem:[%s1 + $0x1e4] sm:$0xf]
  %v142 = vld [vmem:[%s1 + $0x1e8] sm:$0xf]
  %v143 = vld [vmem:[%s1 + $0x1ec] sm:$0xf]
  %v144 = vld [vmem:[%s1 + $0x1f0] sm:$0xf]
  %v145 = vld [vmem:[%s1 + $0x1f4] sm:$0xf]
  %v146 = vld [vmem:[%s1 + $0x1f8] sm:$0xf]
  %v147 = vld [vmem:[%s1 + $0x1fc] sm:$0xf]
  %v148 = vld [vmem:[%s1 + $0x200] sm:$0xf]
  %v149 = vld [vmem:[%s1 + $0x204] sm:$0xf]
  %v150 = vld [vmem:[%s1 + $0x208] sm:$0xf]
  %v151 = vld [vmem:[%s1 + $0x20c] sm:$0xf]
  %v152 = vld [vmem:[%s1 + $0x210] sm:$0xf]
  %v153 = vld [vmem:[%s1 + $0x214] sm:$0xf]
  %v154 = vld [vmem:[%s1 + $0x218] sm:$0xf]
  %v155 = vld [vmem:[%s1 + $0x21c] sm:$0xf]
  %v156 = vld [vmem:[%s1 + $0x220] sm:$0xf]
  %v157 = vld [vmem:[%s1 + $0x224] sm:$0xf]
  %v158 = vld [vmem:[%s1 + $0x228] sm:$0xf]
  %v159 = vld [vmem:[%s1 + $0x22c] sm:$0xf]
  %v160 = vld [vmem:[%s1 + $0x230] sm:$0xf]
  %v161 = vld [vmem:[%s1 + $0x234] sm:$0xf]
  %v162 = vld [vmem:[%s1 + $0x238] sm:$0xf]
  %v163 = vld [vmem:[%s1 + $0x23c] sm:$0xf]
  %v164 = vld [vmem:[%s1 + $0x240] sm:$0xf]
  %v165 = vld [vmem:[%s1 + $0x244] sm:$0xf]
  %v166 = vld [vmem:[%s1 + $0x248] sm:$0xf]
  %v167 = vld [vmem:[%s1 + $0x24c] sm:$0xf]
  %v168 = vld [vmem:[%s1 + $0x250] sm:$0xf]
  %v169 = vld [vmem:[%s1 + $0x254] sm:$0xf]
  %v170 = vld [vmem:[%s1 + $0x258] sm:$0xf]
  %v171 = vld [vmem:[%s1 + $0x25c] sm:$0xf]
  %v172 = vld [vmem:[%s1 + $0x260] sm:$0xf]
  %v173 = vld [vmem:[%s1 + $0x264] sm:$0xf]
  %v174 = vld [vmem:[%s1 + $0x268] sm:$0xf]
  %v175 = vld [vmem:[%s1 + $0x26c] sm:$0xf]
  %v176 = vld [vmem:[%s1 + $0x270] sm:$0xf]
  %v177 = vld [vmem:[%s1 + $0x274] sm:$0xf]
  %v178 = vld [vmem:[%s1 + $0x278] sm:$0xf]
  %v179 = vld [vmem:[%s1 + $0x27c] sm:$0xf]
  %v180 = vld [vmem:[%s1 + $0x280] sm:$0xf]
  %v181 = vld [vmem:[%s1 + $0x284] sm:$0xf]
  %v182 = vld [vmem:[%s1 + $0x288] sm:$0xf]
  %v183 = vld [vmem:[%s1 + $0x28c] sm:$0xf]
  %v184 = vld [vmem:[%s1 + $0x290] sm:$0xf]
  %v185 = vld [vmem:[%s1 + $0x294] sm:$0xf]
  %v186 = vld [vmem:[%s1 + $0x298] sm:$0xf]
  %v187 = vld [vmem:[%s1 + $0x29c] sm:$0xf]
  %v188 = vld [vmem:[%s1 + $0x2a0] sm:$0xf]
  %v189 = vld [vmem:[%s1 + $0x2a4] sm:$0xf]
  %v190 = vld [vmem:[%s1 + $0x2a8] sm:$0xf]
  %v191 = vld [vmem:[%s1 + $0x2ac] sm:$0xf]
  %v192 = vld [vmem:[%s1 + $0x2b0] sm:$0xf]
  %v193 = vld [vmem:[%s1 + $0x2b4] sm:$0xf]
  %v194 = vld [vmem:[%s1 + $0x2b8] sm:$0xf]
  %v195 = vld [vmem:[%s1 + $0x2bc] sm:$0xf]
  %v196 = vld [vmem:[%s1 + $0x2c0] sm:$0xf]
  %v197 = vld [vmem:[%s1 + $0x2c4] sm:$0xf]
  %v198 = vld [vmem:[%s1 + $0x2c8] sm:$0xf]
  %v199 = vld [vmem:[%s1 + $0x2cc] sm:$0xf]
  %v200 = vld [vmem:[%s1 + $0x2d0] sm:$0xf]
  %v201 = vld [vmem:[%s1 + $0x2d4] sm:$0xf]
  %v202 = vld [vmem:[%s1 + $0x2d8] sm:$0xf]
  %v203 = vld [vmem:[%s1 + $0x2dc] sm:$0xf]
  %v204 = vld [vmem:[%s1 + $0x2e0] sm:$0xf]
  %v205 = vld [vmem:[%s1 + $0x2e4] sm:$0xf]
  %v206 = vld [vmem:[%s1 + $0x2e8] sm:$0xf]
  %v207 = vld [vmem:[%s1 + $0x2ec] sm:$0xf]
  %v208 = vld [vmem:[%s1 + $0x2f0] sm:$0xf]
  %v209 = vld [vmem:[%s1 + $0x2f4] sm:$0xf]
  %v210 = vld [vmem:[%s1 + $0x2f8] sm:$0xf]
  %v211 = vld [vmem:[%s1 + $0x2fc] sm:$0xf]
  %v212 = vld [vmem:[%s1 + $0x300] sm:$0xf]
  %v213 = vld [vmem:[%s1 + $0x304] sm:$0xf]
  %v214 = vld [vmem:[%s1 + $0x308] sm:$0xf]
  %v215 = vld [vmem:[%s1 + $0x30c] sm:$0xf]
  %v216 = vld [vmem:[%s1 + $0x310] sm:$0xf]
  %v217 = vld [vmem:[%s1 + $0x314] sm:$0xf]
  %v218 = vld [vmem:[%s1 + $0x318] sm:$0xf]
  %v219 = vld [vmem:[%s1 + $0x31c] sm:$0xf]
  %v220 = vld [vmem:[%s1 + $0x320] sm:$0xf]
  %v221 = vld [vmem:[%s1 + $0x324] sm:$0xf]
  %v222 = vld [vmem:[%s1 + $0x328] sm:$0xf]
  %v223 = vld [vmem:[%s1 + $0x32c] sm:$0xf]
  %v224 = vld [vmem:[%s1 + $0x330] sm:$0xf]
  %v225 = vld [vmem:[%s1 + $0x334] sm:$0xf]
  %v226 = vld [vmem:[%s1 + $0x338] sm:$0xf]
  %v227 = vld [vmem:[%s1 + $0x33c] sm:$0xf]
  %v228 = vld [vmem:[%s1 + $0x340] sm:$0xf]
  %v229 = vld [vmem:[%s1 + $0x344] sm:$0xf]
  %v230 = vld [vmem:[%s1 + $0x348] sm:$0xf]
  %v231 = vld [vmem:[%s1 + $0x34c] sm:$0xf]
  %v232 = vld [vmem:[%s1 + $0x350] sm:$0xf]
  %v233 = vld [vmem:[%s1 + $0x354] sm:$0xf]
  %v234 = vld [vmem:[%s1 + $0x358] sm:$0xf]
  %v235 = vld [vmem:[%s1 + $0x35c] sm:$0xf]
  %v236 = vld [vmem:[%s1 + $0x360] sm:$0xf]
  %v237 = vld [vmem:[%s1 + $0x364] sm:$0xf]
  %v238 = vld [vmem:[%s1 + $0x368] sm:$0xf]
  %v239 = vld [vmem:[%s1 + $0x36c] sm:$0xf]
  %v240 = vld [vmem:[%s1 + $0x370] sm:$0xf]
  %v241 = vld [vmem:[%s1 + $0x374] sm:$0xf]
  %v242 = vld [vmem:[%s1 + $0x378] sm:$0xf]
  %v243 = vld [vmem:[%s1 + $0x37c] sm:$0xf]
  %v244 = vld [vmem:[%s1 + $0x380] sm:$0xf]
  %v245 = vld [vmem:[%s1 + $0x384] sm:$0xf]
  %v246 = vld [vmem:[%s1 + $0x388] sm:$0xf]
  %v247 = vld [vmem:[%s1 + $0x38c] sm:$0xf]
  %v248 = vld [vmem:[%s1 + $0x390] sm:$0xf]
  %v249 = vld [vmem:[%s1 + $0x394] sm:$0xf]
  %v250 = vld [vmem:[%s1 + $0x398] sm:$0xf]
  %v251 = vld [vmem:[%s1 + $0x39c] sm:$0xf]
  %v252 = vld [vmem:[%s1 + $0x3a0] sm:$0xf]
  %v253 = vld [vmem:[%s1 + $0x3a4] sm:$0xf]
  %v254 = vld [vmem:[%s1 + $0x3a8] sm:$0xf]
  %v255 = vld [vmem:[%s1 + $0x3ac] sm:$0xf]
  %v256 = vld [vmem:[%s1 + $0x3b0] sm:$0xf]
  %v257 = vld [vmem:[%s1 + $0x3b4] sm:$0xf]
  %v258 = vld [vmem:[%s1 + $0x3b8] sm:$0xf]
  %v259 = vld [vmem:[%s1 + $0x3bc] sm:$0xf]
  %v260 = vld [vmem:[%s1 + $0x3c0] sm:$0xf]
  %v261 = vld [vmem:[%s1 + $0x3c4] sm:$0xf]
  %v262 = vld [vmem:[%s1 + $0x3c8] sm:$0xf]
  %v263 = vld [vmem:[%s1 + $0x3cc] sm:$0xf]
  %v264 = vld [vmem:[%s1 + $0x3d0] sm:$0xf]
  %v265 = vld [vmem:[%s1 + $0x3d4] sm:$0xf]
  %v266 = vld [vmem:[%s1 + $0x3d8] sm:$0xf]
  %v267 = vld [vmem:[%s1 + $0x3dc] sm:$0xf]
  %v268 = vld [vmem:[%s1 + $0x3e0] sm:$0xf]
  %v269 = vld [vmem:[%s1 + $0x3e4] sm:$0xf]
  %v270 = vld [vmem:[%s1 + $0x3e8] sm:$0xf]
  %v271 = vld [vmem:[%s1 + $0x3ec] sm:$0xf]
  %v272 = vld [vmem:[%s1 + $0x3f0] sm:$0xf]
  %v273 = vld [vmem:[%s1 + $0x3f4] sm:$0xf]
  %v274 = vld [vmem:[%s1 + $0x3f8] sm:$0xf]
  %v275 = vld [vmem:[%s1 + $0x3fc] sm:$0xf]
  %v278 = vcombine.high %v18, %v18
  %v280 = vunpack.c.l.s4 1966171168
  %v281 = vunpack.c.0.s8 %v280
  %v282 = vlaneseq
  %v283 = vshrl.u32 %v282, 7
  %v284 = vsub.s32 %v281, %v283
  %v285 = vrot.slane %v18, %v284
  %v287 = vunpack.c.l.s4 1966171168
  %v288 = vunpack.c.0.s8 %v287
  %v289 = vlaneseq
  %v290 = vshrl.u32 %v289, 7
  %v291 = vsub.s32 %v288, %v290
  %v292 = vrot.slane %v278, %v291
  %v293 = vcombine.high %v285, %v285
  %v294 = vcombine.high %v292, %v292
  %v296 = vunpack.c.l.s4 1966171168
  %v297 = vunpack.c.0.s8 %v296
  %v298 = vlaneseq
  %v299 = vshrl.u32 %v298, 7
  %v300 = vsub.s32 %v297, %v299
  %v301 = vrot.slane %v285, %v300
  %v303 = vunpack.c.l.s4 1966171168
  %v304 = vunpack.c.0.s8 %v303
  %v305 = vlaneseq
  %v306 = vshrl.u32 %v305, 7
  %v307 = vsub.s32 %v304, %v306
  %v308 = vrot.slane %v292, %v307
  %v310 = vunpack.c.l.s4 1966171168
  %v311 = vunpack.c.0.s8 %v310
  %v312 = vlaneseq
  %v313 = vshrl.u32 %v312, 7
  %v314 = vsub.s32 %v311, %v313
  %v315 = vrot.slane %v293, %v314
  %v317 = vunpack.c.l.s4 1966171168
  %v318 = vunpack.c.0.s8 %v317
  %v319 = vlaneseq
  %v320 = vshrl.u32 %v319, 7
  %v321 = vsub.s32 %v318, %v320
  %v322 = vrot.slane %v294, %v321
  %v323 = vcombine.high %v301, %v301
  %v324 = vcombine.high %v308, %v308
  %v325 = vcombine.high %v315, %v315
  %v326 = vcombine.high %v322, %v322
  %v327 = vcombine.high %v19, %v19
  %v329 = vunpack.c.l.s4 1966171168
  %v330 = vunpack.c.0.s8 %v329
  %v331 = vlaneseq
  %v332 = vshrl.u32 %v331, 7
  %v333 = vsub.s32 %v330, %v332
  %v334 = vrot.slane %v19, %v333
  %v336 = vunpack.c.l.s4 1966171168
  %v337 = vunpack.c.0.s8 %v336
  %v338 = vlaneseq
  %v339 = vshrl.u32 %v338, 7
  %v340 = vsub.s32 %v337, %v339
  %v341 = vrot.slane %v327, %v340
  %v342 = vcombine.high %v334, %v334
  %v343 = vcombine.high %v341, %v341
  %v345 = vunpack.c.l.s4 1966171168
  %v346 = vunpack.c.0.s8 %v345
  %v347 = vlaneseq
  %v348 = vshrl.u32 %v347, 7
  %v349 = vsub.s32 %v346, %v348
  %v350 = vrot.slane %v334, %v349
  %v352 = vunpack.c.l.s4 1966171168
  %v353 = vunpack.c.0.s8 %v352
  %v354 = vlaneseq
  %v355 = vshrl.u32 %v354, 7
  %v356 = vsub.s32 %v353, %v355
  %v357 = vrot.slane %v341, %v356
  %v359 = vunpack.c.l.s4 1966171168
  %v360 = vunpack.c.0.s8 %v359
  %v361 = vlaneseq
  %v362 = vshrl.u32 %v361, 7
  %v363 = vsub.s32 %v360, %v362
  %v364 = vrot.slane %v342, %v363
  %v366 = vunpack.c.l.s4 1966171168
  %v367 = vunpack.c.0.s8 %v366
  %v368 = vlaneseq
  %v369 = vshrl.u32 %v368, 7
  %v370 = vsub.s32 %v367, %v369
  %v371 = vrot.slane %v343, %v370
  %v372 = vcombine.high %v350, %v350
  %v373 = vcombine.high %v357, %v357
  %v374 = vcombine.high %v364, %v364
  %v375 = vcombine.high %v371, %v371
  %v648 = vunpack.c.l.b16 %v20
  %v649 = vunpack.c.l.b16 %v21
  %v650 = vunpack.c.l.b16 %v22
  %v651 = vunpack.c.l.b16 %v23
  %v652 = vunpack.c.l.b16 %v24
  %v653 = vunpack.c.l.b16 %v25
  %v654 = vunpack.c.l.b16 %v26
  %v655 = vunpack.c.l.b16 %v27
  %v656 = vunpack.c.l.b16 %v28
  %v657 = vunpack.c.l.b16 %v29
  %v658 = vunpack.c.l.b16 %v30
  %v659 = vunpack.c.l.b16 %v31
  %v660 = vunpack.c.l.b16 %v32
  %v661 = vunpack.c.l.b16 %v33
  %v662 = vunpack.c.l.b16 %v34
  %v663 = vunpack.c.l.b16 %v35
  %v664 = vunpack.c.l.b16 %v36
  %v665 = vunpack.c.l.b16 %v37
  %v666 = vunpack.c.l.b16 %v38
  %v667 = vunpack.c.l.b16 %v39
  %v668 = vunpack.c.l.b16 %v40
  %v669 = vunpack.c.l.b16 %v41
  %v670 = vunpack.c.l.b16 %v42
  %v671 = vunpack.c.l.b16 %v43
  %v672 = vunpack.c.l.b16 %v44
  %v673 = vunpack.c.l.b16 %v45
  %v674 = vunpack.c.l.b16 %v46
  %v675 = vunpack.c.l.b16 %v47
  %v676 = vunpack.c.l.b16 %v48
  %v677 = vunpack.c.l.b16 %v49
  %v678 = vunpack.c.l.b16 %v50
  %v679 = vunpack.c.l.b16 %v51
  %v680 = vunpack.c.l.b16 %v52
  %v681 = vunpack.c.l.b16 %v53
  %v682 = vunpack.c.l.b16 %v54
  %v683 = vunpack.c.l.b16 %v55
  %v684 = vunpack.c.l.b16 %v56
  %v685 = vunpack.c.l.b16 %v57
  %v686 = vunpack.c.l.b16 %v58
  %v687 = vunpack.c.l.b16 %v59
  %v688 = vunpack.c.l.b16 %v60
  %v689 = vunpack.c.l.b16 %v61
  %v690 = vunpack.c.l.b16 %v62
  %v691 = vunpack.c.l.b16 %v63
  %v692 = vunpack.c.l.b16 %v64
  %v693 = vunpack.c.l.b16 %v65
  %v694 = vunpack.c.l.b16 %v66
  %v695 = vunpack.c.l.b16 %v67
  %v696 = vunpack.c.l.b16 %v68
  %v697 = vunpack.c.l.b16 %v69
  %v698 = vunpack.c.l.b16 %v70
  %v699 = vunpack.c.l.b16 %v71
  %v700 = vunpack.c.l.b16 %v72
  %v701 = vunpack.c.l.b16 %v73
  %v702 = vunpack.c.l.b16 %v74
  %v703 = vunpack.c.l.b16 %v75
  %v704 = vunpack.c.l.b16 %v76
  %v705 = vunpack.c.l.b16 %v77
  %v706 = vunpack.c.l.b16 %v78
  %v707 = vunpack.c.l.b16 %v79
  %v708 = vunpack.c.l.b16 %v80
  %v709 = vunpack.c.l.b16 %v81
  %v710 = vunpack.c.l.b16 %v82
  %v711 = vunpack.c.l.b16 %v83
  %v712 = vunpack.c.l.b16 %v84
  %v713 = vunpack.c.l.b16 %v85
  %v714 = vunpack.c.l.b16 %v86
  %v715 = vunpack.c.l.b16 %v87
  %v716 = vunpack.c.l.b16 %v88
  %v717 = vunpack.c.l.b16 %v89
  %v718 = vunpack.c.l.b16 %v90
  %v719 = vunpack.c.l.b16 %v91
  %v720 = vunpack.c.l.b16 %v92
  %v721 = vunpack.c.l.b16 %v93
  %v722 = vunpack.c.l.b16 %v94
  %v723 = vunpack.c.l.b16 %v95
  %v724 = vunpack.c.l.b16 %v96
  %v725 = vunpack.c.l.b16 %v97
  %v726 = vunpack.c.l.b16 %v98
  %v727 = vunpack.c.l.b16 %v99
  %v728 = vunpack.c.l.b16 %v100
  %v729 = vunpack.c.l.b16 %v101
  %v730 = vunpack.c.l.b16 %v102
  %v731 = vunpack.c.l.b16 %v103
  %v732 = vunpack.c.l.b16 %v104
  %v733 = vunpack.c.l.b16 %v105
  %v734 = vunpack.c.l.b16 %v106
  %v735 = vunpack.c.l.b16 %v107
  %v736 = vunpack.c.l.b16 %v108
  %v737 = vunpack.c.l.b16 %v109
  %v738 = vunpack.c.l.b16 %v110
  %v739 = vunpack.c.l.b16 %v111
  %v740 = vunpack.c.l.b16 %v112
  %v741 = vunpack.c.l.b16 %v113
  %v742 = vunpack.c.l.b16 %v114
  %v743 = vunpack.c.l.b16 %v115
  %v744 = vunpack.c.l.b16 %v116
  %v745 = vunpack.c.l.b16 %v117
  %v746 = vunpack.c.l.b16 %v118
  %v747 = vunpack.c.l.b16 %v119
  %v748 = vunpack.c.l.b16 %v120
  %v749 = vunpack.c.l.b16 %v121
  %v750 = vunpack.c.l.b16 %v122
  %v751 = vunpack.c.l.b16 %v123
  %v752 = vunpack.c.l.b16 %v124
  %v753 = vunpack.c.l.b16 %v125
  %v754 = vunpack.c.l.b16 %v126
  %v755 = vunpack.c.l.b16 %v127
  %v756 = vunpack.c.l.b16 %v128
  %v757 = vunpack.c.l.b16 %v129
  %v758 = vunpack.c.l.b16 %v130
  %v759 = vunpack.c.l.b16 %v131
  %v760 = vunpack.c.l.b16 %v132
  %v761 = vunpack.c.l.b16 %v133
  %v762 = vunpack.c.l.b16 %v134
  %v763 = vunpack.c.l.b16 %v135
  %v764 = vunpack.c.l.b16 %v136
  %v765 = vunpack.c.l.b16 %v137
  %v766 = vunpack.c.l.b16 %v138
  %v767 = vunpack.c.l.b16 %v139
  %v768 = vunpack.c.l.b16 %v140
  %v769 = vunpack.c.l.b16 %v141
  %v770 = vunpack.c.l.b16 %v142
  %v771 = vunpack.c.l.b16 %v143
  %v772 = vunpack.c.l.b16 %v144
  %v773 = vunpack.c.l.b16 %v145
  %v774 = vunpack.c.l.b16 %v146
  %v775 = vunpack.c.l.b16 %v147
  %v776 = vunpack.c.l.b16 %v148
  %v777 = vunpack.c.l.b16 %v149
  %v778 = vunpack.c.l.b16 %v150
  %v779 = vunpack.c.l.b16 %v151
  %v780 = vunpack.c.l.b16 %v152
  %v781 = vunpack.c.l.b16 %v153
  %v782 = vunpack.c.l.b16 %v154
  %v783 = vunpack.c.l.b16 %v155
  %v784 = vunpack.c.l.b16 %v156
  %v785 = vunpack.c.l.b16 %v157
  %v786 = vunpack.c.l.b16 %v158
  %v787 = vunpack.c.l.b16 %v159
  %v788 = vunpack.c.l.b16 %v160
  %v789 = vunpack.c.l.b16 %v161
  %v790 = vunpack.c.l.b16 %v162
  %v791 = vunpack.c.l.b16 %v163
  %v792 = vunpack.c.l.b16 %v164
  %v793 = vunpack.c.l.b16 %v165
  %v794 = vunpack.c.l.b16 %v166
  %v795 = vunpack.c.l.b16 %v167
  %v796 = vunpack.c.l.b16 %v168
  %v797 = vunpack.c.l.b16 %v169
  %v798 = vunpack.c.l.b16 %v170
  %v799 = vunpack.c.l.b16 %v171
  %v800 = vunpack.c.l.b16 %v172
  %v801 = vunpack.c.l.b16 %v173
  %v802 = vunpack.c.l.b16 %v174
  %v803 = vunpack.c.l.b16 %v175
  %v804 = vunpack.c.l.b16 %v176
  %v805 = vunpack.c.l.b16 %v177
  %v806 = vunpack.c.l.b16 %v178
  %v807 = vunpack.c.l.b16 %v179
  %v808 = vunpack.c.l.b16 %v180
  %v809 = vunpack.c.l.b16 %v181
  %v810 = vunpack.c.l.b16 %v182
  %v811 = vunpack.c.l.b16 %v183
  %v812 = vunpack.c.l.b16 %v184
  %v813 = vunpack.c.l.b16 %v185
  %v814 = vunpack.c.l.b16 %v186
  %v815 = vunpack.c.l.b16 %v187
  %v816 = vunpack.c.l.b16 %v188
  %v817 = vunpack.c.l.b16 %v189
  %v818 = vunpack.c.l.b16 %v190
  %v819 = vunpack.c.l.b16 %v191
  %v820 = vunpack.c.l.b16 %v192
  %v821 = vunpack.c.l.b16 %v193
  %v822 = vunpack.c.l.b16 %v194
  %v823 = vunpack.c.l.b16 %v195
  %v824 = vunpack.c.l.b16 %v196
  %v825 = vunpack.c.l.b16 %v197
  %v826 = vunpack.c.l.b16 %v198
  %v827 = vunpack.c.l.b16 %v199
  %v828 = vunpack.c.l.b16 %v200
  %v829 = vunpack.c.l.b16 %v201
  %v830 = vunpack.c.l.b16 %v202
  %v831 = vunpack.c.l.b16 %v203
  %v832 = vunpack.c.l.b16 %v204
  %v833 = vunpack.c.l.b16 %v205
  %v834 = vunpack.c.l.b16 %v206
  %v835 = vunpack.c.l.b16 %v207
  %v836 = vunpack.c.l.b16 %v208
  %v837 = vunpack.c.l.b16 %v209
  %v838 = vunpack.c.l.b16 %v210
  %v839 = vunpack.c.l.b16 %v211
  %v840 = vunpack.c.l.b16 %v212
  %v841 = vunpack.c.l.b16 %v213
  %v842 = vunpack.c.l.b16 %v214
  %v843 = vunpack.c.l.b16 %v215
  %v844 = vunpack.c.l.b16 %v216
  %v845 = vunpack.c.l.b16 %v217
  %v846 = vunpack.c.l.b16 %v218
  %v847 = vunpack.c.l.b16 %v219
  %v848 = vunpack.c.l.b16 %v220
  %v849 = vunpack.c.l.b16 %v221
  %v850 = vunpack.c.l.b16 %v222
  %v851 = vunpack.c.l.b16 %v223
  %v852 = vunpack.c.l.b16 %v224
  %v853 = vunpack.c.l.b16 %v225
  %v854 = vunpack.c.l.b16 %v226
  %v855 = vunpack.c.l.b16 %v227
  %v856 = vunpack.c.l.b16 %v228
  %v857 = vunpack.c.l.b16 %v229
  %v858 = vunpack.c.l.b16 %v230
  %v859 = vunpack.c.l.b16 %v231
  %v860 = vunpack.c.l.b16 %v232
  %v861 = vunpack.c.l.b16 %v233
  %v862 = vunpack.c.l.b16 %v234
  %v863 = vunpack.c.l.b16 %v235
  %v864 = vunpack.c.l.b16 %v236
  %v865 = vunpack.c.l.b16 %v237
  %v866 = vunpack.c.l.b16 %v238
  %v867 = vunpack.c.l.b16 %v239
  %v868 = vunpack.c.l.b16 %v240
  %v869 = vunpack.c.l.b16 %v241
  %v870 = vunpack.c.l.b16 %v242
  %v871 = vunpack.c.l.b16 %v243
  %v872 = vunpack.c.l.b16 %v244
  %v873 = vunpack.c.l.b16 %v245
  %v874 = vunpack.c.l.b16 %v246
  %v875 = vunpack.c.l.b16 %v247
  %v876 = vunpack.c.l.b16 %v248
  %v877 = vunpack.c.l.b16 %v249
  %v878 = vunpack.c.l.b16 %v250
  %v879 = vunpack.c.l.b16 %v251
  %v880 = vunpack.c.l.b16 %v252
  %v881 = vunpack.c.l.b16 %v253
  %v882 = vunpack.c.l.b16 %v254
  %v883 = vunpack.c.l.b16 %v255
  %v884 = vunpack.c.l.b16 %v256
  %v885 = vunpack.c.l.b16 %v257
  %v886 = vunpack.c.l.b16 %v258
  %v887 = vunpack.c.l.b16 %v259
  %v888 = vunpack.c.l.b16 %v260
  %v889 = vunpack.c.l.b16 %v261
  %v890 = vunpack.c.l.b16 %v262
  %v891 = vunpack.c.l.b16 %v263
  %v892 = vunpack.c.l.b16 %v264
  %v893 = vunpack.c.l.b16 %v265
  %v894 = vunpack.c.l.b16 %v266
  %v895 = vunpack.c.l.b16 %v267
  %v896 = vunpack.c.l.b16 %v268
  %v897 = vunpack.c.l.b16 %v269
  %v898 = vunpack.c.l.b16 %v270
  %v899 = vunpack.c.l.b16 %v271
  %v900 = vunpack.c.l.b16 %v272
  %v901 = vunpack.c.l.b16 %v273
  %v902 = vunpack.c.l.b16 %v274
  %v903 = vunpack.c.l.b16 %v275
  %v904 = vpack.c.b16 %v649, %v648
  %v905 = vpack.c.b16 %v651, %v650
  %v906 = vpack.c.b16 %v653, %v652
  %v907 = vpack.c.b16 %v655, %v654
  %v908 = vpack.c.b16 %v657, %v656
  %v909 = vpack.c.b16 %v659, %v658
  %v910 = vpack.c.b16 %v661, %v660
  %v911 = vpack.c.b16 %v663, %v662
  %v912 = vpack.c.b16 %v665, %v664
  %v913 = vpack.c.b16 %v667, %v666
  %v914 = vpack.c.b16 %v669, %v668
  %v915 = vpack.c.b16 %v671, %v670
  %v916 = vpack.c.b16 %v673, %v672
  %v917 = vpack.c.b16 %v675, %v674
  %v918 = vpack.c.b16 %v677, %v676
  %v919 = vpack.c.b16 %v679, %v678
  %v920 = vpack.c.b16 %v681, %v680
  %v921 = vpack.c.b16 %v683, %v682
  %v922 = vpack.c.b16 %v685, %v684
  %v923 = vpack.c.b16 %v687, %v686
  %v924 = vpack.c.b16 %v689, %v688
  %v925 = vpack.c.b16 %v691, %v690
  %v926 = vpack.c.b16 %v693, %v692
  %v927 = vpack.c.b16 %v695, %v694
  %v928 = vpack.c.b16 %v697, %v696
  %v929 = vpack.c.b16 %v699, %v698
  %v930 = vpack.c.b16 %v701, %v700
  %v931 = vpack.c.b16 %v703, %v702
  %v932 = vpack.c.b16 %v705, %v704
  %v933 = vpack.c.b16 %v707, %v706
  %v934 = vpack.c.b16 %v709, %v708
  %v935 = vpack.c.b16 %v711, %v710
  %v936 = vpack.c.b16 %v713, %v712
  %v937 = vpack.c.b16 %v715, %v714
  %v938 = vpack.c.b16 %v717, %v716
  %v939 = vpack.c.b16 %v719, %v718
  %v940 = vpack.c.b16 %v721, %v720
  %v941 = vpack.c.b16 %v723, %v722
  %v942 = vpack.c.b16 %v725, %v724
  %v943 = vpack.c.b16 %v727, %v726
  %v944 = vpack.c.b16 %v729, %v728
  %v945 = vpack.c.b16 %v731, %v730
  %v946 = vpack.c.b16 %v733, %v732
  %v947 = vpack.c.b16 %v735, %v734
  %v948 = vpack.c.b16 %v737, %v736
  %v949 = vpack.c.b16 %v739, %v738
  %v950 = vpack.c.b16 %v741, %v740
  %v951 = vpack.c.b16 %v743, %v742
  %v952 = vpack.c.b16 %v745, %v744
  %v953 = vpack.c.b16 %v747, %v746
  %v954 = vpack.c.b16 %v749, %v748
  %v955 = vpack.c.b16 %v751, %v750
  %v956 = vpack.c.b16 %v753, %v752
  %v957 = vpack.c.b16 %v755, %v754
  %v958 = vpack.c.b16 %v757, %v756
  %v959 = vpack.c.b16 %v759, %v758
  %v960 = vpack.c.b16 %v761, %v760
  %v961 = vpack.c.b16 %v763, %v762
  %v962 = vpack.c.b16 %v765, %v764
  %v963 = vpack.c.b16 %v767, %v766
  %v964 = vpack.c.b16 %v769, %v768
  %v965 = vpack.c.b16 %v771, %v770
  %v966 = vpack.c.b16 %v773, %v772
  %v967 = vpack.c.b16 %v775, %v774
  %v968 = vpack.c.b16 %v777, %v776
  %v969 = vpack.c.b16 %v779, %v778
  %v970 = vpack.c.b16 %v781, %v780
  %v971 = vpack.c.b16 %v783, %v782
  %v972 = vpack.c.b16 %v785, %v784
  %v973 = vpack.c.b16 %v787, %v786
  %v974 = vpack.c.b16 %v789, %v788
  %v975 = vpack.c.b16 %v791, %v790
  %v976 = vpack.c.b16 %v793, %v792
  %v977 = vpack.c.b16 %v795, %v794
  %v978 = vpack.c.b16 %v797, %v796
  %v979 = vpack.c.b16 %v799, %v798
  %v980 = vpack.c.b16 %v801, %v800
  %v981 = vpack.c.b16 %v803, %v802
  %v982 = vpack.c.b16 %v805, %v804
  %v983 = vpack.c.b16 %v807, %v806
  %v984 = vpack.c.b16 %v809, %v808
  %v985 = vpack.c.b16 %v811, %v810
  %v986 = vpack.c.b16 %v813, %v812
  %v987 = vpack.c.b16 %v815, %v814
  %v988 = vpack.c.b16 %v817, %v816
  %v989 = vpack.c.b16 %v819, %v818
  %v990 = vpack.c.b16 %v821, %v820
  %v991 = vpack.c.b16 %v823, %v822
  %v992 = vpack.c.b16 %v825, %v824
  %v993 = vpack.c.b16 %v827, %v826
  %v994 = vpack.c.b16 %v829, %v828
  %v995 = vpack.c.b16 %v831, %v830
  %v996 = vpack.c.b16 %v833, %v832
  %v997 = vpack.c.b16 %v835, %v834
  %v998 = vpack.c.b16 %v837, %v836
  %v999 = vpack.c.b16 %v839, %v838
  %v1000 = vpack.c.b16 %v841, %v840
  %v1001 = vpack.c.b16 %v843, %v842
  %v1002 = vpack.c.b16 %v845, %v844
  %v1003 = vpack.c.b16 %v847, %v846
  %v1004 = vpack.c.b16 %v849, %v848
  %v1005 = vpack.c.b16 %v851, %v850
  %v1006 = vpack.c.b16 %v853, %v852
  %v1007 = vpack.c.b16 %v855, %v854
  %v1008 = vpack.c.b16 %v857, %v856
  %v1009 = vpack.c.b16 %v859, %v858
  %v1010 = vpack.c.b16 %v861, %v860
  %v1011 = vpack.c.b16 %v863, %v862
  %v1012 = vpack.c.b16 %v865, %v864
  %v1013 = vpack.c.b16 %v867, %v866
  %v1014 = vpack.c.b16 %v869, %v868
  %v1015 = vpack.c.b16 %v871, %v870
  %v1016 = vpack.c.b16 %v873, %v872
  %v1017 = vpack.c.b16 %v875, %v874
  %v1018 = vpack.c.b16 %v877, %v876
  %v1019 = vpack.c.b16 %v879, %v878
  %v1020 = vpack.c.b16 %v881, %v880
  %v1021 = vpack.c.b16 %v883, %v882
  %v1022 = vpack.c.b16 %v885, %v884
  %v1023 = vpack.c.b16 %v887, %v886
  %v1024 = vpack.c.b16 %v889, %v888
  %v1025 = vpack.c.b16 %v891, %v890
  %v1026 = vpack.c.b16 %v893, %v892
  %v1027 = vpack.c.b16 %v895, %v894
  %v1028 = vpack.c.b16 %v897, %v896
  %v1029 = vpack.c.b16 %v899, %v898
  %v1030 = vpack.c.b16 %v901, %v900
  %v1031 = vpack.c.b16 %v903, %v902
  %1160 = vmatprep.subr.bf16.mxu0 0
  %1161 = vmatpush1.bf16.msra.mxu0 %v904
  %1162 = vmatprep.subr.bf16.mxu0 0
  %1163 = vmatpush1.bf16.msra.mxu0 %v905
  %1164 = vmatprep.subr.bf16.mxu0 0
  %1165 = vmatpush1.bf16.msra.mxu0 %v906
  %1166 = vmatprep.subr.bf16.mxu0 0
  %1167 = vmatpush1.bf16.msra.mxu0 %v907
  %1168 = vmatprep.subr.bf16.mxu0 0
  %1169 = vmatpush1.bf16.msra.mxu0 %v908
  %1170 = vmatprep.subr.bf16.mxu0 0
  %1171 = vmatpush1.bf16.msra.mxu0 %v909
  %1172 = vmatprep.subr.bf16.mxu0 0
  %1173 = vmatpush1.bf16.msra.mxu0 %v910
  %1174 = vmatprep.subr.bf16.mxu0 0
  %1175 = vmatpush1.bf16.msra.mxu0 %v911
  %1176 = vmatprep.subr.bf16.mxu0 0
  %1177 = vmatpush1.bf16.msra.mxu0 %v912
  %1178 = vmatprep.subr.bf16.mxu0 0
  %1179 = vmatpush1.bf16.msra.mxu0 %v913
  %1180 = vmatprep.subr.bf16.mxu0 0
  %1181 = vmatpush1.bf16.msra.mxu0 %v914
  %1182 = vmatprep.subr.bf16.mxu0 0
  %1183 = vmatpush1.bf16.msra.mxu0 %v915
  %1184 = vmatprep.subr.bf16.mxu0 0
  %1185 = vmatpush1.bf16.msra.mxu0 %v916
  %1186 = vmatprep.subr.bf16.mxu0 0
  %1187 = vmatpush1.bf16.msra.mxu0 %v917
  %1188 = vmatprep.subr.bf16.mxu0 0
  %1189 = vmatpush1.bf16.msra.mxu0 %v918
  %1190 = vmatprep.subr.bf16.mxu0 0
  %1191 = vmatpush1.bf16.msra.mxu0 %v919
  %1192 = vmatprep.mubr.bf16.mxu0 %v315
  %1193 = vmatmul.mubr.bf16.gmra.mrb[0].mxu0 %v301
  %v1194 = vpop.f32.mrb[0].mxu0
  %v1195 = vadd.f32 0.0, %v1194
  %v1196 = vpop.f32.mrb[0].mxu0
  %v1197 = vpop.f32.mrb[0].mxu0
  %v1198 = vpop.f32.mrb[0].mxu0
  %1199 = vdwg.mxu0
  %1200 = vmatprep.subr.bf16.mxu0 0
  %1201 = vmatpush1.bf16.msra.mxu0 %v920
  %1202 = vmatprep.subr.bf16.mxu0 0
  %1203 = vmatpush1.bf16.msra.mxu0 %v921
  %1204 = vmatprep.subr.bf16.mxu0 0
  %1205 = vmatpush1.bf16.msra.mxu0 %v922
  %1206 = vmatprep.subr.bf16.mxu0 0
  %1207 = vmatpush1.bf16.msra.mxu0 %v923
  %1208 = vmatprep.subr.bf16.mxu0 0
  %1209 = vmatpush1.bf16.msra.mxu0 %v924
  %1210 = vmatprep.subr.bf16.mxu0 0
  %1211 = vmatpush1.bf16.msra.mxu0 %v925
  %1212 = vmatprep.subr.bf16.mxu0 0
  %1213 = vmatpush1.bf16.msra.mxu0 %v926
  %1214 = vmatprep.subr.bf16.mxu0 0
  %1215 = vmatpush1.bf16.msra.mxu0 %v927
  %1216 = vmatprep.subr.bf16.mxu0 0
  %1217 = vmatpush1.bf16.msra.mxu0 %v928
  %1218 = vmatprep.subr.bf16.mxu0 0
  %1219 = vmatpush1.bf16.msra.mxu0 %v929
  %1220 = vmatprep.subr.bf16.mxu0 0
  %1221 = vmatpush1.bf16.msra.mxu0 %v930
  %1222 = vmatprep.subr.bf16.mxu0 0
  %1223 = vmatpush1.bf16.msra.mxu0 %v931
  %1224 = vmatprep.subr.bf16.mxu0 0
  %1225 = vmatpush1.bf16.msra.mxu0 %v932
  %1226 = vmatprep.subr.bf16.mxu0 0
  %1227 = vmatpush1.bf16.msra.mxu0 %v933
  %1228 = vmatprep.subr.bf16.mxu0 0
  %1229 = vmatpush1.bf16.msra.mxu0 %v934
  %1230 = vmatprep.subr.bf16.mxu0 0
  %1231 = vmatpush1.bf16.msra.mxu0 %v935
  %1232 = vmatprep.mubr.bf16.mxu0 %v325
  %1233 = vmatmul.mubr.bf16.gmra.mrb[0].mxu0 %v323
  %v1234 = vpop.f32.mrb[0].mxu0
  %v1235 = vadd.f32 %v1195, %v1234
  %v1236 = vpop.f32.mrb[0].mxu0
  %v1237 = vpop.f32.mrb[0].mxu0
  %v1238 = vpop.f32.mrb[0].mxu0
  %1239 = vdwg.mxu0
  %1240 = vmatprep.subr.bf16.mxu0 0
  %1241 = vmatpush1.bf16.msra.mxu0 %v936
  %1242 = vmatprep.subr.bf16.mxu0 0
  %1243 = vmatpush1.bf16.msra.mxu0 %v937
  %1244 = vmatprep.subr.bf16.mxu0 0
  %1245 = vmatpush1.bf16.msra.mxu0 %v938
  %1246 = vmatprep.subr.bf16.mxu0 0
  %1247 = vmatpush1.bf16.msra.mxu0 %v939
  %1248 = vmatprep.subr.bf16.mxu0 0
  %1249 = vmatpush1.bf16.msra.mxu0 %v940
  %1250 = vmatprep.subr.bf16.mxu0 0
  %1251 = vmatpush1.bf16.msra.mxu0 %v941
  %1252 = vmatprep.subr.bf16.mxu0 0
  %1253 = vmatpush1.bf16.msra.mxu0 %v942
  %1254 = vmatprep.subr.bf16.mxu0 0
  %1255 = vmatpush1.bf16.msra.mxu0 %v943
  %1256 = vmatprep.subr.bf16.mxu0 0
  %1257 = vmatpush1.bf16.msra.mxu0 %v944
  %1258 = vmatprep.subr.bf16.mxu0 0
  %1259 = vmatpush1.bf16.msra.mxu0 %v945
  %1260 = vmatprep.subr.bf16.mxu0 0
  %1261 = vmatpush1.bf16.msra.mxu0 %v946
  %1262 = vmatprep.subr.bf16.mxu0 0
  %1263 = vmatpush1.bf16.msra.mxu0 %v947
  %1264 = vmatprep.subr.bf16.mxu0 0
  %1265 = vmatpush1.bf16.msra.mxu0 %v948
  %1266 = vmatprep.subr.bf16.mxu0 0
  %1267 = vmatpush1.bf16.msra.mxu0 %v949
  %1268 = vmatprep.subr.bf16.mxu0 0
  %1269 = vmatpush1.bf16.msra.mxu0 %v950
  %1270 = vmatprep.subr.bf16.mxu0 0
  %1271 = vmatpush1.bf16.msra.mxu0 %v951
  %1272 = vmatprep.mubr.bf16.mxu0 %v322
  %1273 = vmatmul.mubr.bf16.gmra.mrb[0].mxu0 %v308
  %v1274 = vpop.f32.mrb[0].mxu0
  %v1275 = vadd.f32 %v1235, %v1274
  %v1276 = vpop.f32.mrb[0].mxu0
  %v1277 = vpop.f32.mrb[0].mxu0
  %v1278 = vpop.f32.mrb[0].mxu0
  %1279 = vdwg.mxu0
  %1280 = vmatprep.subr.bf16.mxu0 0
  %1281 = vmatpush1.bf16.msra.mxu0 %v952
  %1282 = vmatprep.subr.bf16.mxu0 0
  %1283 = vmatpush1.bf16.msra.mxu0 %v953
  %1284 = vmatprep.subr.bf16.mxu0 0
  %1285 = vmatpush1.bf16.msra.mxu0 %v954
  %1286 = vmatprep.subr.bf16.mxu0 0
  %1287 = vmatpush1.bf16.msra.mxu0 %v955
  %1288 = vmatprep.subr.bf16.mxu0 0
  %1289 = vmatpush1.bf16.msra.mxu0 %v956
  %1290 = vmatprep.subr.bf16.mxu0 0
  %1291 = vmatpush1.bf16.msra.mxu0 %v957
  %1292 = vmatprep.subr.bf16.mxu0 0
  %1293 = vmatpush1.bf16.msra.mxu0 %v958
  %1294 = vmatprep.subr.bf16.mxu0 0
  %1295 = vmatpush1.bf16.msra.mxu0 %v959
  %1296 = vmatprep.subr.bf16.mxu0 0
  %1297 = vmatpush1.bf16.msra.mxu0 %v960
  %1298 = vmatprep.subr.bf16.mxu0 0
  %1299 = vmatpush1.bf16.msra.mxu0 %v961
  %1300 = vmatprep.subr.bf16.mxu0 0
  %1301 = vmatpush1.bf16.msra.mxu0 %v962
  %1302 = vmatprep.subr.bf16.mxu0 0
  %1303 = vmatpush1.bf16.msra.mxu0 %v963
  %1304 = vmatprep.subr.bf16.mxu0 0
  %1305 = vmatpush1.bf16.msra.mxu0 %v964
  %1306 = vmatprep.subr.bf16.mxu0 0
  %1307 = vmatpush1.bf16.msra.mxu0 %v965
  %1308 = vmatprep.subr.bf16.mxu0 0
  %1309 = vmatpush1.bf16.msra.mxu0 %v966
  %1310 = vmatprep.subr.bf16.mxu0 0
  %1311 = vmatpush1.bf16.msra.mxu0 %v967
  %1312 = vmatprep.mubr.bf16.mxu0 %v326
  %1313 = vmatmul.mubr.bf16.gmra.mrb[0].mxu0 %v324
  %v1314 = vpop.f32.mrb[0].mxu0
  %v1315 = vadd.f32 %v1275, %v1314
  %v1316 = vpop.f32.mrb[0].mxu0
  %v1317 = vpop.f32.mrb[0].mxu0
  %v1318 = vpop.f32.mrb[0].mxu0
  %1319 = vdwg.mxu0
  %1320 = vmatprep.subr.bf16.mxu0 0
  %1321 = vmatpush1.bf16.msra.mxu0 %v968
  %1322 = vmatprep.subr.bf16.mxu0 0
  %1323 = vmatpush1.bf16.msra.mxu0 %v969
  %1324 = vmatprep.subr.bf16.mxu0 0
  %1325 = vmatpush1.bf16.msra.mxu0 %v970
  %1326 = vmatprep.subr.bf16.mxu0 0
  %1327 = vmatpush1.bf16.msra.mxu0 %v971
  %1328 = vmatprep.subr.bf16.mxu0 0
  %1329 = vmatpush1.bf16.msra.mxu0 %v972
  %1330 = vmatprep.subr.bf16.mxu0 0
  %1331 = vmatpush1.bf16.msra.mxu0 %v973
  %1332 = vmatprep.subr.bf16.mxu0 0
  %1333 = vmatpush1.bf16.msra.mxu0 %v974
  %1334 = vmatprep.subr.bf16.mxu0 0
  %1335 = vmatpush1.bf16.msra.mxu0 %v975
  %1336 = vmatprep.subr.bf16.mxu0 0
  %1337 = vmatpush1.bf16.msra.mxu0 %v976
  %1338 = vmatprep.subr.bf16.mxu0 0
  %1339 = vmatpush1.bf16.msra.mxu0 %v977
  %1340 = vmatprep.subr.bf16.mxu0 0
  %1341 = vmatpush1.bf16.msra.mxu0 %v978
  %1342 = vmatprep.subr.bf16.mxu0 0
  %1343 = vmatpush1.bf16.msra.mxu0 %v979
  %1344 = vmatprep.subr.bf16.mxu0 0
  %1345 = vmatpush1.bf16.msra.mxu0 %v980
  %1346 = vmatprep.subr.bf16.mxu0 0
  %1347 = vmatpush1.bf16.msra.mxu0 %v981
  %1348 = vmatprep.subr.bf16.mxu0 0
  %1349 = vmatpush1.bf16.msra.mxu0 %v982
  %1350 = vmatprep.subr.bf16.mxu0 0
  %1351 = vmatpush1.bf16.msra.mxu0 %v983
  %1352 = vmatprep.mubr.bf16.mxu0 %v364
  %1353 = vmatmul.mubr.bf16.gmra.mrb[0].mxu0 %v350
  %v1354 = vpop.f32.mrb[0].mxu0
  %v1355 = vadd.f32 %v1315, %v1354
  %v1356 = vpop.f32.mrb[0].mxu0
  %v1357 = vpop.f32.mrb[0].mxu0
  %v1358 = vpop.f32.mrb[0].mxu0
  %1359 = vdwg.mxu0
  %1360 = vmatprep.subr.bf16.mxu0 0
  %1361 = vmatpush1.bf16.msra.mxu0 %v984
  %1362 = vmatprep.subr.bf16.mxu0 0
  %1363 = vmatpush1.bf16.msra.mxu0 %v985
  %1364 = vmatprep.subr.bf16.mxu0 0
  %1365 = vmatpush1.bf16.msra.mxu0 %v986
  %1366 = vmatprep.subr.bf16.mxu0 0
  %1367 = vmatpush1.bf16.msra.mxu0 %v987
  %1368 = vmatprep.subr.bf16.mxu0 0
  %1369 = vmatpush1.bf16.msra.mxu0 %v988
  %1370 = vmatprep.subr.bf16.mxu0 0
  %1371 = vmatpush1.bf16.msra.mxu0 %v989
  %1372 = vmatprep.subr.bf16.mxu0 0
  %1373 = vmatpush1.bf16.msra.mxu0 %v990
  %1374 = vmatprep.subr.bf16.mxu0 0
  %1375 = vmatpush1.bf16.msra.mxu0 %v991
  %1376 = vmatprep.subr.bf16.mxu0 0
  %1377 = vmatpush1.bf16.msra.mxu0 %v992
  %1378 = vmatprep.subr.bf16.mxu0 0
  %1379 = vmatpush1.bf16.msra.mxu0 %v993
  %1380 = vmatprep.subr.bf16.mxu0 0
  %1381 = vmatpush1.bf16.msra.mxu0 %v994
  %1382 = vmatprep.subr.bf16.mxu0 0
  %1383 = vmatpush1.bf16.msra.mxu0 %v995
  %1384 = vmatprep.subr.bf16.mxu0 0
  %1385 = vmatpush1.bf16.msra.mxu0 %v996
  %1386 = vmatprep.subr.bf16.mxu0 0
  %1387 = vmatpush1.bf16.msra.mxu0 %v997
  %1388 = vmatprep.subr.bf16.mxu0 0
  %1389 = vmatpush1.bf16.msra.mxu0 %v998
  %1390 = vmatprep.subr.bf16.mxu0 0
  %1391 = vmatpush1.bf16.msra.mxu0 %v999
  %1392 = vmatprep.mubr.bf16.mxu0 %v374
  %1393 = vmatmul.mubr.bf16.gmra.mrb[0].mxu0 %v372
  %v1394 = vpop.f32.mrb[0].mxu0
  %v1395 = vadd.f32 %v1355, %v1394
  %v1396 = vpop.f32.mrb[0].mxu0
  %v1397 = vpop.f32.mrb[0].mxu0
  %v1398 = vpop.f32.mrb[0].mxu0
  %1399 = vdwg.mxu0
  %1400 = vmatprep.subr.bf16.mxu0 0
  %1401 = vmatpush1.bf16.msra.mxu0 %v1000
  %1402 = vmatprep.subr.bf16.mxu0 0
  %1403 = vmatpush1.bf16.msra.mxu0 %v1001
  %1404 = vmatprep.subr.bf16.mxu0 0
  %1405 = vmatpush1.bf16.msra.mxu0 %v1002
  %1406 = vmatprep.subr.bf16.mxu0 0
  %1407 = vmatpush1.bf16.msra.mxu0 %v1003
  %1408 = vmatprep.subr.bf16.mxu0 0
  %1409 = vmatpush1.bf16.msra.mxu0 %v1004
  %1410 = vmatprep.subr.bf16.mxu0 0
  %1411 = vmatpush1.bf16.msra.mxu0 %v1005
  %1412 = vmatprep.subr.bf16.mxu0 0
  %1413 = vmatpush1.bf16.msra.mxu0 %v1006
  %1414 = vmatprep.subr.bf16.mxu0 0
  %1415 = vmatpush1.bf16.msra.mxu0 %v1007
  %1416 = vmatprep.subr.bf16.mxu0 0
  %1417 = vmatpush1.bf16.msra.mxu0 %v1008
  %1418 = vmatprep.subr.bf16.mxu0 0
  %1419 = vmatpush1.bf16.msra.mxu0 %v1009
  %1420 = vmatprep.subr.bf16.mxu0 0
  %1421 = vmatpush1.bf16.msra.mxu0 %v1010
  %1422 = vmatprep.subr.bf16.mxu0 0
  %1423 = vmatpush1.bf16.msra.mxu0 %v1011
  %1424 = vmatprep.subr.bf16.mxu0 0
  %1425 = vmatpush1.bf16.msra.mxu0 %v1012
  %1426 = vmatprep.subr.bf16.mxu0 0
  %1427 = vmatpush1.bf16.msra.mxu0 %v1013
  %1428 = vmatprep.subr.bf16.mxu0 0
  %1429 = vmatpush1.bf16.msra.mxu0 %v1014
  %1430 = vmatprep.subr.bf16.mxu0 0
  %1431 = vmatpush1.bf16.msra.mxu0 %v1015
  %1432 = vmatprep.mubr.bf16.mxu0 %v371
  %1433 = vmatmul.mubr.bf16.gmra.mrb[0].mxu0 %v357
  %v1434 = vpop.f32.mrb[0].mxu0
  %v1435 = vadd.f32 %v1395, %v1434
  %v1436 = vpop.f32.mrb[0].mxu0
  %v1437 = vpop.f32.mrb[0].mxu0
  %v1438 = vpop.f32.mrb[0].mxu0
  %1439 = vdwg.mxu0
  %1440 = vmatprep.subr.bf16.mxu0 0
  %1441 = vmatpush1.bf16.msra.mxu0 %v1016
  %1442 = vmatprep.subr.bf16.mxu0 0
  %1443 = vmatpush1.bf16.msra.mxu0 %v1017
  %1444 = vmatprep.subr.bf16.mxu0 0
  %1445 = vmatpush1.bf16.msra.mxu0 %v1018
  %1446 = vmatprep.subr.bf16.mxu0 0
  %1447 = vmatpush1.bf16.msra.mxu0 %v1019
  %1448 = vmatprep.subr.bf16.mxu0 0
  %1449 = vmatpush1.bf16.msra.mxu0 %v1020
  %1450 = vmatprep.subr.bf16.mxu0 0
  %1451 = vmatpush1.bf16.msra.mxu0 %v1021
  %1452 = vmatprep.subr.bf16.mxu0 0
  %1453 = vmatpush1.bf16.msra.mxu0 %v1022
  %1454 = vmatprep.subr.bf16.mxu0 0
  %1455 = vmatpush1.bf16.msra.mxu0 %v1023
  %1456 = vmatprep.subr.bf16.mxu0 0
  %1457 = vmatpush1.bf16.msra.mxu0 %v1024
  %1458 = vmatprep.subr.bf16.mxu0 0
  %1459 = vmatpush1.bf16.msra.mxu0 %v1025
  %1460 = vmatprep.subr.bf16.mxu0 0
  %1461 = vmatpush1.bf16.msra.mxu0 %v1026
  %1462 = vmatprep.subr.bf16.mxu0 0
  %1463 = vmatpush1.bf16.msra.mxu0 %v1027
  %1464 = vmatprep.subr.bf16.mxu0 0
  %1465 = vmatpush1.bf16.msra.mxu0 %v1028
  %1466 = vmatprep.subr.bf16.mxu0 0
  %1467 = vmatpush1.bf16.msra.mxu0 %v1029
  %1468 = vmatprep.subr.bf16.mxu0 0
  %1469 = vmatpush1.bf16.msra.mxu0 %v1030
  %1470 = vmatprep.subr.bf16.mxu0 0
  %1471 = vmatpush1.bf16.msra.mxu0 %v1031
  %1472 = vmatprep.mubr.bf16.mxu0 %v375
  %1473 = vmatmul.mubr.bf16.gmra.mrb[0].mxu0 %v373
  %v1474 = vpop.f32.mrb[0].mxu0
  %v1475 = vadd.f32 %v1435, %v1474
  %v1476 = vpop.f32.mrb[0].mxu0
  %v1477 = vpop.f32.mrb[0].mxu0
  %v1478 = vpop.f32.mrb[0].mxu0
  %1479 = vdwg.mxu0
  %v1480 = vadd.f32 %v17, %v1475
  %1481 = vst [vmem:[#allocation2] sm:$0x3] %v1480
  // Predicated region
  $region14: #{fwd.13} parent=0 // pred_check
    %p1482 = pneg %p12
  $region15: #{fwd.13} parent=0 // pred_check_branch
    %1484 = sbr.rel (%p1482) target = $region17
  $region16: #{fwd.13} parent=0 // pred_region
    %v1485 = vld [vmem:[#allocation2] sm:$0x3]
    %vm1486 = vcmask 1041408
    %v1487 = vsel %vm1486, %v1485, 0.0
    %v1488 = vrot.slane %v1487, 4
    %v1489 = vadd.f32 %v1487, %v1488
    %v1490 = vrot.slane %v1489, 2
    %v1491 = vadd.f32 %v1489, %v1490
    %v1492 = vrot.slane %v1491, 1
    %v1493 = vadd.f32 %v1491, %v1492
    %v1494 = vrcp.pop 2.0
    %v1495 = vmul.f32 %v1493, %v1494
    %v1496 = vadd.f32 %v1495, 0.0
    %v1497 = vmul.f32 %v1485, %v1485
    %v1498 = vsel %vm1486, %v1497, 0.0
    %v1499 = vrot.slane %v1498, 4
    %v1500 = vadd.f32 %v1498, %v1499
    %v1501 = vrot.slane %v1500, 2
    %v1502 = vadd.f32 %v1500, %v1501
    %v1503 = vrot.slane %v1502, 1
    %v1504 = vadd.f32 %v1502, %v1503
    %v1505 = vmul.f32 %v1504, %v1494
    %v1506 = vadd.f32 %v1505, 0.0
    %v1507 = vmul.f32 %v1496, %v1496
    %v1508 = vsub.f32 %v1506, %v1507
    %v1509 = vmax.f32 %v1508, 0.0
    %v1510 = vsub.f32 %v1485, %v1496
    %v1511 = vadd.f32 %v1509, 1e-05
    %v1512 = vrsqrt.pop %v1511
    %v1513 = vmul.f32 %v1510, %v1512
    %vm1514 = vcmp.ge.f32.partialorder %v1513, 0.0
    %v1515 = vmul.f32 %v1513, 0.2
    %v1516 = vsel %vm1514, %v1513, %v1515
    %1517 = vst [vmem:[%s2] sm:$0x3] %v1516
  $region17: #{fwd.13} parent=0 // pred_fallthru
    _
  // Predicated region
  $region18: #{fwd.13} parent=0 // pred_check
    _
  $region19: #{fwd.13} parent=0 // pred_check_branch
    %1519 = sbr.rel (0) target = $region21
  $region20: #{fwd.13} parent=0 // pred_region
    _
  $region21: #{fwd.13} parent=0 // pred_fallthru
    _
  // Predicated region
  $region22: #{fwd.13} parent=0 // pred_check
    _
  $region23: #{fwd.13} parent=0 // pred_check_branch
    %1521 = sbr.rel (0) target = $region25
  $region24: #{fwd.13} parent=0 // pred_region
    _
  $region25: #{fwd.13} parent=0 // pred_fallthru
    _

// kernel: fwd.16
$region0: #{fwd.16}
  #allocation0 [shape = 'u32[]', space=smem, size = 0x4, offset = 0x4, fixed_abs, tag = 'smem constant byte address 0x4 - core index']
  #allocation1 [shape = 'u32[144,128]{1,0:T(1,128)}', space=vmem, size = 0x12000, scoped, tag = 'internal scratch']
  #allocation2 [shape = 'f32[4,2,128]{2,1,0:T(2,128)}', space=vmem, size = 0x1000, scoped, tag = 'scratch operand']
  %s0 = inlined_call_operand.vmem [shape: bf16[4,2,512], index: 0, kind: input, shape index: {}]
  %s1 = inlined_call_operand.vmem [shape: bf16[4,512,128], index: 1, kind: input, shape index: {}]
  %s2 = inlined_call_operand.vmem [shape: f32[4,2,128], index: 2, kind: output, shape index: {}]
  %s3 = sld [smem:[#allocation0]]
  $region26: #{fwd.16} parent=0
    _
  %s5 = ssub.s32 1, %s3
  %s6 = scalar_select 0, %s5, %s3
  // Predicated region
  $region2: #{fwd.16} parent=0 // pred_check
    _
  $region3: #{fwd.16} parent=0 // pred_check_branch
    %8 = sbr.rel (0) target = $region5
  $region4: #{fwd.16} parent=0 // pred_region
    _
  $region5: #{fwd.16} parent=0 // pred_fallthru
    _
  // Predicated region
  $region6: #{fwd.16} parent=0 // pred_check
    _
  $region7: #{fwd.16} parent=0 // pred_check_branch
    %10 = sbr.rel (0) target = $region9
  $region8: #{fwd.16} parent=0 // pred_region
    _
  $region9: #{fwd.16} parent=0 // pred_fallthru
    _
  %p12 = scmp.eq.s32.totalorder 0, 0
  // Predicated region
  $region10: #{fwd.16} parent=0 // pred_check
    %p13 = pneg %p12
  $region11: #{fwd.16} parent=0 // pred_check_branch
    %15 = sbr.rel (%p13) target = $region13
  $region12: #{fwd.16} parent=0 // pred_region
    %16 = vst [vmem:[#allocation2] sm:$0x3] 0.0
    %17 = vst [vmem:[#allocation2 + $0x2] sm:$0x3] 0.0
    %18 = vst [vmem:[#allocation2 + $0x4] sm:$0x3] 0.0
    %19 = vst [vmem:[#allocation2 + $0x6] sm:$0x3] 0.0
  $region13: #{fwd.16} parent=0 // pred_fallthru
    _
  %v20 = vld [vmem:[#allocation2] sm:$0x3]
  %v21 = vld [vmem:[%s0] sm:$0xf]
  %v22 = vld [vmem:[%s1] sm:$0xf]
  %v23 = vld [vmem:[%s1 + $0x4] sm:$0xf]
  %v24 = vld [vmem:[%s1 + $0x8] sm:$0xf]
  %v25 = vld [vmem:[%s1 + $0xc] sm:$0xf]
  %v26 = vld [vmem:[%s1 + $0x10] sm:$0xf]
  %v27 = vld [vmem:[%s1 + $0x14] sm:$0xf]
  %v28 = vld [vmem:[%s1 + $0x18] sm:$0xf]
  %v29 = vld [vmem:[%s1 + $0x1c] sm:$0xf]
  %v30 = vld [vmem:[%s1 + $0x20] sm:$0xf]
  %v31 = vld [vmem:[%s1 + $0x24] sm:$0xf]
  %v32 = vld [vmem:[%s1 + $0x28] sm:$0xf]
  %v33 = vld [vmem:[%s1 + $0x2c] sm:$0xf]
  %v34 = vld [vmem:[%s1 + $0x30] sm:$0xf]
  %v35 = vld [vmem:[%s1 + $0x34] sm:$0xf]
  %v36 = vld [vmem:[%s1 + $0x38] sm:$0xf]
  %v37 = vld [vmem:[%s1 + $0x3c] sm:$0xf]
  %v38 = vld [vmem:[%s1 + $0x40] sm:$0xf]
  %v39 = vld [vmem:[%s1 + $0x44] sm:$0xf]
  %v40 = vld [vmem:[%s1 + $0x48] sm:$0xf]
  %v41 = vld [vmem:[%s1 + $0x4c] sm:$0xf]
  %v42 = vld [vmem:[%s1 + $0x50] sm:$0xf]
  %v43 = vld [vmem:[%s1 + $0x54] sm:$0xf]
  %v44 = vld [vmem:[%s1 + $0x58] sm:$0xf]
  %v45 = vld [vmem:[%s1 + $0x5c] sm:$0xf]
  %v46 = vld [vmem:[%s1 + $0x60] sm:$0xf]
  %v47 = vld [vmem:[%s1 + $0x64] sm:$0xf]
  %v48 = vld [vmem:[%s1 + $0x68] sm:$0xf]
  %v49 = vld [vmem:[%s1 + $0x6c] sm:$0xf]
  %v50 = vld [vmem:[%s1 + $0x70] sm:$0xf]
  %v51 = vld [vmem:[%s1 + $0x74] sm:$0xf]
  %v52 = vld [vmem:[%s1 + $0x78] sm:$0xf]
  %v53 = vld [vmem:[%s1 + $0x7c] sm:$0xf]
  %v54 = vld [vmem:[%s1 + $0x80] sm:$0xf]
  %v55 = vld [vmem:[%s1 + $0x84] sm:$0xf]
  %v56 = vld [vmem:[%s1 + $0x88] sm:$0xf]
  %v57 = vld [vmem:[%s1 + $0x8c] sm:$0xf]
  %v58 = vld [vmem:[%s1 + $0x90] sm:$0xf]
  %v59 = vld [vmem:[%s1 + $0x94] sm:$0xf]
  %v60 = vld [vmem:[%s1 + $0x98] sm:$0xf]
  %v61 = vld [vmem:[%s1 + $0x9c] sm:$0xf]
  %v62 = vld [vmem:[%s1 + $0xa0] sm:$0xf]
  %v63 = vld [vmem:[%s1 + $0xa4] sm:$0xf]
  %v64 = vld [vmem:[%s1 + $0xa8] sm:$0xf]
  %v65 = vld [vmem:[%s1 + $0xac] sm:$0xf]
  %v66 = vld [vmem:[%s1 + $0xb0] sm:$0xf]
  %v67 = vld [vmem:[%s1 + $0xb4] sm:$0xf]
  %v68 = vld [vmem:[%s1 + $0xb8] sm:$0xf]
  %v69 = vld [vmem:[%s1 + $0xbc] sm:$0xf]
  %v70 = vld [vmem:[%s1 + $0xc0] sm:$0xf]
  %v71 = vld [vmem:[%s1 + $0xc4] sm:$0xf]
  %v72 = vld [vmem:[%s1 + $0xc8] sm:$0xf]
  %v73 = vld [vmem:[%s1 + $0xcc] sm:$0xf]
  %v74 = vld [vmem:[%s1 + $0xd0] sm:$0xf]
  %v75 = vld [vmem:[%s1 + $0xd4] sm:$0xf]
  %v76 = vld [vmem:[%s1 + $0xd8] sm:$0xf]
  %v77 = vld [vmem:[%s1 + $0xdc] sm:$0xf]
  %v78 = vld [vmem:[%s1 + $0xe0] sm:$0xf]
  %v79 = vld [vmem:[%s1 + $0xe4] sm:$0xf]
  %v80 = vld [vmem:[%s1 + $0xe8] sm:$0xf]
  %v81 = vld [vmem:[%s1 + $0xec] sm:$0xf]
  %v82 = vld [vmem:[%s1 + $0xf0] sm:$0xf]
  %v83 = vld [vmem:[%s1 + $0xf4] sm:$0xf]
  %v84 = vld [vmem:[%s1 + $0xf8] sm:$0xf]
  %v85 = vld [vmem:[%s1 + $0xfc] sm:$0xf]
  %v88 = vunpack.c.l.s4 1966171168
  %v89 = vunpack.c.0.s8 %v88
  %v90 = vlaneseq
  %v91 = vshrl.u32 %v90, 7
  %v92 = vsub.s32 %v89, %v91
  %v93 = vrot.slane %v21, %v92
  %v94 = vcombine.high %v93, %v93
  %v96 = vunpack.c.l.s4 1966171168
  %v97 = vunpack.c.0.s8 %v96
  %v98 = vlaneseq
  %v99 = vshrl.u32 %v98, 7
  %v100 = vsub.s32 %v97, %v99
  %v101 = vrot.slane %v93, %v100
  %v103 = vunpack.c.l.s4 1966171168
  %v104 = vunpack.c.0.s8 %v103
  %v105 = vlaneseq
  %v106 = vshrl.u32 %v105, 7
  %v107 = vsub.s32 %v104, %v106
  %v108 = vrot.slane %v94, %v107
  %v109 = vcombine.high %v101, %v101
  %v110 = vcombine.high %v108, %v108
  %v179 = vunpack.c.l.b16 %v22
  %v180 = vunpack.c.l.b16 %v23
  %v181 = vunpack.c.l.b16 %v24
  %v182 = vunpack.c.l.b16 %v25
  %v183 = vunpack.c.l.b16 %v26
  %v184 = vunpack.c.l.b16 %v27
  %v185 = vunpack.c.l.b16 %v28
  %v186 = vunpack.c.l.b16 %v29
  %v187 = vunpack.c.l.b16 %v30
  %v188 = vunpack.c.l.b16 %v31
  %v189 = vunpack.c.l.b16 %v32
  %v190 = vunpack.c.l.b16 %v33
  %v191 = vunpack.c.l.b16 %v34
  %v192 = vunpack.c.l.b16 %v35
  %v193 = vunpack.c.l.b16 %v36
  %v194 = vunpack.c.l.b16 %v37
  %v195 = vunpack.c.l.b16 %v38
  %v196 = vunpack.c.l.b16 %v39
  %v197 = vunpack.c.l.b16 %v40
  %v198 = vunpack.c.l.b16 %v41
  %v199 = vunpack.c.l.b16 %v42
  %v200 = vunpack.c.l.b16 %v43
  %v201 = vunpack.c.l.b16 %v44
  %v202 = vunpack.c.l.b16 %v45
  %v203 = vunpack.c.l.b16 %v46
  %v204 = vunpack.c.l.b16 %v47
  %v205 = vunpack.c.l.b16 %v48
  %v206 = vunpack.c.l.b16 %v49
  %v207 = vunpack.c.l.b16 %v50
  %v208 = vunpack.c.l.b16 %v51
  %v209 = vunpack.c.l.b16 %v52
  %v210 = vunpack.c.l.b16 %v53
  %v211 = vunpack.c.l.b16 %v54
  %v212 = vunpack.c.l.b16 %v55
  %v213 = vunpack.c.l.b16 %v56
  %v214 = vunpack.c.l.b16 %v57
  %v215 = vunpack.c.l.b16 %v58
  %v216 = vunpack.c.l.b16 %v59
  %v217 = vunpack.c.l.b16 %v60
  %v218 = vunpack.c.l.b16 %v61
  %v219 = vunpack.c.l.b16 %v62
  %v220 = vunpack.c.l.b16 %v63
  %v221 = vunpack.c.l.b16 %v64
  %v222 = vunpack.c.l.b16 %v65
  %v223 = vunpack.c.l.b16 %v66
  %v224 = vunpack.c.l.b16 %v67
  %v225 = vunpack.c.l.b16 %v68
  %v226 = vunpack.c.l.b16 %v69
  %v227 = vunpack.c.l.b16 %v70
  %v228 = vunpack.c.l.b16 %v71
  %v229 = vunpack.c.l.b16 %v72
  %v230 = vunpack.c.l.b16 %v73
  %v231 = vunpack.c.l.b16 %v74
  %v232 = vunpack.c.l.b16 %v75
  %v233 = vunpack.c.l.b16 %v76
  %v234 = vunpack.c.l.b16 %v77
  %v235 = vunpack.c.l.b16 %v78
  %v236 = vunpack.c.l.b16 %v79
  %v237 = vunpack.c.l.b16 %v80
  %v238 = vunpack.c.l.b16 %v81
  %v239 = vunpack.c.l.b16 %v82
  %v240 = vunpack.c.l.b16 %v83
  %v241 = vunpack.c.l.b16 %v84
  %v242 = vunpack.c.l.b16 %v85
  %v243 = vpack.c.b16 %v180, %v179
  %v244 = vpack.c.b16 %v182, %v181
  %v245 = vpack.c.b16 %v184, %v183
  %v246 = vpack.c.b16 %v186, %v185
  %v247 = vpack.c.b16 %v188, %v187
  %v248 = vpack.c.b16 %v190, %v189
  %v249 = vpack.c.b16 %v192, %v191
  %v250 = vpack.c.b16 %v194, %v193
  %v251 = vpack.c.b16 %v196, %v195
  %v252 = vpack.c.b16 %v198, %v197
  %v253 = vpack.c.b16 %v200, %v199
  %v254 = vpack.c.b16 %v202, %v201
  %v255 = vpack.c.b16 %v204, %v203
  %v256 = vpack.c.b16 %v206, %v205
  %v257 = vpack.c.b16 %v208, %v207
  %v258 = vpack.c.b16 %v210, %v209
  %v259 = vpack.c.b16 %v212, %v211
  %v260 = vpack.c.b16 %v214, %v213
  %v261 = vpack.c.b16 %v216, %v215
  %v262 = vpack.c.b16 %v218, %v217
  %v263 = vpack.c.b16 %v220, %v219
  %v264 = vpack.c.b16 %v222, %v221
  %v265 = vpack.c.b16 %v224, %v223
  %v266 = vpack.c.b16 %v226, %v225
  %v267 = vpack.c.b16 %v228, %v227
  %v268 = vpack.c.b16 %v230, %v229
  %v269 = vpack.c.b16 %v232, %v231
  %v270 = vpack.c.b16 %v234, %v233
  %v271 = vpack.c.b16 %v236, %v235
  %v272 = vpack.c.b16 %v238, %v237
  %v273 = vpack.c.b16 %v240, %v239
  %v274 = vpack.c.b16 %v242, %v241
  %307 = vmatprep.subr.bf16.mxu0 0
  %308 = vmatpush1.bf16.msra.mxu0 %v243
  %309 = vmatprep.subr.bf16.mxu0 0
  %310 = vmatpush1.bf16.msra.mxu0 %v244
  %311 = vmatprep.subr.bf16.mxu0 0
  %312 = vmatpush1.bf16.msra.mxu0 %v245
  %313 = vmatprep.subr.bf16.mxu0 0
  %314 = vmatpush1.bf16.msra.mxu0 %v246
  %315 = vmatprep.subr.bf16.mxu0 0
  %316 = vmatpush1.bf16.msra.mxu0 %v247
  %317 = vmatprep.subr.bf16.mxu0 0
  %318 = vmatpush1.bf16.msra.mxu0 %v248
  %319 = vmatprep.subr.bf16.mxu0 0
  %320 = vmatpush1.bf16.msra.mxu0 %v249
  %321 = vmatprep.subr.bf16.mxu0 0
  %322 = vmatpush1.bf16.msra.mxu0 %v250
  %323 = vmatprep.subr.bf16.mxu0 0
  %324 = vmatpush1.bf16.msra.mxu0 %v251
  %325 = vmatprep.subr.bf16.mxu0 0
  %326 = vmatpush1.bf16.msra.mxu0 %v252
  %327 = vmatprep.subr.bf16.mxu0 0
  %328 = vmatpush1.bf16.msra.mxu0 %v253
  %329 = vmatprep.subr.bf16.mxu0 0
  %330 = vmatpush1.bf16.msra.mxu0 %v254
  %331 = vmatprep.subr.bf16.mxu0 0
  %332 = vmatpush1.bf16.msra.mxu0 %v255
  %333 = vmatprep.subr.bf16.mxu0 0
  %334 = vmatpush1.bf16.msra.mxu0 %v256
  %335 = vmatprep.subr.bf16.mxu0 0
  %336 = vmatpush1.bf16.msra.mxu0 %v257
  %337 = vmatprep.subr.bf16.mxu0 0
  %338 = vmatpush1.bf16.msra.mxu0 %v258
  %339 = vmatprep.mubr.bf16.mxu0 %v108
  %340 = vmatmul.mubr.bf16.gmra.mrb[0].mxu0 %v101
  %v341 = vpop.f32.mrb[0].mxu0
  %v342 = vadd.f32 0.0, %v341
  %v343 = vpop.f32.mrb[0].mxu0
  %v344 = vpop.f32.mrb[0].mxu0
  %v345 = vpop.f32.mrb[0].mxu0
  %346 = vdwg.mxu0
  %347 = vmatprep.subr.bf16.mxu0 0
  %348 = vmatpush1.bf16.msra.mxu0 %v259
  %349 = vmatprep.subr.bf16.mxu0 0
  %350 = vmatpush1.bf16.msra.mxu0 %v260
  %351 = vmatprep.subr.bf16.mxu0 0
  %352 = vmatpush1.bf16.msra.mxu0 %v261
  %353 = vmatprep.subr.bf16.mxu0 0
  %354 = vmatpush1.bf16.msra.mxu0 %v262
  %355 = vmatprep.subr.bf16.mxu0 0
  %356 = vmatpush1.bf16.msra.mxu0 %v263
  %357 = vmatprep.subr.bf16.mxu0 0
  %358 = vmatpush1.bf16.msra.mxu0 %v264
  %359 = vmatprep.subr.bf16.mxu0 0
  %360 = vmatpush1.bf16.msra.mxu0 %v265
  %361 = vmatprep.subr.bf16.mxu0 0
  %362 = vmatpush1.bf16.msra.mxu0 %v266
  %363 = vmatprep.subr.bf16.mxu0 0
  %364 = vmatpush1.bf16.msra.mxu0 %v267
  %365 = vmatprep.subr.bf16.mxu0 0
  %366 = vmatpush1.bf16.msra.mxu0 %v268
  %367 = vmatprep.subr.bf16.mxu0 0
  %368 = vmatpush1.bf16.msra.mxu0 %v269
  %369 = vmatprep.subr.bf16.mxu0 0
  %370 = vmatpush1.bf16.msra.mxu0 %v270
  %371 = vmatprep.subr.bf16.mxu0 0
  %372 = vmatpush1.bf16.msra.mxu0 %v271
  %373 = vmatprep.subr.bf16.mxu0 0
  %374 = vmatpush1.bf16.msra.mxu0 %v272
  %375 = vmatprep.subr.bf16.mxu0 0
  %376 = vmatpush1.bf16.msra.mxu0 %v273
  %377 = vmatprep.subr.bf16.mxu0 0
  %378 = vmatpush1.bf16.msra.mxu0 %v274
  %379 = vmatprep.mubr.bf16.mxu0 %v110
  %380 = vmatmul.mubr.bf16.gmra.mrb[0].mxu0 %v109
  %v381 = vpop.f32.mrb[0].mxu0
  %v382 = vadd.f32 %v342, %v381
  %v383 = vpop.f32.mrb[0].mxu0
  %v384 = vpop.f32.mrb[0].mxu0
  %v385 = vpop.f32.mrb[0].mxu0
  %386 = vdwg.mxu0
  %v387 = vadd.f32 %v20, %v382
  %388 = vst [vmem:[#allocation2] sm:$0x3] %v387
  %s389 = scalar_lea.vmem [#allocation2], 2
  %v390 = vld [vmem:[%s389] sm:$0x3]
  %s391 = scalar_lea.vmem %s0, 4
  %v392 = vld [vmem:[%s391] sm:$0xf]
  %s393 = scalar_lea.vmem %s1, 256
  %v394 = vld [vmem:[%s393] sm:$0xf]
  %v395 = vld [vmem:[%s393 + $0x4] sm:$0xf]
  %v396 = vld [vmem:[%s393 + $0x8] sm:$0xf]
  %v397 = vld [vmem:[%s393 + $0xc] sm:$0xf]
  %v398 = vld [vmem:[%s393 + $0x10] sm:$0xf]
  %v399 = vld [vmem:[%s393 + $0x14] sm:$0xf]
  %v400 = vld [vmem:[%s393 + $0x18] sm:$0xf]
  %v401 = vld [vmem:[%s393 + $0x1c] sm:$0xf]
  %v402 = vld [vmem:[%s393 + $0x20] sm:$0xf]
  %v403 = vld [vmem:[%s393 + $0x24] sm:$0xf]
  %v404 = vld [vmem:[%s393 + $0x28] sm:$0xf]
  %v405 = vld [vmem:[%s393 + $0x2c] sm:$0xf]
  %v406 = vld [vmem:[%s393 + $0x30] sm:$0xf]
  %v407 = vld [vmem:[%s393 + $0x34] sm:$0xf]
  %v408 = vld [vmem:[%s393 + $0x38] sm:$0xf]
  %v409 = vld [vmem:[%s393 + $0x3c] sm:$0xf]
  %v410 = vld [vmem:[%s393 + $0x40] sm:$0xf]
  %v411 = vld [vmem:[%s393 + $0x44] sm:$0xf]
  %v412 = vld [vmem:[%s393 + $0x48] sm:$0xf]
  %v413 = vld [vmem:[%s393 + $0x4c] sm:$0xf]
  %v414 = vld [vmem:[%s393 + $0x50] sm:$0xf]
  %v415 = vld [vmem:[%s393 + $0x54] sm:$0xf]
  %v416 = vld [vmem:[%s393 + $0x58] sm:$0xf]
  %v417 = vld [vmem:[%s393 + $0x5c] sm:$0xf]
  %v418 = vld [vmem:[%s393 + $0x60] sm:$0xf]
  %v419 = vld [vmem:[%s393 + $0x64] sm:$0xf]
  %v420 = vld [vmem:[%s393 + $0x68] sm:$0xf]
  %v421 = vld [vmem:[%s393 + $0x6c] sm:$0xf]
  %v422 = vld [vmem:[%s393 + $0x70] sm:$0xf]
  %v423 = vld [vmem:[%s393 + $0x74] sm:$0xf]
  %v424 = vld [vmem:[%s393 + $0x78] sm:$0xf]
  %v425 = vld [vmem:[%s393 + $0x7c] sm:$0xf]
  %v426 = vld [vmem:[%s393 + $0x80] sm:$0xf]
  %v427 = vld [vmem:[%s393 + $0x84] sm:$0xf]
  %v428 = vld [vmem:[%s393 + $0x88] sm:$0xf]
  %v429 = vld [vmem:[%s393 + $0x8c] sm:$0xf]
  %v430 = vld [vmem:[%s393 + $0x90] sm:$0xf]
  %v431 = vld [vmem:[%s393 + $0x94] sm:$0xf]
  %v432 = vld [vmem:[%s393 + $0x98] sm:$0xf]
  %v433 = vld [vmem:[%s393 + $0x9c] sm:$0xf]
  %v434 = vld [vmem:[%s393 + $0xa0] sm:$0xf]
  %v435 = vld [vmem:[%s393 + $0xa4] sm:$0xf]
  %v436 = vld [vmem:[%s393 + $0xa8] sm:$0xf]
  %v437 = vld [vmem:[%s393 + $0xac] sm:$0xf]
  %v438 = vld [vmem:[%s393 + $0xb0] sm:$0xf]
  %v439 = vld [vmem:[%s393 + $0xb4] sm:$0xf]
  %v440 = vld [vmem:[%s393 + $0xb8] sm:$0xf]
  %v441 = vld [vmem:[%s393 + $0xbc] sm:$0xf]
  %v442 = vld [vmem:[%s393 + $0xc0] sm:$0xf]
  %v443 = vld [vmem:[%s393 + $0xc4] sm:$0xf]
  %v444 = vld [vmem:[%s393 + $0xc8] sm:$0xf]
  %v445 = vld [vmem:[%s393 + $0xcc] sm:$0xf]
  %v446 = vld [vmem:[%s393 + $0xd0] sm:$0xf]
  %v447 = vld [vmem:[%s393 + $0xd4] sm:$0xf]
  %v448 = vld [vmem:[%s393 + $0xd8] sm:$0xf]
  %v449 = vld [vmem:[%s393 + $0xdc] sm:$0xf]
  %v450 = vld [vmem:[%s393 + $0xe0] sm:$0xf]
  %v451 = vld [vmem:[%s393 + $0xe4] sm:$0xf]
  %v452 = vld [vmem:[%s393 + $0xe8] sm:$0xf]
  %v453 = vld [vmem:[%s393 + $0xec] sm:$0xf]
  %v454 = vld [vmem:[%s393 + $0xf0] sm:$0xf]
  %v455 = vld [vmem:[%s393 + $0xf4] sm:$0xf]
  %v456 = vld [vmem:[%s393 + $0xf8] sm:$0xf]
  %v457 = vld [vmem:[%s393 + $0xfc] sm:$0xf]
  %v460 = vunpack.c.l.s4 1966171168
  %v461 = vunpack.c.0.s8 %v460
  %v462 = vlaneseq
  %v463 = vshrl.u32 %v462, 7
  %v464 = vsub.s32 %v461, %v463
  %v465 = vrot.slane %v392, %v464
  %v466 = vcombine.high %v465, %v465
  %v468 = vunpack.c.l.s4 1966171168
  %v469 = vunpack.c.0.s8 %v468
  %v470 = vlaneseq
  %v471 = vshrl.u32 %v470, 7
  %v472 = vsub.s32 %v469, %v471
  %v473 = vrot.slane %v465, %v472
  %v475 = vunpack.c.l.s4 1966171168
  %v476 = vunpack.c.0.s8 %v475
  %v477 = vlaneseq
  %v478 = vshrl.u32 %v477, 7
  %v479 = vsub.s32 %v476, %v478
  %v480 = vrot.slane %v466, %v479
  %v481 = vcombine.high %v473, %v473
  %v482 = vcombine.high %v480, %v480
  %v551 = vunpack.c.l.b16 %v394
  %v552 = vunpack.c.l.b16 %v395
  %v553 = vunpack.c.l.b16 %v396
  %v554 = vunpack.c.l.b16 %v397
  %v555 = vunpack.c.l.b16 %v398
  %v556 = vunpack.c.l.b16 %v399
  %v557 = vunpack.c.l.b16 %v400
  %v558 = vunpack.c.l.b16 %v401
  %v559 = vunpack.c.l.b16 %v402
  %v560 = vunpack.c.l.b16 %v403
  %v561 = vunpack.c.l.b16 %v404
  %v562 = vunpack.c.l.b16 %v405
  %v563 = vunpack.c.l.b16 %v406
  %v564 = vunpack.c.l.b16 %v407
  %v565 = vunpack.c.l.b16 %v408
  %v566 = vunpack.c.l.b16 %v409
  %v567 = vunpack.c.l.b16 %v410
  %v568 = vunpack.c.l.b16 %v411
  %v569 = vunpack.c.l.b16 %v412
  %v570 = vunpack.c.l.b16 %v413
  %v571 = vunpack.c.l.b16 %v414
  %v572 = vunpack.c.l.b16 %v415
  %v573 = vunpack.c.l.b16 %v416
  %v574 = vunpack.c.l.b16 %v417
  %v575 = vunpack.c.l.b16 %v418
  %v576 = vunpack.c.l.b16 %v419
  %v577 = vunpack.c.l.b16 %v420
  %v578 = vunpack.c.l.b16 %v421
  %v579 = vunpack.c.l.b16 %v422
  %v580 = vunpack.c.l.b16 %v423
  %v581 = vunpack.c.l.b16 %v424
  %v582 = vunpack.c.l.b16 %v425
  %v583 = vunpack.c.l.b16 %v426
  %v584 = vunpack.c.l.b16 %v427
  %v585 = vunpack.c.l.b16 %v428
  %v586 = vunpack.c.l.b16 %v429
  %v587 = vunpack.c.l.b16 %v430
  %v588 = vunpack.c.l.b16 %v431
  %v589 = vunpack.c.l.b16 %v432
  %v590 = vunpack.c.l.b16 %v433
  %v591 = vunpack.c.l.b16 %v434
  %v592 = vunpack.c.l.b16 %v435
  %v593 = vunpack.c.l.b16 %v436
  %v594 = vunpack.c.l.b16 %v437
  %v595 = vunpack.c.l.b16 %v438
  %v596 = vunpack.c.l.b16 %v439
  %v597 = vunpack.c.l.b16 %v440
  %v598 = vunpack.c.l.b16 %v441
  %v599 = vunpack.c.l.b16 %v442
  %v600 = vunpack.c.l.b16 %v443
  %v601 = vunpack.c.l.b16 %v444
  %v602 = vunpack.c.l.b16 %v445
  %v603 = vunpack.c.l.b16 %v446
  %v604 = vunpack.c.l.b16 %v447
  %v605 = vunpack.c.l.b16 %v448
  %v606 = vunpack.c.l.b16 %v449
  %v607 = vunpack.c.l.b16 %v450
  %v608 = vunpack.c.l.b16 %v451
  %v609 = vunpack.c.l.b16 %v452
  %v610 = vunpack.c.l.b16 %v453
  %v611 = vunpack.c.l.b16 %v454
  %v612 = vunpack.c.l.b16 %v455
  %v613 = vunpack.c.l.b16 %v456
  %v614 = vunpack.c.l.b16 %v457
  %v615 = vpack.c.b16 %v552, %v551
  %v616 = vpack.c.b16 %v554, %v553
  %v617 = vpack.c.b16 %v556, %v555
  %v618 = vpack.c.b16 %v558, %v557
  %v619 = vpack.c.b16 %v560, %v559
  %v620 = vpack.c.b16 %v562, %v561
  %v621 = vpack.c.b16 %v564, %v563
  %v622 = vpack.c.b16 %v566, %v565
  %v623 = vpack.c.b16 %v568, %v567
  %v624 = vpack.c.b16 %v570, %v569
  %v625 = vpack.c.b16 %v572, %v571
  %v626 = vpack.c.b16 %v574, %v573
  %v627 = vpack.c.b16 %v576, %v575
  %v628 = vpack.c.b16 %v578, %v577
  %v629 = vpack.c.b16 %v580, %v579
  %v630 = vpack.c.b16 %v582, %v581
  %v631 = vpack.c.b16 %v584, %v583
  %v632 = vpack.c.b16 %v586, %v585
  %v633 = vpack.c.b16 %v588, %v587
  %v634 = vpack.c.b16 %v590, %v589
  %v635 = vpack.c.b16 %v592, %v591
  %v636 = vpack.c.b16 %v594, %v593
  %v637 = vpack.c.b16 %v596, %v595
  %v638 = vpack.c.b16 %v598, %v597
  %v639 = vpack.c.b16 %v600, %v599
  %v640 = vpack.c.b16 %v602, %v601
  %v641 = vpack.c.b16 %v604, %v603
  %v642 = vpack.c.b16 %v606, %v605
  %v643 = vpack.c.b16 %v608, %v607
  %v644 = vpack.c.b16 %v610, %v609
  %v645 = vpack.c.b16 %v612, %v611
  %v646 = vpack.c.b16 %v614, %v613
  %679 = vmatprep.subr.bf16.mxu0 0
  %680 = vmatpush1.bf16.msra.mxu0 %v615
  %681 = vmatprep.subr.bf16.mxu0 0
  %682 = vmatpush1.bf16.msra.mxu0 %v616
  %683 = vmatprep.subr.bf16.mxu0 0
  %684 = vmatpush1.bf16.msra.mxu0 %v617
  %685 = vmatprep.subr.bf16.mxu0 0
  %686 = vmatpush1.bf16.msra.mxu0 %v618
  %687 = vmatprep.subr.bf16.mxu0 0
  %688 = vmatpush1.bf16.msra.mxu0 %v619
  %689 = vmatprep.subr.bf16.mxu0 0
  %690 = vmatpush1.bf16.msra.mxu0 %v620
  %691 = vmatprep.subr.bf16.mxu0 0
  %692 = vmatpush1.bf16.msra.mxu0 %v621
  %693 = vmatprep.subr.bf16.mxu0 0
  %694 = vmatpush1.bf16.msra.mxu0 %v622
  %695 = vmatprep.subr.bf16.mxu0 0
  %696 = vmatpush1.bf16.msra.mxu0 %v623
  %697 = vmatprep.subr.bf16.mxu0 0
  %698 = vmatpush1.bf16.msra.mxu0 %v624
  %699 = vmatprep.subr.bf16.mxu0 0
  %700 = vmatpush1.bf16.msra.mxu0 %v625
  %701 = vmatprep.subr.bf16.mxu0 0
  %702 = vmatpush1.bf16.msra.mxu0 %v626
  %703 = vmatprep.subr.bf16.mxu0 0
  %704 = vmatpush1.bf16.msra.mxu0 %v627
  %705 = vmatprep.subr.bf16.mxu0 0
  %706 = vmatpush1.bf16.msra.mxu0 %v628
  %707 = vmatprep.subr.bf16.mxu0 0
  %708 = vmatpush1.bf16.msra.mxu0 %v629
  %709 = vmatprep.subr.bf16.mxu0 0
  %710 = vmatpush1.bf16.msra.mxu0 %v630
  %711 = vmatprep.mubr.bf16.mxu0 %v480
  %712 = vmatmul.mubr.bf16.gmra.mrb[0].mxu0 %v473
  %v713 = vpop.f32.mrb[0].mxu0
  %v714 = vadd.f32 0.0, %v713
  %v715 = vpop.f32.mrb[0].mxu0
  %v716 = vpop.f32.mrb[0].mxu0
  %v717 = vpop.f32.mrb[0].mxu0
  %718 = vdwg.mxu0
  %719 = vmatprep.subr.bf16.mxu0 0
  %720 = vmatpush1.bf16.msra.mxu0 %v631
  %721 = vmatprep.subr.bf16.mxu0 0
  %722 = vmatpush1.bf16.msra.mxu0 %v632
  %723 = vmatprep.subr.bf16.mxu0 0
  %724 = vmatpush1.bf16.msra.mxu0 %v633
  %725 = vmatprep.subr.bf16.mxu0 0
  %726 = vmatpush1.bf16.msra.mxu0 %v634
  %727 = vmatprep.subr.bf16.mxu0 0
  %728 = vmatpush1.bf16.msra.mxu0 %v635
  %729 = vmatprep.subr.bf16.mxu0 0
  %730 = vmatpush1.bf16.msra.mxu0 %v636
  %731 = vmatprep.subr.bf16.mxu0 0
  %732 = vmatpush1.bf16.msra.mxu0 %v637
  %733 = vmatprep.subr.bf16.mxu0 0
  %734 = vmatpush1.bf16.msra.mxu0 %v638
  %735 = vmatprep.subr.bf16.mxu0 0
  %736 = vmatpush1.bf16.msra.mxu0 %v639
  %737 = vmatprep.subr.bf16.mxu0 0
  %738 = vmatpush1.bf16.msra.mxu0 %v640
  %739 = vmatprep.subr.bf16.mxu0 0
  %740 = vmatpush1.bf16.msra.mxu0 %v641
  %741 = vmatprep.subr.bf16.mxu0 0
  %742 = vmatpush1.bf16.msra.mxu0 %v642
  %743 = vmatprep.subr.bf16.mxu0 0
  %744 = vmatpush1.bf16.msra.mxu0 %v643
  %745 = vmatprep.subr.bf16.mxu0 0
  %746 = vmatpush1.bf16.msra.mxu0 %v644
  %747 = vmatprep.subr.bf16.mxu0 0
  %748 = vmatpush1.bf16.msra.mxu0 %v645
  %749 = vmatprep.subr.bf16.mxu0 0
  %750 = vmatpush1.bf16.msra.mxu0 %v646
  %751 = vmatprep.mubr.bf16.mxu0 %v482
  %752 = vmatmul.mubr.bf16.gmra.mrb[0].mxu0 %v481
  %v753 = vpop.f32.mrb[0].mxu0
  %v754 = vadd.f32 %v714, %v753
  %v755 = vpop.f32.mrb[0].mxu0
  %v756 = vpop.f32.mrb[0].mxu0
  %v757 = vpop.f32.mrb[0].mxu0
  %758 = vdwg.mxu0
  %v759 = vadd.f32 %v390, %v754
  %760 = vst [vmem:[%s389] sm:$0x3] %v759
  %s761 = scalar_lea.vmem [#allocation2], 4
  %v762 = vld [vmem:[%s761] sm:$0x3]
  %s763 = scalar_lea.vmem %s0, 8
  %v764 = vld [vmem:[%s763] sm:$0xf]
  %s765 = scalar_lea.vmem %s1, 512
  %v766 = vld [vmem:[%s765] sm:$0xf]
  %v767 = vld [vmem:[%s765 + $0x4] sm:$0xf]
  %v768 = vld [vmem:[%s765 + $0x8] sm:$0xf]
  %v769 = vld [vmem:[%s765 + $0xc] sm:$0xf]
  %v770 = vld [vmem:[%s765 + $0x10] sm:$0xf]
  %v771 = vld [vmem:[%s765 + $0x14] sm:$0xf]
  %v772 = vld [vmem:[%s765 + $0x18] sm:$0xf]
  %v773 = vld [vmem:[%s765 + $0x1c] sm:$0xf]
  %v774 = vld [vmem:[%s765 + $0x20] sm:$0xf]
  %v775 = vld [vmem:[%s765 + $0x24] sm:$0xf]
  %v776 = vld [vmem:[%s765 + $0x28] sm:$0xf]
  %v777 = vld [vmem:[%s765 + $0x2c] sm:$0xf]
  %v778 = vld [vmem:[%s765 + $0x30] sm:$0xf]
  %v779 = vld [vmem:[%s765 + $0x34] sm:$0xf]
  %v780 = vld [vmem:[%s765 + $0x38] sm:$0xf]
  %v781 = vld [vmem:[%s765 + $0x3c] sm:$0xf]
  %v782 = vld [vmem:[%s765 + $0x40] sm:$0xf]
  %v783 = vld [vmem:[%s765 + $0x44] sm:$0xf]
  %v784 = vld [vmem:[%s765 + $0x48] sm:$0xf]
  %v785 = vld [vmem:[%s765 + $0x4c] sm:$0xf]
  %v786 = vld [vmem:[%s765 + $0x50] sm:$0xf]
  %v787 = vld [vmem:[%s765 + $0x54] sm:$0xf]
  %v788 = vld [vmem:[%s765 + $0x58] sm:$0xf]
  %v789 = vld [vmem:[%s765 + $0x5c] sm:$0xf]
  %v790 = vld [vmem:[%s765 + $0x60] sm:$0xf]
  %v791 = vld [vmem:[%s765 + $0x64] sm:$0xf]
  %v792 = vld [vmem:[%s765 + $0x68] sm:$0xf]
  %v793 = vld [vmem:[%s765 + $0x6c] sm:$0xf]
  %v794 = vld [vmem:[%s765 + $0x70] sm:$0xf]
  %v795 = vld [vmem:[%s765 + $0x74] sm:$0xf]
  %v796 = vld [vmem:[%s765 + $0x78] sm:$0xf]
  %v797 = vld [vmem:[%s765 + $0x7c] sm:$0xf]
  %v798 = vld [vmem:[%s765 + $0x80] sm:$0xf]
  %v799 = vld [vmem:[%s765 + $0x84] sm:$0xf]
  %v800 = vld [vmem:[%s765 + $0x88] sm:$0xf]
  %v801 = vld [vmem:[%s765 + $0x8c] sm:$0xf]
  %v802 = vld [vmem:[%s765 + $0x90] sm:$0xf]
  %v803 = vld [vmem:[%s765 + $0x94] sm:$0xf]
  %v804 = vld [vmem:[%s765 + $0x98] sm:$0xf]
  %v805 = vld [vmem:[%s765 + $0x9c] sm:$0xf]
  %v806 = vld [vmem:[%s765 + $0xa0] sm:$0xf]
  %v807 = vld [vmem:[%s765 + $0xa4] sm:$0xf]
  %v808 = vld [vmem:[%s765 + $0xa8] sm:$0xf]
  %v809 = vld [vmem:[%s765 + $0xac] sm:$0xf]
  %v810 = vld [vmem:[%s765 + $0xb0] sm:$0xf]
  %v811 = vld [vmem:[%s765 + $0xb4] sm:$0xf]
  %v812 = vld [vmem:[%s765 + $0xb8] sm:$0xf]
  %v813 = vld [vmem:[%s765 + $0xbc] sm:$0xf]
  %v814 = vld [vmem:[%s765 + $0xc0] sm:$0xf]
  %v815 = vld [vmem:[%s765 + $0xc4] sm:$0xf]
  %v816 = vld [vmem:[%s765 + $0xc8] sm:$0xf]
  %v817 = vld [vmem:[%s765 + $0xcc] sm:$0xf]
  %v818 = vld [vmem:[%s765 + $0xd0] sm:$0xf]
  %v819 = vld [vmem:[%s765 + $0xd4] sm:$0xf]
  %v820 = vld [vmem:[%s765 + $0xd8] sm:$0xf]
  %v821 = vld [vmem:[%s765 + $0xdc] sm:$0xf]
  %v822 = vld [vmem:[%s765 + $0xe0] sm:$0xf]
  %v823 = vld [vmem:[%s765 + $0xe4] sm:$0xf]
  %v824 = vld [vmem:[%s765 + $0xe8] sm:$0xf]
  %v825 = vld [vmem:[%s765 + $0xec] sm:$0xf]
  %v826 = vld [vmem:[%s765 + $0xf0] sm:$0xf]
  %v827 = vld [vmem:[%s765 + $0xf4] sm:$0xf]
  %v828 = vld [vmem:[%s765 + $0xf8] sm:$0xf]
  %v829 = vld [vmem:[%s765 + $0xfc] sm:$0xf]
  %v832 = vunpack.c.l.s4 1966171168
  %v833 = vunpack.c.0.s8 %v832
  %v834 = vlaneseq
  %v835 = vshrl.u32 %v834, 7
  %v836 = vsub.s32 %v833, %v835
  %v837 = vrot.slane %v764, %v836
  %v838 = vcombine.high %v837, %v837
  %v840 = vunpack.c.l.s4 1966171168
  %v841 = vunpack.c.0.s8 %v840
  %v842 = vlaneseq
  %v843 = vshrl.u32 %v842, 7
  %v844 = vsub.s32 %v841, %v843
  %v845 = vrot.slane %v837, %v844
  %v847 = vunpack.c.l.s4 1966171168
  %v848 = vunpack.c.0.s8 %v847
  %v849 = vlaneseq
  %v850 = vshrl.u32 %v849, 7
  %v851 = vsub.s32 %v848, %v850
  %v852 = vrot.slane %v838, %v851
  %v853 = vcombine.high %v845, %v845
  %v854 = vcombine.high %v852, %v852
  %v923 = vunpack.c.l.b16 %v766
  %v924 = vunpack.c.l.b16 %v767
  %v925 = vunpack.c.l.b16 %v768
  %v926 = vunpack.c.l.b16 %v769
  %v927 = vunpack.c.l.b16 %v770
  %v928 = vunpack.c.l.b16 %v771
  %v929 = vunpack.c.l.b16 %v772
  %v930 = vunpack.c.l.b16 %v773
  %v931 = vunpack.c.l.b16 %v774
  %v932 = vunpack.c.l.b16 %v775
  %v933 = vunpack.c.l.b16 %v776
  %v934 = vunpack.c.l.b16 %v777
  %v935 = vunpack.c.l.b16 %v778
  %v936 = vunpack.c.l.b16 %v779
  %v937 = vunpack.c.l.b16 %v780
  %v938 = vunpack.c.l.b16 %v781
  %v939 = vunpack.c.l.b16 %v782
  %v940 = vunpack.c.l.b16 %v783
  %v941 = vunpack.c.l.b16 %v784
  %v942 = vunpack.c.l.b16 %v785
  %v943 = vunpack.c.l.b16 %v786
  %v944 = vunpack.c.l.b16 %v787
  %v945 = vunpack.c.l.b16 %v788
  %v946 = vunpack.c.l.b16 %v789
  %v947 = vunpack.c.l.b16 %v790
  %v948 = vunpack.c.l.b16 %v791
  %v949 = vunpack.c.l.b16 %v792
  %v950 = vunpack.c.l.b16 %v793
  %v951 = vunpack.c.l.b16 %v794
  %v952 = vunpack.c.l.b16 %v795
  %v953 = vunpack.c.l.b16 %v796
  %v954 = vunpack.c.l.b16 %v797
  %v955 = vunpack.c.l.b16 %v798
  %v956 = vunpack.c.l.b16 %v799
  %v957 = vunpack.c.l.b16 %v800
  %v958 = vunpack.c.l.b16 %v801
  %v959 = vunpack.c.l.b16 %v802
  %v960 = vunpack.c.l.b16 %v803
  %v961 = vunpack.c.l.b16 %v804
  %v962 = vunpack.c.l.b16 %v805
  %v963 = vunpack.c.l.b16 %v806
  %v964 = vunpack.c.l.b16 %v807
  %v965 = vunpack.c.l.b16 %v808
  %v966 = vunpack.c.l.b16 %v809
  %v967 = vunpack.c.l.b16 %v810
  %v968 = vunpack.c.l.b16 %v811
  %v969 = vunpack.c.l.b16 %v812
  %v970 = vunpack.c.l.b16 %v813
  %v971 = vunpack.c.l.b16 %v814
  %v972 = vunpack.c.l.b16 %v815
  %v973 = vunpack.c.l.b16 %v816
  %v974 = vunpack.c.l.b16 %v817
  %v975 = vunpack.c.l.b16 %v818
  %v976 = vunpack.c.l.b16 %v819
  %v977 = vunpack.c.l.b16 %v820
  %v978 = vunpack.c.l.b16 %v821
  %v979 = vunpack.c.l.b16 %v822
  %v980 = vunpack.c.l.b16 %v823
  %v981 = vunpack.c.l.b16 %v824
  %v982 = vunpack.c.l.b16 %v825
  %v983 = vunpack.c.l.b16 %v826
  %v984 = vunpack.c.l.b16 %v827
  %v985 = vunpack.c.l.b16 %v828
  %v986 = vunpack.c.l.b16 %v829
  %v987 = vpack.c.b16 %v924, %v923
  %v988 = vpack.c.b16 %v926, %v925
  %v989 = vpack.c.b16 %v928, %v927
  %v990 = vpack.c.b16 %v930, %v929
  %v991 = vpack.c.b16 %v932, %v931
  %v992 = vpack.c.b16 %v934, %v933
  %v993 = vpack.c.b16 %v936, %v935
  %v994 = vpack.c.b16 %v938, %v937
  %v995 = vpack.c.b16 %v940, %v939
  %v996 = vpack.c.b16 %v942, %v941
  %v997 = vpack.c.b16 %v944, %v943
  %v998 = vpack.c.b16 %v946, %v945
  %v999 = vpack.c.b16 %v948, %v947
  %v1000 = vpack.c.b16 %v950, %v949
  %v1001 = vpack.c.b16 %v952, %v951
  %v1002 = vpack.c.b16 %v954, %v953
  %v1003 = vpack.c.b16 %v956, %v955
  %v1004 = vpack.c.b16 %v958, %v957
  %v1005 = vpack.c.b16 %v960, %v959
  %v1006 = vpack.c.b16 %v962, %v961
  %v1007 = vpack.c.b16 %v964, %v963
  %v1008 = vpack.c.b16 %v966, %v965
  %v1009 = vpack.c.b16 %v968, %v967
  %v1010 = vpack.c.b16 %v970, %v969
  %v1011 = vpack.c.b16 %v972, %v971
  %v1012 = vpack.c.b16 %v974, %v973
  %v1013 = vpack.c.b16 %v976, %v975
  %v1014 = vpack.c.b16 %v978, %v977
  %v1015 = vpack.c.b16 %v980, %v979
  %v1016 = vpack.c.b16 %v982, %v981
  %v1017 = vpack.c.b16 %v984, %v983
  %v1018 = vpack.c.b16 %v986, %v985
  %1051 = vmatprep.subr.bf16.mxu0 0
  %1052 = vmatpush1.bf16.msra.mxu0 %v987
  %1053 = vmatprep.subr.bf16.mxu0 0
  %1054 = vmatpush1.bf16.msra.mxu0 %v988
  %1055 = vmatprep.subr.bf16.mxu0 0
  %1056 = vmatpush1.bf16.msra.mxu0 %v989
  %1057 = vmatprep.subr.bf16.mxu0 0
  %1058 = vmatpush1.bf16.msra.mxu0 %v990
  %1059 = vmatprep.subr.bf16.mxu0 0
  %1060 = vmatpush1.bf16.msra.mxu0 %v991
  %1061 = vmatprep.subr.bf16.mxu0 0
  %1062 = vmatpush1.bf16.msra.mxu0 %v992
  %1063 = vmatprep.subr.bf16.mxu0 0
  %1064 = vmatpush1.bf16.msra.mxu0 %v993
  %1065 = vmatprep.subr.bf16.mxu0 0
  %1066 = vmatpush1.bf16.msra.mxu0 %v994
  %1067 = vmatprep.subr.bf16.mxu0 0
  %1068 = vmatpush1.bf16.msra.mxu0 %v995
  %1069 = vmatprep.subr.bf16.mxu0 0
  %1070 = vmatpush1.bf16.msra.mxu0 %v996
  %1071 = vmatprep.subr.bf16.mxu0 0
  %1072 = vmatpush1.bf16.msra.mxu0 %v997
  %1073 = vmatprep.subr.bf16.mxu0 0
  %1074 = vmatpush1.bf16.msra.mxu0 %v998
  %1075 = vmatprep.subr.bf16.mxu0 0
  %1076 = vmatpush1.bf16.msra.mxu0 %v999
  %1077 = vmatprep.subr.bf16.mxu0 0
  %1078 = vmatpush1.bf16.msra.mxu0 %v1000
  %1079 = vmatprep.subr.bf16.mxu0 0
  %1080 = vmatpush1.bf16.msra.mxu0 %v1001
  %1081 = vmatprep.subr.bf16.mxu0 0
  %1082 = vmatpush1.bf16.msra.mxu0 %v1002
  %1083 = vmatprep.mubr.bf16.mxu0 %v852
  %1084 = vmatmul.mubr.bf16.gmra.mrb[0].mxu0 %v845
  %v1085 = vpop.f32.mrb[0].mxu0
  %v1086 = vadd.f32 0.0, %v1085
  %v1087 = vpop.f32.mrb[0].mxu0
  %v1088 = vpop.f32.mrb[0].mxu0
  %v1089 = vpop.f32.mrb[0].mxu0
  %1090 = vdwg.mxu0
  %1091 = vmatprep.subr.bf16.mxu0 0
  %1092 = vmatpush1.bf16.msra.mxu0 %v1003
  %1093 = vmatprep.subr.bf16.mxu0 0
  %1094 = vmatpush1.bf16.msra.mxu0 %v1004
  %1095 = vmatprep.subr.bf16.mxu0 0
  %1096 = vmatpush1.bf16.msra.mxu0 %v1005
  %1097 = vmatprep.subr.bf16.mxu0 0
  %1098 = vmatpush1.bf16.msra.mxu0 %v1006
  %1099 = vmatprep.subr.bf16.mxu0 0
  %1100 = vmatpush1.bf16.msra.mxu0 %v1007
  %1101 = vmatprep.subr.bf16.mxu0 0
  %1102 = vmatpush1.bf16.msra.mxu0 %v1008
  %1103 = vmatprep.subr.bf16.mxu0 0
  %1104 = vmatpush1.bf16.msra.mxu0 %v1009
  %1105 = vmatprep.subr.bf16.mxu0 0
  %1106 = vmatpush1.bf16.msra.mxu0 %v1010
  %1107 = vmatprep.subr.bf16.mxu0 0
  %1108 = vmatpush1.bf16.msra.mxu0 %v1011
  %1109 = vmatprep.subr.bf16.mxu0 0
  %1110 = vmatpush1.bf16.msra.mxu0 %v1012
  %1111 = vmatprep.subr.bf16.mxu0 0
  %1112 = vmatpush1.bf16.msra.mxu0 %v1013
  %1113 = vmatprep.subr.bf16.mxu0 0
  %1114 = vmatpush1.bf16.msra.mxu0 %v1014
  %1115 = vmatprep.subr.bf16.mxu0 0
  %1116 = vmatpush1.bf16.msra.mxu0 %v1015
  %1117 = vmatprep.subr.bf16.mxu0 0
  %1118 = vmatpush1.bf16.msra.mxu0 %v1016
  %1119 = vmatprep.subr.bf16.mxu0 0
  %1120 = vmatpush1.bf16.msra.mxu0 %v1017
  %1121 = vmatprep.subr.bf16.mxu0 0
  %1122 = vmatpush1.bf16.msra.mxu0 %v1018
  %1123 = vmatprep.mubr.bf16.mxu0 %v854
  %1124 = vmatmul.mubr.bf16.gmra.mrb[0].mxu0 %v853
  %v1125 = vpop.f32.mrb[0].mxu0
  %v1126 = vadd.f32 %v1086, %v1125
  %v1127 = vpop.f32.mrb[0].mxu0
  %v1128 = vpop.f32.mrb[0].mxu0
  %v1129 = vpop.f32.mrb[0].mxu0
  %1130 = vdwg.mxu0
  %v1131 = vadd.f32 %v762, %v1126
  %1132 = vst [vmem:[%s761] sm:$0x3] %v1131
  %s1133 = scalar_lea.vmem [#allocation2], 6
  %v1134 = vld [vmem:[%s1133] sm:$0x3]
  %s1135 = scalar_lea.vmem %s0, 12
  %v1136 = vld [vmem:[%s1135] sm:$0xf]
  %s1137 = scalar_lea.vmem %s1, 768
  %v1138 = vld [vmem:[%s1137] sm:$0xf]
  %v1139 = vld [vmem:[%s1137 + $0x4] sm:$0xf]
  %v1140 = vld [vmem:[%s1137 + $0x8] sm:$0xf]
  %v1141 = vld [vmem:[%s1137 + $0xc] sm:$0xf]
  %v1142 = vld [vmem:[%s1137 + $0x10] sm:$0xf]
  %v1143 = vld [vmem:[%s1137 + $0x14] sm:$0xf]
  %v1144 = vld [vmem:[%s1137 + $0x18] sm:$0xf]
  %v1145 = vld [vmem:[%s1137 + $0x1c] sm:$0xf]
  %v1146 = vld [vmem:[%s1137 + $0x20] sm:$0xf]
  %v1147 = vld [vmem:[%s1137 + $0x24] sm:$0xf]
  %v1148 = vld [vmem:[%s1137 + $0x28] sm:$0xf]
  %v1149 = vld [vmem:[%s1137 + $0x2c] sm:$0xf]
  %v1150 = vld [vmem:[%s1137 + $0x30] sm:$0xf]
  %v1151 = vld [vmem:[%s1137 + $0x34] sm:$0xf]
  %v1152 = vld [vmem:[%s1137 + $0x38] sm:$0xf]
  %v1153 = vld [vmem:[%s1137 + $0x3c] sm:$0xf]
  %v1154 = vld [vmem:[%s1137 + $0x40] sm:$0xf]
  %v1155 = vld [vmem:[%s1137 + $0x44] sm:$0xf]
  %v1156 = vld [vmem:[%s1137 + $0x48] sm:$0xf]
  %v1157 = vld [vmem:[%s1137 + $0x4c] sm:$0xf]
  %v1158 = vld [vmem:[%s1137 + $0x50] sm:$0xf]
  %v1159 = vld [vmem:[%s1137 + $0x54] sm:$0xf]
  %v1160 = vld [vmem:[%s1137 + $0x58] sm:$0xf]
  %v1161 = vld [vmem:[%s1137 + $0x5c] sm:$0xf]
  %v1162 = vld [vmem:[%s1137 + $0x60] sm:$0xf]
  %v1163 = vld [vmem:[%s1137 + $0x64] sm:$0xf]
  %v1164 = vld [vmem:[%s1137 + $0x68] sm:$0xf]
  %v1165 = vld [vmem:[%s1137 + $0x6c] sm:$0xf]
  %v1166 = vld [vmem:[%s1137 + $0x70] sm:$0xf]
  %v1167 = vld [vmem:[%s1137 + $0x74] sm:$0xf]
  %v1168 = vld [vmem:[%s1137 + $0x78] sm:$0xf]
  %v1169 = vld [vmem:[%s1137 + $0x7c] sm:$0xf]
  %v1170 = vld [vmem:[%s1137 + $0x80] sm:$0xf]
  %v1171 = vld [vmem:[%s1137 + $0x84] sm:$0xf]
  %v1172 = vld [vmem:[%s1137 + $0x88] sm:$0xf]
  %v1173 = vld [vmem:[%s1137 + $0x8c] sm:$0xf]
  %v1174 = vld [vmem:[%s1137 + $0x90] sm:$0xf]
  %v1175 = vld [vmem:[%s1137 + $0x94] sm:$0xf]
  %v1176 = vld [vmem:[%s1137 + $0x98] sm:$0xf]
  %v1177 = vld [vmem:[%s1137 + $0x9c] sm:$0xf]
  %v1178 = vld [vmem:[%s1137 + $0xa0] sm:$0xf]
  %v1179 = vld [vmem:[%s1137 + $0xa4] sm:$0xf]
  %v1180 = vld [vmem:[%s1137 + $0xa8] sm:$0xf]
  %v1181 = vld [vmem:[%s1137 + $0xac] sm:$0xf]
  %v1182 = vld [vmem:[%s1137 + $0xb0] sm:$0xf]
  %v1183 = vld [vmem:[%s1137 + $0xb4] sm:$0xf]
  %v1184 = vld [vmem:[%s1137 + $0xb8] sm:$0xf]
  %v1185 = vld [vmem:[%s1137 + $0xbc] sm:$0xf]
  %v1186 = vld [vmem:[%s1137 + $0xc0] sm:$0xf]
  %v1187 = vld [vmem:[%s1137 + $0xc4] sm:$0xf]
  %v1188 = vld [vmem:[%s1137 + $0xc8] sm:$0xf]
  %v1189 = vld [vmem:[%s1137 + $0xcc] sm:$0xf]
  %v1190 = vld [vmem:[%s1137 + $0xd0] sm:$0xf]
  %v1191 = vld [vmem:[%s1137 + $0xd4] sm:$0xf]
  %v1192 = vld [vmem:[%s1137 + $0xd8] sm:$0xf]
  %v1193 = vld [vmem:[%s1137 + $0xdc] sm:$0xf]
  %v1194 = vld [vmem:[%s1137 + $0xe0] sm:$0xf]
  %v1195 = vld [vmem:[%s1137 + $0xe4] sm:$0xf]
  %v1196 = vld [vmem:[%s1137 + $0xe8] sm:$0xf]
  %v1197 = vld [vmem:[%s1137 + $0xec] sm:$0xf]
  %v1198 = vld [vmem:[%s1137 + $0xf0] sm:$0xf]
  %v1199 = vld [vmem:[%s1137 + $0xf4] sm:$0xf]
  %v1200 = vld [vmem:[%s1137 + $0xf8] sm:$0xf]
  %v1201 = vld [vmem:[%s1137 + $0xfc] sm:$0xf]
  %v1204 = vunpack.c.l.s4 1966171168
  %v1205 = vunpack.c.0.s8 %v1204
  %v1206 = vlaneseq
  %v1207 = vshrl.u32 %v1206, 7
  %v1208 = vsub.s32 %v1205, %v1207
  %v1209 = vrot.slane %v1136, %v1208
  %v1210 = vcombine.high %v1209, %v1209
  %v1212 = vunpack.c.l.s4 1966171168
  %v1213 = vunpack.c.0.s8 %v1212
  %v1214 = vlaneseq
  %v1215 = vshrl.u32 %v1214, 7
  %v1216 = vsub.s32 %v1213, %v1215
  %v1217 = vrot.slane %v1209, %v1216
  %v1219 = vunpack.c.l.s4 1966171168
  %v1220 = vunpack.c.0.s8 %v1219
  %v1221 = vlaneseq
  %v1222 = vshrl.u32 %v1221, 7
  %v1223 = vsub.s32 %v1220, %v1222
  %v1224 = vrot.slane %v1210, %v1223
  %v1225 = vcombine.high %v1217, %v1217
  %v1226 = vcombine.high %v1224, %v1224
  %v1295 = vunpack.c.l.b16 %v1138
  %v1296 = vunpack.c.l.b16 %v1139
  %v1297 = vunpack.c.l.b16 %v1140
  %v1298 = vunpack.c.l.b16 %v1141
  %v1299 = vunpack.c.l.b16 %v1142
  %v1300 = vunpack.c.l.b16 %v1143
  %v1301 = vunpack.c.l.b16 %v1144
  %v1302 = vunpack.c.l.b16 %v1145
  %v1303 = vunpack.c.l.b16 %v1146
  %v1304 = vunpack.c.l.b16 %v1147
  %v1305 = vunpack.c.l.b16 %v1148
  %v1306 = vunpack.c.l.b16 %v1149
  %v1307 = vunpack.c.l.b16 %v1150
  %v1308 = vunpack.c.l.b16 %v1151
  %v1309 = vunpack.c.l.b16 %v1152
  %v1310 = vunpack.c.l.b16 %v1153
  %v1311 = vunpack.c.l.b16 %v1154
  %v1312 = vunpack.c.l.b16 %v1155
  %v1313 = vunpack.c.l.b16 %v1156
  %v1314 = vunpack.c.l.b16 %v1157
  %v1315 = vunpack.c.l.b16 %v1158
  %v1316 = vunpack.c.l.b16 %v1159
  %v1317 = vunpack.c.l.b16 %v1160
  %v1318 = vunpack.c.l.b16 %v1161
  %v1319 = vunpack.c.l.b16 %v1162
  %v1320 = vunpack.c.l.b16 %v1163
  %v1321 = vunpack.c.l.b16 %v1164
  %v1322 = vunpack.c.l.b16 %v1165
  %v1323 = vunpack.c.l.b16 %v1166
  %v1324 = vunpack.c.l.b16 %v1167
  %v1325 = vunpack.c.l.b16 %v1168
  %v1326 = vunpack.c.l.b16 %v1169
  %v1327 = vunpack.c.l.b16 %v1170
  %v1328 = vunpack.c.l.b16 %v1171
  %v1329 = vunpack.c.l.b16 %v1172
  %v1330 = vunpack.c.l.b16 %v1173
  %v1331 = vunpack.c.l.b16 %v1174
  %v1332 = vunpack.c.l.b16 %v1175
  %v1333 = vunpack.c.l.b16 %v1176
  %v1334 = vunpack.c.l.b16 %v1177
  %v1335 = vunpack.c.l.b16 %v1178
  %v1336 = vunpack.c.l.b16 %v1179
  %v1337 = vunpack.c.l.b16 %v1180
  %v1338 = vunpack.c.l.b16 %v1181
  %v1339 = vunpack.c.l.b16 %v1182
  %v1340 = vunpack.c.l.b16 %v1183
  %v1341 = vunpack.c.l.b16 %v1184
  %v1342 = vunpack.c.l.b16 %v1185
  %v1343 = vunpack.c.l.b16 %v1186
  %v1344 = vunpack.c.l.b16 %v1187
  %v1345 = vunpack.c.l.b16 %v1188
  %v1346 = vunpack.c.l.b16 %v1189
  %v1347 = vunpack.c.l.b16 %v1190
  %v1348 = vunpack.c.l.b16 %v1191
  %v1349 = vunpack.c.l.b16 %v1192
  %v1350 = vunpack.c.l.b16 %v1193
  %v1351 = vunpack.c.l.b16 %v1194
  %v1352 = vunpack.c.l.b16 %v1195
  %v1353 = vunpack.c.l.b16 %v1196
  %v1354 = vunpack.c.l.b16 %v1197
  %v1355 = vunpack.c.l.b16 %v1198
  %v1356 = vunpack.c.l.b16 %v1199
  %v1357 = vunpack.c.l.b16 %v1200
  %v1358 = vunpack.c.l.b16 %v1201
  %v1359 = vpack.c.b16 %v1296, %v1295
  %v1360 = vpack.c.b16 %v1298, %v1297
  %v1361 = vpack.c.b16 %v1300, %v1299
  %v1362 = vpack.c.b16 %v1302, %v1301
  %v1363 = vpack.c.b16 %v1304, %v1303
  %v1364 = vpack.c.b16 %v1306, %v1305
  %v1365 = vpack.c.b16 %v1308, %v1307
  %v1366 = vpack.c.b16 %v1310, %v1309
  %v1367 = vpack.c.b16 %v1312, %v1311
  %v1368 = vpack.c.b16 %v1314, %v1313
  %v1369 = vpack.c.b16 %v1316, %v1315
  %v1370 = vpack.c.b16 %v1318, %v1317
  %v1371 = vpack.c.b16 %v1320, %v1319
  %v1372 = vpack.c.b16 %v1322, %v1321
  %v1373 = vpack.c.b16 %v1324, %v1323
  %v1374 = vpack.c.b16 %v1326, %v1325
  %v1375 = vpack.c.b16 %v1328, %v1327
  %v1376 = vpack.c.b16 %v1330, %v1329
  %v1377 = vpack.c.b16 %v1332, %v1331
  %v1378 = vpack.c.b16 %v1334, %v1333
  %v1379 = vpack.c.b16 %v1336, %v1335
  %v1380 = vpack.c.b16 %v1338, %v1337
  %v1381 = vpack.c.b16 %v1340, %v1339
  %v1382 = vpack.c.b16 %v1342, %v1341
  %v1383 = vpack.c.b16 %v1344, %v1343
  %v1384 = vpack.c.b16 %v1346, %v1345
  %v1385 = vpack.c.b16 %v1348, %v1347
  %v1386 = vpack.c.b16 %v1350, %v1349
  %v1387 = vpack.c.b16 %v1352, %v1351
  %v1388 = vpack.c.b16 %v1354, %v1353
  %v1389 = vpack.c.b16 %v1356, %v1355
  %v1390 = vpack.c.b16 %v1358, %v1357
  %1423 = vmatprep.subr.bf16.mxu0 0
  %1424 = vmatpush1.bf16.msra.mxu0 %v1359
  %1425 = vmatprep.subr.bf16.mxu0 0
  %1426 = vmatpush1.bf16.msra.mxu0 %v1360
  %1427 = vmatprep.subr.bf16.mxu0 0
  %1428 = vmatpush1.bf16.msra.mxu0 %v1361
  %1429 = vmatprep.subr.bf16.mxu0 0
  %1430 = vmatpush1.bf16.msra.mxu0 %v1362
  %1431 = vmatprep.subr.bf16.mxu0 0
  %1432 = vmatpush1.bf16.msra.mxu0 %v1363
  %1433 = vmatprep.subr.bf16.mxu0 0
  %1434 = vmatpush1.bf16.msra.mxu0 %v1364
  %1435 = vmatprep.subr.bf16.mxu0 0
  %1436 = vmatpush1.bf16.msra.mxu0 %v1365
  %1437 = vmatprep.subr.bf16.mxu0 0
  %1438 = vmatpush1.bf16.msra.mxu0 %v1366
  %1439 = vmatprep.subr.bf16.mxu0 0
  %1440 = vmatpush1.bf16.msra.mxu0 %v1367
  %1441 = vmatprep.subr.bf16.mxu0 0
  %1442 = vmatpush1.bf16.msra.mxu0 %v1368
  %1443 = vmatprep.subr.bf16.mxu0 0
  %1444 = vmatpush1.bf16.msra.mxu0 %v1369
  %1445 = vmatprep.subr.bf16.mxu0 0
  %1446 = vmatpush1.bf16.msra.mxu0 %v1370
  %1447 = vmatprep.subr.bf16.mxu0 0
  %1448 = vmatpush1.bf16.msra.mxu0 %v1371
  %1449 = vmatprep.subr.bf16.mxu0 0
  %1450 = vmatpush1.bf16.msra.mxu0 %v1372
  %1451 = vmatprep.subr.bf16.mxu0 0
  %1452 = vmatpush1.bf16.msra.mxu0 %v1373
  %1453 = vmatprep.subr.bf16.mxu0 0
  %1454 = vmatpush1.bf16.msra.mxu0 %v1374
  %1455 = vmatprep.mubr.bf16.mxu0 %v1224
  %1456 = vmatmul.mubr.bf16.gmra.mrb[0].mxu0 %v1217
  %v1457 = vpop.f32.mrb[0].mxu0
  %v1458 = vadd.f32 0.0, %v1457
  %v1459 = vpop.f32.mrb[0].mxu0
  %v1460 = vpop.f32.mrb[0].mxu0
  %v1461 = vpop.f32.mrb[0].mxu0
  %1462 = vdwg.mxu0
  %1463 = vmatprep.subr.bf16.mxu0 0
  %1464 = vmatpush1.bf16.msra.mxu0 %v1375
  %1465 = vmatprep.subr.bf16.mxu0 0
  %1466 = vmatpush1.bf16.msra.mxu0 %v1376
  %1467 = vmatprep.subr.bf16.mxu0 0
  %1468 = vmatpush1.bf16.msra.mxu0 %v1377
  %1469 = vmatprep.subr.bf16.mxu0 0
  %1470 = vmatpush1.bf16.msra.mxu0 %v1378
  %1471 = vmatprep.subr.bf16.mxu0 0
  %1472 = vmatpush1.bf16.msra.mxu0 %v1379
  %1473 = vmatprep.subr.bf16.mxu0 0
  %1474 = vmatpush1.bf16.msra.mxu0 %v1380
  %1475 = vmatprep.subr.bf16.mxu0 0
  %1476 = vmatpush1.bf16.msra.mxu0 %v1381
  %1477 = vmatprep.subr.bf16.mxu0 0
  %1478 = vmatpush1.bf16.msra.mxu0 %v1382
  %1479 = vmatprep.subr.bf16.mxu0 0
  %1480 = vmatpush1.bf16.msra.mxu0 %v1383
  %1481 = vmatprep.subr.bf16.mxu0 0
  %1482 = vmatpush1.bf16.msra.mxu0 %v1384
  %1483 = vmatprep.subr.bf16.mxu0 0
  %1484 = vmatpush1.bf16.msra.mxu0 %v1385
  %1485 = vmatprep.subr.bf16.mxu0 0
  %1486 = vmatpush1.bf16.msra.mxu0 %v1386
  %1487 = vmatprep.subr.bf16.mxu0 0
  %1488 = vmatpush1.bf16.msra.mxu0 %v1387
  %1489 = vmatprep.subr.bf16.mxu0 0
  %1490 = vmatpush1.bf16.msra.mxu0 %v1388
  %1491 = vmatprep.subr.bf16.mxu0 0
  %1492 = vmatpush1.bf16.msra.mxu0 %v1389
  %1493 = vmatprep.subr.bf16.mxu0 0
  %1494 = vmatpush1.bf16.msra.mxu0 %v1390
  %1495 = vmatprep.mubr.bf16.mxu0 %v1226
  %1496 = vmatmul.mubr.bf16.gmra.mrb[0].mxu0 %v1225
  %v1497 = vpop.f32.mrb[0].mxu0
  %v1498 = vadd.f32 %v1458, %v1497
  %v1499 = vpop.f32.mrb[0].mxu0
  %v1500 = vpop.f32.mrb[0].mxu0
  %v1501 = vpop.f32.mrb[0].mxu0
  %1502 = vdwg.mxu0
  %v1503 = vadd.f32 %v1134, %v1498
  %1504 = vst [vmem:[%s1133] sm:$0x3] %v1503
  // Predicated region
  $region14: #{fwd.16} parent=0 // pred_check
    %p1505 = pneg %p12
  $region15: #{fwd.16} parent=0 // pred_check_branch
    %1507 = sbr.rel (%p1505) target = $region17
  $region16: #{fwd.16} parent=0 // pred_region
    %v1508 = vld [vmem:[#allocation2] sm:$0x3]
    %v1509 = vld [vmem:[#allocation2 + $0x2] sm:$0x3]
    %v1510 = vld [vmem:[#allocation2 + $0x4] sm:$0x3]
    %v1511 = vld [vmem:[#allocation2 + $0x6] sm:$0x3]
    %vm1512 = vcmask 1041408
    %v1513 = vsel %vm1512, %v1508, 0.0
    %v1514 = vrot.slane %v1513, 4
    %v1515 = vadd.f32 %v1513, %v1514
    %v1516 = vrot.slane %v1515, 2
    %v1517 = vadd.f32 %v1515, %v1516
    %v1518 = vrot.slane %v1517, 1
    %v1519 = vadd.f32 %v1517, %v1518
    %v1520 = vsel %vm1512, %v1509, 0.0
    %v1521 = vrot.slane %v1520, 4
    %v1522 = vadd.f32 %v1520, %v1521
    %v1523 = vrot.slane %v1522, 2
    %v1524 = vadd.f32 %v1522, %v1523
    %v1525 = vrot.slane %v1524, 1
    %v1526 = vadd.f32 %v1524, %v1525
    %v1527 = vsel %vm1512, %v1510, 0.0
    %v1528 = vrot.slane %v1527, 4
    %v1529 = vadd.f32 %v1527, %v1528
    %v1530 = vrot.slane %v1529, 2
    %v1531 = vadd.f32 %v1529, %v1530
    %v1532 = vrot.slane %v1531, 1
    %v1533 = vadd.f32 %v1531, %v1532
    %v1534 = vsel %vm1512, %v1511, 0.0
    %v1535 = vrot.slane %v1534, 4
    %v1536 = vadd.f32 %v1534, %v1535
    %v1537 = vrot.slane %v1536, 2
    %v1538 = vadd.f32 %v1536, %v1537
    %v1539 = vrot.slane %v1538, 1
    %v1540 = vadd.f32 %v1538, %v1539
    %v1541 = vrcp.pop 2.0
    %v1542 = vmul.f32 %v1519, %v1541
    %v1543 = vmul.f32 %v1526, %v1541
    %v1544 = vmul.f32 %v1533, %v1541
    %v1545 = vmul.f32 %v1540, %v1541
    %v1546 = vadd.f32 %v1542, %v1543
    %v1547 = vadd.f32 %v1546, %v1544
    %v1548 = vadd.f32 %v1547, %v1545
    %v1549 = vrcp.pop 4.0
    %v1550 = vmul.f32 %v1548, %v1549
    %v1551 = vmul.f32 %v1508, %v1508
    %v1552 = vmul.f32 %v1509, %v1509
    %v1553 = vmul.f32 %v1510, %v1510
    %v1554 = vmul.f32 %v1511, %v1511
    %v1555 = vsel %vm1512, %v1551, 0.0
    %v1556 = vrot.slane %v1555, 4
    %v1557 = vadd.f32 %v1555, %v1556
    %v1558 = vrot.slane %v1557, 2
    %v1559 = vadd.f32 %v1557, %v1558
    %v1560 = vrot.slane %v1559, 1
    %v1561 = vadd.f32 %v1559, %v1560
    %v1562 = vsel %vm1512, %v1552, 0.0
    %v1563 = vrot.slane %v1562, 4
    %v1564 = vadd.f32 %v1562, %v1563
    %v1565 = vrot.slane %v1564, 2
    %v1566 = vadd.f32 %v1564, %v1565
    %v1567 = vrot.slane %v1566, 1
    %v1568 = vadd.f32 %v1566, %v1567
    %v1569 = vsel %vm1512, %v1553, 0.0
    %v1570 = vrot.slane %v1569, 4
    %v1571 = vadd.f32 %v1569, %v1570
    %v1572 = vrot.slane %v1571, 2
    %v1573 = vadd.f32 %v1571, %v1572
    %v1574 = vrot.slane %v1573, 1
    %v1575 = vadd.f32 %v1573, %v1574
    %v1576 = vsel %vm1512, %v1554, 0.0
    %v1577 = vrot.slane %v1576, 4
    %v1578 = vadd.f32 %v1576, %v1577
    %v1579 = vrot.slane %v1578, 2
    %v1580 = vadd.f32 %v1578, %v1579
    %v1581 = vrot.slane %v1580, 1
    %v1582 = vadd.f32 %v1580, %v1581
    %v1583 = vmul.f32 %v1561, %v1541
    %v1584 = vmul.f32 %v1568, %v1541
    %v1585 = vmul.f32 %v1575, %v1541
    %v1586 = vmul.f32 %v1582, %v1541
    %v1587 = vadd.f32 %v1583, %v1584
    %v1588 = vadd.f32 %v1587, %v1585
    %v1589 = vadd.f32 %v1588, %v1586
    %v1590 = vmul.f32 %v1589, %v1549
    %v1591 = vmul.f32 %v1550, %v1550
    %v1592 = vsub.f32 %v1590, %v1591
    %v1593 = vmax.f32 %v1592, 0.0
    %v1594 = vsub.f32 %v1508, %v1550
    %v1595 = vsub.f32 %v1509, %v1550
    %v1596 = vsub.f32 %v1510, %v1550
    %v1597 = vsub.f32 %v1511, %v1550
    %v1598 = vadd.f32 %v1593, 1e-05
    %v1599 = vrsqrt.pop %v1598
    %v1600 = vmul.f32 %v1594, %v1599
    %v1601 = vmul.f32 %v1595, %v1599
    %v1602 = vmul.f32 %v1596, %v1599
    %v1603 = vmul.f32 %v1597, %v1599
    %vm1604 = vcmp.ge.f32.partialorder %v1600, 0.0
    %vm1605 = vcmp.ge.f32.partialorder %v1601, 0.0
    %vm1606 = vcmp.ge.f32.partialorder %v1602, 0.0
    %vm1607 = vcmp.ge.f32.partialorder %v1603, 0.0
    %v1608 = vmul.f32 %v1600, 0.2
    %v1609 = vmul.f32 %v1601, 0.2
    %v1610 = vmul.f32 %v1602, 0.2
    %v1611 = vmul.f32 %v1603, 0.2
    %v1612 = vsel %vm1604, %v1600, %v1608
    %v1613 = vsel %vm1605, %v1601, %v1609
    %v1614 = vsel %vm1606, %v1602, %v1610
    %v1615 = vsel %vm1607, %v1603, %v1611
    %1616 = vst [vmem:[%s2] sm:$0x3] %v1612
    %1617 = vst [vmem:[%s2 + $0x2] sm:$0x3] %v1613
    %1618 = vst [vmem:[%s2 + $0x4] sm:$0x3] %v1614
    %1619 = vst [vmem:[%s2 + $0x6] sm:$0x3] %v1615
  $region17: #{fwd.16} parent=0 // pred_fallthru
    _
  // Predicated region
  $region18: #{fwd.16} parent=0 // pred_check
    _
  $region19: #{fwd.16} parent=0 // pred_check_branch
    %1621 = sbr.rel (0) target = $region21
  $region20: #{fwd.16} parent=0 // pred_region
    _
  $region21: #{fwd.16} parent=0 // pred_fallthru
    _
  // Predicated region
  $region22: #{fwd.16} parent=0 // pred_check
    _
  $region23: #{fwd.16} parent=0 // pred_check_branch
    %1623 = sbr.rel (0) target = $region25
  $region24: #{fwd.16} parent=0 // pred_region
    _
  $region25: #{fwd.16} parent=0 // pred_fallthru
    _

// kernel: fwd.17
$region0: #{fwd.17}
  #allocation0 [shape = 'u32[]', space=smem, size = 0x4, offset = 0x4, fixed_abs, tag = 'smem constant byte address 0x4 - core index']
  #allocation1 [shape = 'u32[144,128]{1,0:T(1,128)}', space=vmem, size = 0x12000, scoped, tag = 'internal scratch']
  #allocation2 [shape = 'f32[4,8,64]{2,1,0:T(8,128)}', space=vmem, size = 0x4000, scoped, tag = 'scratch operand']
  %s0 = inlined_call_operand.vmem [shape: bf16[4,8,512], index: 0, kind: input, shape index: {}]
  %s1 = inlined_call_operand.vmem [shape: bf16[4,512,64], index: 1, kind: input, shape index: {}]
  %s2 = inlined_call_operand.vmem [shape: f32[4,8,64], index: 2, kind: output, shape index: {}]
  %s3 = sld [smem:[#allocation0]]
  $region26: #{fwd.17} parent=0
    _
  %s5 = ssub.s32 1, %s3
  %s6 = scalar_select 0, %s5, %s3
  // Predicated region
  $region2: #{fwd.17} parent=0 // pred_check
    _
  $region3: #{fwd.17} parent=0 // pred_check_branch
    %8 = sbr.rel (0) target = $region5
  $region4: #{fwd.17} parent=0 // pred_region
    _
  $region5: #{fwd.17} parent=0 // pred_fallthru
    _
  // Predicated region
  $region6: #{fwd.17} parent=0 // pred_check
    _
  $region7: #{fwd.17} parent=0 // pred_check_branch
    %10 = sbr.rel (0) target = $region9
  $region8: #{fwd.17} parent=0 // pred_region
    _
  $region9: #{fwd.17} parent=0 // pred_fallthru
    _
  %p12 = scmp.eq.s32.totalorder 0, 0
  // Predicated region
  $region10: #{fwd.17} parent=0 // pred_check
    %p13 = pneg %p12
  $region11: #{fwd.17} parent=0 // pred_check_branch
    %15 = sbr.rel (%p13) target = $region13
  $region12: #{fwd.17} parent=0 // pred_region
    %vm16 = vcmask 523264
    %17 = vst.msk [vmem:[#allocation2] sm:$0xff] %vm16, 0.0
    %18 = vst.msk [vmem:[#allocation2 + $0x8] sm:$0xff] %vm16, 0.0
    %19 = vst.msk [vmem:[#allocation2 + $0x10] sm:$0xff] %vm16, 0.0
    %20 = vst.msk [vmem:[#allocation2 + $0x18] sm:$0xff] %vm16, 0.0
  $region13: #{fwd.17} parent=0 // pred_fallthru
    _
  %v21 = vld [vmem:[#allocation2] sm:$0xff]
  %v22 = vld [vmem:[%s0] sm:$0xff]
  %v23 = vld [vmem:[%s0 + $0x8] sm:$0xff]
  %v24 = vld [vmem:[%s1] sm:$0xf]
  %v25 = vld [vmem:[%s1 + $0x4] sm:$0xf]
  %v26 = vld [vmem:[%s1 + $0x8] sm:$0xf]
  %v27 = vld [vmem:[%s1 + $0xc] sm:$0xf]
  %v28 = vld [vmem:[%s1 + $0x10] sm:$0xf]
  %v29 = vld [vmem:[%s1 + $0x14] sm:$0xf]
  %v30 = vld [vmem:[%s1 + $0x18] sm:$0xf]
  %v31 = vld [vmem:[%s1 + $0x1c] sm:$0xf]
  %v32 = vld [vmem:[%s1 + $0x20] sm:$0xf]
  %v33 = vld [vmem:[%s1 + $0x24] sm:$0xf]
  %v34 = vld [vmem:[%s1 + $0x28] sm:$0xf]
  %v35 = vld [vmem:[%s1 + $0x2c] sm:$0xf]
  %v36 = vld [vmem:[%s1 + $0x30] sm:$0xf]
  %v37 = vld [vmem:[%s1 + $0x34] sm:$0xf]
  %v38 = vld [vmem:[%s1 + $0x38] sm:$0xf]
  %v39 = vld [vmem:[%s1 + $0x3c] sm:$0xf]
  %v40 = vld [vmem:[%s1 + $0x40] sm:$0xf]
  %v41 = vld [vmem:[%s1 + $0x44] sm:$0xf]
  %v42 = vld [vmem:[%s1 + $0x48] sm:$0xf]
  %v43 = vld [vmem:[%s1 + $0x4c] sm:$0xf]
  %v44 = vld [vmem:[%s1 + $0x50] sm:$0xf]
  %v45 = vld [vmem:[%s1 + $0x54] sm:$0xf]
  %v46 = vld [vmem:[%s1 + $0x58] sm:$0xf]
  %v47 = vld [vmem:[%s1 + $0x5c] sm:$0xf]
  %v48 = vld [vmem:[%s1 + $0x60] sm:$0xf]
  %v49 = vld [vmem:[%s1 + $0x64] sm:$0xf]
  %v50 = vld [vmem:[%s1 + $0x68] sm:$0xf]
  %v51 = vld [vmem:[%s1 + $0x6c] sm:$0xf]
  %v52 = vld [vmem:[%s1 + $0x70] sm:$0xf]
  %v53 = vld [vmem:[%s1 + $0x74] sm:$0xf]
  %v54 = vld [vmem:[%s1 + $0x78] sm:$0xf]
  %v55 = vld [vmem:[%s1 + $0x7c] sm:$0xf]
  %v56 = vld [vmem:[%s1 + $0x80] sm:$0xf]
  %v57 = vld [vmem:[%s1 + $0x84] sm:$0xf]
  %v58 = vld [vmem:[%s1 + $0x88] sm:$0xf]
  %v59 = vld [vmem:[%s1 + $0x8c] sm:$0xf]
  %v60 = vld [vmem:[%s1 + $0x90] sm:$0xf]
  %v61 = vld [vmem:[%s1 + $0x94] sm:$0xf]
  %v62 = vld [vmem:[%s1 + $0x98] sm:$0xf]
  %v63 = vld [vmem:[%s1 + $0x9c] sm:$0xf]
  %v64 = vld [vmem:[%s1 + $0xa0] sm:$0xf]
  %v65 = vld [vmem:[%s1 + $0xa4] sm:$0xf]
  %v66 = vld [vmem:[%s1 + $0xa8] sm:$0xf]
  %v67 = vld [vmem:[%s1 + $0xac] sm:$0xf]
  %v68 = vld [vmem:[%s1 + $0xb0] sm:$0xf]
  %v69 = vld [vmem:[%s1 + $0xb4] sm:$0xf]
  %v70 = vld [vmem:[%s1 + $0xb8] sm:$0xf]
  %v71 = vld [vmem:[%s1 + $0xbc] sm:$0xf]
  %v72 = vld [vmem:[%s1 + $0xc0] sm:$0xf]
  %v73 = vld [vmem:[%s1 + $0xc4] sm:$0xf]
  %v74 = vld [vmem:[%s1 + $0xc8] sm:$0xf]
  %v75 = vld [vmem:[%s1 + $0xcc] sm:$0xf]
  %v76 = vld [vmem:[%s1 + $0xd0] sm:$0xf]
  %v77 = vld [vmem:[%s1 + $0xd4] sm:$0xf]
  %v78 = vld [vmem:[%s1 + $0xd8] sm:$0xf]
  %v79 = vld [vmem:[%s1 + $0xdc] sm:$0xf]
  %v80 = vld [vmem:[%s1 + $0xe0] sm:$0xf]
  %v81 = vld [vmem:[%s1 + $0xe4] sm:$0xf]
  %v82 = vld [vmem:[%s1 + $0xe8] sm:$0xf]
  %v83 = vld [vmem:[%s1 + $0xec] sm:$0xf]
  %v84 = vld [vmem:[%s1 + $0xf0] sm:$0xf]
  %v85 = vld [vmem:[%s1 + $0xf4] sm:$0xf]
  %v86 = vld [vmem:[%s1 + $0xf8] sm:$0xf]
  %v87 = vld [vmem:[%s1 + $0xfc] sm:$0xf]
  %v90 = vunpack.c.l.b16 %v22
  %v91 = vunpack.c.h.b16 %v22
  %v92 = vunpack.c.l.b16 %v23
  %v93 = vunpack.c.h.b16 %v23
  %v94 = vpack.c.b16 %v90, %v90
  %v95 = vpack.c.b16 %v91, %v91
  %v96 = vpack.c.b16 %v92, %v92
  %v97 = vpack.c.b16 %v93, %v93
  %v166 = vunpack.c.l.b16 %v24
  %v167 = vunpack.c.l.b16 %v25
  %v168 = vunpack.c.l.b16 %v26
  %v169 = vunpack.c.l.b16 %v27
  %v170 = vunpack.c.l.b16 %v28
  %v171 = vunpack.c.l.b16 %v29
  %v172 = vunpack.c.l.b16 %v30
  %v173 = vunpack.c.l.b16 %v31
  %v174 = vunpack.c.l.b16 %v32
  %v175 = vunpack.c.l.b16 %v33
  %v176 = vunpack.c.l.b16 %v34
  %v177 = vunpack.c.l.b16 %v35
  %v178 = vunpack.c.l.b16 %v36
  %v179 = vunpack.c.l.b16 %v37
  %v180 = vunpack.c.l.b16 %v38
  %v181 = vunpack.c.l.b16 %v39
  %v182 = vunpack.c.l.b16 %v40
  %v183 = vunpack.c.l.b16 %v41
  %v184 = vunpack.c.l.b16 %v42
  %v185 = vunpack.c.l.b16 %v43
  %v186 = vunpack.c.l.b16 %v44
  %v187 = vunpack.c.l.b16 %v45
  %v188 = vunpack.c.l.b16 %v46
  %v189 = vunpack.c.l.b16 %v47
  %v190 = vunpack.c.l.b16 %v48
  %v191 = vunpack.c.l.b16 %v49
  %v192 = vunpack.c.l.b16 %v50
  %v193 = vunpack.c.l.b16 %v51
  %v194 = vunpack.c.l.b16 %v52
  %v195 = vunpack.c.l.b16 %v53
  %v196 = vunpack.c.l.b16 %v54
  %v197 = vunpack.c.l.b16 %v55
  %v198 = vunpack.c.l.b16 %v56
  %v199 = vunpack.c.l.b16 %v57
  %v200 = vunpack.c.l.b16 %v58
  %v201 = vunpack.c.l.b16 %v59
  %v202 = vunpack.c.l.b16 %v60
  %v203 = vunpack.c.l.b16 %v61
  %v204 = vunpack.c.l.b16 %v62
  %v205 = vunpack.c.l.b16 %v63
  %v206 = vunpack.c.l.b16 %v64
  %v207 = vunpack.c.l.b16 %v65
  %v208 = vunpack.c.l.b16 %v66
  %v209 = vunpack.c.l.b16 %v67
  %v210 = vunpack.c.l.b16 %v68
  %v211 = vunpack.c.l.b16 %v69
  %v212 = vunpack.c.l.b16 %v70
  %v213 = vunpack.c.l.b16 %v71
  %v214 = vunpack.c.l.b16 %v72
  %v215 = vunpack.c.l.b16 %v73
  %v216 = vunpack.c.l.b16 %v74
  %v217 = vunpack.c.l.b16 %v75
  %v218 = vunpack.c.l.b16 %v76
  %v219 = vunpack.c.l.b16 %v77
  %v220 = vunpack.c.l.b16 %v78
  %v221 = vunpack.c.l.b16 %v79
  %v222 = vunpack.c.l.b16 %v80
  %v223 = vunpack.c.l.b16 %v81
  %v224 = vunpack.c.l.b16 %v82
  %v225 = vunpack.c.l.b16 %v83
  %v226 = vunpack.c.l.b16 %v84
  %v227 = vunpack.c.l.b16 %v85
  %v228 = vunpack.c.l.b16 %v86
  %v229 = vunpack.c.l.b16 %v87
  %v230 = vpack.c.b16 %v167, %v166
  %v231 = vpack.c.b16 %v169, %v168
  %v232 = vpack.c.b16 %v171, %v170
  %v233 = vpack.c.b16 %v173, %v172
  %v234 = vpack.c.b16 %v175, %v174
  %v235 = vpack.c.b16 %v177, %v176
  %v236 = vpack.c.b16 %v179, %v178
  %v237 = vpack.c.b16 %v181, %v180
  %v238 = vpack.c.b16 %v183, %v182
  %v239 = vpack.c.b16 %v185, %v184
  %v240 = vpack.c.b16 %v187, %v186
  %v241 = vpack.c.b16 %v189, %v188
  %v242 = vpack.c.b16 %v191, %v190
  %v243 = vpack.c.b16 %v193, %v192
  %v244 = vpack.c.b16 %v195, %v194
  %v245 = vpack.c.b16 %v197, %v196
  %v246 = vpack.c.b16 %v199, %v198
  %v247 = vpack.c.b16 %v201, %v200
  %v248 = vpack.c.b16 %v203, %v202
  %v249 = vpack.c.b16 %v205, %v204
  %v250 = vpack.c.b16 %v207, %v206
  %v251 = vpack.c.b16 %v209, %v208
  %v252 = vpack.c.b16 %v211, %v210
  %v253 = vpack.c.b16 %v213, %v212
  %v254 = vpack.c.b16 %v215, %v214
  %v255 = vpack.c.b16 %v217, %v216
  %v256 = vpack.c.b16 %v219, %v218
  %v257 = vpack.c.b16 %v221, %v220
  %v258 = vpack.c.b16 %v223, %v222
  %v259 = vpack.c.b16 %v225, %v224
  %v260 = vpack.c.b16 %v227, %v226
  %v261 = vpack.c.b16 %v229, %v228
  %294 = vmatprep.subr.bf16.mxu0 0
  %295 = vmatpush1.bf16.msra.mxu0 %v230
  %296 = vmatprep.subr.bf16.mxu0 0
  %297 = vmatpush1.bf16.msra.mxu0 %v231
  %298 = vmatprep.subr.bf16.mxu0 0
  %299 = vmatpush1.bf16.msra.mxu0 %v232
  %300 = vmatprep.subr.bf16.mxu0 0
  %301 = vmatpush1.bf16.msra.mxu0 %v233
  %302 = vmatprep.subr.bf16.mxu0 0
  %303 = vmatpush1.bf16.msra.mxu0 %v234
  %304 = vmatprep.subr.bf16.mxu0 0
  %305 = vmatpush1.bf16.msra.mxu0 %v235
  %306 = vmatprep.subr.bf16.mxu0 0
  %307 = vmatpush1.bf16.msra.mxu0 %v236
  %308 = vmatprep.subr.bf16.mxu0 0
  %309 = vmatpush1.bf16.msra.mxu0 %v237
  %310 = vmatprep.subr.bf16.mxu0 0
  %311 = vmatpush1.bf16.msra.mxu0 %v238
  %312 = vmatprep.subr.bf16.mxu0 0
  %313 = vmatpush1.bf16.msra.mxu0 %v239
  %314 = vmatprep.subr.bf16.mxu0 0
  %315 = vmatpush1.bf16.msra.mxu0 %v240
  %316 = vmatprep.subr.bf16.mxu0 0
  %317 = vmatpush1.bf16.msra.mxu0 %v241
  %318 = vmatprep.subr.bf16.mxu0 0
  %319 = vmatpush1.bf16.msra.mxu0 %v242
  %320 = vmatprep.subr.bf16.mxu0 0
  %321 = vmatpush1.bf16.msra.mxu0 %v243
  %322 = vmatprep.subr.bf16.mxu0 0
  %323 = vmatpush1.bf16.msra.mxu0 %v244
  %324 = vmatprep.subr.bf16.mxu0 0
  %325 = vmatpush1.bf16.msra.mxu0 %v245
  %326 = vmatprep.mubr.bf16.mxu0 %v95
  %327 = vmatmul.mubr.bf16.gmra.mrb[0].mxu0 %v94
  %v328 = vpop.f32.mrb[0].mxu0
  %v329 = vadd.f32 0.0, %v328
  %v330 = vpop.f32.mrb[0].mxu0
  %v331 = vpop.f32.mrb[0].mxu0
  %v332 = vpop.f32.mrb[0].mxu0
  %333 = vdwg.mxu0
  %334 = vmatprep.subr.bf16.mxu0 0
  %335 = vmatpush1.bf16.msra.mxu0 %v246
  %336 = vmatprep.subr.bf16.mxu0 0
  %337 = vmatpush1.bf16.msra.mxu0 %v247
  %338 = vmatprep.subr.bf16.mxu0 0
  %339 = vmatpush1.bf16.msra.mxu0 %v248
  %340 = vmatprep.subr.bf16.mxu0 0
  %341 = vmatpush1.bf16.msra.mxu0 %v249
  %342 = vmatprep.subr.bf16.mxu0 0
  %343 = vmatpush1.bf16.msra.mxu0 %v250
  %344 = vmatprep.subr.bf16.mxu0 0
  %345 = vmatpush1.bf16.msra.mxu0 %v251
  %346 = vmatprep.subr.bf16.mxu0 0
  %347 = vmatpush1.bf16.msra.mxu0 %v252
  %348 = vmatprep.subr.bf16.mxu0 0
  %349 = vmatpush1.bf16.msra.mxu0 %v253
  %350 = vmatprep.subr.bf16.mxu0 0
  %351 = vmatpush1.bf16.msra.mxu0 %v254
  %352 = vmatprep.subr.bf16.mxu0 0
  %353 = vmatpush1.bf16.msra.mxu0 %v255
  %354 = vmatprep.subr.bf16.mxu0 0
  %355 = vmatpush1.bf16.msra.mxu0 %v256
  %356 = vmatprep.subr.bf16.mxu0 0
  %357 = vmatpush1.bf16.msra.mxu0 %v257
  %358 = vmatprep.subr.bf16.mxu0 0
  %359 = vmatpush1.bf16.msra.mxu0 %v258
  %360 = vmatprep.subr.bf16.mxu0 0
  %361 = vmatpush1.bf16.msra.mxu0 %v259
  %362 = vmatprep.subr.bf16.mxu0 0
  %363 = vmatpush1.bf16.msra.mxu0 %v260
  %364 = vmatprep.subr.bf16.mxu0 0
  %365 = vmatpush1.bf16.msra.mxu0 %v261
  %366 = vmatprep.mubr.bf16.mxu0 %v97
  %367 = vmatmul.mubr.bf16.gmra.mrb[0].mxu0 %v96
  %v368 = vpop.f32.mrb[0].mxu0
  %v369 = vadd.f32 %v329, %v368
  %v370 = vpop.f32.mrb[0].mxu0
  %v371 = vpop.f32.mrb[0].mxu0
  %v372 = vpop.f32.mrb[0].mxu0
  %373 = vdwg.mxu0
  %v374 = vadd.f32 %v21, %v369
  %vm375 = vcmask 523264
  %376 = vst.msk [vmem:[#allocation2] sm:$0xff] %vm375, %v374
  %s377 = scalar_lea.vmem [#allocation2], 8
  %v378 = vld [vmem:[%s377] sm:$0xff]
  %s379 = scalar_lea.vmem %s0, 16
  %v380 = vld [vmem:[%s379] sm:$0xff]
  %v381 = vld [vmem:[%s379 + $0x8] sm:$0xff]
  %s382 = scalar_lea.vmem %s1, 256
  %v383 = vld [vmem:[%s382] sm:$0xf]
  %v384 = vld [vmem:[%s382 + $0x4] sm:$0xf]
  %v385 = vld [vmem:[%s382 + $0x8] sm:$0xf]
  %v386 = vld [vmem:[%s382 + $0xc] sm:$0xf]
  %v387 = vld [vmem:[%s382 + $0x10] sm:$0xf]
  %v388 = vld [vmem:[%s382 + $0x14] sm:$0xf]
  %v389 = vld [vmem:[%s382 + $0x18] sm:$0xf]
  %v390 = vld [vmem:[%s382 + $0x1c] sm:$0xf]
  %v391 = vld [vmem:[%s382 + $0x20] sm:$0xf]
  %v392 = vld [vmem:[%s382 + $0x24] sm:$0xf]
  %v393 = vld [vmem:[%s382 + $0x28] sm:$0xf]
  %v394 = vld [vmem:[%s382 + $0x2c] sm:$0xf]
  %v395 = vld [vmem:[%s382 + $0x30] sm:$0xf]
  %v396 = vld [vmem:[%s382 + $0x34] sm:$0xf]
  %v397 = vld [vmem:[%s382 + $0x38] sm:$0xf]
  %v398 = vld [vmem:[%s382 + $0x3c] sm:$0xf]
  %v399 = vld [vmem:[%s382 + $0x40] sm:$0xf]
  %v400 = vld [vmem:[%s382 + $0x44] sm:$0xf]
  %v401 = vld [vmem:[%s382 + $0x48] sm:$0xf]
  %v402 = vld [vmem:[%s382 + $0x4c] sm:$0xf]
  %v403 = vld [vmem:[%s382 + $0x50] sm:$0xf]
  %v404 = vld [vmem:[%s382 + $0x54] sm:$0xf]
  %v405 = vld [vmem:[%s382 + $0x58] sm:$0xf]
  %v406 = vld [vmem:[%s382 + $0x5c] sm:$0xf]
  %v407 = vld [vmem:[%s382 + $0x60] sm:$0xf]
  %v408 = vld [vmem:[%s382 + $0x64] sm:$0xf]
  %v409 = vld [vmem:[%s382 + $0x68] sm:$0xf]
  %v410 = vld [vmem:[%s382 + $0x6c] sm:$0xf]
  %v411 = vld [vmem:[%s382 + $0x70] sm:$0xf]
  %v412 = vld [vmem:[%s382 + $0x74] sm:$0xf]
  %v413 = vld [vmem:[%s382 + $0x78] sm:$0xf]
  %v414 = vld [vmem:[%s382 + $0x7c] sm:$0xf]
  %v415 = vld [vmem:[%s382 + $0x80] sm:$0xf]
  %v416 = vld [vmem:[%s382 + $0x84] sm:$0xf]
  %v417 = vld [vmem:[%s382 + $0x88] sm:$0xf]
  %v418 = vld [vmem:[%s382 + $0x8c] sm:$0xf]
  %v419 = vld [vmem:[%s382 + $0x90] sm:$0xf]
  %v420 = vld [vmem:[%s382 + $0x94] sm:$0xf]
  %v421 = vld [vmem:[%s382 + $0x98] sm:$0xf]
  %v422 = vld [vmem:[%s382 + $0x9c] sm:$0xf]
  %v423 = vld [vmem:[%s382 + $0xa0] sm:$0xf]
  %v424 = vld [vmem:[%s382 + $0xa4] sm:$0xf]
  %v425 = vld [vmem:[%s382 + $0xa8] sm:$0xf]
  %v426 = vld [vmem:[%s382 + $0xac] sm:$0xf]
  %v427 = vld [vmem:[%s382 + $0xb0] sm:$0xf]
  %v428 = vld [vmem:[%s382 + $0xb4] sm:$0xf]
  %v429 = vld [vmem:[%s382 + $0xb8] sm:$0xf]
  %v430 = vld [vmem:[%s382 + $0xbc] sm:$0xf]
  %v431 = vld [vmem:[%s382 + $0xc0] sm:$0xf]
  %v432 = vld [vmem:[%s382 + $0xc4] sm:$0xf]
  %v433 = vld [vmem:[%s382 + $0xc8] sm:$0xf]
  %v434 = vld [vmem:[%s382 + $0xcc] sm:$0xf]
  %v435 = vld [vmem:[%s382 + $0xd0] sm:$0xf]
  %v436 = vld [vmem:[%s382 + $0xd4] sm:$0xf]
  %v437 = vld [vmem:[%s382 + $0xd8] sm:$0xf]
  %v438 = vld [vmem:[%s382 + $0xdc] sm:$0xf]
  %v439 = vld [vmem:[%s382 + $0xe0] sm:$0xf]
  %v440 = vld [vmem:[%s382 + $0xe4] sm:$0xf]
  %v441 = vld [vmem:[%s382 + $0xe8] sm:$0xf]
  %v442 = vld [vmem:[%s382 + $0xec] sm:$0xf]
  %v443 = vld [vmem:[%s382 + $0xf0] sm:$0xf]
  %v444 = vld [vmem:[%s382 + $0xf4] sm:$0xf]
  %v445 = vld [vmem:[%s382 + $0xf8] sm:$0xf]
  %v446 = vld [vmem:[%s382 + $0xfc] sm:$0xf]
  %v449 = vunpack.c.l.b16 %v380
  %v450 = vunpack.c.h.b16 %v380
  %v451 = vunpack.c.l.b16 %v381
  %v452 = vunpack.c.h.b16 %v381
  %v453 = vpack.c.b16 %v449, %v449
  %v454 = vpack.c.b16 %v450, %v450
  %v455 = vpack.c.b16 %v451, %v451
  %v456 = vpack.c.b16 %v452, %v452
  %v525 = vunpack.c.l.b16 %v383
  %v526 = vunpack.c.l.b16 %v384
  %v527 = vunpack.c.l.b16 %v385
  %v528 = vunpack.c.l.b16 %v386
  %v529 = vunpack.c.l.b16 %v387
  %v530 = vunpack.c.l.b16 %v388
  %v531 = vunpack.c.l.b16 %v389
  %v532 = vunpack.c.l.b16 %v390
  %v533 = vunpack.c.l.b16 %v391
  %v534 = vunpack.c.l.b16 %v392
  %v535 = vunpack.c.l.b16 %v393
  %v536 = vunpack.c.l.b16 %v394
  %v537 = vunpack.c.l.b16 %v395
  %v538 = vunpack.c.l.b16 %v396
  %v539 = vunpack.c.l.b16 %v397
  %v540 = vunpack.c.l.b16 %v398
  %v541 = vunpack.c.l.b16 %v399
  %v542 = vunpack.c.l.b16 %v400
  %v543 = vunpack.c.l.b16 %v401
  %v544 = vunpack.c.l.b16 %v402
  %v545 = vunpack.c.l.b16 %v403
  %v546 = vunpack.c.l.b16 %v404
  %v547 = vunpack.c.l.b16 %v405
  %v548 = vunpack.c.l.b16 %v406
  %v549 = vunpack.c.l.b16 %v407
  %v550 = vunpack.c.l.b16 %v408
  %v551 = vunpack.c.l.b16 %v409
  %v552 = vunpack.c.l.b16 %v410
  %v553 = vunpack.c.l.b16 %v411
  %v554 = vunpack.c.l.b16 %v412
  %v555 = vunpack.c.l.b16 %v413
  %v556 = vunpack.c.l.b16 %v414
  %v557 = vunpack.c.l.b16 %v415
  %v558 = vunpack.c.l.b16 %v416
  %v559 = vunpack.c.l.b16 %v417
  %v560 = vunpack.c.l.b16 %v418
  %v561 = vunpack.c.l.b16 %v419
  %v562 = vunpack.c.l.b16 %v420
  %v563 = vunpack.c.l.b16 %v421
  %v564 = vunpack.c.l.b16 %v422
  %v565 = vunpack.c.l.b16 %v423
  %v566 = vunpack.c.l.b16 %v424
  %v567 = vunpack.c.l.b16 %v425
  %v568 = vunpack.c.l.b16 %v426
  %v569 = vunpack.c.l.b16 %v427
  %v570 = vunpack.c.l.b16 %v428
  %v571 = vunpack.c.l.b16 %v429
  %v572 = vunpack.c.l.b16 %v430
  %v573 = vunpack.c.l.b16 %v431
  %v574 = vunpack.c.l.b16 %v432
  %v575 = vunpack.c.l.b16 %v433
  %v576 = vunpack.c.l.b16 %v434
  %v577 = vunpack.c.l.b16 %v435
  %v578 = vunpack.c.l.b16 %v436
  %v579 = vunpack.c.l.b16 %v437
  %v580 = vunpack.c.l.b16 %v438
  %v581 = vunpack.c.l.b16 %v439
  %v582 = vunpack.c.l.b16 %v440
  %v583 = vunpack.c.l.b16 %v441
  %v584 = vunpack.c.l.b16 %v442
  %v585 = vunpack.c.l.b16 %v443
  %v586 = vunpack.c.l.b16 %v444
  %v587 = vunpack.c.l.b16 %v445
  %v588 = vunpack.c.l.b16 %v446
  %v589 = vpack.c.b16 %v526, %v525
  %v590 = vpack.c.b16 %v528, %v527
  %v591 = vpack.c.b16 %v530, %v529
  %v592 = vpack.c.b16 %v532, %v531
  %v593 = vpack.c.b16 %v534, %v533
  %v594 = vpack.c.b16 %v536, %v535
  %v595 = vpack.c.b16 %v538, %v537
  %v596 = vpack.c.b16 %v540, %v539
  %v597 = vpack.c.b16 %v542, %v541
  %v598 = vpack.c.b16 %v544, %v543
  %v599 = vpack.c.b16 %v546, %v545
  %v600 = vpack.c.b16 %v548, %v547
  %v601 = vpack.c.b16 %v550, %v549
  %v602 = vpack.c.b16 %v552, %v551
  %v603 = vpack.c.b16 %v554, %v553
  %v604 = vpack.c.b16 %v556, %v555
  %v605 = vpack.c.b16 %v558, %v557
  %v606 = vpack.c.b16 %v560, %v559
  %v607 = vpack.c.b16 %v562, %v561
  %v608 = vpack.c.b16 %v564, %v563
  %v609 = vpack.c.b16 %v566, %v565
  %v610 = vpack.c.b16 %v568, %v567
  %v611 = vpack.c.b16 %v570, %v569
  %v612 = vpack.c.b16 %v572, %v571
  %v613 = vpack.c.b16 %v574, %v573
  %v614 = vpack.c.b16 %v576, %v575
  %v615 = vpack.c.b16 %v578, %v577
  %v616 = vpack.c.b16 %v580, %v579
  %v617 = vpack.c.b16 %v582, %v581
  %v618 = vpack.c.b16 %v584, %v583
  %v619 = vpack.c.b16 %v586, %v585
  %v620 = vpack.c.b16 %v588, %v587
  %653 = vmatprep.subr.bf16.mxu0 0
  %654 = vmatpush1.bf16.msra.mxu0 %v589
  %655 = vmatprep.subr.bf16.mxu0 0
  %656 = vmatpush1.bf16.msra.mxu0 %v590
  %657 = vmatprep.subr.bf16.mxu0 0
  %658 = vmatpush1.bf16.msra.mxu0 %v591
  %659 = vmatprep.subr.bf16.mxu0 0
  %660 = vmatpush1.bf16.msra.mxu0 %v592
  %661 = vmatprep.subr.bf16.mxu0 0
  %662 = vmatpush1.bf16.msra.mxu0 %v593
  %663 = vmatprep.subr.bf16.mxu0 0
  %664 = vmatpush1.bf16.msra.mxu0 %v594
  %665 = vmatprep.subr.bf16.mxu0 0
  %666 = vmatpush1.bf16.msra.mxu0 %v595
  %667 = vmatprep.subr.bf16.mxu0 0
  %668 = vmatpush1.bf16.msra.mxu0 %v596
  %669 = vmatprep.subr.bf16.mxu0 0
  %670 = vmatpush1.bf16.msra.mxu0 %v597
  %671 = vmatprep.subr.bf16.mxu0 0
  %672 = vmatpush1.bf16.msra.mxu0 %v598
  %673 = vmatprep.subr.bf16.mxu0 0
  %674 = vmatpush1.bf16.msra.mxu0 %v599
  %675 = vmatprep.subr.bf16.mxu0 0
  %676 = vmatpush1.bf16.msra.mxu0 %v600
  %677 = vmatprep.subr.bf16.mxu0 0
  %678 = vmatpush1.bf16.msra.mxu0 %v601
  %679 = vmatprep.subr.bf16.mxu0 0
  %680 = vmatpush1.bf16.msra.mxu0 %v602
  %681 = vmatprep.subr.bf16.mxu0 0
  %682 = vmatpush1.bf16.msra.mxu0 %v603
  %683 = vmatprep.subr.bf16.mxu0 0
  %684 = vmatpush1.bf16.msra.mxu0 %v604
  %685 = vmatprep.mubr.bf16.mxu0 %v454
  %686 = vmatmul.mubr.bf16.gmra.mrb[0].mxu0 %v453
  %v687 = vpop.f32.mrb[0].mxu0
  %v688 = vadd.f32 0.0, %v687
  %v689 = vpop.f32.mrb[0].mxu0
  %v690 = vpop.f32.mrb[0].mxu0
  %v691 = vpop.f32.mrb[0].mxu0
  %692 = vdwg.mxu0
  %693 = vmatprep.subr.bf16.mxu0 0
  %694 = vmatpush1.bf16.msra.mxu0 %v605
  %695 = vmatprep.subr.bf16.mxu0 0
  %696 = vmatpush1.bf16.msra.mxu0 %v606
  %697 = vmatprep.subr.bf16.mxu0 0
  %698 = vmatpush1.bf16.msra.mxu0 %v607
  %699 = vmatprep.subr.bf16.mxu0 0
  %700 = vmatpush1.bf16.msra.mxu0 %v608
  %701 = vmatprep.subr.bf16.mxu0 0
  %702 = vmatpush1.bf16.msra.mxu0 %v609
  %703 = vmatprep.subr.bf16.mxu0 0
  %704 = vmatpush1.bf16.msra.mxu0 %v610
  %705 = vmatprep.subr.bf16.mxu0 0
  %706 = vmatpush1.bf16.msra.mxu0 %v611
  %707 = vmatprep.subr.bf16.mxu0 0
  %708 = vmatpush1.bf16.msra.mxu0 %v612
  %709 = vmatprep.subr.bf16.mxu0 0
  %710 = vmatpush1.bf16.msra.mxu0 %v613
  %711 = vmatprep.subr.bf16.mxu0 0
  %712 = vmatpush1.bf16.msra.mxu0 %v614
  %713 = vmatprep.subr.bf16.mxu0 0
  %714 = vmatpush1.bf16.msra.mxu0 %v615
  %715 = vmatprep.subr.bf16.mxu0 0
  %716 = vmatpush1.bf16.msra.mxu0 %v616
  %717 = vmatprep.subr.bf16.mxu0 0
  %718 = vmatpush1.bf16.msra.mxu0 %v617
  %719 = vmatprep.subr.bf16.mxu0 0
  %720 = vmatpush1.bf16.msra.mxu0 %v618
  %721 = vmatprep.subr.bf16.mxu0 0
  %722 = vmatpush1.bf16.msra.mxu0 %v619
  %723 = vmatprep.subr.bf16.mxu0 0
  %724 = vmatpush1.bf16.msra.mxu0 %v620
  %725 = vmatprep.mubr.bf16.mxu0 %v456
  %726 = vmatmul.mubr.bf16.gmra.mrb[0].mxu0 %v455
  %v727 = vpop.f32.mrb[0].mxu0
  %v728 = vadd.f32 %v688, %v727
  %v729 = vpop.f32.mrb[0].mxu0
  %v730 = vpop.f32.mrb[0].mxu0
  %v731 = vpop.f32.mrb[0].mxu0
  %732 = vdwg.mxu0
  %v733 = vadd.f32 %v378, %v728
  %734 = vst.msk [vmem:[%s377] sm:$0xff] %vm375, %v733
  %s735 = scalar_lea.vmem [#allocation2], 16
  %v736 = vld [vmem:[%s735] sm:$0xff]
  %s737 = scalar_lea.vmem %s0, 32
  %v738 = vld [vmem:[%s737] sm:$0xff]
  %v739 = vld [vmem:[%s737 + $0x8] sm:$0xff]
  %s740 = scalar_lea.vmem %s1, 512
  %v741 = vld [vmem:[%s740] sm:$0xf]
  %v742 = vld [vmem:[%s740 + $0x4] sm:$0xf]
  %v743 = vld [vmem:[%s740 + $0x8] sm:$0xf]
  %v744 = vld [vmem:[%s740 + $0xc] sm:$0xf]
  %v745 = vld [vmem:[%s740 + $0x10] sm:$0xf]
  %v746 = vld [vmem:[%s740 + $0x14] sm:$0xf]
  %v747 = vld [vmem:[%s740 + $0x18] sm:$0xf]
  %v748 = vld [vmem:[%s740 + $0x1c] sm:$0xf]
  %v749 = vld [vmem:[%s740 + $0x20] sm:$0xf]
  %v750 = vld [vmem:[%s740 + $0x24] sm:$0xf]
  %v751 = vld [vmem:[%s740 + $0x28] sm:$0xf]
  %v752 = vld [vmem:[%s740 + $0x2c] sm:$0xf]
  %v753 = vld [vmem:[%s740 + $0x30] sm:$0xf]
  %v754 = vld [vmem:[%s740 + $0x34] sm:$0xf]
  %v755 = vld [vmem:[%s740 + $0x38] sm:$0xf]
  %v756 = vld [vmem:[%s740 + $0x3c] sm:$0xf]
  %v757 = vld [vmem:[%s740 + $0x40] sm:$0xf]
  %v758 = vld [vmem:[%s740 + $0x44] sm:$0xf]
  %v759 = vld [vmem:[%s740 + $0x48] sm:$0xf]
  %v760 = vld [vmem:[%s740 + $0x4c] sm:$0xf]
  %v761 = vld [vmem:[%s740 + $0x50] sm:$0xf]
  %v762 = vld [vmem:[%s740 + $0x54] sm:$0xf]
  %v763 = vld [vmem:[%s740 + $0x58] sm:$0xf]
  %v764 = vld [vmem:[%s740 + $0x5c] sm:$0xf]
  %v765 = vld [vmem:[%s740 + $0x60] sm:$0xf]
  %v766 = vld [vmem:[%s740 + $0x64] sm:$0xf]
  %v767 = vld [vmem:[%s740 + $0x68] sm:$0xf]
  %v768 = vld [vmem:[%s740 + $0x6c] sm:$0xf]
  %v769 = vld [vmem:[%s740 + $0x70] sm:$0xf]
  %v770 = vld [vmem:[%s740 + $0x74] sm:$0xf]
  %v771 = vld [vmem:[%s740 + $0x78] sm:$0xf]
  %v772 = vld [vmem:[%s740 + $0x7c] sm:$0xf]
  %v773 = vld [vmem:[%s740 + $0x80] sm:$0xf]
  %v774 = vld [vmem:[%s740 + $0x84] sm:$0xf]
  %v775 = vld [vmem:[%s740 + $0x88] sm:$0xf]
  %v776 = vld [vmem:[%s740 + $0x8c] sm:$0xf]
  %v777 = vld [vmem:[%s740 + $0x90] sm:$0xf]
  %v778 = vld [vmem:[%s740 + $0x94] sm:$0xf]
  %v779 = vld [vmem:[%s740 + $0x98] sm:$0xf]
  %v780 = vld [vmem:[%s740 + $0x9c] sm:$0xf]
  %v781 = vld [vmem:[%s740 + $0xa0] sm:$0xf]
  %v782 = vld [vmem:[%s740 + $0xa4] sm:$0xf]
  %v783 = vld [vmem:[%s740 + $0xa8] sm:$0xf]
  %v784 = vld [vmem:[%s740 + $0xac] sm:$0xf]
  %v785 = vld [vmem:[%s740 + $0xb0] sm:$0xf]
  %v786 = vld [vmem:[%s740 + $0xb4] sm:$0xf]
  %v787 = vld [vmem:[%s740 + $0xb8] sm:$0xf]
  %v788 = vld [vmem:[%s740 + $0xbc] sm:$0xf]
  %v789 = vld [vmem:[%s740 + $0xc0] sm:$0xf]
  %v790 = vld [vmem:[%s740 + $0xc4] sm:$0xf]
  %v791 = vld [vmem:[%s740 + $0xc8] sm:$0xf]
  %v792 = vld [vmem:[%s740 + $0xcc] sm:$0xf]
  %v793 = vld [vmem:[%s740 + $0xd0] sm:$0xf]
  %v794 = vld [vmem:[%s740 + $0xd4] sm:$0xf]
  %v795 = vld [vmem:[%s740 + $0xd8] sm:$0xf]
  %v796 = vld [vmem:[%s740 + $0xdc] sm:$0xf]
  %v797 = vld [vmem:[%s740 + $0xe0] sm:$0xf]
  %v798 = vld [vmem:[%s740 + $0xe4] sm:$0xf]
  %v799 = vld [vmem:[%s740 + $0xe8] sm:$0xf]
  %v800 = vld [vmem:[%s740 + $0xec] sm:$0xf]
  %v801 = vld [vmem:[%s740 + $0xf0] sm:$0xf]
  %v802 = vld [vmem:[%s740 + $0xf4] sm:$0xf]
  %v803 = vld [vmem:[%s740 + $0xf8] sm:$0xf]
  %v804 = vld [vmem:[%s740 + $0xfc] sm:$0xf]
  %v807 = vunpack.c.l.b16 %v738
  %v808 = vunpack.c.h.b16 %v738
  %v809 = vunpack.c.l.b16 %v739
  %v810 = vunpack.c.h.b16 %v739
  %v811 = vpack.c.b16 %v807, %v807
  %v812 = vpack.c.b16 %v808, %v808
  %v813 = vpack.c.b16 %v809, %v809
  %v814 = vpack.c.b16 %v810, %v810
  %v883 = vunpack.c.l.b16 %v741
  %v884 = vunpack.c.l.b16 %v742
  %v885 = vunpack.c.l.b16 %v743
  %v886 = vunpack.c.l.b16 %v744
  %v887 = vunpack.c.l.b16 %v745
  %v888 = vunpack.c.l.b16 %v746
  %v889 = vunpack.c.l.b16 %v747
  %v890 = vunpack.c.l.b16 %v748
  %v891 = vunpack.c.l.b16 %v749
  %v892 = vunpack.c.l.b16 %v750
  %v893 = vunpack.c.l.b16 %v751
  %v894 = vunpack.c.l.b16 %v752
  %v895 = vunpack.c.l.b16 %v753
  %v896 = vunpack.c.l.b16 %v754
  %v897 = vunpack.c.l.b16 %v755
  %v898 = vunpack.c.l.b16 %v756
  %v899 = vunpack.c.l.b16 %v757
  %v900 = vunpack.c.l.b16 %v758
  %v901 = vunpack.c.l.b16 %v759
  %v902 = vunpack.c.l.b16 %v760
  %v903 = vunpack.c.l.b16 %v761
  %v904 = vunpack.c.l.b16 %v762
  %v905 = vunpack.c.l.b16 %v763
  %v906 = vunpack.c.l.b16 %v764
  %v907 = vunpack.c.l.b16 %v765
  %v908 = vunpack.c.l.b16 %v766
  %v909 = vunpack.c.l.b16 %v767
  %v910 = vunpack.c.l.b16 %v768
  %v911 = vunpack.c.l.b16 %v769
  %v912 = vunpack.c.l.b16 %v770
  %v913 = vunpack.c.l.b16 %v771
  %v914 = vunpack.c.l.b16 %v772
  %v915 = vunpack.c.l.b16 %v773
  %v916 = vunpack.c.l.b16 %v774
  %v917 = vunpack.c.l.b16 %v775
  %v918 = vunpack.c.l.b16 %v776
  %v919 = vunpack.c.l.b16 %v777
  %v920 = vunpack.c.l.b16 %v778
  %v921 = vunpack.c.l.b16 %v779
  %v922 = vunpack.c.l.b16 %v780
  %v923 = vunpack.c.l.b16 %v781
  %v924 = vunpack.c.l.b16 %v782
  %v925 = vunpack.c.l.b16 %v783
  %v926 = vunpack.c.l.b16 %v784
  %v927 = vunpack.c.l.b16 %v785
  %v928 = vunpack.c.l.b16 %v786
  %v929 = vunpack.c.l.b16 %v787
  %v930 = vunpack.c.l.b16 %v788
  %v931 = vunpack.c.l.b16 %v789
  %v932 = vunpack.c.l.b16 %v790
  %v933 = vunpack.c.l.b16 %v791
  %v934 = vunpack.c.l.b16 %v792
  %v935 = vunpack.c.l.b16 %v793
  %v936 = vunpack.c.l.b16 %v794
  %v937 = vunpack.c.l.b16 %v795
  %v938 = vunpack.c.l.b16 %v796
  %v939 = vunpack.c.l.b16 %v797
  %v940 = vunpack.c.l.b16 %v798
  %v941 = vunpack.c.l.b16 %v799
  %v942 = vunpack.c.l.b16 %v800
  %v943 = vunpack.c.l.b16 %v801
  %v944 = vunpack.c.l.b16 %v802
  %v945 = vunpack.c.l.b16 %v803
  %v946 = vunpack.c.l.b16 %v804
  %v947 = vpack.c.b16 %v884, %v883
  %v948 = vpack.c.b16 %v886, %v885
  %v949 = vpack.c.b16 %v888, %v887
  %v950 = vpack.c.b16 %v890, %v889
  %v951 = vpack.c.b16 %v892, %v891
  %v952 = vpack.c.b16 %v894, %v893
  %v953 = vpack.c.b16 %v896, %v895
  %v954 = vpack.c.b16 %v898, %v897
  %v955 = vpack.c.b16 %v900, %v899
  %v956 = vpack.c.b16 %v902, %v901
  %v957 = vpack.c.b16 %v904, %v903
  %v958 = vpack.c.b16 %v906, %v905
  %v959 = vpack.c.b16 %v908, %v907
  %v960 = vpack.c.b16 %v910, %v909
  %v961 = vpack.c.b16 %v912, %v911
  %v962 = vpack.c.b16 %v914, %v913
  %v963 = vpack.c.b16 %v916, %v915
  %v964 = vpack.c.b16 %v918, %v917
  %v965 = vpack.c.b16 %v920, %v919
  %v966 = vpack.c.b16 %v922, %v921
  %v967 = vpack.c.b16 %v924, %v923
  %v968 = vpack.c.b16 %v926, %v925
  %v969 = vpack.c.b16 %v928, %v927
  %v970 = vpack.c.b16 %v930, %v929
  %v971 = vpack.c.b16 %v932, %v931
  %v972 = vpack.c.b16 %v934, %v933
  %v973 = vpack.c.b16 %v936, %v935
  %v974 = vpack.c.b16 %v938, %v937
  %v975 = vpack.c.b16 %v940, %v939
  %v976 = vpack.c.b16 %v942, %v941
  %v977 = vpack.c.b16 %v944, %v943
  %v978 = vpack.c.b16 %v946, %v945
  %1011 = vmatprep.subr.bf16.mxu0 0
  %1012 = vmatpush1.bf16.msra.mxu0 %v947
  %1013 = vmatprep.subr.bf16.mxu0 0
  %1014 = vmatpush1.bf16.msra.mxu0 %v948
  %1015 = vmatprep.subr.bf16.mxu0 0
  %1016 = vmatpush1.bf16.msra.mxu0 %v949
  %1017 = vmatprep.subr.bf16.mxu0 0
  %1018 = vmatpush1.bf16.msra.mxu0 %v950
  %1019 = vmatprep.subr.bf16.mxu0 0
  %1020 = vmatpush1.bf16.msra.mxu0 %v951
  %1021 = vmatprep.subr.bf16.mxu0 0
  %1022 = vmatpush1.bf16.msra.mxu0 %v952
  %1023 = vmatprep.subr.bf16.mxu0 0
  %1024 = vmatpush1.bf16.msra.mxu0 %v953
  %1025 = vmatprep.subr.bf16.mxu0 0
  %1026 = vmatpush1.bf16.msra.mxu0 %v954
  %1027 = vmatprep.subr.bf16.mxu0 0
  %1028 = vmatpush1.bf16.msra.mxu0 %v955
  %1029 = vmatprep.subr.bf16.mxu0 0
  %1030 = vmatpush1.bf16.msra.mxu0 %v956
  %1031 = vmatprep.subr.bf16.mxu0 0
  %1032 = vmatpush1.bf16.msra.mxu0 %v957
  %1033 = vmatprep.subr.bf16.mxu0 0
  %1034 = vmatpush1.bf16.msra.mxu0 %v958
  %1035 = vmatprep.subr.bf16.mxu0 0
  %1036 = vmatpush1.bf16.msra.mxu0 %v959
  %1037 = vmatprep.subr.bf16.mxu0 0
  %1038 = vmatpush1.bf16.msra.mxu0 %v960
  %1039 = vmatprep.subr.bf16.mxu0 0
  %1040 = vmatpush1.bf16.msra.mxu0 %v961
  %1041 = vmatprep.subr.bf16.mxu0 0
  %1042 = vmatpush1.bf16.msra.mxu0 %v962
  %1043 = vmatprep.mubr.bf16.mxu0 %v812
  %1044 = vmatmul.mubr.bf16.gmra.mrb[0].mxu0 %v811
  %v1045 = vpop.f32.mrb[0].mxu0
  %v1046 = vadd.f32 0.0, %v1045
  %v1047 = vpop.f32.mrb[0].mxu0
  %v1048 = vpop.f32.mrb[0].mxu0
  %v1049 = vpop.f32.mrb[0].mxu0
  %1050 = vdwg.mxu0
  %1051 = vmatprep.subr.bf16.mxu0 0
  %1052 = vmatpush1.bf16.msra.mxu0 %v963
  %1053 = vmatprep.subr.bf16.mxu0 0
  %1054 = vmatpush1.bf16.msra.mxu0 %v964
  %1055 = vmatprep.subr.bf16.mxu0 0
  %1056 = vmatpush1.bf16.msra.mxu0 %v965
  %1057 = vmatprep.subr.bf16.mxu0 0
  %1058 = vmatpush1.bf16.msra.mxu0 %v966
  %1059 = vmatprep.subr.bf16.mxu0 0
  %1060 = vmatpush1.bf16.msra.mxu0 %v967
  %1061 = vmatprep.subr.bf16.mxu0 0
  %1062 = vmatpush1.bf16.msra.mxu0 %v968
  %1063 = vmatprep.subr.bf16.mxu0 0
  %1064 = vmatpush1.bf16.msra.mxu0 %v969
  %1065 = vmatprep.subr.bf16.mxu0 0
  %1066 = vmatpush1.bf16.msra.mxu0 %v970
  %1067 = vmatprep.subr.bf16.mxu0 0
  %1068 = vmatpush1.bf16.msra.mxu0 %v971
  %1069 = vmatprep.subr.bf16.mxu0 0
  %1070 = vmatpush1.bf16.msra.mxu0 %v972
  %1071 = vmatprep.subr.bf16.mxu0 0
  %1072 = vmatpush1.bf16.msra.mxu0 %v973
  %1073 = vmatprep.subr.bf16.mxu0 0
  %1074 = vmatpush1.bf16.msra.mxu0 %v974
  %1075 = vmatprep.subr.bf16.mxu0 0
  %1076 = vmatpush1.bf16.msra.mxu0 %v975
  %1077 = vmatprep.subr.bf16.mxu0 0
  %1078 = vmatpush1.bf16.msra.mxu0 %v976
  %1079 = vmatprep.subr.bf16.mxu0 0
  %1080 = vmatpush1.bf16.msra.mxu0 %v977
  %1081 = vmatprep.subr.bf16.mxu0 0
  %1082 = vmatpush1.bf16.msra.mxu0 %v978
  %1083 = vmatprep.mubr.bf16.mxu0 %v814
  %1084 = vmatmul.mubr.bf16.gmra.mrb[0].mxu0 %v813
  %v1085 = vpop.f32.mrb[0].mxu0
  %v1086 = vadd.f32 %v1046, %v1085
  %v1087 = vpop.f32.mrb[0].mxu0
  %v1088 = vpop.f32.mrb[0].mxu0
  %v1089 = vpop.f32.mrb[0].mxu0
  %1090 = vdwg.mxu0
  %v1091 = vadd.f32 %v736, %v1086
  %1092 = vst.msk [vmem:[%s735] sm:$0xff] %vm375, %v1091
  %s1093 = scalar_lea.vmem [#allocation2], 24
  %v1094 = vld [vmem:[%s1093] sm:$0xff]
  %s1095 = scalar_lea.vmem %s0, 48
  %v1096 = vld [vmem:[%s1095] sm:$0xff]
  %v1097 = vld [vmem:[%s1095 + $0x8] sm:$0xff]
  %s1098 = scalar_lea.vmem %s1, 768
  %v1099 = vld [vmem:[%s1098] sm:$0xf]
  %v1100 = vld [vmem:[%s1098 + $0x4] sm:$0xf]
  %v1101 = vld [vmem:[%s1098 + $0x8] sm:$0xf]
  %v1102 = vld [vmem:[%s1098 + $0xc] sm:$0xf]
  %v1103 = vld [vmem:[%s1098 + $0x10] sm:$0xf]
  %v1104 = vld [vmem:[%s1098 + $0x14] sm:$0xf]
  %v1105 = vld [vmem:[%s1098 + $0x18] sm:$0xf]
  %v1106 = vld [vmem:[%s1098 + $0x1c] sm:$0xf]
  %v1107 = vld [vmem:[%s1098 + $0x20] sm:$0xf]
  %v1108 = vld [vmem:[%s1098 + $0x24] sm:$0xf]
  %v1109 = vld [vmem:[%s1098 + $0x28] sm:$0xf]
  %v1110 = vld [vmem:[%s1098 + $0x2c] sm:$0xf]
  %v1111 = vld [vmem:[%s1098 + $0x30] sm:$0xf]
  %v1112 = vld [vmem:[%s1098 + $0x34] sm:$0xf]
  %v1113 = vld [vmem:[%s1098 + $0x38] sm:$0xf]
  %v1114 = vld [vmem:[%s1098 + $0x3c] sm:$0xf]
  %v1115 = vld [vmem:[%s1098 + $0x40] sm:$0xf]
  %v1116 = vld [vmem:[%s1098 + $0x44] sm:$0xf]
  %v1117 = vld [vmem:[%s1098 + $0x48] sm:$0xf]
  %v1118 = vld [vmem:[%s1098 + $0x4c] sm:$0xf]
  %v1119 = vld [vmem:[%s1098 + $0x50] sm:$0xf]
  %v1120 = vld [vmem:[%s1098 + $0x54] sm:$0xf]
  %v1121 = vld [vmem:[%s1098 + $0x58] sm:$0xf]
  %v1122 = vld [vmem:[%s1098 + $0x5c] sm:$0xf]
  %v1123 = vld [vmem:[%s1098 + $0x60] sm:$0xf]
  %v1124 = vld [vmem:[%s1098 + $0x64] sm:$0xf]
  %v1125 = vld [vmem:[%s1098 + $0x68] sm:$0xf]
  %v1126 = vld [vmem:[%s1098 + $0x6c] sm:$0xf]
  %v1127 = vld [vmem:[%s1098 + $0x70] sm:$0xf]
  %v1128 = vld [vmem:[%s1098 + $0x74] sm:$0xf]
  %v1129 = vld [vmem:[%s1098 + $0x78] sm:$0xf]
  %v1130 = vld [vmem:[%s1098 + $0x7c] sm:$0xf]
  %v1131 = vld [vmem:[%s1098 + $0x80] sm:$0xf]
  %v1132 = vld [vmem:[%s1098 + $0x84] sm:$0xf]
  %v1133 = vld [vmem:[%s1098 + $0x88] sm:$0xf]
  %v1134 = vld [vmem:[%s1098 + $0x8c] sm:$0xf]
  %v1135 = vld [vmem:[%s1098 + $0x90] sm:$0xf]
  %v1136 = vld [vmem:[%s1098 + $0x94] sm:$0xf]
  %v1137 = vld [vmem:[%s1098 + $0x98] sm:$0xf]
  %v1138 = vld [vmem:[%s1098 + $0x9c] sm:$0xf]
  %v1139 = vld [vmem:[%s1098 + $0xa0] sm:$0xf]
  %v1140 = vld [vmem:[%s1098 + $0xa4] sm:$0xf]
  %v1141 = vld [vmem:[%s1098 + $0xa8] sm:$0xf]
  %v1142 = vld [vmem:[%s1098 + $0xac] sm:$0xf]
  %v1143 = vld [vmem:[%s1098 + $0xb0] sm:$0xf]
  %v1144 = vld [vmem:[%s1098 + $0xb4] sm:$0xf]
  %v1145 = vld [vmem:[%s1098 + $0xb8] sm:$0xf]
  %v1146 = vld [vmem:[%s1098 + $0xbc] sm:$0xf]
  %v1147 = vld [vmem:[%s1098 + $0xc0] sm:$0xf]
  %v1148 = vld [vmem:[%s1098 + $0xc4] sm:$0xf]
  %v1149 = vld [vmem:[%s1098 + $0xc8] sm:$0xf]
  %v1150 = vld [vmem:[%s1098 + $0xcc] sm:$0xf]
  %v1151 = vld [vmem:[%s1098 + $0xd0] sm:$0xf]
  %v1152 = vld [vmem:[%s1098 + $0xd4] sm:$0xf]
  %v1153 = vld [vmem:[%s1098 + $0xd8] sm:$0xf]
  %v1154 = vld [vmem:[%s1098 + $0xdc] sm:$0xf]
  %v1155 = vld [vmem:[%s1098 + $0xe0] sm:$0xf]
  %v1156 = vld [vmem:[%s1098 + $0xe4] sm:$0xf]
  %v1157 = vld [vmem:[%s1098 + $0xe8] sm:$0xf]
  %v1158 = vld [vmem:[%s1098 + $0xec] sm:$0xf]
  %v1159 = vld [vmem:[%s1098 + $0xf0] sm:$0xf]
  %v1160 = vld [vmem:[%s1098 + $0xf4] sm:$0xf]
  %v1161 = vld [vmem:[%s1098 + $0xf8] sm:$0xf]
  %v1162 = vld [vmem:[%s1098 + $0xfc] sm:$0xf]
  %v1165 = vunpack.c.l.b16 %v1096
  %v1166 = vunpack.c.h.b16 %v1096
  %v1167 = vunpack.c.l.b16 %v1097
  %v1168 = vunpack.c.h.b16 %v1097
  %v1169 = vpack.c.b16 %v1165, %v1165
  %v1170 = vpack.c.b16 %v1166, %v1166
  %v1171 = vpack.c.b16 %v1167, %v1167
  %v1172 = vpack.c.b16 %v1168, %v1168
  %v1241 = vunpack.c.l.b16 %v1099
  %v1242 = vunpack.c.l.b16 %v1100
  %v1243 = vunpack.c.l.b16 %v1101
  %v1244 = vunpack.c.l.b16 %v1102
  %v1245 = vunpack.c.l.b16 %v1103
  %v1246 = vunpack.c.l.b16 %v1104
  %v1247 = vunpack.c.l.b16 %v1105
  %v1248 = vunpack.c.l.b16 %v1106
  %v1249 = vunpack.c.l.b16 %v1107
  %v1250 = vunpack.c.l.b16 %v1108
  %v1251 = vunpack.c.l.b16 %v1109
  %v1252 = vunpack.c.l.b16 %v1110
  %v1253 = vunpack.c.l.b16 %v1111
  %v1254 = vunpack.c.l.b16 %v1112
  %v1255 = vunpack.c.l.b16 %v1113
  %v1256 = vunpack.c.l.b16 %v1114
  %v1257 = vunpack.c.l.b16 %v1115
  %v1258 = vunpack.c.l.b16 %v1116
  %v1259 = vunpack.c.l.b16 %v1117
  %v1260 = vunpack.c.l.b16 %v1118
  %v1261 = vunpack.c.l.b16 %v1119
  %v1262 = vunpack.c.l.b16 %v1120
  %v1263 = vunpack.c.l.b16 %v1121
  %v1264 = vunpack.c.l.b16 %v1122
  %v1265 = vunpack.c.l.b16 %v1123
  %v1266 = vunpack.c.l.b16 %v1124
  %v1267 = vunpack.c.l.b16 %v1125
  %v1268 = vunpack.c.l.b16 %v1126
  %v1269 = vunpack.c.l.b16 %v1127
  %v1270 = vunpack.c.l.b16 %v1128
  %v1271 = vunpack.c.l.b16 %v1129
  %v1272 = vunpack.c.l.b16 %v1130
  %v1273 = vunpack.c.l.b16 %v1131
  %v1274 = vunpack.c.l.b16 %v1132
  %v1275 = vunpack.c.l.b16 %v1133
  %v1276 = vunpack.c.l.b16 %v1134
  %v1277 = vunpack.c.l.b16 %v1135
  %v1278 = vunpack.c.l.b16 %v1136
  %v1279 = vunpack.c.l.b16 %v1137
  %v1280 = vunpack.c.l.b16 %v1138
  %v1281 = vunpack.c.l.b16 %v1139
  %v1282 = vunpack.c.l.b16 %v1140
  %v1283 = vunpack.c.l.b16 %v1141
  %v1284 = vunpack.c.l.b16 %v1142
  %v1285 = vunpack.c.l.b16 %v1143
  %v1286 = vunpack.c.l.b16 %v1144
  %v1287 = vunpack.c.l.b16 %v1145
  %v1288 = vunpack.c.l.b16 %v1146
  %v1289 = vunpack.c.l.b16 %v1147
  %v1290 = vunpack.c.l.b16 %v1148
  %v1291 = vunpack.c.l.b16 %v1149
  %v1292 = vunpack.c.l.b16 %v1150
  %v1293 = vunpack.c.l.b16 %v1151
  %v1294 = vunpack.c.l.b16 %v1152
  %v1295 = vunpack.c.l.b16 %v1153
  %v1296 = vunpack.c.l.b16 %v1154
  %v1297 = vunpack.c.l.b16 %v1155
  %v1298 = vunpack.c.l.b16 %v1156
  %v1299 = vunpack.c.l.b16 %v1157
  %v1300 = vunpack.c.l.b16 %v1158
  %v1301 = vunpack.c.l.b16 %v1159
  %v1302 = vunpack.c.l.b16 %v1160
  %v1303 = vunpack.c.l.b16 %v1161
  %v1304 = vunpack.c.l.b16 %v1162
  %v1305 = vpack.c.b16 %v1242, %v1241
  %v1306 = vpack.c.b16 %v1244, %v1243
  %v1307 = vpack.c.b16 %v1246, %v1245
  %v1308 = vpack.c.b16 %v1248, %v1247
  %v1309 = vpack.c.b16 %v1250, %v1249
  %v1310 = vpack.c.b16 %v1252, %v1251
  %v1311 = vpack.c.b16 %v1254, %v1253
  %v1312 = vpack.c.b16 %v1256, %v1255
  %v1313 = vpack.c.b16 %v1258, %v1257
  %v1314 = vpack.c.b16 %v1260, %v1259
  %v1315 = vpack.c.b16 %v1262, %v1261
  %v1316 = vpack.c.b16 %v1264, %v1263
  %v1317 = vpack.c.b16 %v1266, %v1265
  %v1318 = vpack.c.b16 %v1268, %v1267
  %v1319 = vpack.c.b16 %v1270, %v1269
  %v1320 = vpack.c.b16 %v1272, %v1271
  %v1321 = vpack.c.b16 %v1274, %v1273
  %v1322 = vpack.c.b16 %v1276, %v1275
  %v1323 = vpack.c.b16 %v1278, %v1277
  %v1324 = vpack.c.b16 %v1280, %v1279
  %v1325 = vpack.c.b16 %v1282, %v1281
  %v1326 = vpack.c.b16 %v1284, %v1283
  %v1327 = vpack.c.b16 %v1286, %v1285
  %v1328 = vpack.c.b16 %v1288, %v1287
  %v1329 = vpack.c.b16 %v1290, %v1289
  %v1330 = vpack.c.b16 %v1292, %v1291
  %v1331 = vpack.c.b16 %v1294, %v1293
  %v1332 = vpack.c.b16 %v1296, %v1295
  %v1333 = vpack.c.b16 %v1298, %v1297
  %v1334 = vpack.c.b16 %v1300, %v1299
  %v1335 = vpack.c.b16 %v1302, %v1301
  %v1336 = vpack.c.b16 %v1304, %v1303
  %1369 = vmatprep.subr.bf16.mxu0 0
  %1370 = vmatpush1.bf16.msra.mxu0 %v1305
  %1371 = vmatprep.subr.bf16.mxu0 0
  %1372 = vmatpush1.bf16.msra.mxu0 %v1306
  %1373 = vmatprep.subr.bf16.mxu0 0
  %1374 = vmatpush1.bf16.msra.mxu0 %v1307
  %1375 = vmatprep.subr.bf16.mxu0 0
  %1376 = vmatpush1.bf16.msra.mxu0 %v1308
  %1377 = vmatprep.subr.bf16.mxu0 0
  %1378 = vmatpush1.bf16.msra.mxu0 %v1309
  %1379 = vmatprep.subr.bf16.mxu0 0
  %1380 = vmatpush1.bf16.msra.mxu0 %v1310
  %1381 = vmatprep.subr.bf16.mxu0 0
  %1382 = vmatpush1.bf16.msra.mxu0 %v1311
  %1383 = vmatprep.subr.bf16.mxu0 0
  %1384 = vmatpush1.bf16.msra.mxu0 %v1312
  %1385 = vmatprep.subr.bf16.mxu0 0
  %1386 = vmatpush1.bf16.msra.mxu0 %v1313
  %1387 = vmatprep.subr.bf16.mxu0 0
  %1388 = vmatpush1.bf16.msra.mxu0 %v1314
  %1389 = vmatprep.subr.bf16.mxu0 0
  %1390 = vmatpush1.bf16.msra.mxu0 %v1315
  %1391 = vmatprep.subr.bf16.mxu0 0
  %1392 = vmatpush1.bf16.msra.mxu0 %v1316
  %1393 = vmatprep.subr.bf16.mxu0 0
  %1394 = vmatpush1.bf16.msra.mxu0 %v1317
  %1395 = vmatprep.subr.bf16.mxu0 0
  %1396 = vmatpush1.bf16.msra.mxu0 %v1318
  %1397 = vmatprep.subr.bf16.mxu0 0
  %1398 = vmatpush1.bf16.msra.mxu0 %v1319
  %1399 = vmatprep.subr.bf16.mxu0 0
  %1400 = vmatpush1.bf16.msra.mxu0 %v1320
  %1401 = vmatprep.mubr.bf16.mxu0 %v1170
  %1402 = vmatmul.mubr.bf16.gmra.mrb[0].mxu0 %v1169
  %v1403 = vpop.f32.mrb[0].mxu0
  %v1404 = vadd.f32 0.0, %v1403
  %v1405 = vpop.f32.mrb[0].mxu0
  %v1406 = vpop.f32.mrb[0].mxu0
  %v1407 = vpop.f32.mrb[0].mxu0
  %1408 = vdwg.mxu0
  %1409 = vmatprep.subr.bf16.mxu0 0
  %1410 = vmatpush1.bf16.msra.mxu0 %v1321
  %1411 = vmatprep.subr.bf16.mxu0 0
  %1412 = vmatpush1.bf16.msra.mxu0 %v1322
  %1413 = vmatprep.subr.bf16.mxu0 0
  %1414 = vmatpush1.bf16.msra.mxu0 %v1323
  %1415 = vmatprep.subr.bf16.mxu0 0
  %1416 = vmatpush1.bf16.msra.mxu0 %v1324
  %1417 = vmatprep.subr.bf16.mxu0 0
  %1418 = vmatpush1.bf16.msra.mxu0 %v1325
  %1419 = vmatprep.subr.bf16.mxu0 0
  %1420 = vmatpush1.bf16.msra.mxu0 %v1326
  %1421 = vmatprep.subr.bf16.mxu0 0
  %1422 = vmatpush1.bf16.msra.mxu0 %v1327
  %1423 = vmatprep.subr.bf16.mxu0 0
  %1424 = vmatpush1.bf16.msra.mxu0 %v1328
  %1425 = vmatprep.subr.bf16.mxu0 0
  %1426 = vmatpush1.bf16.msra.mxu0 %v1329
  %1427 = vmatprep.subr.bf16.mxu0 0
  %1428 = vmatpush1.bf16.msra.mxu0 %v1330
  %1429 = vmatprep.subr.bf16.mxu0 0
  %1430 = vmatpush1.bf16.msra.mxu0 %v1331
  %1431 = vmatprep.subr.bf16.mxu0 0
  %1432 = vmatpush1.bf16.msra.mxu0 %v1332
  %1433 = vmatprep.subr.bf16.mxu0 0
  %1434 = vmatpush1.bf16.msra.mxu0 %v1333
  %1435 = vmatprep.subr.bf16.mxu0 0
  %1436 = vmatpush1.bf16.msra.mxu0 %v1334
  %1437 = vmatprep.subr.bf16.mxu0 0
  %1438 = vmatpush1.bf16.msra.mxu0 %v1335
  %1439 = vmatprep.subr.bf16.mxu0 0
  %1440 = vmatpush1.bf16.msra.mxu0 %v1336
  %1441 = vmatprep.mubr.bf16.mxu0 %v1172
  %1442 = vmatmul.mubr.bf16.gmra.mrb[0].mxu0 %v1171
  %v1443 = vpop.f32.mrb[0].mxu0
  %v1444 = vadd.f32 %v1404, %v1443
  %v1445 = vpop.f32.mrb[0].mxu0
  %v1446 = vpop.f32.mrb[0].mxu0
  %v1447 = vpop.f32.mrb[0].mxu0
  %1448 = vdwg.mxu0
  %v1449 = vadd.f32 %v1094, %v1444
  %1450 = vst.msk [vmem:[%s1093] sm:$0xff] %vm375, %v1449
  // Predicated region
  $region14: #{fwd.17} parent=0 // pred_check
    %p1451 = pneg %p12
  $region15: #{fwd.17} parent=0 // pred_check_branch
    %1453 = sbr.rel (%p1451) target = $region17
  $region16: #{fwd.17} parent=0 // pred_region
    %v1454 = vld [vmem:[#allocation2] sm:$0xff]
    %v1455 = vld [vmem:[#allocation2 + $0x8] sm:$0xff]
    %v1456 = vld [vmem:[#allocation2 + $0x10] sm:$0xff]
    %v1457 = vld [vmem:[#allocation2 + $0x18] sm:$0xff]
    %v1458 = vsel %vm375, %v1454, 0.0
    %v1459 = vrot.slane %v1458, 4
    %v1460 = vadd.f32 %v1458, %v1459
    %v1461 = vrot.slane %v1460, 2
    %v1462 = vadd.f32 %v1460, %v1461
    %v1463 = vrot.slane %v1462, 1
    %v1464 = vadd.f32 %v1462, %v1463
    %v1465 = vsel %vm375, %v1455, 0.0
    %v1466 = vrot.slane %v1465, 4
    %v1467 = vadd.f32 %v1465, %v1466
    %v1468 = vrot.slane %v1467, 2
    %v1469 = vadd.f32 %v1467, %v1468
    %v1470 = vrot.slane %v1469, 1
    %v1471 = vadd.f32 %v1469, %v1470
    %v1472 = vsel %vm375, %v1456, 0.0
    %v1473 = vrot.slane %v1472, 4
    %v1474 = vadd.f32 %v1472, %v1473
    %v1475 = vrot.slane %v1474, 2
    %v1476 = vadd.f32 %v1474, %v1475
    %v1477 = vrot.slane %v1476, 1
    %v1478 = vadd.f32 %v1476, %v1477
    %v1479 = vsel %vm375, %v1457, 0.0
    %v1480 = vrot.slane %v1479, 4
    %v1481 = vadd.f32 %v1479, %v1480
    %v1482 = vrot.slane %v1481, 2
    %v1483 = vadd.f32 %v1481, %v1482
    %v1484 = vrot.slane %v1483, 1
    %v1485 = vadd.f32 %v1483, %v1484
    %v1486 = vrcp.pop 8.0
    %v1487 = vmul.f32 %v1464, %v1486
    %v1488 = vmul.f32 %v1471, %v1486
    %v1489 = vmul.f32 %v1478, %v1486
    %v1490 = vmul.f32 %v1485, %v1486
    %v1491 = vsel %vm375, %v1487, 0.0
    %v1492 = vsel %vm375, %v1488, 0.0
    %v1493 = vadd.f32 %v1491, %v1492
    %v1494 = vsel %vm375, %v1489, 0.0
    %v1495 = vadd.f32 %v1493, %v1494
    %v1496 = vsel %vm375, %v1490, 0.0
    %v1497 = vadd.f32 %v1495, %v1496
    %v1498 = vrcp.pop 4.0
    %v1499 = vmul.f32 %v1497, %v1498
    %v1500 = vmul.f32 %v1454, %v1454
    %v1501 = vmul.f32 %v1455, %v1455
    %v1502 = vmul.f32 %v1456, %v1456
    %v1503 = vmul.f32 %v1457, %v1457
    %v1504 = vsel %vm375, %v1500, 0.0
    %v1505 = vrot.slane %v1504, 4
    %v1506 = vadd.f32 %v1504, %v1505
    %v1507 = vrot.slane %v1506, 2
    %v1508 = vadd.f32 %v1506, %v1507
    %v1509 = vrot.slane %v1508, 1
    %v1510 = vadd.f32 %v1508, %v1509
    %v1511 = vsel %vm375, %v1501, 0.0
    %v1512 = vrot.slane %v1511, 4
    %v1513 = vadd.f32 %v1511, %v1512
    %v1514 = vrot.slane %v1513, 2
    %v1515 = vadd.f32 %v1513, %v1514
    %v1516 = vrot.slane %v1515, 1
    %v1517 = vadd.f32 %v1515, %v1516
    %v1518 = vsel %vm375, %v1502, 0.0
    %v1519 = vrot.slane %v1518, 4
    %v1520 = vadd.f32 %v1518, %v1519
    %v1521 = vrot.slane %v1520, 2
    %v1522 = vadd.f32 %v1520, %v1521
    %v1523 = vrot.slane %v1522, 1
    %v1524 = vadd.f32 %v1522, %v1523
    %v1525 = vsel %vm375, %v1503, 0.0
    %v1526 = vrot.slane %v1525, 4
    %v1527 = vadd.f32 %v1525, %v1526
    %v1528 = vrot.slane %v1527, 2
    %v1529 = vadd.f32 %v1527, %v1528
    %v1530 = vrot.slane %v1529, 1
    %v1531 = vadd.f32 %v1529, %v1530
    %v1532 = vmul.f32 %v1510, %v1486
    %v1533 = vmul.f32 %v1517, %v1486
    %v1534 = vmul.f32 %v1524, %v1486
    %v1535 = vmul.f32 %v1531, %v1486
    %v1536 = vsel %vm375, %v1532, 0.0
    %v1537 = vsel %vm375, %v1533, 0.0
    %v1538 = vadd.f32 %v1536, %v1537
    %v1539 = vsel %vm375, %v1534, 0.0
    %v1540 = vadd.f32 %v1538, %v1539
    %v1541 = vsel %vm375, %v1535, 0.0
    %v1542 = vadd.f32 %v1540, %v1541
    %v1543 = vmul.f32 %v1542, %v1498
    %v1544 = vmul.f32 %v1499, %v1499
    %v1545 = vsub.f32 %v1543, %v1544
    %v1546 = vmax.f32 %v1545, 0.0
    %v1547 = vsub.f32 %v1454, %v1499
    %v1548 = vsub.f32 %v1455, %v1499
    %v1549 = vsub.f32 %v1456, %v1499
    %v1550 = vsub.f32 %v1457, %v1499
    %v1551 = vadd.f32 %v1546, 1e-05
    %v1552 = vrsqrt.pop %v1551
    %v1553 = vmul.f32 %v1547, %v1552
    %v1554 = vmul.f32 %v1548, %v1552
    %v1555 = vmul.f32 %v1549, %v1552
    %v1556 = vmul.f32 %v1550, %v1552
    %vm1557 = vcmp.ge.f32.partialorder %v1553, 0.0
    %vm1558 = vcmp.ge.f32.partialorder %v1554, 0.0
    %vm1559 = vcmp.ge.f32.partialorder %v1555, 0.0
    %vm1560 = vcmp.ge.f32.partialorder %v1556, 0.0
    %v1561 = vmul.f32 %v1553, 0.2
    %v1562 = vmul.f32 %v1554, 0.2
    %v1563 = vmul.f32 %v1555, 0.2
    %v1564 = vmul.f32 %v1556, 0.2
    %v1565 = vsel %vm1557, %v1553, %v1561
    %v1566 = vsel %vm1558, %v1554, %v1562
    %v1567 = vsel %vm1559, %v1555, %v1563
    %v1568 = vsel %vm1560, %v1556, %v1564
    %1569 = vst.msk [vmem:[%s2] sm:$0xff] %vm375, %v1565
    %1570 = vst.msk [vmem:[%s2 + $0x8] sm:$0xff] %vm375, %v1566
    %1571 = vst.msk [vmem:[%s2 + $0x10] sm:$0xff] %vm375, %v1567
    %1572 = vst.msk [vmem:[%s2 + $0x18] sm:$0xff] %vm375, %v1568
  $region17: #{fwd.17} parent=0 // pred_fallthru
    _
  // Predicated region
  $region18: #{fwd.17} parent=0 // pred_check
    _
  $region19: #{fwd.17} parent=0 // pred_check_branch
    %1574 = sbr.rel (0) target = $region21
  $region20: #{fwd.17} parent=0 // pred_region
    _
  $region21: #{fwd.17} parent=0 // pred_fallthru
    _
  // Predicated region
  $region22: #{fwd.17} parent=0 // pred_check
    _
  $region23: #{fwd.17} parent=0 // pred_check_branch
    %1576 = sbr.rel (0) target = $region25
  $region24: #{fwd.17} parent=0 // pred_region
    _
  $region25: #{fwd.17} parent=0 // pred_fallthru
    _

// kernel: fwd.18
$region0: #{fwd.18}
  #allocation0 [shape = 'u32[]', space=smem, size = 0x4, offset = 0x4, fixed_abs, tag = 'smem constant byte address 0x4 - core index']
  #allocation1 [shape = 'u32[144,128]{1,0:T(1,128)}', space=vmem, size = 0x12000, scoped, tag = 'internal scratch']
  #allocation2 [shape = 'f32[4,32,32]{2,1,0:T(8,128)}', space=vmem, size = 0x10000, scoped, tag = 'scratch operand']
  %s0 = inlined_call_operand.vmem [shape: bf16[4,32,256], index: 0, kind: input, shape index: {}]
  %s1 = inlined_call_operand.vmem [shape: bf16[4,256,32], index: 1, kind: input, shape index: {}]
  %s2 = inlined_call_operand.vmem [shape: f32[4,32,32], index: 2, kind: output, shape index: {}]
  %s3 = sld [smem:[#allocation0]]
  $region26: #{fwd.18} parent=0
    _
  %s5 = ssub.s32 1, %s3
  %s6 = scalar_select 0, %s5, %s3
  // Predicated region
  $region2: #{fwd.18} parent=0 // pred_check
    _
  $region3: #{fwd.18} parent=0 // pred_check_branch
    %8 = sbr.rel (0) target = $region5
  $region4: #{fwd.18} parent=0 // pred_region
    _
  $region5: #{fwd.18} parent=0 // pred_fallthru
    _
  // Predicated region
  $region6: #{fwd.18} parent=0 // pred_check
    _
  $region7: #{fwd.18} parent=0 // pred_check_branch
    %10 = sbr.rel (0) target = $region9
  $region8: #{fwd.18} parent=0 // pred_region
    _
  $region9: #{fwd.18} parent=0 // pred_fallthru
    _
  %p12 = scmp.eq.s32.totalorder 0, 0
  // Predicated region
  $region10: #{fwd.18} parent=0 // pred_check
    %p13 = pneg %p12
  $region11: #{fwd.18} parent=0 // pred_check_branch
    %15 = sbr.rel (%p13) target = $region13
  $region12: #{fwd.18} parent=0 // pred_region
    %vm16 = vcmask 261120
    %17 = vst.msk [vmem:[#allocation2] sm:$0xff] %vm16, 0.0
    %18 = vst.msk [vmem:[#allocation2 + $0x8] sm:$0xff] %vm16, 0.0
    %19 = vst.msk [vmem:[#allocation2 + $0x10] sm:$0xff] %vm16, 0.0
    %20 = vst.msk [vmem:[#allocation2 + $0x18] sm:$0xff] %vm16, 0.0
    %21 = vst.msk [vmem:[#allocation2 + $0x20] sm:$0xff] %vm16, 0.0
    %22 = vst.msk [vmem:[#allocation2 + $0x28] sm:$0xff] %vm16, 0.0
    %23 = vst.msk [vmem:[#allocation2 + $0x30] sm:$0xff] %vm16, 0.0
    %24 = vst.msk [vmem:[#allocation2 + $0x38] sm:$0xff] %vm16, 0.0
    %25 = vst.msk [vmem:[#allocation2 + $0x40] sm:$0xff] %vm16, 0.0
    %26 = vst.msk [vmem:[#allocation2 + $0x48] sm:$0xff] %vm16, 0.0
    %27 = vst.msk [vmem:[#allocation2 + $0x50] sm:$0xff] %vm16, 0.0
    %28 = vst.msk [vmem:[#allocation2 + $0x58] sm:$0xff] %vm16, 0.0
    %29 = vst.msk [vmem:[#allocation2 + $0x60] sm:$0xff] %vm16, 0.0
    %30 = vst.msk [vmem:[#allocation2 + $0x68] sm:$0xff] %vm16, 0.0
    %31 = vst.msk [vmem:[#allocation2 + $0x70] sm:$0xff] %vm16, 0.0
    %32 = vst.msk [vmem:[#allocation2 + $0x78] sm:$0xff] %vm16, 0.0
  $region13: #{fwd.18} parent=0 // pred_fallthru
    _
  %v33 = vld [vmem:[#allocation2] sm:$0xff]
  %v34 = vld [vmem:[#allocation2 + $0x8] sm:$0xff]
  %v35 = vld [vmem:[#allocation2 + $0x10] sm:$0xff]
  %v36 = vld [vmem:[#allocation2 + $0x18] sm:$0xff]
  %v37 = vld [vmem:[%s0] sm:$0xff]
  %v38 = vld [vmem:[%s0 + $0x8] sm:$0xff]
  %v39 = vld [vmem:[%s0 + $0x10] sm:$0xff]
  %v40 = vld [vmem:[%s0 + $0x18] sm:$0xff]
  %v41 = vld [vmem:[%s1] sm:$0xf]
  %v42 = vld [vmem:[%s1 + $0x4] sm:$0xf]
  %v43 = vld [vmem:[%s1 + $0x8] sm:$0xf]
  %v44 = vld [vmem:[%s1 + $0xc] sm:$0xf]
  %v45 = vld [vmem:[%s1 + $0x10] sm:$0xf]
  %v46 = vld [vmem:[%s1 + $0x14] sm:$0xf]
  %v47 = vld [vmem:[%s1 + $0x18] sm:$0xf]
  %v48 = vld [vmem:[%s1 + $0x1c] sm:$0xf]
  %v49 = vld [vmem:[%s1 + $0x20] sm:$0xf]
  %v50 = vld [vmem:[%s1 + $0x24] sm:$0xf]
  %v51 = vld [vmem:[%s1 + $0x28] sm:$0xf]
  %v52 = vld [vmem:[%s1 + $0x2c] sm:$0xf]
  %v53 = vld [vmem:[%s1 + $0x30] sm:$0xf]
  %v54 = vld [vmem:[%s1 + $0x34] sm:$0xf]
  %v55 = vld [vmem:[%s1 + $0x38] sm:$0xf]
  %v56 = vld [vmem:[%s1 + $0x3c] sm:$0xf]
  %v57 = vld [vmem:[%s1 + $0x40] sm:$0xf]
  %v58 = vld [vmem:[%s1 + $0x44] sm:$0xf]
  %v59 = vld [vmem:[%s1 + $0x48] sm:$0xf]
  %v60 = vld [vmem:[%s1 + $0x4c] sm:$0xf]
  %v61 = vld [vmem:[%s1 + $0x50] sm:$0xf]
  %v62 = vld [vmem:[%s1 + $0x54] sm:$0xf]
  %v63 = vld [vmem:[%s1 + $0x58] sm:$0xf]
  %v64 = vld [vmem:[%s1 + $0x5c] sm:$0xf]
  %v65 = vld [vmem:[%s1 + $0x60] sm:$0xf]
  %v66 = vld [vmem:[%s1 + $0x64] sm:$0xf]
  %v67 = vld [vmem:[%s1 + $0x68] sm:$0xf]
  %v68 = vld [vmem:[%s1 + $0x6c] sm:$0xf]
  %v69 = vld [vmem:[%s1 + $0x70] sm:$0xf]
  %v70 = vld [vmem:[%s1 + $0x74] sm:$0xf]
  %v71 = vld [vmem:[%s1 + $0x78] sm:$0xf]
  %v72 = vld [vmem:[%s1 + $0x7c] sm:$0xf]
  %v77 = vunpack.c.l.b16 %v37
  %v78 = vunpack.c.h.b16 %v37
  %v79 = vunpack.c.l.b16 %v38
  %v80 = vunpack.c.h.b16 %v38
  %v81 = vunpack.c.l.b16 %v39
  %v82 = vunpack.c.h.b16 %v39
  %v83 = vunpack.c.l.b16 %v40
  %v84 = vunpack.c.h.b16 %v40
  %v85 = vpack.c.b16 %v79, %v77
  %v86 = vpack.c.b16 %v80, %v78
  %v87 = vpack.c.b16 %v83, %v81
  %v88 = vpack.c.b16 %v84, %v82
  %v125 = vunpack.c.l.b16 %v41
  %v126 = vunpack.c.l.b16 %v42
  %v127 = vunpack.c.l.b16 %v43
  %v128 = vunpack.c.l.b16 %v44
  %v129 = vunpack.c.l.b16 %v45
  %v130 = vunpack.c.l.b16 %v46
  %v131 = vunpack.c.l.b16 %v47
  %v132 = vunpack.c.l.b16 %v48
  %v133 = vunpack.c.l.b16 %v49
  %v134 = vunpack.c.l.b16 %v50
  %v135 = vunpack.c.l.b16 %v51
  %v136 = vunpack.c.l.b16 %v52
  %v137 = vunpack.c.l.b16 %v53
  %v138 = vunpack.c.l.b16 %v54
  %v139 = vunpack.c.l.b16 %v55
  %v140 = vunpack.c.l.b16 %v56
  %v141 = vunpack.c.l.b16 %v57
  %v142 = vunpack.c.l.b16 %v58
  %v143 = vunpack.c.l.b16 %v59
  %v144 = vunpack.c.l.b16 %v60
  %v145 = vunpack.c.l.b16 %v61
  %v146 = vunpack.c.l.b16 %v62
  %v147 = vunpack.c.l.b16 %v63
  %v148 = vunpack.c.l.b16 %v64
  %v149 = vunpack.c.l.b16 %v65
  %v150 = vunpack.c.l.b16 %v66
  %v151 = vunpack.c.l.b16 %v67
  %v152 = vunpack.c.l.b16 %v68
  %v153 = vunpack.c.l.b16 %v69
  %v154 = vunpack.c.l.b16 %v70
  %v155 = vunpack.c.l.b16 %v71
  %v156 = vunpack.c.l.b16 %v72
  %v157 = vpack.c.b16 %v126, %v125
  %v158 = vpack.c.b16 %v128, %v127
  %v159 = vpack.c.b16 %v130, %v129
  %v160 = vpack.c.b16 %v132, %v131
  %v161 = vpack.c.b16 %v134, %v133
  %v162 = vpack.c.b16 %v136, %v135
  %v163 = vpack.c.b16 %v138, %v137
  %v164 = vpack.c.b16 %v140, %v139
  %v165 = vpack.c.b16 %v142, %v141
  %v166 = vpack.c.b16 %v144, %v143
  %v167 = vpack.c.b16 %v146, %v145
  %v168 = vpack.c.b16 %v148, %v147
  %v169 = vpack.c.b16 %v150, %v149
  %v170 = vpack.c.b16 %v152, %v151
  %v171 = vpack.c.b16 %v154, %v153
  %v172 = vpack.c.b16 %v156, %v155
  %189 = vmatprep.subr.bf16.mxu0 0
  %190 = vmatpush1.bf16.msra.mxu0 %v157
  %191 = vmatprep.subr.bf16.mxu0 0
  %192 = vmatpush1.bf16.msra.mxu0 %v158
  %193 = vmatprep.subr.bf16.mxu0 0
  %194 = vmatpush1.bf16.msra.mxu0 %v159
  %195 = vmatprep.subr.bf16.mxu0 0
  %196 = vmatpush1.bf16.msra.mxu0 %v160
  %197 = vmatprep.subr.bf16.mxu0 0
  %198 = vmatpush1.bf16.msra.mxu0 %v161
  %199 = vmatprep.subr.bf16.mxu0 0
  %200 = vmatpush1.bf16.msra.mxu0 %v162
  %201 = vmatprep.subr.bf16.mxu0 0
  %202 = vmatpush1.bf16.msra.mxu0 %v163
  %203 = vmatprep.subr.bf16.mxu0 0
  %204 = vmatpush1.bf16.msra.mxu0 %v164
  %205 = vmatprep.subr.bf16.mxu0 0
  %206 = vmatpush1.bf16.msra.mxu0 %v165
  %207 = vmatprep.subr.bf16.mxu0 0
  %208 = vmatpush1.bf16.msra.mxu0 %v166
  %209 = vmatprep.subr.bf16.mxu0 0
  %210 = vmatpush1.bf16.msra.mxu0 %v167
  %211 = vmatprep.subr.bf16.mxu0 0
  %212 = vmatpush1.bf16.msra.mxu0 %v168
  %213 = vmatprep.subr.bf16.mxu0 0
  %214 = vmatpush1.bf16.msra.mxu0 %v169
  %215 = vmatprep.subr.bf16.mxu0 0
  %216 = vmatpush1.bf16.msra.mxu0 %v170
  %217 = vmatprep.subr.bf16.mxu0 0
  %218 = vmatpush1.bf16.msra.mxu0 %v171
  %219 = vmatprep.subr.bf16.mxu0 0
  %220 = vmatpush1.bf16.msra.mxu0 %v172
  %221 = vmatprep.mubr.bf16.mxu0 %v86
  %222 = vmatmul.mubr.bf16.gmra.mrb[0].mxu0 %v85
  %v223 = vpop.f32.mrb[0].mxu0
  %v224 = vadd.f32 0.0, %v223
  %v225 = vpop.f32.mrb[0].mxu0
  %v226 = vpop.f32.mrb[0].mxu0
  %v227 = vadd.f32 0.0, %v226
  %v228 = vpop.f32.mrb[0].mxu0
  %229 = vmatprep.mubr.bf16.mxu0 %v88
  %230 = vmatmul.mubr.bf16.gmra.mrb[0].mxu0 %v87
  %v231 = vpop.f32.mrb[0].mxu0
  %v232 = vadd.f32 0.0, %v231
  %v233 = vpop.f32.mrb[0].mxu0
  %v234 = vpop.f32.mrb[0].mxu0
  %v235 = vadd.f32 0.0, %v234
  %v236 = vpop.f32.mrb[0].mxu0
  %237 = vdwg.mxu0
  %v238 = vadd.f32 %v33, %v224
  %v239 = vadd.f32 %v34, %v227
  %v240 = vadd.f32 %v35, %v232
  %v241 = vadd.f32 %v36, %v235
  %vm242 = vcmask 261120
  %243 = vst.msk [vmem:[#allocation2] sm:$0xff] %vm242, %v238
  %244 = vst.msk [vmem:[#allocation2 + $0x8] sm:$0xff] %vm242, %v239
  %245 = vst.msk [vmem:[#allocation2 + $0x10] sm:$0xff] %vm242, %v240
  %246 = vst.msk [vmem:[#allocation2 + $0x18] sm:$0xff] %vm242, %v241
  %s247 = scalar_lea.vmem [#allocation2], 32
  %v248 = vld [vmem:[%s247] sm:$0xff]
  %v249 = vld [vmem:[%s247 + $0x8] sm:$0xff]
  %v250 = vld [vmem:[%s247 + $0x10] sm:$0xff]
  %v251 = vld [vmem:[%s247 + $0x18] sm:$0xff]
  %s252 = scalar_lea.vmem %s0, 32
  %v253 = vld [vmem:[%s252] sm:$0xff]
  %v254 = vld [vmem:[%s252 + $0x8] sm:$0xff]
  %v255 = vld [vmem:[%s252 + $0x10] sm:$0xff]
  %v256 = vld [vmem:[%s252 + $0x18] sm:$0xff]
  %s257 = scalar_lea.vmem %s1, 128
  %v258 = vld [vmem:[%s257] sm:$0xf]
  %v259 = vld [vmem:[%s257 + $0x4] sm:$0xf]
  %v260 = vld [vmem:[%s257 + $0x8] sm:$0xf]
  %v261 = vld [vmem:[%s257 + $0xc] sm:$0xf]
  %v262 = vld [vmem:[%s257 + $0x10] sm:$0xf]
  %v263 = vld [vmem:[%s257 + $0x14] sm:$0xf]
  %v264 = vld [vmem:[%s257 + $0x18] sm:$0xf]
  %v265 = vld [vmem:[%s257 + $0x1c] sm:$0xf]
  %v266 = vld [vmem:[%s257 + $0x20] sm:$0xf]
  %v267 = vld [vmem:[%s257 + $0x24] sm:$0xf]
  %v268 = vld [vmem:[%s257 + $0x28] sm:$0xf]
  %v269 = vld [vmem:[%s257 + $0x2c] sm:$0xf]
  %v270 = vld [vmem:[%s257 + $0x30] sm:$0xf]
  %v271 = vld [vmem:[%s257 + $0x34] sm:$0xf]
  %v272 = vld [vmem:[%s257 + $0x38] sm:$0xf]
  %v273 = vld [vmem:[%s257 + $0x3c] sm:$0xf]
  %v274 = vld [vmem:[%s257 + $0x40] sm:$0xf]
  %v275 = vld [vmem:[%s257 + $0x44] sm:$0xf]
  %v276 = vld [vmem:[%s257 + $0x48] sm:$0xf]
  %v277 = vld [vmem:[%s257 + $0x4c] sm:$0xf]
  %v278 = vld [vmem:[%s257 + $0x50] sm:$0xf]
  %v279 = vld [vmem:[%s257 + $0x54] sm:$0xf]
  %v280 = vld [vmem:[%s257 + $0x58] sm:$0xf]
  %v281 = vld [vmem:[%s257 + $0x5c] sm:$0xf]
  %v282 = vld [vmem:[%s257 + $0x60] sm:$0xf]
  %v283 = vld [vmem:[%s257 + $0x64] sm:$0xf]
  %v284 = vld [vmem:[%s257 + $0x68] sm:$0xf]
  %v285 = vld [vmem:[%s257 + $0x6c] sm:$0xf]
  %v286 = vld [vmem:[%s257 + $0x70] sm:$0xf]
  %v287 = vld [vmem:[%s257 + $0x74] sm:$0xf]
  %v288 = vld [vmem:[%s257 + $0x78] sm:$0xf]
  %v289 = vld [vmem:[%s257 + $0x7c] sm:$0xf]
  %v294 = vunpack.c.l.b16 %v253
  %v295 = vunpack.c.h.b16 %v253
  %v296 = vunpack.c.l.b16 %v254
  %v297 = vunpack.c.h.b16 %v254
  %v298 = vunpack.c.l.b16 %v255
  %v299 = vunpack.c.h.b16 %v255
  %v300 = vunpack.c.l.b16 %v256
  %v301 = vunpack.c.h.b16 %v256
  %v302 = vpack.c.b16 %v296, %v294
  %v303 = vpack.c.b16 %v297, %v295
  %v304 = vpack.c.b16 %v300, %v298
  %v305 = vpack.c.b16 %v301, %v299
  %v342 = vunpack.c.l.b16 %v258
  %v343 = vunpack.c.l.b16 %v259
  %v344 = vunpack.c.l.b16 %v260
  %v345 = vunpack.c.l.b16 %v261
  %v346 = vunpack.c.l.b16 %v262
  %v347 = vunpack.c.l.b16 %v263
  %v348 = vunpack.c.l.b16 %v264
  %v349 = vunpack.c.l.b16 %v265
  %v350 = vunpack.c.l.b16 %v266
  %v351 = vunpack.c.l.b16 %v267
  %v352 = vunpack.c.l.b16 %v268
  %v353 = vunpack.c.l.b16 %v269
  %v354 = vunpack.c.l.b16 %v270
  %v355 = vunpack.c.l.b16 %v271
  %v356 = vunpack.c.l.b16 %v272
  %v357 = vunpack.c.l.b16 %v273
  %v358 = vunpack.c.l.b16 %v274
  %v359 = vunpack.c.l.b16 %v275
  %v360 = vunpack.c.l.b16 %v276
  %v361 = vunpack.c.l.b16 %v277
  %v362 = vunpack.c.l.b16 %v278
  %v363 = vunpack.c.l.b16 %v279
  %v364 = vunpack.c.l.b16 %v280
  %v365 = vunpack.c.l.b16 %v281
  %v366 = vunpack.c.l.b16 %v282
  %v367 = vunpack.c.l.b16 %v283
  %v368 = vunpack.c.l.b16 %v284
  %v369 = vunpack.c.l.b16 %v285
  %v370 = vunpack.c.l.b16 %v286
  %v371 = vunpack.c.l.b16 %v287
  %v372 = vunpack.c.l.b16 %v288
  %v373 = vunpack.c.l.b16 %v289
  %v374 = vpack.c.b16 %v343, %v342
  %v375 = vpack.c.b16 %v345, %v344
  %v376 = vpack.c.b16 %v347, %v346
  %v377 = vpack.c.b16 %v349, %v348
  %v378 = vpack.c.b16 %v351, %v350
  %v379 = vpack.c.b16 %v353, %v352
  %v380 = vpack.c.b16 %v355, %v354
  %v381 = vpack.c.b16 %v357, %v356
  %v382 = vpack.c.b16 %v359, %v358
  %v383 = vpack.c.b16 %v361, %v360
  %v384 = vpack.c.b16 %v363, %v362
  %v385 = vpack.c.b16 %v365, %v364
  %v386 = vpack.c.b16 %v367, %v366
  %v387 = vpack.c.b16 %v369, %v368
  %v388 = vpack.c.b16 %v371, %v370
  %v389 = vpack.c.b16 %v373, %v372
  %406 = vmatprep.subr.bf16.mxu0 0
  %407 = vmatpush1.bf16.msra.mxu0 %v374
  %408 = vmatprep.subr.bf16.mxu0 0
  %409 = vmatpush1.bf16.msra.mxu0 %v375
  %410 = vmatprep.subr.bf16.mxu0 0
  %411 = vmatpush1.bf16.msra.mxu0 %v376
  %412 = vmatprep.subr.bf16.mxu0 0
  %413 = vmatpush1.bf16.msra.mxu0 %v377
  %414 = vmatprep.subr.bf16.mxu0 0
  %415 = vmatpush1.bf16.msra.mxu0 %v378
  %416 = vmatprep.subr.bf16.mxu0 0
  %417 = vmatpush1.bf16.msra.mxu0 %v379
  %418 = vmatprep.subr.bf16.mxu0 0
  %419 = vmatpush1.bf16.msra.mxu0 %v380
  %420 = vmatprep.subr.bf16.mxu0 0
  %421 = vmatpush1.bf16.msra.mxu0 %v381
  %422 = vmatprep.subr.bf16.mxu0 0
  %423 = vmatpush1.bf16.msra.mxu0 %v382
  %424 = vmatprep.subr.bf16.mxu0 0
  %425 = vmatpush1.bf16.msra.mxu0 %v383
  %426 = vmatprep.subr.bf16.mxu0 0
  %427 = vmatpush1.bf16.msra.mxu0 %v384
  %428 = vmatprep.subr.bf16.mxu0 0
  %429 = vmatpush1.bf16.msra.mxu0 %v385
  %430 = vmatprep.subr.bf16.mxu0 0
  %431 = vmatpush1.bf16.msra.mxu0 %v386
  %432 = vmatprep.subr.bf16.mxu0 0
  %433 = vmatpush1.bf16.msra.mxu0 %v387
  %434 = vmatprep.subr.bf16.mxu0 0
  %435 = vmatpush1.bf16.msra.mxu0 %v388
  %436 = vmatprep.subr.bf16.mxu0 0
  %437 = vmatpush1.bf16.msra.mxu0 %v389
  %438 = vmatprep.mubr.bf16.mxu0 %v303
  %439 = vmatmul.mubr.bf16.gmra.mrb[0].mxu0 %v302
  %v440 = vpop.f32.mrb[0].mxu0
  %v441 = vadd.f32 0.0, %v440
  %v442 = vpop.f32.mrb[0].mxu0
  %v443 = vpop.f32.mrb[0].mxu0
  %v444 = vadd.f32 0.0, %v443
  %v445 = vpop.f32.mrb[0].mxu0
  %446 = vmatprep.mubr.bf16.mxu0 %v305
  %447 = vmatmul.mubr.bf16.gmra.mrb[0].mxu0 %v304
  %v448 = vpop.f32.mrb[0].mxu0
  %v449 = vadd.f32 0.0, %v448
  %v450 = vpop.f32.mrb[0].mxu0
  %v451 = vpop.f32.mrb[0].mxu0
  %v452 = vadd.f32 0.0, %v451
  %v453 = vpop.f32.mrb[0].mxu0
  %454 = vdwg.mxu0
  %v455 = vadd.f32 %v248, %v441
  %v456 = vadd.f32 %v249, %v444
  %v457 = vadd.f32 %v250, %v449
  %v458 = vadd.f32 %v251, %v452
  %459 = vst.msk [vmem:[%s247] sm:$0xff] %vm242, %v455
  %460 = vst.msk [vmem:[%s247 + $0x8] sm:$0xff] %vm242, %v456
  %461 = vst.msk [vmem:[%s247 + $0x10] sm:$0xff] %vm242, %v457
  %462 = vst.msk [vmem:[%s247 + $0x18] sm:$0xff] %vm242, %v458
  %s463 = scalar_lea.vmem [#allocation2], 64
  %v464 = vld [vmem:[%s463] sm:$0xff]
  %v465 = vld [vmem:[%s463 + $0x8] sm:$0xff]
  %v466 = vld [vmem:[%s463 + $0x10] sm:$0xff]
  %v467 = vld [vmem:[%s463 + $0x18] sm:$0xff]
  %s468 = scalar_lea.vmem %s0, 64
  %v469 = vld [vmem:[%s468] sm:$0xff]
  %v470 = vld [vmem:[%s468 + $0x8] sm:$0xff]
  %v471 = vld [vmem:[%s468 + $0x10] sm:$0xff]
  %v472 = vld [vmem:[%s468 + $0x18] sm:$0xff]
  %s473 = scalar_lea.vmem %s1, 256
  %v474 = vld [vmem:[%s473] sm:$0xf]
  %v475 = vld [vmem:[%s473 + $0x4] sm:$0xf]
  %v476 = vld [vmem:[%s473 + $0x8] sm:$0xf]
  %v477 = vld [vmem:[%s473 + $0xc] sm:$0xf]
  %v478 = vld [vmem:[%s473 + $0x10] sm:$0xf]
  %v479 = vld [vmem:[%s473 + $0x14] sm:$0xf]
  %v480 = vld [vmem:[%s473 + $0x18] sm:$0xf]
  %v481 = vld [vmem:[%s473 + $0x1c] sm:$0xf]
  %v482 = vld [vmem:[%s473 + $0x20] sm:$0xf]
  %v483 = vld [vmem:[%s473 + $0x24] sm:$0xf]
  %v484 = vld [vmem:[%s473 + $0x28] sm:$0xf]
  %v485 = vld [vmem:[%s473 + $0x2c] sm:$0xf]
  %v486 = vld [vmem:[%s473 + $0x30] sm:$0xf]
  %v487 = vld [vmem:[%s473 + $0x34] sm:$0xf]
  %v488 = vld [vmem:[%s473 + $0x38] sm:$0xf]
  %v489 = vld [vmem:[%s473 + $0x3c] sm:$0xf]
  %v490 = vld [vmem:[%s473 + $0x40] sm:$0xf]
  %v491 = vld [vmem:[%s473 + $0x44] sm:$0xf]
  %v492 = vld [vmem:[%s473 + $0x48] sm:$0xf]
  %v493 = vld [vmem:[%s473 + $0x4c] sm:$0xf]
  %v494 = vld [vmem:[%s473 + $0x50] sm:$0xf]
  %v495 = vld [vmem:[%s473 + $0x54] sm:$0xf]
  %v496 = vld [vmem:[%s473 + $0x58] sm:$0xf]
  %v497 = vld [vmem:[%s473 + $0x5c] sm:$0xf]
  %v498 = vld [vmem:[%s473 + $0x60] sm:$0xf]
  %v499 = vld [vmem:[%s473 + $0x64] sm:$0xf]
  %v500 = vld [vmem:[%s473 + $0x68] sm:$0xf]
  %v501 = vld [vmem:[%s473 + $0x6c] sm:$0xf]
  %v502 = vld [vmem:[%s473 + $0x70] sm:$0xf]
  %v503 = vld [vmem:[%s473 + $0x74] sm:$0xf]
  %v504 = vld [vmem:[%s473 + $0x78] sm:$0xf]
  %v505 = vld [vmem:[%s473 + $0x7c] sm:$0xf]
  %v510 = vunpack.c.l.b16 %v469
  %v511 = vunpack.c.h.b16 %v469
  %v512 = vunpack.c.l.b16 %v470
  %v513 = vunpack.c.h.b16 %v470
  %v514 = vunpack.c.l.b16 %v471
  %v515 = vunpack.c.h.b16 %v471
  %v516 = vunpack.c.l.b16 %v472
  %v517 = vunpack.c.h.b16 %v472
  %v518 = vpack.c.b16 %v512, %v510
  %v519 = vpack.c.b16 %v513, %v511
  %v520 = vpack.c.b16 %v516, %v514
  %v521 = vpack.c.b16 %v517, %v515
  %v558 = vunpack.c.l.b16 %v474
  %v559 = vunpack.c.l.b16 %v475
  %v560 = vunpack.c.l.b16 %v476
  %v561 = vunpack.c.l.b16 %v477
  %v562 = vunpack.c.l.b16 %v478
  %v563 = vunpack.c.l.b16 %v479
  %v564 = vunpack.c.l.b16 %v480
  %v565 = vunpack.c.l.b16 %v481
  %v566 = vunpack.c.l.b16 %v482
  %v567 = vunpack.c.l.b16 %v483
  %v568 = vunpack.c.l.b16 %v484
  %v569 = vunpack.c.l.b16 %v485
  %v570 = vunpack.c.l.b16 %v486
  %v571 = vunpack.c.l.b16 %v487
  %v572 = vunpack.c.l.b16 %v488
  %v573 = vunpack.c.l.b16 %v489
  %v574 = vunpack.c.l.b16 %v490
  %v575 = vunpack.c.l.b16 %v491
  %v576 = vunpack.c.l.b16 %v492
  %v577 = vunpack.c.l.b16 %v493
  %v578 = vunpack.c.l.b16 %v494
  %v579 = vunpack.c.l.b16 %v495
  %v580 = vunpack.c.l.b16 %v496
  %v581 = vunpack.c.l.b16 %v497
  %v582 = vunpack.c.l.b16 %v498
  %v583 = vunpack.c.l.b16 %v499
  %v584 = vunpack.c.l.b16 %v500
  %v585 = vunpack.c.l.b16 %v501
  %v586 = vunpack.c.l.b16 %v502
  %v587 = vunpack.c.l.b16 %v503
  %v588 = vunpack.c.l.b16 %v504
  %v589 = vunpack.c.l.b16 %v505
  %v590 = vpack.c.b16 %v559, %v558
  %v591 = vpack.c.b16 %v561, %v560
  %v592 = vpack.c.b16 %v563, %v562
  %v593 = vpack.c.b16 %v565, %v564
  %v594 = vpack.c.b16 %v567, %v566
  %v595 = vpack.c.b16 %v569, %v568
  %v596 = vpack.c.b16 %v571, %v570
  %v597 = vpack.c.b16 %v573, %v572
  %v598 = vpack.c.b16 %v575, %v574
  %v599 = vpack.c.b16 %v577, %v576
  %v600 = vpack.c.b16 %v579, %v578
  %v601 = vpack.c.b16 %v581, %v580
  %v602 = vpack.c.b16 %v583, %v582
  %v603 = vpack.c.b16 %v585, %v584
  %v604 = vpack.c.b16 %v587, %v586
  %v605 = vpack.c.b16 %v589, %v588
  %622 = vmatprep.subr.bf16.mxu0 0
  %623 = vmatpush1.bf16.msra.mxu0 %v590
  %624 = vmatprep.subr.bf16.mxu0 0
  %625 = vmatpush1.bf16.msra.mxu0 %v591
  %626 = vmatprep.subr.bf16.mxu0 0
  %627 = vmatpush1.bf16.msra.mxu0 %v592
  %628 = vmatprep.subr.bf16.mxu0 0
  %629 = vmatpush1.bf16.msra.mxu0 %v593
  %630 = vmatprep.subr.bf16.mxu0 0
  %631 = vmatpush1.bf16.msra.mxu0 %v594
  %632 = vmatprep.subr.bf16.mxu0 0
  %633 = vmatpush1.bf16.msra.mxu0 %v595
  %634 = vmatprep.subr.bf16.mxu0 0
  %635 = vmatpush1.bf16.msra.mxu0 %v596
  %636 = vmatprep.subr.bf16.mxu0 0
  %637 = vmatpush1.bf16.msra.mxu0 %v597
  %638 = vmatprep.subr.bf16.mxu0 0
  %639 = vmatpush1.bf16.msra.mxu0 %v598
  %640 = vmatprep.subr.bf16.mxu0 0
  %641 = vmatpush1.bf16.msra.mxu0 %v599
  %642 = vmatprep.subr.bf16.mxu0 0
  %643 = vmatpush1.bf16.msra.mxu0 %v600
  %644 = vmatprep.subr.bf16.mxu0 0
  %645 = vmatpush1.bf16.msra.mxu0 %v601
  %646 = vmatprep.subr.bf16.mxu0 0
  %647 = vmatpush1.bf16.msra.mxu0 %v602
  %648 = vmatprep.subr.bf16.mxu0 0
  %649 = vmatpush1.bf16.msra.mxu0 %v603
  %650 = vmatprep.subr.bf16.mxu0 0
  %651 = vmatpush1.bf16.msra.mxu0 %v604
  %652 = vmatprep.subr.bf16.mxu0 0
  %653 = vmatpush1.bf16.msra.mxu0 %v605
  %654 = vmatprep.mubr.bf16.mxu0 %v519
  %655 = vmatmul.mubr.bf16.gmra.mrb[0].mxu0 %v518
  %v656 = vpop.f32.mrb[0].mxu0
  %v657 = vadd.f32 0.0, %v656
  %v658 = vpop.f32.mrb[0].mxu0
  %v659 = vpop.f32.mrb[0].mxu0
  %v660 = vadd.f32 0.0, %v659
  %v661 = vpop.f32.mrb[0].mxu0
  %662 = vmatprep.mubr.bf16.mxu0 %v521
  %663 = vmatmul.mubr.bf16.gmra.mrb[0].mxu0 %v520
  %v664 = vpop.f32.mrb[0].mxu0
  %v665 = vadd.f32 0.0, %v664
  %v666 = vpop.f32.mrb[0].mxu0
  %v667 = vpop.f32.mrb[0].mxu0
  %v668 = vadd.f32 0.0, %v667
  %v669 = vpop.f32.mrb[0].mxu0
  %670 = vdwg.mxu0
  %v671 = vadd.f32 %v464, %v657
  %v672 = vadd.f32 %v465, %v660
  %v673 = vadd.f32 %v466, %v665
  %v674 = vadd.f32 %v467, %v668
  %675 = vst.msk [vmem:[%s463] sm:$0xff] %vm242, %v671
  %676 = vst.msk [vmem:[%s463 + $0x8] sm:$0xff] %vm242, %v672
  %677 = vst.msk [vmem:[%s463 + $0x10] sm:$0xff] %vm242, %v673
  %678 = vst.msk [vmem:[%s463 + $0x18] sm:$0xff] %vm242, %v674
  %s679 = scalar_lea.vmem [#allocation2], 96
  %v680 = vld [vmem:[%s679] sm:$0xff]
  %v681 = vld [vmem:[%s679 + $0x8] sm:$0xff]
  %v682 = vld [vmem:[%s679 + $0x10] sm:$0xff]
  %v683 = vld [vmem:[%s679 + $0x18] sm:$0xff]
  %s684 = scalar_lea.vmem %s0, 96
  %v685 = vld [vmem:[%s684] sm:$0xff]
  %v686 = vld [vmem:[%s684 + $0x8] sm:$0xff]
  %v687 = vld [vmem:[%s684 + $0x10] sm:$0xff]
  %v688 = vld [vmem:[%s684 + $0x18] sm:$0xff]
  %s689 = scalar_lea.vmem %s1, 384
  %v690 = vld [vmem:[%s689] sm:$0xf]
  %v691 = vld [vmem:[%s689 + $0x4] sm:$0xf]
  %v692 = vld [vmem:[%s689 + $0x8] sm:$0xf]
  %v693 = vld [vmem:[%s689 + $0xc] sm:$0xf]
  %v694 = vld [vmem:[%s689 + $0x10] sm:$0xf]
  %v695 = vld [vmem:[%s689 + $0x14] sm:$0xf]
  %v696 = vld [vmem:[%s689 + $0x18] sm:$0xf]
  %v697 = vld [vmem:[%s689 + $0x1c] sm:$0xf]
  %v698 = vld [vmem:[%s689 + $0x20] sm:$0xf]
  %v699 = vld [vmem:[%s689 + $0x24] sm:$0xf]
  %v700 = vld [vmem:[%s689 + $0x28] sm:$0xf]
  %v701 = vld [vmem:[%s689 + $0x2c] sm:$0xf]
  %v702 = vld [vmem:[%s689 + $0x30] sm:$0xf]
  %v703 = vld [vmem:[%s689 + $0x34] sm:$0xf]
  %v704 = vld [vmem:[%s689 + $0x38] sm:$0xf]
  %v705 = vld [vmem:[%s689 + $0x3c] sm:$0xf]
  %v706 = vld [vmem:[%s689 + $0x40] sm:$0xf]
  %v707 = vld [vmem:[%s689 + $0x44] sm:$0xf]
  %v708 = vld [vmem:[%s689 + $0x48] sm:$0xf]
  %v709 = vld [vmem:[%s689 + $0x4c] sm:$0xf]
  %v710 = vld [vmem:[%s689 + $0x50] sm:$0xf]
  %v711 = vld [vmem:[%s689 + $0x54] sm:$0xf]
  %v712 = vld [vmem:[%s689 + $0x58] sm:$0xf]
  %v713 = vld [vmem:[%s689 + $0x5c] sm:$0xf]
  %v714 = vld [vmem:[%s689 + $0x60] sm:$0xf]
  %v715 = vld [vmem:[%s689 + $0x64] sm:$0xf]
  %v716 = vld [vmem:[%s689 + $0x68] sm:$0xf]
  %v717 = vld [vmem:[%s689 + $0x6c] sm:$0xf]
  %v718 = vld [vmem:[%s689 + $0x70] sm:$0xf]
  %v719 = vld [vmem:[%s689 + $0x74] sm:$0xf]
  %v720 = vld [vmem:[%s689 + $0x78] sm:$0xf]
  %v721 = vld [vmem:[%s689 + $0x7c] sm:$0xf]
  %v726 = vunpack.c.l.b16 %v685
  %v727 = vunpack.c.h.b16 %v685
  %v728 = vunpack.c.l.b16 %v686
  %v729 = vunpack.c.h.b16 %v686
  %v730 = vunpack.c.l.b16 %v687
  %v731 = vunpack.c.h.b16 %v687
  %v732 = vunpack.c.l.b16 %v688
  %v733 = vunpack.c.h.b16 %v688
  %v734 = vpack.c.b16 %v728, %v726
  %v735 = vpack.c.b16 %v729, %v727
  %v736 = vpack.c.b16 %v732, %v730
  %v737 = vpack.c.b16 %v733, %v731
  %v774 = vunpack.c.l.b16 %v690
  %v775 = vunpack.c.l.b16 %v691
  %v776 = vunpack.c.l.b16 %v692
  %v777 = vunpack.c.l.b16 %v693
  %v778 = vunpack.c.l.b16 %v694
  %v779 = vunpack.c.l.b16 %v695
  %v780 = vunpack.c.l.b16 %v696
  %v781 = vunpack.c.l.b16 %v697
  %v782 = vunpack.c.l.b16 %v698
  %v783 = vunpack.c.l.b16 %v699
  %v784 = vunpack.c.l.b16 %v700
  %v785 = vunpack.c.l.b16 %v701
  %v786 = vunpack.c.l.b16 %v702
  %v787 = vunpack.c.l.b16 %v703
  %v788 = vunpack.c.l.b16 %v704
  %v789 = vunpack.c.l.b16 %v705
  %v790 = vunpack.c.l.b16 %v706
  %v791 = vunpack.c.l.b16 %v707
  %v792 = vunpack.c.l.b16 %v708
  %v793 = vunpack.c.l.b16 %v709
  %v794 = vunpack.c.l.b16 %v710
  %v795 = vunpack.c.l.b16 %v711
  %v796 = vunpack.c.l.b16 %v712
  %v797 = vunpack.c.l.b16 %v713
  %v798 = vunpack.c.l.b16 %v714
  %v799 = vunpack.c.l.b16 %v715
  %v800 = vunpack.c.l.b16 %v716
  %v801 = vunpack.c.l.b16 %v717
  %v802 = vunpack.c.l.b16 %v718
  %v803 = vunpack.c.l.b16 %v719
  %v804 = vunpack.c.l.b16 %v720
  %v805 = vunpack.c.l.b16 %v721
  %v806 = vpack.c.b16 %v775, %v774
  %v807 = vpack.c.b16 %v777, %v776
  %v808 = vpack.c.b16 %v779, %v778
  %v809 = vpack.c.b16 %v781, %v780
  %v810 = vpack.c.b16 %v783, %v782
  %v811 = vpack.c.b16 %v785, %v784
  %v812 = vpack.c.b16 %v787, %v786
  %v813 = vpack.c.b16 %v789, %v788
  %v814 = vpack.c.b16 %v791, %v790
  %v815 = vpack.c.b16 %v793, %v792
  %v816 = vpack.c.b16 %v795, %v794
  %v817 = vpack.c.b16 %v797, %v796
  %v818 = vpack.c.b16 %v799, %v798
  %v819 = vpack.c.b16 %v801, %v800
  %v820 = vpack.c.b16 %v803, %v802
  %v821 = vpack.c.b16 %v805, %v804
  %838 = vmatprep.subr.bf16.mxu0 0
  %839 = vmatpush1.bf16.msra.mxu0 %v806
  %840 = vmatprep.subr.bf16.mxu0 0
  %841 = vmatpush1.bf16.msra.mxu0 %v807
  %842 = vmatprep.subr.bf16.mxu0 0
  %843 = vmatpush1.bf16.msra.mxu0 %v808
  %844 = vmatprep.subr.bf16.mxu0 0
  %845 = vmatpush1.bf16.msra.mxu0 %v809
  %846 = vmatprep.subr.bf16.mxu0 0
  %847 = vmatpush1.bf16.msra.mxu0 %v810
  %848 = vmatprep.subr.bf16.mxu0 0
  %849 = vmatpush1.bf16.msra.mxu0 %v811
  %850 = vmatprep.subr.bf16.mxu0 0
  %851 = vmatpush1.bf16.msra.mxu0 %v812
  %852 = vmatprep.subr.bf16.mxu0 0
  %853 = vmatpush1.bf16.msra.mxu0 %v813
  %854 = vmatprep.subr.bf16.mxu0 0
  %855 = vmatpush1.bf16.msra.mxu0 %v814
  %856 = vmatprep.subr.bf16.mxu0 0
  %857 = vmatpush1.bf16.msra.mxu0 %v815
  %858 = vmatprep.subr.bf16.mxu0 0
  %859 = vmatpush1.bf16.msra.mxu0 %v816
  %860 = vmatprep.subr.bf16.mxu0 0
  %861 = vmatpush1.bf16.msra.mxu0 %v817
  %862 = vmatprep.subr.bf16.mxu0 0
  %863 = vmatpush1.bf16.msra.mxu0 %v818
  %864 = vmatprep.subr.bf16.mxu0 0
  %865 = vmatpush1.bf16.msra.mxu0 %v819
  %866 = vmatprep.subr.bf16.mxu0 0
  %867 = vmatpush1.bf16.msra.mxu0 %v820
  %868 = vmatprep.subr.bf16.mxu0 0
  %869 = vmatpush1.bf16.msra.mxu0 %v821
  %870 = vmatprep.mubr.bf16.mxu0 %v735
  %871 = vmatmul.mubr.bf16.gmra.mrb[0].mxu0 %v734
  %v872 = vpop.f32.mrb[0].mxu0
  %v873 = vadd.f32 0.0, %v872
  %v874 = vpop.f32.mrb[0].mxu0
  %v875 = vpop.f32.mrb[0].mxu0
  %v876 = vadd.f32 0.0, %v875
  %v877 = vpop.f32.mrb[0].mxu0
  %878 = vmatprep.mubr.bf16.mxu0 %v737
  %879 = vmatmul.mubr.bf16.gmra.mrb[0].mxu0 %v736
  %v880 = vpop.f32.mrb[0].mxu0
  %v881 = vadd.f32 0.0, %v880
  %v882 = vpop.f32.mrb[0].mxu0
  %v883 = vpop.f32.mrb[0].mxu0
  %v884 = vadd.f32 0.0, %v883
  %v885 = vpop.f32.mrb[0].mxu0
  %886 = vdwg.mxu0
  %v887 = vadd.f32 %v680, %v873
  %v888 = vadd.f32 %v681, %v876
  %v889 = vadd.f32 %v682, %v881
  %v890 = vadd.f32 %v683, %v884
  %891 = vst.msk [vmem:[%s679] sm:$0xff] %vm242, %v887
  %892 = vst.msk [vmem:[%s679 + $0x8] sm:$0xff] %vm242, %v888
  %893 = vst.msk [vmem:[%s679 + $0x10] sm:$0xff] %vm242, %v889
  %894 = vst.msk [vmem:[%s679 + $0x18] sm:$0xff] %vm242, %v890
  // Predicated region
  $region14: #{fwd.18} parent=0 // pred_check
    %p895 = pneg %p12
  $region15: #{fwd.18} parent=0 // pred_check_branch
    %897 = sbr.rel (%p895) target = $region17
  $region16: #{fwd.18} parent=0 // pred_region
    %v898 = vld [vmem:[#allocation2] sm:$0xff]
    %v899 = vld [vmem:[#allocation2 + $0x8] sm:$0xff]
    %v900 = vld [vmem:[#allocation2 + $0x10] sm:$0xff]
    %v901 = vld [vmem:[#allocation2 + $0x18] sm:$0xff]
    %v902 = vld [vmem:[#allocation2 + $0x20] sm:$0xff]
    %v903 = vld [vmem:[#allocation2 + $0x28] sm:$0xff]
    %v904 = vld [vmem:[#allocation2 + $0x30] sm:$0xff]
    %v905 = vld [vmem:[#allocation2 + $0x38] sm:$0xff]
    %v906 = vld [vmem:[#allocation2 + $0x40] sm:$0xff]
    %v907 = vld [vmem:[#allocation2 + $0x48] sm:$0xff]
    %v908 = vld [vmem:[#allocation2 + $0x50] sm:$0xff]
    %v909 = vld [vmem:[#allocation2 + $0x58] sm:$0xff]
    %v910 = vld [vmem:[#allocation2 + $0x60] sm:$0xff]
    %v911 = vld [vmem:[#allocation2 + $0x68] sm:$0xff]
    %v912 = vld [vmem:[#allocation2 + $0x70] sm:$0xff]
    %v913 = vld [vmem:[#allocation2 + $0x78] sm:$0xff]
    %v914 = vsel %vm242, %v898, 0.0
    %v915 = vsel %vm242, %v899, 0.0
    %v916 = vadd.f32 %v914, %v915
    %v917 = vsel %vm242, %v900, 0.0
    %v918 = vadd.f32 %v916, %v917
    %v919 = vsel %vm242, %v901, 0.0
    %v920 = vadd.f32 %v918, %v919
    %v921 = vrot.slane %v920, 4
    %v922 = vadd.f32 %v920, %v921
    %v923 = vrot.slane %v922, 2
    %v924 = vadd.f32 %v922, %v923
    %v925 = vrot.slane %v924, 1
    %v926 = vadd.f32 %v924, %v925
    %v927 = vsel %vm242, %v902, 0.0
    %v928 = vsel %vm242, %v903, 0.0
    %v929 = vadd.f32 %v927, %v928
    %v930 = vsel %vm242, %v904, 0.0
    %v931 = vadd.f32 %v929, %v930
    %v932 = vsel %vm242, %v905, 0.0
    %v933 = vadd.f32 %v931, %v932
    %v934 = vrot.slane %v933, 4
    %v935 = vadd.f32 %v933, %v934
    %v936 = vrot.slane %v935, 2
    %v937 = vadd.f32 %v935, %v936
    %v938 = vrot.slane %v937, 1
    %v939 = vadd.f32 %v937, %v938
    %v940 = vsel %vm242, %v906, 0.0
    %v941 = vsel %vm242, %v907, 0.0
    %v942 = vadd.f32 %v940, %v941
    %v943 = vsel %vm242, %v908, 0.0
    %v944 = vadd.f32 %v942, %v943
    %v945 = vsel %vm242, %v909, 0.0
    %v946 = vadd.f32 %v944, %v945
    %v947 = vrot.slane %v946, 4
    %v948 = vadd.f32 %v946, %v947
    %v949 = vrot.slane %v948, 2
    %v950 = vadd.f32 %v948, %v949
    %v951 = vrot.slane %v950, 1
    %v952 = vadd.f32 %v950, %v951
    %v953 = vsel %vm242, %v910, 0.0
    %v954 = vsel %vm242, %v911, 0.0
    %v955 = vadd.f32 %v953, %v954
    %v956 = vsel %vm242, %v912, 0.0
    %v957 = vadd.f32 %v955, %v956
    %v958 = vsel %vm242, %v913, 0.0
    %v959 = vadd.f32 %v957, %v958
    %v960 = vrot.slane %v959, 4
    %v961 = vadd.f32 %v959, %v960
    %v962 = vrot.slane %v961, 2
    %v963 = vadd.f32 %v961, %v962
    %v964 = vrot.slane %v963, 1
    %v965 = vadd.f32 %v963, %v964
    %v966 = vrcp.pop 32.0
    %v967 = vmul.f32 %v926, %v966
    %v968 = vmul.f32 %v939, %v966
    %v969 = vmul.f32 %v952, %v966
    %v970 = vmul.f32 %v965, %v966
    %v971 = vsel %vm242, %v967, 0.0
    %v972 = vsel %vm242, %v968, 0.0
    %v973 = vadd.f32 %v971, %v972
    %v974 = vsel %vm242, %v969, 0.0
    %v975 = vadd.f32 %v973, %v974
    %v976 = vsel %vm242, %v970, 0.0
    %v977 = vadd.f32 %v975, %v976
    %v978 = vrcp.pop 4.0
    %v979 = vmul.f32 %v977, %v978
    %v980 = vmul.f32 %v898, %v898
    %v981 = vmul.f32 %v899, %v899
    %v982 = vmul.f32 %v900, %v900
    %v983 = vmul.f32 %v901, %v901
    %v984 = vmul.f32 %v902, %v902
    %v985 = vmul.f32 %v903, %v903
    %v986 = vmul.f32 %v904, %v904
    %v987 = vmul.f32 %v905, %v905
    %v988 = vmul.f32 %v906, %v906
    %v989 = vmul.f32 %v907, %v907
    %v990 = vmul.f32 %v908, %v908
    %v991 = vmul.f32 %v909, %v909
    %v992 = vmul.f32 %v910, %v910
    %v993 = vmul.f32 %v911, %v911
    %v994 = vmul.f32 %v912, %v912
    %v995 = vmul.f32 %v913, %v913
    %v996 = vsel %vm242, %v980, 0.0
    %v997 = vsel %vm242, %v981, 0.0
    %v998 = vadd.f32 %v996, %v997
    %v999 = vsel %vm242, %v982, 0.0
    %v1000 = vadd.f32 %v998, %v999
    %v1001 = vsel %vm242, %v983, 0.0
    %v1002 = vadd.f32 %v1000, %v1001
    %v1003 = vrot.slane %v1002, 4
    %v1004 = vadd.f32 %v1002, %v1003
    %v1005 = vrot.slane %v1004, 2
    %v1006 = vadd.f32 %v1004, %v1005
    %v1007 = vrot.slane %v1006, 1
    %v1008 = vadd.f32 %v1006, %v1007
    %v1009 = vsel %vm242, %v984, 0.0
    %v1010 = vsel %vm242, %v985, 0.0
    %v1011 = vadd.f32 %v1009, %v1010
    %v1012 = vsel %vm242, %v986, 0.0
    %v1013 = vadd.f32 %v1011, %v1012
    %v1014 = vsel %vm242, %v987, 0.0
    %v1015 = vadd.f32 %v1013, %v1014
    %v1016 = vrot.slane %v1015, 4
    %v1017 = vadd.f32 %v1015, %v1016
    %v1018 = vrot.slane %v1017, 2
    %v1019 = vadd.f32 %v1017, %v1018
    %v1020 = vrot.slane %v1019, 1
    %v1021 = vadd.f32 %v1019, %v1020
    %v1022 = vsel %vm242, %v988, 0.0
    %v1023 = vsel %vm242, %v989, 0.0
    %v1024 = vadd.f32 %v1022, %v1023
    %v1025 = vsel %vm242, %v990, 0.0
    %v1026 = vadd.f32 %v1024, %v1025
    %v1027 = vsel %vm242, %v991, 0.0
    %v1028 = vadd.f32 %v1026, %v1027
    %v1029 = vrot.slane %v1028, 4
    %v1030 = vadd.f32 %v1028, %v1029
    %v1031 = vrot.slane %v1030, 2
    %v1032 = vadd.f32 %v1030, %v1031
    %v1033 = vrot.slane %v1032, 1
    %v1034 = vadd.f32 %v1032, %v1033
    %v1035 = vsel %vm242, %v992, 0.0
    %v1036 = vsel %vm242, %v993, 0.0
    %v1037 = vadd.f32 %v1035, %v1036
    %v1038 = vsel %vm242, %v994, 0.0
    %v1039 = vadd.f32 %v1037, %v1038
    %v1040 = vsel %vm242, %v995, 0.0
    %v1041 = vadd.f32 %v1039, %v1040
    %v1042 = vrot.slane %v1041, 4
    %v1043 = vadd.f32 %v1041, %v1042
    %v1044 = vrot.slane %v1043, 2
    %v1045 = vadd.f32 %v1043, %v1044
    %v1046 = vrot.slane %v1045, 1
    %v1047 = vadd.f32 %v1045, %v1046
    %v1048 = vmul.f32 %v1008, %v966
    %v1049 = vmul.f32 %v1021, %v966
    %v1050 = vmul.f32 %v1034, %v966
    %v1051 = vmul.f32 %v1047, %v966
    %v1052 = vsel %vm242, %v1048, 0.0
    %v1053 = vsel %vm242, %v1049, 0.0
    %v1054 = vadd.f32 %v1052, %v1053
    %v1055 = vsel %vm242, %v1050, 0.0
    %v1056 = vadd.f32 %v1054, %v1055
    %v1057 = vsel %vm242, %v1051, 0.0
    %v1058 = vadd.f32 %v1056, %v1057
    %v1059 = vmul.f32 %v1058, %v978
    %v1060 = vmul.f32 %v979, %v979
    %v1061 = vsub.f32 %v1059, %v1060
    %v1062 = vmax.f32 %v1061, 0.0
    %v1063 = vsub.f32 %v898, %v979
    %v1064 = vsub.f32 %v899, %v979
    %v1065 = vsub.f32 %v900, %v979
    %v1066 = vsub.f32 %v901, %v979
    %v1067 = vsub.f32 %v902, %v979
    %v1068 = vsub.f32 %v903, %v979
    %v1069 = vsub.f32 %v904, %v979
    %v1070 = vsub.f32 %v905, %v979
    %v1071 = vsub.f32 %v906, %v979
    %v1072 = vsub.f32 %v907, %v979
    %v1073 = vsub.f32 %v908, %v979
    %v1074 = vsub.f32 %v909, %v979
    %v1075 = vsub.f32 %v910, %v979
    %v1076 = vsub.f32 %v911, %v979
    %v1077 = vsub.f32 %v912, %v979
    %v1078 = vsub.f32 %v913, %v979
    %v1079 = vadd.f32 %v1062, 1e-05
    %v1080 = vrsqrt.pop %v1079
    %v1081 = vmul.f32 %v1063, %v1080
    %v1082 = vmul.f32 %v1064, %v1080
    %v1083 = vmul.f32 %v1065, %v1080
    %v1084 = vmul.f32 %v1066, %v1080
    %v1085 = vmul.f32 %v1067, %v1080
    %v1086 = vmul.f32 %v1068, %v1080
    %v1087 = vmul.f32 %v1069, %v1080
    %v1088 = vmul.f32 %v1070, %v1080
    %v1089 = vmul.f32 %v1071, %v1080
    %v1090 = vmul.f32 %v1072, %v1080
    %v1091 = vmul.f32 %v1073, %v1080
    %v1092 = vmul.f32 %v1074, %v1080
    %v1093 = vmul.f32 %v1075, %v1080
    %v1094 = vmul.f32 %v1076, %v1080
    %v1095 = vmul.f32 %v1077, %v1080
    %v1096 = vmul.f32 %v1078, %v1080
    %vm1097 = vcmp.ge.f32.partialorder %v1081, 0.0
    %vm1098 = vcmp.ge.f32.partialorder %v1082, 0.0
    %vm1099 = vcmp.ge.f32.partialorder %v1083, 0.0
    %vm1100 = vcmp.ge.f32.partialorder %v1084, 0.0
    %vm1101 = vcmp.ge.f32.partialorder %v1085, 0.0
    %vm1102 = vcmp.ge.f32.partialorder %v1086, 0.0
    %vm1103 = vcmp.ge.f32.partialorder %v1087, 0.0
    %vm1104 = vcmp.ge.f32.partialorder %v1088, 0.0
    %vm1105 = vcmp.ge.f32.partialorder %v1089, 0.0
    %vm1106 = vcmp.ge.f32.partialorder %v1090, 0.0
    %vm1107 = vcmp.ge.f32.partialorder %v1091, 0.0
    %vm1108 = vcmp.ge.f32.partialorder %v1092, 0.0
    %vm1109 = vcmp.ge.f32.partialorder %v1093, 0.0
    %vm1110 = vcmp.ge.f32.partialorder %v1094, 0.0
    %vm1111 = vcmp.ge.f32.partialorder %v1095, 0.0
    %vm1112 = vcmp.ge.f32.partialorder %v1096, 0.0
    %v1113 = vmul.f32 %v1081, 0.2
    %v1114 = vmul.f32 %v1082, 0.2
    %v1115 = vmul.f32 %v1083, 0.2
    %v1116 = vmul.f32 %v1084, 0.2
    %v1117 = vmul.f32 %v1085, 0.2
    %v1118 = vmul.f32 %v1086, 0.2
    %v1119 = vmul.f32 %v1087, 0.2
    %v1120 = vmul.f32 %v1088, 0.2
    %v1121 = vmul.f32 %v1089, 0.2
    %v1122 = vmul.f32 %v1090, 0.2
    %v1123 = vmul.f32 %v1091, 0.2
    %v1124 = vmul.f32 %v1092, 0.2
    %v1125 = vmul.f32 %v1093, 0.2
    %v1126 = vmul.f32 %v1094, 0.2
    %v1127 = vmul.f32 %v1095, 0.2
    %v1128 = vmul.f32 %v1096, 0.2
    %v1129 = vsel %vm1097, %v1081, %v1113
    %v1130 = vsel %vm1098, %v1082, %v1114
    %v1131 = vsel %vm1099, %v1083, %v1115
    %v1132 = vsel %vm1100, %v1084, %v1116
    %v1133 = vsel %vm1101, %v1085, %v1117
    %v1134 = vsel %vm1102, %v1086, %v1118
    %v1135 = vsel %vm1103, %v1087, %v1119
    %v1136 = vsel %vm1104, %v1088, %v1120
    %v1137 = vsel %vm1105, %v1089, %v1121
    %v1138 = vsel %vm1106, %v1090, %v1122
    %v1139 = vsel %vm1107, %v1091, %v1123
    %v1140 = vsel %vm1108, %v1092, %v1124
    %v1141 = vsel %vm1109, %v1093, %v1125
    %v1142 = vsel %vm1110, %v1094, %v1126
    %v1143 = vsel %vm1111, %v1095, %v1127
    %v1144 = vsel %vm1112, %v1096, %v1128
    %1145 = vst.msk [vmem:[%s2] sm:$0xff] %vm242, %v1129
    %1146 = vst.msk [vmem:[%s2 + $0x8] sm:$0xff] %vm242, %v1130
    %1147 = vst.msk [vmem:[%s2 + $0x10] sm:$0xff] %vm242, %v1131
    %1148 = vst.msk [vmem:[%s2 + $0x18] sm:$0xff] %vm242, %v1132
    %1149 = vst.msk [vmem:[%s2 + $0x20] sm:$0xff] %vm242, %v1133
    %1150 = vst.msk [vmem:[%s2 + $0x28] sm:$0xff] %vm242, %v1134
    %1151 = vst.msk [vmem:[%s2 + $0x30] sm:$0xff] %vm242, %v1135
    %1152 = vst.msk [vmem:[%s2 + $0x38] sm:$0xff] %vm242, %v1136
    %1153 = vst.msk [vmem:[%s2 + $0x40] sm:$0xff] %vm242, %v1137
    %1154 = vst.msk [vmem:[%s2 + $0x48] sm:$0xff] %vm242, %v1138
    %1155 = vst.msk [vmem:[%s2 + $0x50] sm:$0xff] %vm242, %v1139
    %1156 = vst.msk [vmem:[%s2 + $0x58] sm:$0xff] %vm242, %v1140
    %1157 = vst.msk [vmem:[%s2 + $0x60] sm:$0xff] %vm242, %v1141
    %1158 = vst.msk [vmem:[%s2 + $0x68] sm:$0xff] %vm242, %v1142
    %1159 = vst.msk [vmem:[%s2 + $0x70] sm:$0xff] %vm242, %v1143
    %1160 = vst.msk [vmem:[%s2 + $0x78] sm:$0xff] %vm242, %v1144
  $region17: #{fwd.18} parent=0 // pred_fallthru
    _
  // Predicated region
  $region18: #{fwd.18} parent=0 // pred_check
    _
  $region19: #{fwd.18} parent=0 // pred_check_branch
    %1162 = sbr.rel (0) target = $region21
  $region20: #{fwd.18} parent=0 // pred_region
    _
  $region21: #{fwd.18} parent=0 // pred_fallthru
    _
  // Predicated region
  $region22: #{fwd.18} parent=0 // pred_check
    _
  $region23: #{fwd.18} parent=0 // pred_check_branch
    %1164 = sbr.rel (0) target = $region25
  $region24: #{fwd.18} parent=0 // pred_region
    _
  $region25: #{fwd.18} parent=0 // pred_fallthru
    _

// kernel: fwd.19
$region0: #{fwd.19}
  #allocation0 [shape = 'u32[]', space=smem, size = 0x4, offset = 0x4, fixed_abs, tag = 'smem constant byte address 0x4 - core index']
  #allocation1 [shape = 'u32[144,128]{1,0:T(1,128)}', space=vmem, size = 0x12000, scoped, tag = 'internal scratch']
  #allocation2 [shape = 'f32[4,128,3]{2,1,0:T(8,128)}', space=vmem, size = 0x40000, scoped, tag = 'scratch operand']
  %s0 = inlined_call_operand.vmem [shape: bf16[4,128,128], index: 0, kind: input, shape index: {}]
  %s1 = inlined_call_operand.vmem [shape: bf16[4,128,3], index: 1, kind: input, shape index: {}]
  %s2 = inlined_call_operand.vmem [shape: f32[1,1,3], index: 2, kind: input, shape index: {}]
  %s3 = inlined_call_operand.vmem [shape: f32[4,128,3], index: 3, kind: output, shape index: {}]
  %s4 = sld [smem:[#allocation0]]
  $region30: #{fwd.19} parent=0
    _
  %s6 = ssub.s32 1, %s4
  %s7 = scalar_select 0, %s6, %s4
  // Predicated region
  $region2: #{fwd.19} parent=0 // pred_check
    _
  $region3: #{fwd.19} parent=0 // pred_check_branch
    %9 = sbr.rel (0) target = $region5
  $region4: #{fwd.19} parent=0 // pred_region
    _
  $region5: #{fwd.19} parent=0 // pred_fallthru
    _
  // Predicated region
  $region6: #{fwd.19} parent=0 // pred_check
    _
  $region7: #{fwd.19} parent=0 // pred_check_branch
    %11 = sbr.rel (0) target = $region9
  $region8: #{fwd.19} parent=0 // pred_region
    _
  $region9: #{fwd.19} parent=0 // pred_fallthru
    _
  // Predicated region
  $region10: #{fwd.19} parent=0 // pred_check
    _
  $region11: #{fwd.19} parent=0 // pred_check_branch
    %13 = sbr.rel (0) target = $region13
  $region12: #{fwd.19} parent=0 // pred_region
    _
  $region13: #{fwd.19} parent=0 // pred_fallthru
    _
  %p15 = scmp.eq.s32.totalorder 0, 0
  // Predicated region
  $region14: #{fwd.19} parent=0 // pred_check
    %p16 = pneg %p15
  $region15: #{fwd.19} parent=0 // pred_check_branch
    %18 = sbr.rel (%p16) target = $region17
  $region16: #{fwd.19} parent=0 // pred_region
    %vm19 = vcmask 23552
    %20 = vst.msk [vmem:[#allocation2] sm:$0xff] %vm19, 0.0
    %21 = vst.msk [vmem:[#allocation2 + $0x8] sm:$0xff] %vm19, 0.0
    %22 = vst.msk [vmem:[#allocation2 + $0x10] sm:$0xff] %vm19, 0.0
    %23 = vst.msk [vmem:[#allocation2 + $0x18] sm:$0xff] %vm19, 0.0
    %24 = vst.msk [vmem:[#allocation2 + $0x20] sm:$0xff] %vm19, 0.0
    %25 = vst.msk [vmem:[#allocation2 + $0x28] sm:$0xff] %vm19, 0.0
    %26 = vst.msk [vmem:[#allocation2 + $0x30] sm:$0xff] %vm19, 0.0
    %27 = vst.msk [vmem:[#allocation2 + $0x38] sm:$0xff] %vm19, 0.0
    %28 = vst.msk [vmem:[#allocation2 + $0x40] sm:$0xff] %vm19, 0.0
    %29 = vst.msk [vmem:[#allocation2 + $0x48] sm:$0xff] %vm19, 0.0
    %30 = vst.msk [vmem:[#allocation2 + $0x50] sm:$0xff] %vm19, 0.0
    %31 = vst.msk [vmem:[#allocation2 + $0x58] sm:$0xff] %vm19, 0.0
    %32 = vst.msk [vmem:[#allocation2 + $0x60] sm:$0xff] %vm19, 0.0
    %33 = vst.msk [vmem:[#allocation2 + $0x68] sm:$0xff] %vm19, 0.0
    %34 = vst.msk [vmem:[#allocation2 + $0x70] sm:$0xff] %vm19, 0.0
    %35 = vst.msk [vmem:[#allocation2 + $0x78] sm:$0xff] %vm19, 0.0
    %36 = vst.msk [vmem:[#allocation2 + $0x80] sm:$0xff] %vm19, 0.0
    %37 = vst.msk [vmem:[#allocation2 + $0x88] sm:$0xff] %vm19, 0.0
    %38 = vst.msk [vmem:[#allocation2 + $0x90] sm:$0xff] %vm19, 0.0
    %39 = vst.msk [vmem:[#allocation2 + $0x98] sm:$0xff] %vm19, 0.0
    %40 = vst.msk [vmem:[#allocation2 + $0xa0] sm:$0xff] %vm19, 0.0
    %41 = vst.msk [vmem:[#allocation2 + $0xa8] sm:$0xff] %vm19, 0.0
    %42 = vst.msk [vmem:[#allocation2 + $0xb0] sm:$0xff] %vm19, 0.0
    %43 = vst.msk [vmem:[#allocation2 + $0xb8] sm:$0xff] %vm19, 0.0
    %44 = vst.msk [vmem:[#allocation2 + $0xc0] sm:$0xff] %vm19, 0.0
    %45 = vst.msk [vmem:[#allocation2 + $0xc8] sm:$0xff] %vm19, 0.0
    %46 = vst.msk [vmem:[#allocation2 + $0xd0] sm:$0xff] %vm19, 0.0
    %47 = vst.msk [vmem:[#allocation2 + $0xd8] sm:$0xff] %vm19, 0.0
    %48 = vst.msk [vmem:[#allocation2 + $0xe0] sm:$0xff] %vm19, 0.0
    %49 = vst.msk [vmem:[#allocation2 + $0xe8] sm:$0xff] %vm19, 0.0
    %50 = vst.msk [vmem:[#allocation2 + $0xf0] sm:$0xff] %vm19, 0.0
    %51 = vst.msk [vmem:[#allocation2 + $0xf8] sm:$0xff] %vm19, 0.0
    %52 = vst.msk [vmem:[#allocation2 + $0x100] sm:$0xff] %vm19, 0.0
    %53 = vst.msk [vmem:[#allocation2 + $0x108] sm:$0xff] %vm19, 0.0
    %54 = vst.msk [vmem:[#allocation2 + $0x110] sm:$0xff] %vm19, 0.0
    %55 = vst.msk [vmem:[#allocation2 + $0x118] sm:$0xff] %vm19, 0.0
    %56 = vst.msk [vmem:[#allocation2 + $0x120] sm:$0xff] %vm19, 0.0
    %57 = vst.msk [vmem:[#allocation2 + $0x128] sm:$0xff] %vm19, 0.0
    %58 = vst.msk [vmem:[#allocation2 + $0x130] sm:$0xff] %vm19, 0.0
    %59 = vst.msk [vmem:[#allocation2 + $0x138] sm:$0xff] %vm19, 0.0
    %60 = vst.msk [vmem:[#allocation2 + $0x140] sm:$0xff] %vm19, 0.0
    %61 = vst.msk [vmem:[#allocation2 + $0x148] sm:$0xff] %vm19, 0.0
    %62 = vst.msk [vmem:[#allocation2 + $0x150] sm:$0xff] %vm19, 0.0
    %63 = vst.msk [vmem:[#allocation2 + $0x158] sm:$0xff] %vm19, 0.0
    %64 = vst.msk [vmem:[#allocation2 + $0x160] sm:$0xff] %vm19, 0.0
    %65 = vst.msk [vmem:[#allocation2 + $0x168] sm:$0xff] %vm19, 0.0
    %66 = vst.msk [vmem:[#allocation2 + $0x170] sm:$0xff] %vm19, 0.0
    %67 = vst.msk [vmem:[#allocation2 + $0x178] sm:$0xff] %vm19, 0.0
    %68 = vst.msk [vmem:[#allocation2 + $0x180] sm:$0xff] %vm19, 0.0
    %69 = vst.msk [vmem:[#allocation2 + $0x188] sm:$0xff] %vm19, 0.0
    %70 = vst.msk [vmem:[#allocation2 + $0x190] sm:$0xff] %vm19, 0.0
    %71 = vst.msk [vmem:[#allocation2 + $0x198] sm:$0xff] %vm19, 0.0
    %72 = vst.msk [vmem:[#allocation2 + $0x1a0] sm:$0xff] %vm19, 0.0
    %73 = vst.msk [vmem:[#allocation2 + $0x1a8] sm:$0xff] %vm19, 0.0
    %74 = vst.msk [vmem:[#allocation2 + $0x1b0] sm:$0xff] %vm19, 0.0
    %75 = vst.msk [vmem:[#allocation2 + $0x1b8] sm:$0xff] %vm19, 0.0
    %76 = vst.msk [vmem:[#allocation2 + $0x1c0] sm:$0xff] %vm19, 0.0
    %77 = vst.msk [vmem:[#allocation2 + $0x1c8] sm:$0xff] %vm19, 0.0
    %78 = vst.msk [vmem:[#allocation2 + $0x1d0] sm:$0xff] %vm19, 0.0
    %79 = vst.msk [vmem:[#allocation2 + $0x1d8] sm:$0xff] %vm19, 0.0
    %80 = vst.msk [vmem:[#allocation2 + $0x1e0] sm:$0xff] %vm19, 0.0
    %81 = vst.msk [vmem:[#allocation2 + $0x1e8] sm:$0xff] %vm19, 0.0
    %82 = vst.msk [vmem:[#allocation2 + $0x1f0] sm:$0xff] %vm19, 0.0
    %83 = vst.msk [vmem:[#allocation2 + $0x1f8] sm:$0xff] %vm19, 0.0
  $region17: #{fwd.19} parent=0 // pred_fallthru
    _
  %v84 = vld [vmem:[#allocation2] sm:$0xff]
  %v85 = vld [vmem:[#allocation2 + $0x8] sm:$0xff]
  %v86 = vld [vmem:[#allocation2 + $0x10] sm:$0xff]
  %v87 = vld [vmem:[#allocation2 + $0x18] sm:$0xff]
  %v88 = vld [vmem:[#allocation2 + $0x20] sm:$0xff]
  %v89 = vld [vmem:[#allocation2 + $0x28] sm:$0xff]
  %v90 = vld [vmem:[#allocation2 + $0x30] sm:$0xff]
  %v91 = vld [vmem:[#allocation2 + $0x38] sm:$0xff]
  %v92 = vld [vmem:[#allocation2 + $0x40] sm:$0xff]
  %v93 = vld [vmem:[#allocation2 + $0x48] sm:$0xff]
  %v94 = vld [vmem:[#allocation2 + $0x50] sm:$0xff]
  %v95 = vld [vmem:[#allocation2 + $0x58] sm:$0xff]
  %v96 = vld [vmem:[#allocation2 + $0x60] sm:$0xff]
  %v97 = vld [vmem:[#allocation2 + $0x68] sm:$0xff]
  %v98 = vld [vmem:[#allocation2 + $0x70] sm:$0xff]
  %v99 = vld [vmem:[#allocation2 + $0x78] sm:$0xff]
  %v100 = vld [vmem:[%s0] sm:$0xf]
  %v101 = vld [vmem:[%s0 + $0x4] sm:$0xf]
  %v102 = vld [vmem:[%s0 + $0x8] sm:$0xf]
  %v103 = vld [vmem:[%s0 + $0xc] sm:$0xf]
  %v104 = vld [vmem:[%s0 + $0x10] sm:$0xf]
  %v105 = vld [vmem:[%s0 + $0x14] sm:$0xf]
  %v106 = vld [vmem:[%s0 + $0x18] sm:$0xf]
  %v107 = vld [vmem:[%s0 + $0x1c] sm:$0xf]
  %v108 = vld [vmem:[%s0 + $0x20] sm:$0xf]
  %v109 = vld [vmem:[%s0 + $0x24] sm:$0xf]
  %v110 = vld [vmem:[%s0 + $0x28] sm:$0xf]
  %v111 = vld [vmem:[%s0 + $0x2c] sm:$0xf]
  %v112 = vld [vmem:[%s0 + $0x30] sm:$0xf]
  %v113 = vld [vmem:[%s0 + $0x34] sm:$0xf]
  %v114 = vld [vmem:[%s0 + $0x38] sm:$0xf]
  %v115 = vld [vmem:[%s0 + $0x3c] sm:$0xf]
  %v116 = vld [vmem:[%s1] sm:$0xf]
  %v117 = vld [vmem:[%s1 + $0x4] sm:$0xf]
  %v118 = vld [vmem:[%s1 + $0x8] sm:$0xf]
  %v119 = vld [vmem:[%s1 + $0xc] sm:$0xf]
  %v120 = vld [vmem:[%s1 + $0x10] sm:$0xf]
  %v121 = vld [vmem:[%s1 + $0x14] sm:$0xf]
  %v122 = vld [vmem:[%s1 + $0x18] sm:$0xf]
  %v123 = vld [vmem:[%s1 + $0x1c] sm:$0xf]
  %v124 = vld [vmem:[%s1 + $0x20] sm:$0xf]
  %v125 = vld [vmem:[%s1 + $0x24] sm:$0xf]
  %v126 = vld [vmem:[%s1 + $0x28] sm:$0xf]
  %v127 = vld [vmem:[%s1 + $0x2c] sm:$0xf]
  %v128 = vld [vmem:[%s1 + $0x30] sm:$0xf]
  %v129 = vld [vmem:[%s1 + $0x34] sm:$0xf]
  %v130 = vld [vmem:[%s1 + $0x38] sm:$0xf]
  %v131 = vld [vmem:[%s1 + $0x3c] sm:$0xf]
  %v148 = vunpack.c.l.b16 %v100
  %v149 = vunpack.c.l.b16 %v101
  %v150 = vunpack.c.l.b16 %v102
  %v151 = vunpack.c.l.b16 %v103
  %v152 = vunpack.c.l.b16 %v104
  %v153 = vunpack.c.l.b16 %v105
  %v154 = vunpack.c.l.b16 %v106
  %v155 = vunpack.c.l.b16 %v107
  %v156 = vunpack.c.l.b16 %v108
  %v157 = vunpack.c.l.b16 %v109
  %v158 = vunpack.c.l.b16 %v110
  %v159 = vunpack.c.l.b16 %v111
  %v160 = vunpack.c.l.b16 %v112
  %v161 = vunpack.c.l.b16 %v113
  %v162 = vunpack.c.l.b16 %v114
  %v163 = vunpack.c.l.b16 %v115
  %v164 = vpack.c.b16 %v149, %v148
  %v165 = vpack.c.b16 %v151, %v150
  %v166 = vpack.c.b16 %v153, %v152
  %v167 = vpack.c.b16 %v155, %v154
  %v168 = vpack.c.b16 %v157, %v156
  %v169 = vpack.c.b16 %v159, %v158
  %v170 = vpack.c.b16 %v161, %v160
  %v171 = vpack.c.b16 %v163, %v162
  %v196 = vunpack.c.l.b16 %v116
  %v197 = vunpack.c.l.b16 %v117
  %v198 = vunpack.c.l.b16 %v118
  %v199 = vunpack.c.l.b16 %v119
  %v200 = vunpack.c.l.b16 %v120
  %v201 = vunpack.c.l.b16 %v121
  %v202 = vunpack.c.l.b16 %v122
  %v203 = vunpack.c.l.b16 %v123
  %v204 = vunpack.c.l.b16 %v124
  %v205 = vunpack.c.l.b16 %v125
  %v206 = vunpack.c.l.b16 %v126
  %v207 = vunpack.c.l.b16 %v127
  %v208 = vunpack.c.l.b16 %v128
  %v209 = vunpack.c.l.b16 %v129
  %v210 = vunpack.c.l.b16 %v130
  %v211 = vunpack.c.l.b16 %v131
  %v212 = vpack.c.b16 %v197, %v196
  %v213 = vpack.c.b16 %v199, %v198
  %v214 = vpack.c.b16 %v201, %v200
  %v215 = vpack.c.b16 %v203, %v202
  %v216 = vpack.c.b16 %v205, %v204
  %v217 = vpack.c.b16 %v207, %v206
  %v218 = vpack.c.b16 %v209, %v208
  %v219 = vpack.c.b16 %v211, %v210
  %228 = vmatprep.subr.bf16.mxu0 0
  %229 = vmatpush1.bf16.msra.mxu0 %v212
  %230 = vmatprep.subr.bf16.mxu0 0
  %231 = vmatpush1.bf16.msra.mxu0 %v213
  %232 = vmatprep.subr.bf16.mxu0 0
  %233 = vmatpush1.bf16.msra.mxu0 %v214
  %234 = vmatprep.subr.bf16.mxu0 0
  %235 = vmatpush1.bf16.msra.mxu0 %v215
  %236 = vmatprep.subr.bf16.mxu0 0
  %237 = vmatpush1.bf16.msra.mxu0 %v216
  %238 = vmatprep.subr.bf16.mxu0 0
  %239 = vmatpush1.bf16.msra.mxu0 %v217
  %240 = vmatprep.subr.bf16.mxu0 0
  %241 = vmatpush1.bf16.msra.mxu0 %v218
  %242 = vmatprep.subr.bf16.mxu0 0
  %243 = vmatpush1.bf16.msra.mxu0 %v219
  %244 = vmatprep.subr.bf16.mxu0 0
  %245 = vmatpush1.bf16.msra.mxu0 0
  %246 = vmatprep.subr.bf16.mxu0 0
  %247 = vmatpush1.bf16.msra.mxu0 0
  %248 = vmatprep.subr.bf16.mxu0 0
  %249 = vmatpush1.bf16.msra.mxu0 0
  %250 = vmatprep.subr.bf16.mxu0 0
  %251 = vmatpush1.bf16.msra.mxu0 0
  %252 = vmatprep.subr.bf16.mxu0 0
  %253 = vmatpush1.bf16.msra.mxu0 0
  %254 = vmatprep.subr.bf16.mxu0 0
  %255 = vmatpush1.bf16.msra.mxu0 0
  %256 = vmatprep.subr.bf16.mxu0 0
  %257 = vmatpush1.bf16.msra.mxu0 0
  %258 = vmatprep.subr.bf16.mxu0 0
  %259 = vmatpush1.bf16.msra.mxu0 0
  %260 = vmatprep.mubr.bf16.mxu0 0
  %261 = vmatmul.mubr.bf16.gmra.mrb[0].mxu0 %v164
  %v262 = vpop.f32.mrb[0].mxu0
  %v263 = vadd.f32 0.0, %v262
  %v264 = vpop.f32.mrb[0].mxu0
  %v265 = vpop.f32.mrb[0].mxu0
  %v266 = vadd.f32 0.0, %v265
  %v267 = vpop.f32.mrb[0].mxu0
  %268 = vmatprep.mubr.bf16.mxu0 0
  %269 = vmatmul.mubr.bf16.gmra.mrb[0].mxu0 %v165
  %v270 = vpop.f32.mrb[0].mxu0
  %v271 = vadd.f32 0.0, %v270
  %v272 = vpop.f32.mrb[0].mxu0
  %v273 = vpop.f32.mrb[0].mxu0
  %v274 = vadd.f32 0.0, %v273
  %v275 = vpop.f32.mrb[0].mxu0
  %276 = vmatprep.mubr.bf16.mxu0 0
  %277 = vmatmul.mubr.bf16.gmra.mrb[0].mxu0 %v166
  %v278 = vpop.f32.mrb[0].mxu0
  %v279 = vadd.f32 0.0, %v278
  %v280 = vpop.f32.mrb[0].mxu0
  %v281 = vpop.f32.mrb[0].mxu0
  %v282 = vadd.f32 0.0, %v281
  %v283 = vpop.f32.mrb[0].mxu0
  %284 = vmatprep.mubr.bf16.mxu0 0
  %285 = vmatmul.mubr.bf16.gmra.mrb[0].mxu0 %v167
  %v286 = vpop.f32.mrb[0].mxu0
  %v287 = vadd.f32 0.0, %v286
  %v288 = vpop.f32.mrb[0].mxu0
  %v289 = vpop.f32.mrb[0].mxu0
  %v290 = vadd.f32 0.0, %v289
  %v291 = vpop.f32.mrb[0].mxu0
  %292 = vmatprep.mubr.bf16.mxu0 0
  %293 = vmatmul.mubr.bf16.gmra.mrb[0].mxu0 %v168
  %v294 = vpop.f32.mrb[0].mxu0
  %v295 = vadd.f32 0.0, %v294
  %v296 = vpop.f32.mrb[0].mxu0
  %v297 = vpop.f32.mrb[0].mxu0
  %v298 = vadd.f32 0.0, %v297
  %v299 = vpop.f32.mrb[0].mxu0
  %300 = vmatprep.mubr.bf16.mxu0 0
  %301 = vmatmul.mubr.bf16.gmra.mrb[0].mxu0 %v169
  %v302 = vpop.f32.mrb[0].mxu0
  %v303 = vadd.f32 0.0, %v302
  %v304 = vpop.f32.mrb[0].mxu0
  %v305 = vpop.f32.mrb[0].mxu0
  %v306 = vadd.f32 0.0, %v305
  %v307 = vpop.f32.mrb[0].mxu0
  %308 = vmatprep.mubr.bf16.mxu0 0
  %309 = vmatmul.mubr.bf16.gmra.mrb[0].mxu0 %v170
  %v310 = vpop.f32.mrb[0].mxu0
  %v311 = vadd.f32 0.0, %v310
  %v312 = vpop.f32.mrb[0].mxu0
  %v313 = vpop.f32.mrb[0].mxu0
  %v314 = vadd.f32 0.0, %v313
  %v315 = vpop.f32.mrb[0].mxu0
  %316 = vmatprep.mubr.bf16.mxu0 0
  %317 = vmatmul.mubr.bf16.gmra.mrb[0].mxu0 %v171
  %v318 = vpop.f32.mrb[0].mxu0
  %v319 = vadd.f32 0.0, %v318
  %v320 = vpop.f32.mrb[0].mxu0
  %v321 = vpop.f32.mrb[0].mxu0
  %v322 = vadd.f32 0.0, %v321
  %v323 = vpop.f32.mrb[0].mxu0
  %324 = vdwg.mxu0
  %v325 = vadd.f32 %v84, %v263
  %v326 = vadd.f32 %v85, %v266
  %v327 = vadd.f32 %v86, %v271
  %v328 = vadd.f32 %v87, %v274
  %v329 = vadd.f32 %v88, %v279
  %v330 = vadd.f32 %v89, %v282
  %v331 = vadd.f32 %v90, %v287
  %v332 = vadd.f32 %v91, %v290
  %v333 = vadd.f32 %v92, %v295
  %v334 = vadd.f32 %v93, %v298
  %v335 = vadd.f32 %v94, %v303
  %v336 = vadd.f32 %v95, %v306
  %v337 = vadd.f32 %v96, %v311
  %v338 = vadd.f32 %v97, %v314
  %v339 = vadd.f32 %v98, %v319
  %v340 = vadd.f32 %v99, %v322
  %vm341 = vcmask 23552
  %342 = vst.msk [vmem:[#allocation2] sm:$0xff] %vm341, %v325
  %343 = vst.msk [vmem:[#allocation2 + $0x8] sm:$0xff] %vm341, %v326
  %344 = vst.msk [vmem:[#allocation2 + $0x10] sm:$0xff] %vm341, %v327
  %345 = vst.msk [vmem:[#allocation2 + $0x18] sm:$0xff] %vm341, %v328
  %346 = vst.msk [vmem:[#allocation2 + $0x20] sm:$0xff] %vm341, %v329
  %347 = vst.msk [vmem:[#allocation2 + $0x28] sm:$0xff] %vm341, %v330
  %348 = vst.msk [vmem:[#allocation2 + $0x30] sm:$0xff] %vm341, %v331
  %349 = vst.msk [vmem:[#allocation2 + $0x38] sm:$0xff] %vm341, %v332
  %350 = vst.msk [vmem:[#allocation2 + $0x40] sm:$0xff] %vm341, %v333
  %351 = vst.msk [vmem:[#allocation2 + $0x48] sm:$0xff] %vm341, %v334
  %352 = vst.msk [vmem:[#allocation2 + $0x50] sm:$0xff] %vm341, %v335
  %353 = vst.msk [vmem:[#allocation2 + $0x58] sm:$0xff] %vm341, %v336
  %354 = vst.msk [vmem:[#allocation2 + $0x60] sm:$0xff] %vm341, %v337
  %355 = vst.msk [vmem:[#allocation2 + $0x68] sm:$0xff] %vm341, %v338
  %356 = vst.msk [vmem:[#allocation2 + $0x70] sm:$0xff] %vm341, %v339
  %357 = vst.msk [vmem:[#allocation2 + $0x78] sm:$0xff] %vm341, %v340
  %s358 = scalar_lea.vmem [#allocation2], 128
  %v359 = vld [vmem:[%s358] sm:$0xff]
  %v360 = vld [vmem:[%s358 + $0x8] sm:$0xff]
  %v361 = vld [vmem:[%s358 + $0x10] sm:$0xff]
  %v362 = vld [vmem:[%s358 + $0x18] sm:$0xff]
  %v363 = vld [vmem:[%s358 + $0x20] sm:$0xff]
  %v364 = vld [vmem:[%s358 + $0x28] sm:$0xff]
  %v365 = vld [vmem:[%s358 + $0x30] sm:$0xff]
  %v366 = vld [vmem:[%s358 + $0x38] sm:$0xff]
  %v367 = vld [vmem:[%s358 + $0x40] sm:$0xff]
  %v368 = vld [vmem:[%s358 + $0x48] sm:$0xff]
  %v369 = vld [vmem:[%s358 + $0x50] sm:$0xff]
  %v370 = vld [vmem:[%s358 + $0x58] sm:$0xff]
  %v371 = vld [vmem:[%s358 + $0x60] sm:$0xff]
  %v372 = vld [vmem:[%s358 + $0x68] sm:$0xff]
  %v373 = vld [vmem:[%s358 + $0x70] sm:$0xff]
  %v374 = vld [vmem:[%s358 + $0x78] sm:$0xff]
  %s375 = scalar_lea.vmem %s0, 64
  %v376 = vld [vmem:[%s375] sm:$0xf]
  %v377 = vld [vmem:[%s375 + $0x4] sm:$0xf]
  %v378 = vld [vmem:[%s375 + $0x8] sm:$0xf]
  %v379 = vld [vmem:[%s375 + $0xc] sm:$0xf]
  %v380 = vld [vmem:[%s375 + $0x10] sm:$0xf]
  %v381 = vld [vmem:[%s375 + $0x14] sm:$0xf]
  %v382 = vld [vmem:[%s375 + $0x18] sm:$0xf]
  %v383 = vld [vmem:[%s375 + $0x1c] sm:$0xf]
  %v384 = vld [vmem:[%s375 + $0x20] sm:$0xf]
  %v385 = vld [vmem:[%s375 + $0x24] sm:$0xf]
  %v386 = vld [vmem:[%s375 + $0x28] sm:$0xf]
  %v387 = vld [vmem:[%s375 + $0x2c] sm:$0xf]
  %v388 = vld [vmem:[%s375 + $0x30] sm:$0xf]
  %v389 = vld [vmem:[%s375 + $0x34] sm:$0xf]
  %v390 = vld [vmem:[%s375 + $0x38] sm:$0xf]
  %v391 = vld [vmem:[%s375 + $0x3c] sm:$0xf]
  %s392 = scalar_lea.vmem %s1, 64
  %v393 = vld [vmem:[%s392] sm:$0xf]
  %v394 = vld [vmem:[%s392 + $0x4] sm:$0xf]
  %v395 = vld [vmem:[%s392 + $0x8] sm:$0xf]
  %v396 = vld [vmem:[%s392 + $0xc] sm:$0xf]
  %v397 = vld [vmem:[%s392 + $0x10] sm:$0xf]
  %v398 = vld [vmem:[%s392 + $0x14] sm:$0xf]
  %v399 = vld [vmem:[%s392 + $0x18] sm:$0xf]
  %v400 = vld [vmem:[%s392 + $0x1c] sm:$0xf]
  %v401 = vld [vmem:[%s392 + $0x20] sm:$0xf]
  %v402 = vld [vmem:[%s392 + $0x24] sm:$0xf]
  %v403 = vld [vmem:[%s392 + $0x28] sm:$0xf]
  %v404 = vld [vmem:[%s392 + $0x2c] sm:$0xf]
  %v405 = vld [vmem:[%s392 + $0x30] sm:$0xf]
  %v406 = vld [vmem:[%s392 + $0x34] sm:$0xf]
  %v407 = vld [vmem:[%s392 + $0x38] sm:$0xf]
  %v408 = vld [vmem:[%s392 + $0x3c] sm:$0xf]
  %v425 = vunpack.c.l.b16 %v376
  %v426 = vunpack.c.l.b16 %v377
  %v427 = vunpack.c.l.b16 %v378
  %v428 = vunpack.c.l.b16 %v379
  %v429 = vunpack.c.l.b16 %v380
  %v430 = vunpack.c.l.b16 %v381
  %v431 = vunpack.c.l.b16 %v382
  %v432 = vunpack.c.l.b16 %v383
  %v433 = vunpack.c.l.b16 %v384
  %v434 = vunpack.c.l.b16 %v385
  %v435 = vunpack.c.l.b16 %v386
  %v436 = vunpack.c.l.b16 %v387
  %v437 = vunpack.c.l.b16 %v388
  %v438 = vunpack.c.l.b16 %v389
  %v439 = vunpack.c.l.b16 %v390
  %v440 = vunpack.c.l.b16 %v391
  %v441 = vpack.c.b16 %v426, %v425
  %v442 = vpack.c.b16 %v428, %v427
  %v443 = vpack.c.b16 %v430, %v429
  %v444 = vpack.c.b16 %v432, %v431
  %v445 = vpack.c.b16 %v434, %v433
  %v446 = vpack.c.b16 %v436, %v435
  %v447 = vpack.c.b16 %v438, %v437
  %v448 = vpack.c.b16 %v440, %v439
  %v473 = vunpack.c.l.b16 %v393
  %v474 = vunpack.c.l.b16 %v394
  %v475 = vunpack.c.l.b16 %v395
  %v476 = vunpack.c.l.b16 %v396
  %v477 = vunpack.c.l.b16 %v397
  %v478 = vunpack.c.l.b16 %v398
  %v479 = vunpack.c.l.b16 %v399
  %v480 = vunpack.c.l.b16 %v400
  %v481 = vunpack.c.l.b16 %v401
  %v482 = vunpack.c.l.b16 %v402
  %v483 = vunpack.c.l.b16 %v403
  %v484 = vunpack.c.l.b16 %v404
  %v485 = vunpack.c.l.b16 %v405
  %v486 = vunpack.c.l.b16 %v406
  %v487 = vunpack.c.l.b16 %v407
  %v488 = vunpack.c.l.b16 %v408
  %v489 = vpack.c.b16 %v474, %v473
  %v490 = vpack.c.b16 %v476, %v475
  %v491 = vpack.c.b16 %v478, %v477
  %v492 = vpack.c.b16 %v480, %v479
  %v493 = vpack.c.b16 %v482, %v481
  %v494 = vpack.c.b16 %v484, %v483
  %v495 = vpack.c.b16 %v486, %v485
  %v496 = vpack.c.b16 %v488, %v487
  %505 = vmatprep.subr.bf16.mxu0 0
  %506 = vmatpush1.bf16.msra.mxu0 %v489
  %507 = vmatprep.subr.bf16.mxu0 0
  %508 = vmatpush1.bf16.msra.mxu0 %v490
  %509 = vmatprep.subr.bf16.mxu0 0
  %510 = vmatpush1.bf16.msra.mxu0 %v491
  %511 = vmatprep.subr.bf16.mxu0 0
  %512 = vmatpush1.bf16.msra.mxu0 %v492
  %513 = vmatprep.subr.bf16.mxu0 0
  %514 = vmatpush1.bf16.msra.mxu0 %v493
  %515 = vmatprep.subr.bf16.mxu0 0
  %516 = vmatpush1.bf16.msra.mxu0 %v494
  %517 = vmatprep.subr.bf16.mxu0 0
  %518 = vmatpush1.bf16.msra.mxu0 %v495
  %519 = vmatprep.subr.bf16.mxu0 0
  %520 = vmatpush1.bf16.msra.mxu0 %v496
  %521 = vmatprep.subr.bf16.mxu0 0
  %522 = vmatpush1.bf16.msra.mxu0 0
  %523 = vmatprep.subr.bf16.mxu0 0
  %524 = vmatpush1.bf16.msra.mxu0 0
  %525 = vmatprep.subr.bf16.mxu0 0
  %526 = vmatpush1.bf16.msra.mxu0 0
  %527 = vmatprep.subr.bf16.mxu0 0
  %528 = vmatpush1.bf16.msra.mxu0 0
  %529 = vmatprep.subr.bf16.mxu0 0
  %530 = vmatpush1.bf16.msra.mxu0 0
  %531 = vmatprep.subr.bf16.mxu0 0
  %532 = vmatpush1.bf16.msra.mxu0 0
  %533 = vmatprep.subr.bf16.mxu0 0
  %534 = vmatpush1.bf16.msra.mxu0 0
  %535 = vmatprep.subr.bf16.mxu0 0
  %536 = vmatpush1.bf16.msra.mxu0 0
  %537 = vmatprep.mubr.bf16.mxu0 0
  %538 = vmatmul.mubr.bf16.gmra.mrb[0].mxu0 %v441
  %v539 = vpop.f32.mrb[0].mxu0
  %v540 = vadd.f32 0.0, %v539
  %v541 = vpop.f32.mrb[0].mxu0
  %v542 = vpop.f32.mrb[0].mxu0
  %v543 = vadd.f32 0.0, %v542
  %v544 = vpop.f32.mrb[0].mxu0
  %545 = vmatprep.mubr.bf16.mxu0 0
  %546 = vmatmul.mubr.bf16.gmra.mrb[0].mxu0 %v442
  %v547 = vpop.f32.mrb[0].mxu0
  %v548 = vadd.f32 0.0, %v547
  %v549 = vpop.f32.mrb[0].mxu0
  %v550 = vpop.f32.mrb[0].mxu0
  %v551 = vadd.f32 0.0, %v550
  %v552 = vpop.f32.mrb[0].mxu0
  %553 = vmatprep.mubr.bf16.mxu0 0
  %554 = vmatmul.mubr.bf16.gmra.mrb[0].mxu0 %v443
  %v555 = vpop.f32.mrb[0].mxu0
  %v556 = vadd.f32 0.0, %v555
  %v557 = vpop.f32.mrb[0].mxu0
  %v558 = vpop.f32.mrb[0].mxu0
  %v559 = vadd.f32 0.0, %v558
  %v560 = vpop.f32.mrb[0].mxu0
  %561 = vmatprep.mubr.bf16.mxu0 0
  %562 = vmatmul.mubr.bf16.gmra.mrb[0].mxu0 %v444
  %v563 = vpop.f32.mrb[0].mxu0
  %v564 = vadd.f32 0.0, %v563
  %v565 = vpop.f32.mrb[0].mxu0
  %v566 = vpop.f32.mrb[0].mxu0
  %v567 = vadd.f32 0.0, %v566
  %v568 = vpop.f32.mrb[0].mxu0
  %569 = vmatprep.mubr.bf16.mxu0 0
  %570 = vmatmul.mubr.bf16.gmra.mrb[0].mxu0 %v445
  %v571 = vpop.f32.mrb[0].mxu0
  %v572 = vadd.f32 0.0, %v571
  %v573 = vpop.f32.mrb[0].mxu0
  %v574 = vpop.f32.mrb[0].mxu0
  %v575 = vadd.f32 0.0, %v574
  %v576 = vpop.f32.mrb[0].mxu0
  %577 = vmatprep.mubr.bf16.mxu0 0
  %578 = vmatmul.mubr.bf16.gmra.mrb[0].mxu0 %v446
  %v579 = vpop.f32.mrb[0].mxu0
  %v580 = vadd.f32 0.0, %v579
  %v581 = vpop.f32.mrb[0].mxu0
  %v582 = vpop.f32.mrb[0].mxu0
  %v583 = vadd.f32 0.0, %v582
  %v584 = vpop.f32.mrb[0].mxu0
  %585 = vmatprep.mubr.bf16.mxu0 0
  %586 = vmatmul.mubr.bf16.gmra.mrb[0].mxu0 %v447
  %v587 = vpop.f32.mrb[0].mxu0
  %v588 = vadd.f32 0.0, %v587
  %v589 = vpop.f32.mrb[0].mxu0
  %v590 = vpop.f32.mrb[0].mxu0
  %v591 = vadd.f32 0.0, %v590
  %v592 = vpop.f32.mrb[0].mxu0
  %593 = vmatprep.mubr.bf16.mxu0 0
  %594 = vmatmul.mubr.bf16.gmra.mrb[0].mxu0 %v448
  %v595 = vpop.f32.mrb[0].mxu0
  %v596 = vadd.f32 0.0, %v595
  %v597 = vpop.f32.mrb[0].mxu0
  %v598 = vpop.f32.mrb[0].mxu0
  %v599 = vadd.f32 0.0, %v598
  %v600 = vpop.f32.mrb[0].mxu0
  %601 = vdwg.mxu0
  %v602 = vadd.f32 %v359, %v540
  %v603 = vadd.f32 %v360, %v543
  %v604 = vadd.f32 %v361, %v548
  %v605 = vadd.f32 %v362, %v551
  %v606 = vadd.f32 %v363, %v556
  %v607 = vadd.f32 %v364, %v559
  %v608 = vadd.f32 %v365, %v564
  %v609 = vadd.f32 %v366, %v567
  %v610 = vadd.f32 %v367, %v572
  %v611 = vadd.f32 %v368, %v575
  %v612 = vadd.f32 %v369, %v580
  %v613 = vadd.f32 %v370, %v583
  %v614 = vadd.f32 %v371, %v588
  %v615 = vadd.f32 %v372, %v591
  %v616 = vadd.f32 %v373, %v596
  %v617 = vadd.f32 %v374, %v599
  %618 = vst.msk [vmem:[%s358] sm:$0xff] %vm341, %v602
  %619 = vst.msk [vmem:[%s358 + $0x8] sm:$0xff] %vm341, %v603
  %620 = vst.msk [vmem:[%s358 + $0x10] sm:$0xff] %vm341, %v604
  %621 = vst.msk [vmem:[%s358 + $0x18] sm:$0xff] %vm341, %v605
  %622 = vst.msk [vmem:[%s358 + $0x20] sm:$0xff] %vm341, %v606
  %623 = vst.msk [vmem:[%s358 + $0x28] sm:$0xff] %vm341, %v607
  %624 = vst.msk [vmem:[%s358 + $0x30] sm:$0xff] %vm341, %v608
  %625 = vst.msk [vmem:[%s358 + $0x38] sm:$0xff] %vm341, %v609
  %626 = vst.msk [vmem:[%s358 + $0x40] sm:$0xff] %vm341, %v610
  %627 = vst.msk [vmem:[%s358 + $0x48] sm:$0xff] %vm341, %v611
  %628 = vst.msk [vmem:[%s358 + $0x50] sm:$0xff] %vm341, %v612
  %629 = vst.msk [vmem:[%s358 + $0x58] sm:$0xff] %vm341, %v613
  %630 = vst.msk [vmem:[%s358 + $0x60] sm:$0xff] %vm341, %v614
  %631 = vst.msk [vmem:[%s358 + $0x68] sm:$0xff] %vm341, %v615
  %632 = vst.msk [vmem:[%s358 + $0x70] sm:$0xff] %vm341, %v616
  %633 = vst.msk [vmem:[%s358 + $0x78] sm:$0xff] %vm341, %v617
  %s634 = scalar_lea.vmem [#allocation2], 256
  %v635 = vld [vmem:[%s634] sm:$0xff]
  %v636 = vld [vmem:[%s634 + $0x8] sm:$0xff]
  %v637 = vld [vmem:[%s634 + $0x10] sm:$0xff]
  %v638 = vld [vmem:[%s634 + $0x18] sm:$0xff]
  %v639 = vld [vmem:[%s634 + $0x20] sm:$0xff]
  %v640 = vld [vmem:[%s634 + $0x28] sm:$0xff]
  %v641 = vld [vmem:[%s634 + $0x30] sm:$0xff]
  %v642 = vld [vmem:[%s634 + $0x38] sm:$0xff]
  %v643 = vld [vmem:[%s634 + $0x40] sm:$0xff]
  %v644 = vld [vmem:[%s634 + $0x48] sm:$0xff]
  %v645 = vld [vmem:[%s634 + $0x50] sm:$0xff]
  %v646 = vld [vmem:[%s634 + $0x58] sm:$0xff]
  %v647 = vld [vmem:[%s634 + $0x60] sm:$0xff]
  %v648 = vld [vmem:[%s634 + $0x68] sm:$0xff]
  %v649 = vld [vmem:[%s634 + $0x70] sm:$0xff]
  %v650 = vld [vmem:[%s634 + $0x78] sm:$0xff]
  %s651 = scalar_lea.vmem %s0, 128
  %v652 = vld [vmem:[%s651] sm:$0xf]
  %v653 = vld [vmem:[%s651 + $0x4] sm:$0xf]
  %v654 = vld [vmem:[%s651 + $0x8] sm:$0xf]
  %v655 = vld [vmem:[%s651 + $0xc] sm:$0xf]
  %v656 = vld [vmem:[%s651 + $0x10] sm:$0xf]
  %v657 = vld [vmem:[%s651 + $0x14] sm:$0xf]
  %v658 = vld [vmem:[%s651 + $0x18] sm:$0xf]
  %v659 = vld [vmem:[%s651 + $0x1c] sm:$0xf]
  %v660 = vld [vmem:[%s651 + $0x20] sm:$0xf]
  %v661 = vld [vmem:[%s651 + $0x24] sm:$0xf]
  %v662 = vld [vmem:[%s651 + $0x28] sm:$0xf]
  %v663 = vld [vmem:[%s651 + $0x2c] sm:$0xf]
  %v664 = vld [vmem:[%s651 + $0x30] sm:$0xf]
  %v665 = vld [vmem:[%s651 + $0x34] sm:$0xf]
  %v666 = vld [vmem:[%s651 + $0x38] sm:$0xf]
  %v667 = vld [vmem:[%s651 + $0x3c] sm:$0xf]
  %s668 = scalar_lea.vmem %s1, 128
  %v669 = vld [vmem:[%s668] sm:$0xf]
  %v670 = vld [vmem:[%s668 + $0x4] sm:$0xf]
  %v671 = vld [vmem:[%s668 + $0x8] sm:$0xf]
  %v672 = vld [vmem:[%s668 + $0xc] sm:$0xf]
  %v673 = vld [vmem:[%s668 + $0x10] sm:$0xf]
  %v674 = vld [vmem:[%s668 + $0x14] sm:$0xf]
  %v675 = vld [vmem:[%s668 + $0x18] sm:$0xf]
  %v676 = vld [vmem:[%s668 + $0x1c] sm:$0xf]
  %v677 = vld [vmem:[%s668 + $0x20] sm:$0xf]
  %v678 = vld [vmem:[%s668 + $0x24] sm:$0xf]
  %v679 = vld [vmem:[%s668 + $0x28] sm:$0xf]
  %v680 = vld [vmem:[%s668 + $0x2c] sm:$0xf]
  %v681 = vld [vmem:[%s668 + $0x30] sm:$0xf]
  %v682 = vld [vmem:[%s668 + $0x34] sm:$0xf]
  %v683 = vld [vmem:[%s668 + $0x38] sm:$0xf]
  %v684 = vld [vmem:[%s668 + $0x3c] sm:$0xf]
  %v701 = vunpack.c.l.b16 %v652
  %v702 = vunpack.c.l.b16 %v653
  %v703 = vunpack.c.l.b16 %v654
  %v704 = vunpack.c.l.b16 %v655
  %v705 = vunpack.c.l.b16 %v656
  %v706 = vunpack.c.l.b16 %v657
  %v707 = vunpack.c.l.b16 %v658
  %v708 = vunpack.c.l.b16 %v659
  %v709 = vunpack.c.l.b16 %v660
  %v710 = vunpack.c.l.b16 %v661
  %v711 = vunpack.c.l.b16 %v662
  %v712 = vunpack.c.l.b16 %v663
  %v713 = vunpack.c.l.b16 %v664
  %v714 = vunpack.c.l.b16 %v665
  %v715 = vunpack.c.l.b16 %v666
  %v716 = vunpack.c.l.b16 %v667
  %v717 = vpack.c.b16 %v702, %v701
  %v718 = vpack.c.b16 %v704, %v703
  %v719 = vpack.c.b16 %v706, %v705
  %v720 = vpack.c.b16 %v708, %v707
  %v721 = vpack.c.b16 %v710, %v709
  %v722 = vpack.c.b16 %v712, %v711
  %v723 = vpack.c.b16 %v714, %v713
  %v724 = vpack.c.b16 %v716, %v715
  %v749 = vunpack.c.l.b16 %v669
  %v750 = vunpack.c.l.b16 %v670
  %v751 = vunpack.c.l.b16 %v671
  %v752 = vunpack.c.l.b16 %v672
  %v753 = vunpack.c.l.b16 %v673
  %v754 = vunpack.c.l.b16 %v674
  %v755 = vunpack.c.l.b16 %v675
  %v756 = vunpack.c.l.b16 %v676
  %v757 = vunpack.c.l.b16 %v677
  %v758 = vunpack.c.l.b16 %v678
  %v759 = vunpack.c.l.b16 %v679
  %v760 = vunpack.c.l.b16 %v680
  %v761 = vunpack.c.l.b16 %v681
  %v762 = vunpack.c.l.b16 %v682
  %v763 = vunpack.c.l.b16 %v683
  %v764 = vunpack.c.l.b16 %v684
  %v765 = vpack.c.b16 %v750, %v749
  %v766 = vpack.c.b16 %v752, %v751
  %v767 = vpack.c.b16 %v754, %v753
  %v768 = vpack.c.b16 %v756, %v755
  %v769 = vpack.c.b16 %v758, %v757
  %v770 = vpack.c.b16 %v760, %v759
  %v771 = vpack.c.b16 %v762, %v761
  %v772 = vpack.c.b16 %v764, %v763
  %781 = vmatprep.subr.bf16.mxu0 0
  %782 = vmatpush1.bf16.msra.mxu0 %v765
  %783 = vmatprep.subr.bf16.mxu0 0
  %784 = vmatpush1.bf16.msra.mxu0 %v766
  %785 = vmatprep.subr.bf16.mxu0 0
  %786 = vmatpush1.bf16.msra.mxu0 %v767
  %787 = vmatprep.subr.bf16.mxu0 0
  %788 = vmatpush1.bf16.msra.mxu0 %v768
  %789 = vmatprep.subr.bf16.mxu0 0
  %790 = vmatpush1.bf16.msra.mxu0 %v769
  %791 = vmatprep.subr.bf16.mxu0 0
  %792 = vmatpush1.bf16.msra.mxu0 %v770
  %793 = vmatprep.subr.bf16.mxu0 0
  %794 = vmatpush1.bf16.msra.mxu0 %v771
  %795 = vmatprep.subr.bf16.mxu0 0
  %796 = vmatpush1.bf16.msra.mxu0 %v772
  %797 = vmatprep.subr.bf16.mxu0 0
  %798 = vmatpush1.bf16.msra.mxu0 0
  %799 = vmatprep.subr.bf16.mxu0 0
  %800 = vmatpush1.bf16.msra.mxu0 0
  %801 = vmatprep.subr.bf16.mxu0 0
  %802 = vmatpush1.bf16.msra.mxu0 0
  %803 = vmatprep.subr.bf16.mxu0 0
  %804 = vmatpush1.bf16.msra.mxu0 0
  %805 = vmatprep.subr.bf16.mxu0 0
  %806 = vmatpush1.bf16.msra.mxu0 0
  %807 = vmatprep.subr.bf16.mxu0 0
  %808 = vmatpush1.bf16.msra.mxu0 0
  %809 = vmatprep.subr.bf16.mxu0 0
  %810 = vmatpush1.bf16.msra.mxu0 0
  %811 = vmatprep.subr.bf16.mxu0 0
  %812 = vmatpush1.bf16.msra.mxu0 0
  %813 = vmatprep.mubr.bf16.mxu0 0
  %814 = vmatmul.mubr.bf16.gmra.mrb[0].mxu0 %v717
  %v815 = vpop.f32.mrb[0].mxu0
  %v816 = vadd.f32 0.0, %v815
  %v817 = vpop.f32.mrb[0].mxu0
  %v818 = vpop.f32.mrb[0].mxu0
  %v819 = vadd.f32 0.0, %v818
  %v820 = vpop.f32.mrb[0].mxu0
  %821 = vmatprep.mubr.bf16.mxu0 0
  %822 = vmatmul.mubr.bf16.gmra.mrb[0].mxu0 %v718
  %v823 = vpop.f32.mrb[0].mxu0
  %v824 = vadd.f32 0.0, %v823
  %v825 = vpop.f32.mrb[0].mxu0
  %v826 = vpop.f32.mrb[0].mxu0
  %v827 = vadd.f32 0.0, %v826
  %v828 = vpop.f32.mrb[0].mxu0
  %829 = vmatprep.mubr.bf16.mxu0 0
  %830 = vmatmul.mubr.bf16.gmra.mrb[0].mxu0 %v719
  %v831 = vpop.f32.mrb[0].mxu0
  %v832 = vadd.f32 0.0, %v831
  %v833 = vpop.f32.mrb[0].mxu0
  %v834 = vpop.f32.mrb[0].mxu0
  %v835 = vadd.f32 0.0, %v834
  %v836 = vpop.f32.mrb[0].mxu0
  %837 = vmatprep.mubr.bf16.mxu0 0
  %838 = vmatmul.mubr.bf16.gmra.mrb[0].mxu0 %v720
  %v839 = vpop.f32.mrb[0].mxu0
  %v840 = vadd.f32 0.0, %v839
  %v841 = vpop.f32.mrb[0].mxu0
  %v842 = vpop.f32.mrb[0].mxu0
  %v843 = vadd.f32 0.0, %v842
  %v844 = vpop.f32.mrb[0].mxu0
  %845 = vmatprep.mubr.bf16.mxu0 0
  %846 = vmatmul.mubr.bf16.gmra.mrb[0].mxu0 %v721
  %v847 = vpop.f32.mrb[0].mxu0
  %v848 = vadd.f32 0.0, %v847
  %v849 = vpop.f32.mrb[0].mxu0
  %v850 = vpop.f32.mrb[0].mxu0
  %v851 = vadd.f32 0.0, %v850
  %v852 = vpop.f32.mrb[0].mxu0
  %853 = vmatprep.mubr.bf16.mxu0 0
  %854 = vmatmul.mubr.bf16.gmra.mrb[0].mxu0 %v722
  %v855 = vpop.f32.mrb[0].mxu0
  %v856 = vadd.f32 0.0, %v855
  %v857 = vpop.f32.mrb[0].mxu0
  %v858 = vpop.f32.mrb[0].mxu0
  %v859 = vadd.f32 0.0, %v858
  %v860 = vpop.f32.mrb[0].mxu0
  %861 = vmatprep.mubr.bf16.mxu0 0
  %862 = vmatmul.mubr.bf16.gmra.mrb[0].mxu0 %v723
  %v863 = vpop.f32.mrb[0].mxu0
  %v864 = vadd.f32 0.0, %v863
  %v865 = vpop.f32.mrb[0].mxu0
  %v866 = vpop.f32.mrb[0].mxu0
  %v867 = vadd.f32 0.0, %v866
  %v868 = vpop.f32.mrb[0].mxu0
  %869 = vmatprep.mubr.bf16.mxu0 0
  %870 = vmatmul.mubr.bf16.gmra.mrb[0].mxu0 %v724
  %v871 = vpop.f32.mrb[0].mxu0
  %v872 = vadd.f32 0.0, %v871
  %v873 = vpop.f32.mrb[0].mxu0
  %v874 = vpop.f32.mrb[0].mxu0
  %v875 = vadd.f32 0.0, %v874
  %v876 = vpop.f32.mrb[0].mxu0
  %877 = vdwg.mxu0
  %v878 = vadd.f32 %v635, %v816
  %v879 = vadd.f32 %v636, %v819
  %v880 = vadd.f32 %v637, %v824
  %v881 = vadd.f32 %v638, %v827
  %v882 = vadd.f32 %v639, %v832
  %v883 = vadd.f32 %v640, %v835
  %v884 = vadd.f32 %v641, %v840
  %v885 = vadd.f32 %v642, %v843
  %v886 = vadd.f32 %v643, %v848
  %v887 = vadd.f32 %v644, %v851
  %v888 = vadd.f32 %v645, %v856
  %v889 = vadd.f32 %v646, %v859
  %v890 = vadd.f32 %v647, %v864
  %v891 = vadd.f32 %v648, %v867
  %v892 = vadd.f32 %v649, %v872
  %v893 = vadd.f32 %v650, %v875
  %894 = vst.msk [vmem:[%s634] sm:$0xff] %vm341, %v878
  %895 = vst.msk [vmem:[%s634 + $0x8] sm:$0xff] %vm341, %v879
  %896 = vst.msk [vmem:[%s634 + $0x10] sm:$0xff] %vm341, %v880
  %897 = vst.msk [vmem:[%s634 + $0x18] sm:$0xff] %vm341, %v881
  %898 = vst.msk [vmem:[%s634 + $0x20] sm:$0xff] %vm341, %v882
  %899 = vst.msk [vmem:[%s634 + $0x28] sm:$0xff] %vm341, %v883
  %900 = vst.msk [vmem:[%s634 + $0x30] sm:$0xff] %vm341, %v884
  %901 = vst.msk [vmem:[%s634 + $0x38] sm:$0xff] %vm341, %v885
  %902 = vst.msk [vmem:[%s634 + $0x40] sm:$0xff] %vm341, %v886
  %903 = vst.msk [vmem:[%s634 + $0x48] sm:$0xff] %vm341, %v887
  %904 = vst.msk [vmem:[%s634 + $0x50] sm:$0xff] %vm341, %v888
  %905 = vst.msk [vmem:[%s634 + $0x58] sm:$0xff] %vm341, %v889
  %906 = vst.msk [vmem:[%s634 + $0x60] sm:$0xff] %vm341, %v890
  %907 = vst.msk [vmem:[%s634 + $0x68] sm:$0xff] %vm341, %v891
  %908 = vst.msk [vmem:[%s634 + $0x70] sm:$0xff] %vm341, %v892
  %909 = vst.msk [vmem:[%s634 + $0x78] sm:$0xff] %vm341, %v893
  %s910 = scalar_lea.vmem [#allocation2], 384
  %v911 = vld [vmem:[%s910] sm:$0xff]
  %v912 = vld [vmem:[%s910 + $0x8] sm:$0xff]
  %v913 = vld [vmem:[%s910 + $0x10] sm:$0xff]
  %v914 = vld [vmem:[%s910 + $0x18] sm:$0xff]
  %v915 = vld [vmem:[%s910 + $0x20] sm:$0xff]
  %v916 = vld [vmem:[%s910 + $0x28] sm:$0xff]
  %v917 = vld [vmem:[%s910 + $0x30] sm:$0xff]
  %v918 = vld [vmem:[%s910 + $0x38] sm:$0xff]
  %v919 = vld [vmem:[%s910 + $0x40] sm:$0xff]
  %v920 = vld [vmem:[%s910 + $0x48] sm:$0xff]
  %v921 = vld [vmem:[%s910 + $0x50] sm:$0xff]
  %v922 = vld [vmem:[%s910 + $0x58] sm:$0xff]
  %v923 = vld [vmem:[%s910 + $0x60] sm:$0xff]
  %v924 = vld [vmem:[%s910 + $0x68] sm:$0xff]
  %v925 = vld [vmem:[%s910 + $0x70] sm:$0xff]
  %v926 = vld [vmem:[%s910 + $0x78] sm:$0xff]
  %s927 = scalar_lea.vmem %s0, 192
  %v928 = vld [vmem:[%s927] sm:$0xf]
  %v929 = vld [vmem:[%s927 + $0x4] sm:$0xf]
  %v930 = vld [vmem:[%s927 + $0x8] sm:$0xf]
  %v931 = vld [vmem:[%s927 + $0xc] sm:$0xf]
  %v932 = vld [vmem:[%s927 + $0x10] sm:$0xf]
  %v933 = vld [vmem:[%s927 + $0x14] sm:$0xf]
  %v934 = vld [vmem:[%s927 + $0x18] sm:$0xf]
  %v935 = vld [vmem:[%s927 + $0x1c] sm:$0xf]
  %v936 = vld [vmem:[%s927 + $0x20] sm:$0xf]
  %v937 = vld [vmem:[%s927 + $0x24] sm:$0xf]
  %v938 = vld [vmem:[%s927 + $0x28] sm:$0xf]
  %v939 = vld [vmem:[%s927 + $0x2c] sm:$0xf]
  %v940 = vld [vmem:[%s927 + $0x30] sm:$0xf]
  %v941 = vld [vmem:[%s927 + $0x34] sm:$0xf]
  %v942 = vld [vmem:[%s927 + $0x38] sm:$0xf]
  %v943 = vld [vmem:[%s927 + $0x3c] sm:$0xf]
  %s944 = scalar_lea.vmem %s1, 192
  %v945 = vld [vmem:[%s944] sm:$0xf]
  %v946 = vld [vmem:[%s944 + $0x4] sm:$0xf]
  %v947 = vld [vmem:[%s944 + $0x8] sm:$0xf]
  %v948 = vld [vmem:[%s944 + $0xc] sm:$0xf]
  %v949 = vld [vmem:[%s944 + $0x10] sm:$0xf]
  %v950 = vld [vmem:[%s944 + $0x14] sm:$0xf]
  %v951 = vld [vmem:[%s944 + $0x18] sm:$0xf]
  %v952 = vld [vmem:[%s944 + $0x1c] sm:$0xf]
  %v953 = vld [vmem:[%s944 + $0x20] sm:$0xf]
  %v954 = vld [vmem:[%s944 + $0x24] sm:$0xf]
  %v955 = vld [vmem:[%s944 + $0x28] sm:$0xf]
  %v956 = vld [vmem:[%s944 + $0x2c] sm:$0xf]
  %v957 = vld [vmem:[%s944 + $0x30] sm:$0xf]
  %v958 = vld [vmem:[%s944 + $0x34] sm:$0xf]
  %v959 = vld [vmem:[%s944 + $0x38] sm:$0xf]
  %v960 = vld [vmem:[%s944 + $0x3c] sm:$0xf]
  %v977 = vunpack.c.l.b16 %v928
  %v978 = vunpack.c.l.b16 %v929
  %v979 = vunpack.c.l.b16 %v930
  %v980 = vunpack.c.l.b16 %v931
  %v981 = vunpack.c.l.b16 %v932
  %v982 = vunpack.c.l.b16 %v933
  %v983 = vunpack.c.l.b16 %v934
  %v984 = vunpack.c.l.b16 %v935
  %v985 = vunpack.c.l.b16 %v936
  %v986 = vunpack.c.l.b16 %v937
  %v987 = vunpack.c.l.b16 %v938
  %v988 = vunpack.c.l.b16 %v939
  %v989 = vunpack.c.l.b16 %v940
  %v990 = vunpack.c.l.b16 %v941
  %v991 = vunpack.c.l.b16 %v942
  %v992 = vunpack.c.l.b16 %v943
  %v993 = vpack.c.b16 %v978, %v977
  %v994 = vpack.c.b16 %v980, %v979
  %v995 = vpack.c.b16 %v982, %v981
  %v996 = vpack.c.b16 %v984, %v983
  %v997 = vpack.c.b16 %v986, %v985
  %v998 = vpack.c.b16 %v988, %v987
  %v999 = vpack.c.b16 %v990, %v989
  %v1000 = vpack.c.b16 %v992, %v991
  %v1025 = vunpack.c.l.b16 %v945
  %v1026 = vunpack.c.l.b16 %v946
  %v1027 = vunpack.c.l.b16 %v947
  %v1028 = vunpack.c.l.b16 %v948
  %v1029 = vunpack.c.l.b16 %v949
  %v1030 = vunpack.c.l.b16 %v950
  %v1031 = vunpack.c.l.b16 %v951
  %v1032 = vunpack.c.l.b16 %v952
  %v1033 = vunpack.c.l.b16 %v953
  %v1034 = vunpack.c.l.b16 %v954
  %v1035 = vunpack.c.l.b16 %v955
  %v1036 = vunpack.c.l.b16 %v956
  %v1037 = vunpack.c.l.b16 %v957
  %v1038 = vunpack.c.l.b16 %v958
  %v1039 = vunpack.c.l.b16 %v959
  %v1040 = vunpack.c.l.b16 %v960
  %v1041 = vpack.c.b16 %v1026, %v1025
  %v1042 = vpack.c.b16 %v1028, %v1027
  %v1043 = vpack.c.b16 %v1030, %v1029
  %v1044 = vpack.c.b16 %v1032, %v1031
  %v1045 = vpack.c.b16 %v1034, %v1033
  %v1046 = vpack.c.b16 %v1036, %v1035
  %v1047 = vpack.c.b16 %v1038, %v1037
  %v1048 = vpack.c.b16 %v1040, %v1039
  %1057 = vmatprep.subr.bf16.mxu0 0
  %1058 = vmatpush1.bf16.msra.mxu0 %v1041
  %1059 = vmatprep.subr.bf16.mxu0 0
  %1060 = vmatpush1.bf16.msra.mxu0 %v1042
  %1061 = vmatprep.subr.bf16.mxu0 0
  %1062 = vmatpush1.bf16.msra.mxu0 %v1043
  %1063 = vmatprep.subr.bf16.mxu0 0
  %1064 = vmatpush1.bf16.msra.mxu0 %v1044
  %1065 = vmatprep.subr.bf16.mxu0 0
  %1066 = vmatpush1.bf16.msra.mxu0 %v1045
  %1067 = vmatprep.subr.bf16.mxu0 0
  %1068 = vmatpush1.bf16.msra.mxu0 %v1046
  %1069 = vmatprep.subr.bf16.mxu0 0
  %1070 = vmatpush1.bf16.msra.mxu0 %v1047
  %1071 = vmatprep.subr.bf16.mxu0 0
  %1072 = vmatpush1.bf16.msra.mxu0 %v1048
  %1073 = vmatprep.subr.bf16.mxu0 0
  %1074 = vmatpush1.bf16.msra.mxu0 0
  %1075 = vmatprep.subr.bf16.mxu0 0
  %1076 = vmatpush1.bf16.msra.mxu0 0
  %1077 = vmatprep.subr.bf16.mxu0 0
  %1078 = vmatpush1.bf16.msra.mxu0 0
  %1079 = vmatprep.subr.bf16.mxu0 0
  %1080 = vmatpush1.bf16.msra.mxu0 0
  %1081 = vmatprep.subr.bf16.mxu0 0
  %1082 = vmatpush1.bf16.msra.mxu0 0
  %1083 = vmatprep.subr.bf16.mxu0 0
  %1084 = vmatpush1.bf16.msra.mxu0 0
  %1085 = vmatprep.subr.bf16.mxu0 0
  %1086 = vmatpush1.bf16.msra.mxu0 0
  %1087 = vmatprep.subr.bf16.mxu0 0
  %1088 = vmatpush1.bf16.msra.mxu0 0
  %1089 = vmatprep.mubr.bf16.mxu0 0
  %1090 = vmatmul.mubr.bf16.gmra.mrb[0].mxu0 %v993
  %v1091 = vpop.f32.mrb[0].mxu0
  %v1092 = vadd.f32 0.0, %v1091
  %v1093 = vpop.f32.mrb[0].mxu0
  %v1094 = vpop.f32.mrb[0].mxu0
  %v1095 = vadd.f32 0.0, %v1094
  %v1096 = vpop.f32.mrb[0].mxu0
  %1097 = vmatprep.mubr.bf16.mxu0 0
  %1098 = vmatmul.mubr.bf16.gmra.mrb[0].mxu0 %v994
  %v1099 = vpop.f32.mrb[0].mxu0
  %v1100 = vadd.f32 0.0, %v1099
  %v1101 = vpop.f32.mrb[0].mxu0
  %v1102 = vpop.f32.mrb[0].mxu0
  %v1103 = vadd.f32 0.0, %v1102
  %v1104 = vpop.f32.mrb[0].mxu0
  %1105 = vmatprep.mubr.bf16.mxu0 0
  %1106 = vmatmul.mubr.bf16.gmra.mrb[0].mxu0 %v995
  %v1107 = vpop.f32.mrb[0].mxu0
  %v1108 = vadd.f32 0.0, %v1107
  %v1109 = vpop.f32.mrb[0].mxu0
  %v1110 = vpop.f32.mrb[0].mxu0
  %v1111 = vadd.f32 0.0, %v1110
  %v1112 = vpop.f32.mrb[0].mxu0
  %1113 = vmatprep.mubr.bf16.mxu0 0
  %1114 = vmatmul.mubr.bf16.gmra.mrb[0].mxu0 %v996
  %v1115 = vpop.f32.mrb[0].mxu0
  %v1116 = vadd.f32 0.0, %v1115
  %v1117 = vpop.f32.mrb[0].mxu0
  %v1118 = vpop.f32.mrb[0].mxu0
  %v1119 = vadd.f32 0.0, %v1118
  %v1120 = vpop.f32.mrb[0].mxu0
  %1121 = vmatprep.mubr.bf16.mxu0 0
  %1122 = vmatmul.mubr.bf16.gmra.mrb[0].mxu0 %v997
  %v1123 = vpop.f32.mrb[0].mxu0
  %v1124 = vadd.f32 0.0, %v1123
  %v1125 = vpop.f32.mrb[0].mxu0
  %v1126 = vpop.f32.mrb[0].mxu0
  %v1127 = vadd.f32 0.0, %v1126
  %v1128 = vpop.f32.mrb[0].mxu0
  %1129 = vmatprep.mubr.bf16.mxu0 0
  %1130 = vmatmul.mubr.bf16.gmra.mrb[0].mxu0 %v998
  %v1131 = vpop.f32.mrb[0].mxu0
  %v1132 = vadd.f32 0.0, %v1131
  %v1133 = vpop.f32.mrb[0].mxu0
  %v1134 = vpop.f32.mrb[0].mxu0
  %v1135 = vadd.f32 0.0, %v1134
  %v1136 = vpop.f32.mrb[0].mxu0
  %1137 = vmatprep.mubr.bf16.mxu0 0
  %1138 = vmatmul.mubr.bf16.gmra.mrb[0].mxu0 %v999
  %v1139 = vpop.f32.mrb[0].mxu0
  %v1140 = vadd.f32 0.0, %v1139
  %v1141 = vpop.f32.mrb[0].mxu0
  %v1142 = vpop.f32.mrb[0].mxu0
  %v1143 = vadd.f32 0.0, %v1142
  %v1144 = vpop.f32.mrb[0].mxu0
  %1145 = vmatprep.mubr.bf16.mxu0 0
  %1146 = vmatmul.mubr.bf16.gmra.mrb[0].mxu0 %v1000
  %v1147 = vpop.f32.mrb[0].mxu0
  %v1148 = vadd.f32 0.0, %v1147
  %v1149 = vpop.f32.mrb[0].mxu0
  %v1150 = vpop.f32.mrb[0].mxu0
  %v1151 = vadd.f32 0.0, %v1150
  %v1152 = vpop.f32.mrb[0].mxu0
  %1153 = vdwg.mxu0
  %v1154 = vadd.f32 %v911, %v1092
  %v1155 = vadd.f32 %v912, %v1095
  %v1156 = vadd.f32 %v913, %v1100
  %v1157 = vadd.f32 %v914, %v1103
  %v1158 = vadd.f32 %v915, %v1108
  %v1159 = vadd.f32 %v916, %v1111
  %v1160 = vadd.f32 %v917, %v1116
  %v1161 = vadd.f32 %v918, %v1119
  %v1162 = vadd.f32 %v919, %v1124
  %v1163 = vadd.f32 %v920, %v1127
  %v1164 = vadd.f32 %v921, %v1132
  %v1165 = vadd.f32 %v922, %v1135
  %v1166 = vadd.f32 %v923, %v1140
  %v1167 = vadd.f32 %v924, %v1143
  %v1168 = vadd.f32 %v925, %v1148
  %v1169 = vadd.f32 %v926, %v1151
  %1170 = vst.msk [vmem:[%s910] sm:$0xff] %vm341, %v1154
  %1171 = vst.msk [vmem:[%s910 + $0x8] sm:$0xff] %vm341, %v1155
  %1172 = vst.msk [vmem:[%s910 + $0x10] sm:$0xff] %vm341, %v1156
  %1173 = vst.msk [vmem:[%s910 + $0x18] sm:$0xff] %vm341, %v1157
  %1174 = vst.msk [vmem:[%s910 + $0x20] sm:$0xff] %vm341, %v1158
  %1175 = vst.msk [vmem:[%s910 + $0x28] sm:$0xff] %vm341, %v1159
  %1176 = vst.msk [vmem:[%s910 + $0x30] sm:$0xff] %vm341, %v1160
  %1177 = vst.msk [vmem:[%s910 + $0x38] sm:$0xff] %vm341, %v1161
  %1178 = vst.msk [vmem:[%s910 + $0x40] sm:$0xff] %vm341, %v1162
  %1179 = vst.msk [vmem:[%s910 + $0x48] sm:$0xff] %vm341, %v1163
  %1180 = vst.msk [vmem:[%s910 + $0x50] sm:$0xff] %vm341, %v1164
  %1181 = vst.msk [vmem:[%s910 + $0x58] sm:$0xff] %vm341, %v1165
  %1182 = vst.msk [vmem:[%s910 + $0x60] sm:$0xff] %vm341, %v1166
  %1183 = vst.msk [vmem:[%s910 + $0x68] sm:$0xff] %vm341, %v1167
  %1184 = vst.msk [vmem:[%s910 + $0x70] sm:$0xff] %vm341, %v1168
  %1185 = vst.msk [vmem:[%s910 + $0x78] sm:$0xff] %vm341, %v1169
  // Predicated region
  $region18: #{fwd.19} parent=0 // pred_check
    %p1186 = pneg %p15
  $region19: #{fwd.19} parent=0 // pred_check_branch
    %1188 = sbr.rel (%p1186) target = $region21
  $region20: #{fwd.19} parent=0 // pred_region
    %v1189 = vld [vmem:[#allocation2] sm:$0xff]
    %v1190 = vld [vmem:[#allocation2 + $0x8] sm:$0xff]
    %v1191 = vld [vmem:[#allocation2 + $0x10] sm:$0xff]
    %v1192 = vld [vmem:[#allocation2 + $0x18] sm:$0xff]
    %v1193 = vld [vmem:[#allocation2 + $0x20] sm:$0xff]
    %v1194 = vld [vmem:[#allocation2 + $0x28] sm:$0xff]
    %v1195 = vld [vmem:[#allocation2 + $0x30] sm:$0xff]
    %v1196 = vld [vmem:[#allocation2 + $0x38] sm:$0xff]
    %v1197 = vld [vmem:[#allocation2 + $0x40] sm:$0xff]
    %v1198 = vld [vmem:[#allocation2 + $0x48] sm:$0xff]
    %v1199 = vld [vmem:[#allocation2 + $0x50] sm:$0xff]
    %v1200 = vld [vmem:[#allocation2 + $0x58] sm:$0xff]
    %v1201 = vld [vmem:[#allocation2 + $0x60] sm:$0xff]
    %v1202 = vld [vmem:[#allocation2 + $0x68] sm:$0xff]
    %v1203 = vld [vmem:[#allocation2 + $0x70] sm:$0xff]
    %v1204 = vld [vmem:[#allocation2 + $0x78] sm:$0xff]
    %v1205 = vld [vmem:[#allocation2 + $0x80] sm:$0xff]
    %v1206 = vld [vmem:[#allocation2 + $0x88] sm:$0xff]
    %v1207 = vld [vmem:[#allocation2 + $0x90] sm:$0xff]
    %v1208 = vld [vmem:[#allocation2 + $0x98] sm:$0xff]
    %v1209 = vld [vmem:[#allocation2 + $0xa0] sm:$0xff]
    %v1210 = vld [vmem:[#allocation2 + $0xa8] sm:$0xff]
    %v1211 = vld [vmem:[#allocation2 + $0xb0] sm:$0xff]
    %v1212 = vld [vmem:[#allocation2 + $0xb8] sm:$0xff]
    %v1213 = vld [vmem:[#allocation2 + $0xc0] sm:$0xff]
    %v1214 = vld [vmem:[#allocation2 + $0xc8] sm:$0xff]
    %v1215 = vld [vmem:[#allocation2 + $0xd0] sm:$0xff]
    %v1216 = vld [vmem:[#allocation2 + $0xd8] sm:$0xff]
    %v1217 = vld [vmem:[#allocation2 + $0xe0] sm:$0xff]
    %v1218 = vld [vmem:[#allocation2 + $0xe8] sm:$0xff]
    %v1219 = vld [vmem:[#allocation2 + $0xf0] sm:$0xff]
    %v1220 = vld [vmem:[#allocation2 + $0xf8] sm:$0xff]
    %v1221 = vld [vmem:[#allocation2 + $0x100] sm:$0xff]
    %v1222 = vld [vmem:[#allocation2 + $0x108] sm:$0xff]
    %v1223 = vld [vmem:[#allocation2 + $0x110] sm:$0xff]
    %v1224 = vld [vmem:[#allocation2 + $0x118] sm:$0xff]
    %v1225 = vld [vmem:[#allocation2 + $0x120] sm:$0xff]
    %v1226 = vld [vmem:[#allocation2 + $0x128] sm:$0xff]
    %v1227 = vld [vmem:[#allocation2 + $0x130] sm:$0xff]
    %v1228 = vld [vmem:[#allocation2 + $0x138] sm:$0xff]
    %v1229 = vld [vmem:[#allocation2 + $0x140] sm:$0xff]
    %v1230 = vld [vmem:[#allocation2 + $0x148] sm:$0xff]
    %v1231 = vld [vmem:[#allocation2 + $0x150] sm:$0xff]
    %v1232 = vld [vmem:[#allocation2 + $0x158] sm:$0xff]
    %v1233 = vld [vmem:[#allocation2 + $0x160] sm:$0xff]
    %v1234 = vld [vmem:[#allocation2 + $0x168] sm:$0xff]
    %v1235 = vld [vmem:[#allocation2 + $0x170] sm:$0xff]
    %v1236 = vld [vmem:[#allocation2 + $0x178] sm:$0xff]
    %v1237 = vld [vmem:[#allocation2 + $0x180] sm:$0xff]
    %v1238 = vld [vmem:[#allocation2 + $0x188] sm:$0xff]
    %v1239 = vld [vmem:[#allocation2 + $0x190] sm:$0xff]
    %v1240 = vld [vmem:[#allocation2 + $0x198] sm:$0xff]
    %v1241 = vld [vmem:[#allocation2 + $0x1a0] sm:$0xff]
    %v1242 = vld [vmem:[#allocation2 + $0x1a8] sm:$0xff]
    %v1243 = vld [vmem:[#allocation2 + $0x1b0] sm:$0xff]
    %v1244 = vld [vmem:[#allocation2 + $0x1b8] sm:$0xff]
    %v1245 = vld [vmem:[#allocation2 + $0x1c0] sm:$0xff]
    %v1246 = vld [vmem:[#allocation2 + $0x1c8] sm:$0xff]
    %v1247 = vld [vmem:[#allocation2 + $0x1d0] sm:$0xff]
    %v1248 = vld [vmem:[#allocation2 + $0x1d8] sm:$0xff]
    %v1249 = vld [vmem:[#allocation2 + $0x1e0] sm:$0xff]
    %v1250 = vld [vmem:[#allocation2 + $0x1e8] sm:$0xff]
    %v1251 = vld [vmem:[#allocation2 + $0x1f0] sm:$0xff]
    %v1252 = vld [vmem:[#allocation2 + $0x1f8] sm:$0xff]
    %v1253 = vld [vmem:[%s2] sm:$0x1]
    %v1255 = vlaneseq
    %v1256 = vshrl.u32 %v1255, 7
    %v1257 = vsub.s32 0, %v1256
    %v1258 = vrot.slane %v1253, %v1257
    %v1260 = vadd.f32 %v1189, %v1258
    %v1261 = vadd.f32 %v1190, %v1258
    %v1262 = vadd.f32 %v1191, %v1258
    %v1263 = vadd.f32 %v1192, %v1258
    %v1264 = vadd.f32 %v1193, %v1258
    %v1265 = vadd.f32 %v1194, %v1258
    %v1266 = vadd.f32 %v1195, %v1258
    %v1267 = vadd.f32 %v1196, %v1258
    %v1268 = vadd.f32 %v1197, %v1258
    %v1269 = vadd.f32 %v1198, %v1258
    %v1270 = vadd.f32 %v1199, %v1258
    %v1271 = vadd.f32 %v1200, %v1258
    %v1272 = vadd.f32 %v1201, %v1258
    %v1273 = vadd.f32 %v1202, %v1258
    %v1274 = vadd.f32 %v1203, %v1258
    %v1275 = vadd.f32 %v1204, %v1258
    %v1276 = vadd.f32 %v1205, %v1258
    %v1277 = vadd.f32 %v1206, %v1258
    %v1278 = vadd.f32 %v1207, %v1258
    %v1279 = vadd.f32 %v1208, %v1258
    %v1280 = vadd.f32 %v1209, %v1258
    %v1281 = vadd.f32 %v1210, %v1258
    %v1282 = vadd.f32 %v1211, %v1258
    %v1283 = vadd.f32 %v1212, %v1258
    %v1284 = vadd.f32 %v1213, %v1258
    %v1285 = vadd.f32 %v1214, %v1258
    %v1286 = vadd.f32 %v1215, %v1258
    %v1287 = vadd.f32 %v1216, %v1258
    %v1288 = vadd.f32 %v1217, %v1258
    %v1289 = vadd.f32 %v1218, %v1258
    %v1290 = vadd.f32 %v1219, %v1258
    %v1291 = vadd.f32 %v1220, %v1258
    %v1292 = vadd.f32 %v1221, %v1258
    %v1293 = vadd.f32 %v1222, %v1258
    %v1294 = vadd.f32 %v1223, %v1258
    %v1295 = vadd.f32 %v1224, %v1258
    %v1296 = vadd.f32 %v1225, %v1258
    %v1297 = vadd.f32 %v1226, %v1258
    %v1298 = vadd.f32 %v1227, %v1258
    %v1299 = vadd.f32 %v1228, %v1258
    %v1300 = vadd.f32 %v1229, %v1258
    %v1301 = vadd.f32 %v1230, %v1258
    %v1302 = vadd.f32 %v1231, %v1258
    %v1303 = vadd.f32 %v1232, %v1258
    %v1304 = vadd.f32 %v1233, %v1258
    %v1305 = vadd.f32 %v1234, %v1258
    %v1306 = vadd.f32 %v1235, %v1258
    %v1307 = vadd.f32 %v1236, %v1258
    %v1308 = vadd.f32 %v1237, %v1258
    %v1309 = vadd.f32 %v1238, %v1258
    %v1310 = vadd.f32 %v1239, %v1258
    %v1311 = vadd.f32 %v1240, %v1258
    %v1312 = vadd.f32 %v1241, %v1258
    %v1313 = vadd.f32 %v1242, %v1258
    %v1314 = vadd.f32 %v1243, %v1258
    %v1315 = vadd.f32 %v1244, %v1258
    %v1316 = vadd.f32 %v1245, %v1258
    %v1317 = vadd.f32 %v1246, %v1258
    %v1318 = vadd.f32 %v1247, %v1258
    %v1319 = vadd.f32 %v1248, %v1258
    %v1320 = vadd.f32 %v1249, %v1258
    %v1321 = vadd.f32 %v1250, %v1258
    %v1322 = vadd.f32 %v1251, %v1258
    %v1323 = vadd.f32 %v1252, %v1258
    %v1324 = vxor.u32 %v1260, 2147483648
    %v1325 = vxor.u32 %v1261, 2147483648
    %v1326 = vxor.u32 %v1262, 2147483648
    %v1327 = vxor.u32 %v1263, 2147483648
    %v1328 = vxor.u32 %v1264, 2147483648
    %v1329 = vxor.u32 %v1265, 2147483648
    %v1330 = vxor.u32 %v1266, 2147483648
    %v1331 = vxor.u32 %v1267, 2147483648
    %v1332 = vxor.u32 %v1268, 2147483648
    %v1333 = vxor.u32 %v1269, 2147483648
    %v1334 = vxor.u32 %v1270, 2147483648
    %v1335 = vxor.u32 %v1271, 2147483648
    %v1336 = vxor.u32 %v1272, 2147483648
    %v1337 = vxor.u32 %v1273, 2147483648
    %v1338 = vxor.u32 %v1274, 2147483648
    %v1339 = vxor.u32 %v1275, 2147483648
    %v1340 = vxor.u32 %v1276, 2147483648
    %v1341 = vxor.u32 %v1277, 2147483648
    %v1342 = vxor.u32 %v1278, 2147483648
    %v1343 = vxor.u32 %v1279, 2147483648
    %v1344 = vxor.u32 %v1280, 2147483648
    %v1345 = vxor.u32 %v1281, 2147483648
    %v1346 = vxor.u32 %v1282, 2147483648
    %v1347 = vxor.u32 %v1283, 2147483648
    %v1348 = vxor.u32 %v1284, 2147483648
    %v1349 = vxor.u32 %v1285, 2147483648
    %v1350 = vxor.u32 %v1286, 2147483648
    %v1351 = vxor.u32 %v1287, 2147483648
    %v1352 = vxor.u32 %v1288, 2147483648
    %v1353 = vxor.u32 %v1289, 2147483648
    %v1354 = vxor.u32 %v1290, 2147483648
    %v1355 = vxor.u32 %v1291, 2147483648
    %v1356 = vxor.u32 %v1292, 2147483648
    %v1357 = vxor.u32 %v1293, 2147483648
    %v1358 = vxor.u32 %v1294, 2147483648
    %v1359 = vxor.u32 %v1295, 2147483648
    %v1360 = vxor.u32 %v1296, 2147483648
    %v1361 = vxor.u32 %v1297, 2147483648
    %v1362 = vxor.u32 %v1298, 2147483648
    %v1363 = vxor.u32 %v1299, 2147483648
    %v1364 = vxor.u32 %v1300, 2147483648
    %v1365 = vxor.u32 %v1301, 2147483648
    %v1366 = vxor.u32 %v1302, 2147483648
    %v1367 = vxor.u32 %v1303, 2147483648
    %v1368 = vxor.u32 %v1304, 2147483648
    %v1369 = vxor.u32 %v1305, 2147483648
    %v1370 = vxor.u32 %v1306, 2147483648
    %v1371 = vxor.u32 %v1307, 2147483648
    %v1372 = vxor.u32 %v1308, 2147483648
    %v1373 = vxor.u32 %v1309, 2147483648
    %v1374 = vxor.u32 %v1310, 2147483648
    %v1375 = vxor.u32 %v1311, 2147483648
    %v1376 = vxor.u32 %v1312, 2147483648
    %v1377 = vxor.u32 %v1313, 2147483648
    %v1378 = vxor.u32 %v1314, 2147483648
    %v1379 = vxor.u32 %v1315, 2147483648
    %v1380 = vxor.u32 %v1316, 2147483648
    %v1381 = vxor.u32 %v1317, 2147483648
    %v1382 = vxor.u32 %v1318, 2147483648
    %v1383 = vxor.u32 %v1319, 2147483648
    %v1384 = vxor.u32 %v1320, 2147483648
    %v1385 = vxor.u32 %v1321, 2147483648
    %v1386 = vxor.u32 %v1322, 2147483648
    %v1387 = vxor.u32 %v1323, 2147483648
    %v1388 = vmul.f32 %v1324, 1.442695
    %v1389 = vpow.pop %v1388
    %v1390 = vmul.f32 %v1325, 1.442695
    %v1391 = vpow.pop %v1390
    %v1392 = vmul.f32 %v1326, 1.442695
    %v1393 = vpow.pop %v1392
    %v1394 = vmul.f32 %v1327, 1.442695
    %v1395 = vpow.pop %v1394
    %v1396 = vmul.f32 %v1328, 1.442695
    %v1397 = vpow.pop %v1396
    %v1398 = vmul.f32 %v1329, 1.442695
    %v1399 = vpow.pop %v1398
    %v1400 = vmul.f32 %v1330, 1.442695
    %v1401 = vpow.pop %v1400
    %v1402 = vmul.f32 %v1331, 1.442695
    %v1403 = vpow.pop %v1402
    %v1404 = vmul.f32 %v1332, 1.442695
    %v1405 = vpow.pop %v1404
    %v1406 = vmul.f32 %v1333, 1.442695
    %v1407 = vpow.pop %v1406
    %v1408 = vmul.f32 %v1334, 1.442695
    %v1409 = vpow.pop %v1408
    %v1410 = vmul.f32 %v1335, 1.442695
    %v1411 = vpow.pop %v1410
    %v1412 = vmul.f32 %v1336, 1.442695
    %v1413 = vpow.pop %v1412
    %v1414 = vmul.f32 %v1337, 1.442695
    %v1415 = vpow.pop %v1414
    %v1416 = vmul.f32 %v1338, 1.442695
    %v1417 = vpow.pop %v1416
    %v1418 = vmul.f32 %v1339, 1.442695
    %v1419 = vpow.pop %v1418
    %v1420 = vmul.f32 %v1340, 1.442695
    %v1421 = vpow.pop %v1420
    %v1422 = vmul.f32 %v1341, 1.442695
    %v1423 = vpow.pop %v1422
    %v1424 = vmul.f32 %v1342, 1.442695
    %v1425 = vpow.pop %v1424
    %v1426 = vmul.f32 %v1343, 1.442695
    %v1427 = vpow.pop %v1426
    %v1428 = vmul.f32 %v1344, 1.442695
    %v1429 = vpow.pop %v1428
    %v1430 = vmul.f32 %v1345, 1.442695
    %v1431 = vpow.pop %v1430
    %v1432 = vmul.f32 %v1346, 1.442695
    %v1433 = vpow.pop %v1432
    %v1434 = vmul.f32 %v1347, 1.442695
    %v1435 = vpow.pop %v1434
    %v1436 = vmul.f32 %v1348, 1.442695
    %v1437 = vpow.pop %v1436
    %v1438 = vmul.f32 %v1349, 1.442695
    %v1439 = vpow.pop %v1438
    %v1440 = vmul.f32 %v1350, 1.442695
    %v1441 = vpow.pop %v1440
    %v1442 = vmul.f32 %v1351, 1.442695
    %v1443 = vpow.pop %v1442
    %v1444 = vmul.f32 %v1352, 1.442695
    %v1445 = vpow.pop %v1444
    %v1446 = vmul.f32 %v1353, 1.442695
    %v1447 = vpow.pop %v1446
    %v1448 = vmul.f32 %v1354, 1.442695
    %v1449 = vpow.pop %v1448
    %v1450 = vmul.f32 %v1355, 1.442695
    %v1451 = vpow.pop %v1450
    %v1452 = vmul.f32 %v1356, 1.442695
    %v1453 = vpow.pop %v1452
    %v1454 = vmul.f32 %v1357, 1.442695
    %v1455 = vpow.pop %v1454
    %v1456 = vmul.f32 %v1358, 1.442695
    %v1457 = vpow.pop %v1456
    %v1458 = vmul.f32 %v1359, 1.442695
    %v1459 = vpow.pop %v1458
    %v1460 = vmul.f32 %v1360, 1.442695
    %v1461 = vpow.pop %v1460
    %v1462 = vmul.f32 %v1361, 1.442695
    %v1463 = vpow.pop %v1462
    %v1464 = vmul.f32 %v1362, 1.442695
    %v1465 = vpow.pop %v1464
    %v1466 = vmul.f32 %v1363, 1.442695
    %v1467 = vpow.pop %v1466
    %v1468 = vmul.f32 %v1364, 1.442695
    %v1469 = vpow.pop %v1468
    %v1470 = vmul.f32 %v1365, 1.442695
    %v1471 = vpow.pop %v1470
    %v1472 = vmul.f32 %v1366, 1.442695
    %v1473 = vpow.pop %v1472
    %v1474 = vmul.f32 %v1367, 1.442695
    %v1475 = vpow.pop %v1474
    %v1476 = vmul.f32 %v1368, 1.442695
    %v1477 = vpow.pop %v1476
    %v1478 = vmul.f32 %v1369, 1.442695
    %v1479 = vpow.pop %v1478
    %v1480 = vmul.f32 %v1370, 1.442695
    %v1481 = vpow.pop %v1480
    %v1482 = vmul.f32 %v1371, 1.442695
    %v1483 = vpow.pop %v1482
    %v1484 = vmul.f32 %v1372, 1.442695
    %v1485 = vpow.pop %v1484
    %v1486 = vmul.f32 %v1373, 1.442695
    %v1487 = vpow.pop %v1486
    %v1488 = vmul.f32 %v1374, 1.442695
    %v1489 = vpow.pop %v1488
    %v1490 = vmul.f32 %v1375, 1.442695
    %v1491 = vpow.pop %v1490
    %v1492 = vmul.f32 %v1376, 1.442695
    %v1493 = vpow.pop %v1492
    %v1494 = vmul.f32 %v1377, 1.442695
    %v1495 = vpow.pop %v1494
    %v1496 = vmul.f32 %v1378, 1.442695
    %v1497 = vpow.pop %v1496
    %v1498 = vmul.f32 %v1379, 1.442695
    %v1499 = vpow.pop %v1498
    %v1500 = vmul.f32 %v1380, 1.442695
    %v1501 = vpow.pop %v1500
    %v1502 = vmul.f32 %v1381, 1.442695
    %v1503 = vpow.pop %v1502
    %v1504 = vmul.f32 %v1382, 1.442695
    %v1505 = vpow.pop %v1504
    %v1506 = vmul.f32 %v1383, 1.442695
    %v1507 = vpow.pop %v1506
    %v1508 = vmul.f32 %v1384, 1.442695
    %v1509 = vpow.pop %v1508
    %v1510 = vmul.f32 %v1385, 1.442695
    %v1511 = vpow.pop %v1510
    %v1512 = vmul.f32 %v1386, 1.442695
    %v1513 = vpow.pop %v1512
    %v1514 = vmul.f32 %v1387, 1.442695
    %v1515 = vpow.pop %v1514
    %v1516 = vadd.f32 %v1389, 1.0
    %v1517 = vadd.f32 %v1391, 1.0
    %v1518 = vadd.f32 %v1393, 1.0
    %v1519 = vadd.f32 %v1395, 1.0
    %v1520 = vadd.f32 %v1397, 1.0
    %v1521 = vadd.f32 %v1399, 1.0
    %v1522 = vadd.f32 %v1401, 1.0
    %v1523 = vadd.f32 %v1403, 1.0
    %v1524 = vadd.f32 %v1405, 1.0
    %v1525 = vadd.f32 %v1407, 1.0
    %v1526 = vadd.f32 %v1409, 1.0
    %v1527 = vadd.f32 %v1411, 1.0
    %v1528 = vadd.f32 %v1413, 1.0
    %v1529 = vadd.f32 %v1415, 1.0
    %v1530 = vadd.f32 %v1417, 1.0
    %v1531 = vadd.f32 %v1419, 1.0
    %v1532 = vadd.f32 %v1421, 1.0
    %v1533 = vadd.f32 %v1423, 1.0
    %v1534 = vadd.f32 %v1425, 1.0
    %v1535 = vadd.f32 %v1427, 1.0
    %v1536 = vadd.f32 %v1429, 1.0
    %v1537 = vadd.f32 %v1431, 1.0
    %v1538 = vadd.f32 %v1433, 1.0
    %v1539 = vadd.f32 %v1435, 1.0
    %v1540 = vadd.f32 %v1437, 1.0
    %v1541 = vadd.f32 %v1439, 1.0
    %v1542 = vadd.f32 %v1441, 1.0
    %v1543 = vadd.f32 %v1443, 1.0
    %v1544 = vadd.f32 %v1445, 1.0
    %v1545 = vadd.f32 %v1447, 1.0
    %v1546 = vadd.f32 %v1449, 1.0
    %v1547 = vadd.f32 %v1451, 1.0
    %v1548 = vadd.f32 %v1453, 1.0
    %v1549 = vadd.f32 %v1455, 1.0
    %v1550 = vadd.f32 %v1457, 1.0
    %v1551 = vadd.f32 %v1459, 1.0
    %v1552 = vadd.f32 %v1461, 1.0
    %v1553 = vadd.f32 %v1463, 1.0
    %v1554 = vadd.f32 %v1465, 1.0
    %v1555 = vadd.f32 %v1467, 1.0
    %v1556 = vadd.f32 %v1469, 1.0
    %v1557 = vadd.f32 %v1471, 1.0
    %v1558 = vadd.f32 %v1473, 1.0
    %v1559 = vadd.f32 %v1475, 1.0
    %v1560 = vadd.f32 %v1477, 1.0
    %v1561 = vadd.f32 %v1479, 1.0
    %v1562 = vadd.f32 %v1481, 1.0
    %v1563 = vadd.f32 %v1483, 1.0
    %v1564 = vadd.f32 %v1485, 1.0
    %v1565 = vadd.f32 %v1487, 1.0
    %v1566 = vadd.f32 %v1489, 1.0
    %v1567 = vadd.f32 %v1491, 1.0
    %v1568 = vadd.f32 %v1493, 1.0
    %v1569 = vadd.f32 %v1495, 1.0
    %v1570 = vadd.f32 %v1497, 1.0
    %v1571 = vadd.f32 %v1499, 1.0
    %v1572 = vadd.f32 %v1501, 1.0
    %v1573 = vadd.f32 %v1503, 1.0
    %v1574 = vadd.f32 %v1505, 1.0
    %v1575 = vadd.f32 %v1507, 1.0
    %v1576 = vadd.f32 %v1509, 1.0
    %v1577 = vadd.f32 %v1511, 1.0
    %v1578 = vadd.f32 %v1513, 1.0
    %v1579 = vadd.f32 %v1515, 1.0
    %v1580 = vrcp.pop %v1516
    %v1581 = vmul.f32 1.0, %v1580
    %v1582 = vrcp.pop %v1517
    %v1583 = vmul.f32 1.0, %v1582
    %v1584 = vrcp.pop %v1518
    %v1585 = vmul.f32 1.0, %v1584
    %v1586 = vrcp.pop %v1519
    %v1587 = vmul.f32 1.0, %v1586
    %v1588 = vrcp.pop %v1520
    %v1589 = vmul.f32 1.0, %v1588
    %v1590 = vrcp.pop %v1521
    %v1591 = vmul.f32 1.0, %v1590
    %v1592 = vrcp.pop %v1522
    %v1593 = vmul.f32 1.0, %v1592
    %v1594 = vrcp.pop %v1523
    %v1595 = vmul.f32 1.0, %v1594
    %v1596 = vrcp.pop %v1524
    %v1597 = vmul.f32 1.0, %v1596
    %v1598 = vrcp.pop %v1525
    %v1599 = vmul.f32 1.0, %v1598
    %v1600 = vrcp.pop %v1526
    %v1601 = vmul.f32 1.0, %v1600
    %v1602 = vrcp.pop %v1527
    %v1603 = vmul.f32 1.0, %v1602
    %v1604 = vrcp.pop %v1528
    %v1605 = vmul.f32 1.0, %v1604
    %v1606 = vrcp.pop %v1529
    %v1607 = vmul.f32 1.0, %v1606
    %v1608 = vrcp.pop %v1530
    %v1609 = vmul.f32 1.0, %v1608
    %v1610 = vrcp.pop %v1531
    %v1611 = vmul.f32 1.0, %v1610
    %v1612 = vrcp.pop %v1532
    %v1613 = vmul.f32 1.0, %v1612
    %v1614 = vrcp.pop %v1533
    %v1615 = vmul.f32 1.0, %v1614
    %v1616 = vrcp.pop %v1534
    %v1617 = vmul.f32 1.0, %v1616
    %v1618 = vrcp.pop %v1535
    %v1619 = vmul.f32 1.0, %v1618
    %v1620 = vrcp.pop %v1536
    %v1621 = vmul.f32 1.0, %v1620
    %v1622 = vrcp.pop %v1537
    %v1623 = vmul.f32 1.0, %v1622
    %v1624 = vrcp.pop %v1538
    %v1625 = vmul.f32 1.0, %v1624
    %v1626 = vrcp.pop %v1539
    %v1627 = vmul.f32 1.0, %v1626
    %v1628 = vrcp.pop %v1540
    %v1629 = vmul.f32 1.0, %v1628
    %v1630 = vrcp.pop %v1541
    %v1631 = vmul.f32 1.0, %v1630
    %v1632 = vrcp.pop %v1542
    %v1633 = vmul.f32 1.0, %v1632
    %v1634 = vrcp.pop %v1543
    %v1635 = vmul.f32 1.0, %v1634
    %v1636 = vrcp.pop %v1544
    %v1637 = vmul.f32 1.0, %v1636
    %v1638 = vrcp.pop %v1545
    %v1639 = vmul.f32 1.0, %v1638
    %v1640 = vrcp.pop %v1546
    %v1641 = vmul.f32 1.0, %v1640
    %v1642 = vrcp.pop %v1547
    %v1643 = vmul.f32 1.0, %v1642
    %v1644 = vrcp.pop %v1548
    %v1645 = vmul.f32 1.0, %v1644
    %v1646 = vrcp.pop %v1549
    %v1647 = vmul.f32 1.0, %v1646
    %v1648 = vrcp.pop %v1550
    %v1649 = vmul.f32 1.0, %v1648
    %v1650 = vrcp.pop %v1551
    %v1651 = vmul.f32 1.0, %v1650
    %v1652 = vrcp.pop %v1552
    %v1653 = vmul.f32 1.0, %v1652
    %v1654 = vrcp.pop %v1553
    %v1655 = vmul.f32 1.0, %v1654
    %v1656 = vrcp.pop %v1554
    %v1657 = vmul.f32 1.0, %v1656
    %v1658 = vrcp.pop %v1555
    %v1659 = vmul.f32 1.0, %v1658
    %v1660 = vrcp.pop %v1556
    %v1661 = vmul.f32 1.0, %v1660
    %v1662 = vrcp.pop %v1557
    %v1663 = vmul.f32 1.0, %v1662
    %v1664 = vrcp.pop %v1558
    %v1665 = vmul.f32 1.0, %v1664
    %v1666 = vrcp.pop %v1559
    %v1667 = vmul.f32 1.0, %v1666
    %v1668 = vrcp.pop %v1560
    %v1669 = vmul.f32 1.0, %v1668
    %v1670 = vrcp.pop %v1561
    %v1671 = vmul.f32 1.0, %v1670
    %v1672 = vrcp.pop %v1562
    %v1673 = vmul.f32 1.0, %v1672
    %v1674 = vrcp.pop %v1563
    %v1675 = vmul.f32 1.0, %v1674
    %v1676 = vrcp.pop %v1564
    %v1677 = vmul.f32 1.0, %v1676
    %v1678 = vrcp.pop %v1565
    %v1679 = vmul.f32 1.0, %v1678
    %v1680 = vrcp.pop %v1566
    %v1681 = vmul.f32 1.0, %v1680
    %v1682 = vrcp.pop %v1567
    %v1683 = vmul.f32 1.0, %v1682
    %v1684 = vrcp.pop %v1568
    %v1685 = vmul.f32 1.0, %v1684
    %v1686 = vrcp.pop %v1569
    %v1687 = vmul.f32 1.0, %v1686
    %v1688 = vrcp.pop %v1570
    %v1689 = vmul.f32 1.0, %v1688
    %v1690 = vrcp.pop %v1571
    %v1691 = vmul.f32 1.0, %v1690
    %v1692 = vrcp.pop %v1572
    %v1693 = vmul.f32 1.0, %v1692
    %v1694 = vrcp.pop %v1573
    %v1695 = vmul.f32 1.0, %v1694
    %v1696 = vrcp.pop %v1574
    %v1697 = vmul.f32 1.0, %v1696
    %v1698 = vrcp.pop %v1575
    %v1699 = vmul.f32 1.0, %v1698
    %v1700 = vrcp.pop %v1576
    %v1701 = vmul.f32 1.0, %v1700
    %v1702 = vrcp.pop %v1577
    %v1703 = vmul.f32 1.0, %v1702
    %v1704 = vrcp.pop %v1578
    %v1705 = vmul.f32 1.0, %v1704
    %v1706 = vrcp.pop %v1579
    %v1707 = vmul.f32 1.0, %v1706
    %1708 = vst.msk [vmem:[%s3] sm:$0xff] %vm341, %v1581
    %1709 = vst.msk [vmem:[%s3 + $0x8] sm:$0xff] %vm341, %v1583
    %1710 = vst.msk [vmem:[%s3 + $0x10] sm:$0xff] %vm341, %v1585
    %1711 = vst.msk [vmem:[%s3 + $0x18] sm:$0xff] %vm341, %v1587
    %1712 = vst.msk [vmem:[%s3 + $0x20] sm:$0xff] %vm341, %v1589
    %1713 = vst.msk [vmem:[%s3 + $0x28] sm:$0xff] %vm341, %v1591
    %1714 = vst.msk [vmem:[%s3 + $0x30] sm:$0xff] %vm341, %v1593
    %1715 = vst.msk [vmem:[%s3 + $0x38] sm:$0xff] %vm341, %v1595
    %1716 = vst.msk [vmem:[%s3 + $0x40] sm:$0xff] %vm341, %v1597
    %1717 = vst.msk [vmem:[%s3 + $0x48] sm:$0xff] %vm341, %v1599
    %1718 = vst.msk [vmem:[%s3 + $0x50] sm:$0xff] %vm341, %v1601
    %1719 = vst.msk [vmem:[%s3 + $0x58] sm:$0xff] %vm341, %v1603
    %1720 = vst.msk [vmem:[%s3 + $0x60] sm:$0xff] %vm341, %v1605
    %1721 = vst.msk [vmem:[%s3 + $0x68] sm:$0xff] %vm341, %v1607
    %1722 = vst.msk [vmem:[%s3 + $0x70] sm:$0xff] %vm341, %v1609
    %1723 = vst.msk [vmem:[%s3 + $0x78] sm:$0xff] %vm341, %v1611
    %1724 = vst.msk [vmem:[%s3 + $0x80] sm:$0xff] %vm341, %v1613
    %1725 = vst.msk [vmem:[%s3 + $0x88] sm:$0xff] %vm341, %v1615
    %1726 = vst.msk [vmem:[%s3 + $0x90] sm:$0xff] %vm341, %v1617
    %1727 = vst.msk [vmem:[%s3 + $0x98] sm:$0xff] %vm341, %v1619
    %1728 = vst.msk [vmem:[%s3 + $0xa0] sm:$0xff] %vm341, %v1621
    %1729 = vst.msk [vmem:[%s3 + $0xa8] sm:$0xff] %vm341, %v1623
    %1730 = vst.msk [vmem:[%s3 + $0xb0] sm:$0xff] %vm341, %v1625
    %1731 = vst.msk [vmem:[%s3 + $0xb8] sm:$0xff] %vm341, %v1627
    %1732 = vst.msk [vmem:[%s3 + $0xc0] sm:$0xff] %vm341, %v1629
    %1733 = vst.msk [vmem:[%s3 + $0xc8] sm:$0xff] %vm341, %v1631
    %1734 = vst.msk [vmem:[%s3 + $0xd0] sm:$0xff] %vm341, %v1633
    %1735 = vst.msk [vmem:[%s3 + $0xd8] sm:$0xff] %vm341, %v1635
    %1736 = vst.msk [vmem:[%s3 + $0xe0] sm:$0xff] %vm341, %v1637
    %1737 = vst.msk [vmem:[%s3 + $0xe8] sm:$0xff] %vm341, %v1639
    %1738 = vst.msk [vmem:[%s3 + $0xf0] sm:$0xff] %vm341, %v1641
    %1739 = vst.msk [vmem:[%s3 + $0xf8] sm:$0xff] %vm341, %v1643
    %1740 = vst.msk [vmem:[%s3 + $0x100] sm:$0xff] %vm341, %v1645
    %1741 = vst.msk [vmem:[%s3 + $0x108] sm:$0xff] %vm341, %v1647
    %1742 = vst.msk [vmem:[%s3 + $0x110] sm:$0xff] %vm341, %v1649
    %1743 = vst.msk [vmem:[%s3 + $0x118] sm:$0xff] %vm341, %v1651
    %1744 = vst.msk [vmem:[%s3 + $0x120] sm:$0xff] %vm341, %v1653
    %1745 = vst.msk [vmem:[%s3 + $0x128] sm:$0xff] %vm341, %v1655
    %1746 = vst.msk [vmem:[%s3 + $0x130] sm:$0xff] %vm341, %v1657
    %1747 = vst.msk [vmem:[%s3 + $0x138] sm:$0xff] %vm341, %v1659
    %1748 = vst.msk [vmem:[%s3 + $0x140] sm:$0xff] %vm341, %v1661
    %1749 = vst.msk [vmem:[%s3 + $0x148] sm:$0xff] %vm341, %v1663
    %1750 = vst.msk [vmem:[%s3 + $0x150] sm:$0xff] %vm341, %v1665
    %1751 = vst.msk [vmem:[%s3 + $0x158] sm:$0xff] %vm341, %v1667
    %1752 = vst.msk [vmem:[%s3 + $0x160] sm:$0xff] %vm341, %v1669
    %1753 = vst.msk [vmem:[%s3 + $0x168] sm:$0xff] %vm341, %v1671
    %1754 = vst.msk [vmem:[%s3 + $0x170] sm:$0xff] %vm341, %v1673
    %1755 = vst.msk [vmem:[%s3 + $0x178] sm:$0xff] %vm341, %v1675
    %1756 = vst.msk [vmem:[%s3 + $0x180] sm:$0xff] %vm341, %v1677
    %1757 = vst.msk [vmem:[%s3 + $0x188] sm:$0xff] %vm341, %v1679
    %1758 = vst.msk [vmem:[%s3 + $0x190] sm:$0xff] %vm341, %v1681
    %1759 = vst.msk [vmem:[%s3 + $0x198] sm:$0xff] %vm341, %v1683
    %1760 = vst.msk [vmem:[%s3 + $0x1a0] sm:$0xff] %vm341, %v1685
    %1761 = vst.msk [vmem:[%s3 + $0x1a8] sm:$0xff] %vm341, %v1687
    %1762 = vst.msk [vmem:[%s3 + $0x1b0] sm:$0xff] %vm341, %v1689
    %1763 = vst.msk [vmem:[%s3 + $0x1b8] sm:$0xff] %vm341, %v1691
    %1764 = vst.msk [vmem:[%s3 + $0x1c0] sm:$0xff] %vm341, %v1693
    %1765 = vst.msk [vmem:[%s3 + $0x1c8] sm:$0xff] %vm341, %v1695
    %1766 = vst.msk [vmem:[%s3 + $0x1d0] sm:$0xff] %vm341, %v1697
    %1767 = vst.msk [vmem:[%s3 + $0x1d8] sm:$0xff] %vm341, %v1699
    %1768 = vst.msk [vmem:[%s3 + $0x1e0] sm:$0xff] %vm341, %v1701
    %1769 = vst.msk [vmem:[%s3 + $0x1e8] sm:$0xff] %vm341, %v1703
    %1770 = vst.msk [vmem:[%s3 + $0x1f0] sm:$0xff] %vm341, %v1705
    %1771 = vst.msk [vmem:[%s3 + $0x1f8] sm:$0xff] %vm341, %v1707
  $region21: #{fwd.19} parent=0 // pred_fallthru
    _
  // Predicated region
  $region22: #{fwd.19} parent=0 // pred_check
    _
  $region23: #{fwd.19} parent=0 // pred_check_branch
    %1773 = sbr.rel (0) target = $region25
  $region24: #{fwd.19} parent=0 // pred_region
    _
  $region25: #{fwd.19} parent=0 // pred_fallthru
    _
  // Predicated region
  $region26: #{fwd.19} parent=0 // pred_check
    _
  $region27: #{fwd.19} parent=0 // pred_check_branch
    %1775 = sbr.rel (0) target = $region29
  $region28: #{fwd.19} parent=0 // pred_region
    _
  $region29: #{fwd.19} parent=0 // pred_fallthru
    _

</llo_original>
